<compile_context>
chip_gen: v5e
topology: v5e:2x2
jax: 0.10.0
libtpu: 0.0.40
codegen_flags: <defaults>
</compile_context>

<pallas_src>
import jax
import jax.numpy as jnp
from jax.experimental import pallas as pl
from jax.experimental.pallas import tpu as pltpu

# ----------------------------------------------------------------------------
# Static network geometry (LeNet on 3x32x32 CIFAR images).
# ----------------------------------------------------------------------------
H = W = 32
C_IN, C1, C2 = 3, 6, 16
K = 5
PATCH1 = K * K * C_IN          # 75  conv1 receptive field (folded onto lanes)
OH1 = OW1 = H - K + 1          # 28  conv1 output
PH1 = PW1 = OH1 // 2           # 14  pool1 output
OH2 = OW2 = PH1 - K + 1        # 10  conv2 output
PH2 = PW2 = OH2 // 2           # 5   pool2 output
N_FC1, N_FC2, N_FC3 = 120, 84, 10

# Flat-row ("dilated") coordinates: the value for spatial position (h, w) sits
# at row h*W + w of a [rows, channels] slab.  Pooling never compacts; valid
# values stay at strided rows, and the next stage uses dilated offsets.
S1H, S1W = W, 1                                  # conv1 output strides (32, 1)
M1 = (OH1 - 1) * S1H + (OW1 - 1) * S1W + 1       # 892 rows (incl. garbage cols)
P1A = M1 - S1W                                   # 891 after max over w-pairs
P1 = P1A - S1H                                   # 859 after max over h-pairs
S2H, S2W = 2 * S1H, 2 * S1W                      # pool1 output strides (64, 2)
M2 = (OH2 - 1) * S2H + (OW2 - 1) * S2W + 1       # 595
P2A = M2 - S2W                                   # 593
P2 = P2A - S2H                                   # 529
S3H, S3W = 2 * S2H, 2 * S2W                      # pool2 output strides (128, 4)


# ----------------------------------------------------------------------------
# Fused whole-network kernel (one image per grid step).
# ----------------------------------------------------------------------------
def _lenet_kernel(x_ref, w1_ref, b1_ref, w2_ref, b2_ref,
                  wf1_ref, bf1_ref, wf2_ref, bf2_ref, wf3_ref, bf3_ref,
                  out_ref):
    # ---- conv1 (5x5 valid): receptive field pre-folded onto lanes -----------
    # x_ref is [H*W, 75]; one MXU dot produces all conv1 outputs.
    acc1 = jnp.dot(x_ref[pl.ds(0, M1), :], w1_ref[...],
                   preferred_element_type=jnp.float32)
    y1 = jnp.maximum(acc1 + b1_ref[...], 0.0)      # valid rows: 32*oh + ow

    # ---- maxpool1 2x2/2: max over row offsets {0, 1, 32, 33} ----------------
    m = jnp.maximum(y1[:P1A, :], y1[S1W:S1W + P1A, :])
    p1 = jnp.maximum(m[:P1, :], m[S1H:S1H + P1, :])   # valid rows: 64*ph + 2*pw

    # ---- conv2 (5x5 valid) on the dilated pool1 grid: 25 shifted matmuls ----
    acc2 = jnp.zeros((M2, C2), jnp.float32)
    for t in range(K * K):
        kh, kw = divmod(t, K)
        off = kh * S2H + kw * S2W
        acc2 = acc2 + jnp.dot(p1[off:off + M2, :], w2_ref[t],
                              preferred_element_type=jnp.float32)
    y2 = jnp.maximum(acc2 + b2_ref[...], 0.0)      # valid rows: 64*qh + 2*qw

    # ---- maxpool2: max over row offsets {0, 2, 64, 66} ----------------------
    m = jnp.maximum(y2[:P2A, :], y2[S2W:S2W + P2A, :])
    p2 = jnp.maximum(m[:P2, :], m[S2H:S2H + P2, :])   # valid rows: 128*th + 4*tw

    # ---- fc1 (torch NCHW flatten folded into prepacked weights) + ReLU ------
    h = bf1_ref[...]                                   # [1, 120]
    for t in range(PH2 * PW2):
        th, tw = divmod(t, PW2)
        r = th * S3H + tw * S3W
        h = h + jnp.dot(p2[r:r + 1, :], wf1_ref[t],
                        preferred_element_type=jnp.float32)
    h = jnp.maximum(h, 0.0)

    # ---- fc2 + ReLU, fc3 -----------------------------------------------------
    h = jnp.maximum(
        jnp.dot(h, wf2_ref[...], preferred_element_type=jnp.float32)
        + bf2_ref[...], 0.0)
    out_ref[...] = (jnp.dot(h, wf3_ref[...], preferred_element_type=jnp.float32)
                    + bf3_ref[...])


# ----------------------------------------------------------------------------
# Host-side prepacking (one-time / fused by XLA) and the pallas_call wrapper.
# ----------------------------------------------------------------------------
def _prepack(p):
    # conv1: full receptive-field fold -> [75, 6] with lane index (kh*5+kw)*3+c.
    w1 = jnp.transpose(p["w_conv1"], (2, 3, 1, 0)).reshape(PATCH1, C1)
    # conv2 taps: [25, C1, C2] with tap index t = kh*5 + kw.
    w2 = jnp.transpose(p["w_conv2"], (2, 3, 1, 0)).reshape(K * K, C1, C2)
    # fc1: fold torch's NCHW flatten (index g*25 + th*5 + tw) into the weight.
    wf1 = p["w_fc1"].T.reshape(C2, PH2, PW2, N_FC1)          # [g, th, tw, j]
    wf1 = jnp.transpose(wf1, (1, 2, 0, 3)).reshape(PH2 * PW2, C2, N_FC1)
    return dict(
        w1=w1, b1=p["b_conv1"].reshape(1, C1),
        w2=w2, b2=p["b_conv2"].reshape(1, C2),
        wf1=wf1, bf1=p["b_fc1"].reshape(1, N_FC1),
        wf2=p["w_fc2"].T, bf2=p["b_fc2"].reshape(1, N_FC2),
        wf3=p["w_fc3"].T, bf3=p["b_fc3"].reshape(1, N_FC3),
    )


def _pack_input(x_nchw):
    """NCHW -> flat-spatial rows with the 5x5x3 conv1 patch folded onto lanes.

    out[b, h*W + w, (kh*5+kw)*3 + c] = x[b, c, h+kh, w+kw]   (0 outside image)
    Only rows 32*oh+ow with oh,ow < 28 are consumed by the kernel, and for
    those every packed entry is in-bounds, so the zero padding never leaks.
    """
    B = x_nchw.shape[0]
    x = jnp.transpose(x_nchw, (0, 2, 3, 1)).astype(jnp.float32)   # [B,32,32,3]
    xp = jnp.pad(x, ((0, 0), (0, K - 1), (0, K - 1), (0, 0)))     # [B,36,36,3]
    taps = [xp[:, kh:kh + H, kw:kw + W, :]
            for kh in range(K) for kw in range(K)]
    xk = jnp.stack(taps, axis=3)                                  # [B,32,32,25,3]
    return xk.reshape(B, H * W, PATCH1)                           # [B,1024,75]


def net_forward(x_nchw, params):
    B = x_nchw.shape[0]
    pk = _prepack(params)
    x = _pack_input(x_nchw)

    def wspec(shape):
        return pl.BlockSpec(shape, lambda i, _s=shape: (0,) * len(_s))

    out = pl.pallas_call(
        _lenet_kernel,
        out_shape=jax.ShapeDtypeStruct((B, 1, N_FC3), jnp.float32),
        grid=(B,),
        in_specs=[
            pl.BlockSpec((None, H * W, PATCH1), lambda i: (i, 0, 0)),
            wspec((PATCH1, C1)), wspec((1, C1)),
            wspec((K * K, C1, C2)), wspec((1, C2)),
            wspec((PH2 * PW2, C2, N_FC1)), wspec((1, N_FC1)),
            wspec((N_FC1, N_FC2)), wspec((1, N_FC2)),
            wspec((N_FC2, N_FC3)), wspec((1, N_FC3)),
        ],
        out_specs=pl.BlockSpec((None, 1, N_FC3), lambda i: (i, 0, 0)),
        compiler_params=pltpu.CompilerParams(
            dimension_semantics=("parallel",)),
    )(x, pk["w1"], pk["b1"], pk["w2"], pk["b2"],
      pk["wf1"], pk["bf1"], pk["wf2"], pk["bf2"], pk["wf3"], pk["bf3"])
    return out.reshape(B, N_FC3)


# ----------------------------------------------------------------------------
# Pure-JAX reference (mirrors the PyTorch module) and parameter init.
# ----------------------------------------------------------------------------
def _im2col_nhwc(x, k):
    B, h, w, c = x.shape
    oh, ow = h - k + 1, w - k + 1
    cols = []
    for ci in range(c):
        for kh in range(k):
            for kw in range(k):
                cols.append(x[:, kh:kh + oh, kw:kw + ow, ci])
    patches = jnp.stack(cols, axis=-1)
    return patches.reshape(B * oh * ow, c * k * k), oh, ow


def net_forward_ref(x_nchw, p):
    B = x_nchw.shape[0]
    x = jnp.transpose(x_nchw, (0, 2, 3, 1)).astype(jnp.float32)

    def conv_relu(xin, wt, b, cout):
        patches, oh, ow = _im2col_nhwc(xin, K)
        y = jnp.maximum(patches @ wt.reshape(cout, -1).T + b, 0.0)
        return y.reshape(B, oh, ow, cout)

    def pool(y):
        return jnp.maximum(
            jnp.maximum(y[:, 0::2, 0::2, :], y[:, 0::2, 1::2, :]),
            jnp.maximum(y[:, 1::2, 0::2, :], y[:, 1::2, 1::2, :]),
        )

    p1 = pool(conv_relu(x, p["w_conv1"], p["b_conv1"], C1))
    p2 = pool(conv_relu(p1, p["w_conv2"], p["b_conv2"], C2))
    flat = jnp.transpose(p2, (0, 3, 1, 2)).reshape(B, -1)
    h = jnp.maximum(flat @ p["w_fc1"].T + p["b_fc1"], 0.0)
    h = jnp.maximum(h @ p["w_fc2"].T + p["b_fc2"], 0.0)
    return h @ p["w_fc3"].T + p["b_fc3"]


def init_params(key):
    def uni(k, shape, fan_in):
        bound = 1.0 / (fan_in ** 0.5)
        return jax.random.uniform(k, shape, jnp.float32, -bound, bound)

    ks = jax.random.split(key, 10)
    return dict(
        w_conv1=uni(ks[0], (C1, C_IN, K, K), C_IN * K * K),
        b_conv1=uni(ks[1], (C1,), C_IN * K * K),
        w_conv2=uni(ks[2], (C2, C1, K, K), C1 * K * K),
        b_conv2=uni(ks[3], (C2,), C1 * K * K),
        w_fc1=uni(ks[4], (N_FC1, C2 * PH2 * PW2), C2 * PH2 * PW2),
        b_fc1=uni(ks[5], (N_FC1,), C2 * PH2 * PW2),
        w_fc2=uni(ks[6], (N_FC2, N_FC1), N_FC1),
        b_fc2=uni(ks[7], (N_FC2,), N_FC1),
        w_fc3=uni(ks[8], (N_FC3, N_FC2), N_FC2),
        b_fc3=uni(ks[9], (N_FC3,), N_FC2),
    )


if __name__ == "__main__":
    key = jax.random.PRNGKey(0)
    k_x, k_p = jax.random.split(key)
    # CIFAR-sized input: the 16*5*5 flatten in fc1 forces 3x32x32 images.
    x = jax.random.normal(k_x, (2, 3, 32, 32), dtype=jnp.float32)
    params = init_params(k_p)

    out = net_forward(x, params)
    out = jax.block_until_ready(out)
    assert out.shape == (2, N_FC3), out.shape

    ref = net_forward_ref(x, params)
    assert jnp.allclose(out, ref, atol=1e-4, rtol=1e-4), (
        "Pallas output mismatch vs JAX reference"
    )
    print("KERNEL_OK")
</pallas_src>

<mosaic_0001>
module attributes {stable_mosaic.version = 11 : i64} {
  func.func @_lenet_kernel(%arg0: i32, %arg1: memref<1x1024x75xf32, #tpu.memory_space<vmem>>, %arg2: memref<75x6xf32, #tpu.memory_space<vmem>>, %arg3: memref<1x6xf32, #tpu.memory_space<vmem>>, %arg4: memref<25x6x16xf32, #tpu.memory_space<vmem>>, %arg5: memref<1x16xf32, #tpu.memory_space<vmem>>, %arg6: memref<25x16x120xf32, #tpu.memory_space<vmem>>, %arg7: memref<1x120xf32, #tpu.memory_space<vmem>>, %arg8: memref<120x84xf32, #tpu.memory_space<vmem>>, %arg9: memref<1x84xf32, #tpu.memory_space<vmem>>, %arg10: memref<84x10xf32, #tpu.memory_space<vmem>>, %arg11: memref<1x10xf32, #tpu.memory_space<vmem>>, %arg12: memref<1x1x10xf32, #tpu.memory_space<vmem>>) attributes {dimension_semantics = [#tpu.dimension_semantics<parallel>], iteration_bounds = array<i64: 2>, scalar_prefetch = 0 : i64, scratch_operands = 0 : i64, tpu.core_type = #tpu.core_type<tc>, window_params = [{transform_indices = @transform_0, window_bounds = array<i64: 1, 1024, 75>}, {pipeline_mode = #tpu.pipeline_mode<synchronous>, transform_indices = @transform_1, window_bounds = array<i64: 75, 6>}, {pipeline_mode = #tpu.pipeline_mode<synchronous>, transform_indices = @transform_2, window_bounds = array<i64: 1, 6>}, {pipeline_mode = #tpu.pipeline_mode<synchronous>, transform_indices = @transform_3, window_bounds = array<i64: 25, 6, 16>}, {pipeline_mode = #tpu.pipeline_mode<synchronous>, transform_indices = @transform_4, window_bounds = array<i64: 1, 16>}, {pipeline_mode = #tpu.pipeline_mode<synchronous>, transform_indices = @transform_5, window_bounds = array<i64: 25, 16, 120>}, {pipeline_mode = #tpu.pipeline_mode<synchronous>, transform_indices = @transform_6, window_bounds = array<i64: 1, 120>}, {pipeline_mode = #tpu.pipeline_mode<synchronous>, transform_indices = @transform_7, window_bounds = array<i64: 120, 84>}, {pipeline_mode = #tpu.pipeline_mode<synchronous>, transform_indices = @transform_8, window_bounds = array<i64: 1, 84>}, {pipeline_mode = #tpu.pipeline_mode<synchronous>, transform_indices = @transform_9, window_bounds = array<i64: 84, 10>}, {pipeline_mode = #tpu.pipeline_mode<synchronous>, transform_indices = @transform_10, window_bounds = array<i64: 1, 10>}, {transform_indices = @transform_11, window_bounds = array<i64: 1, 1, 10>}]} {
    %c0 = arith.constant 0 : index
    %c0_0 = arith.constant 0 : index
    %c0_1 = arith.constant 0 : index
    %0 = vector.load %arg1[%c0, %c0_0, %c0_1] : memref<1x1024x75xf32, #tpu.memory_space<vmem>>, vector<1x892x75xf32>
    %1 = vector.shape_cast %0 : vector<1x892x75xf32> to vector<892x75xf32>
    %c0_2 = arith.constant 0 : index
    %c0_3 = arith.constant 0 : index
    %2 = vector.load %arg2[%c0_2, %c0_3] : memref<75x6xf32, #tpu.memory_space<vmem>>, vector<75x6xf32>
    %cst = arith.constant dense<0.000000e+00> : vector<892x6xf32>
    %3 = tpu.matmul %1, %2, %cst {dimension_numbers = #tpu.dot_dimension_numbers<[1], [0], [0], [1], [0, 0, 1, 1], [], []>} : vector<892x75xf32>, vector<75x6xf32>, vector<892x6xf32> -> vector<892x6xf32>
    %c0_4 = arith.constant 0 : index
    %c0_5 = arith.constant 0 : index
    %4 = vector.load %arg3[%c0_4, %c0_5] : memref<1x6xf32, #tpu.memory_space<vmem>>, vector<1x6xf32>
    %5 = vector.broadcast %4 : vector<1x6xf32> to vector<892x6xf32>
    %6 = arith.addf %3, %5 : vector<892x6xf32>
    %cst_6 = arith.constant 0.000000e+00 : f32
    %7 = vector.broadcast %cst_6 : f32 to vector<892x6xf32>
    %8 = arith.maximumf %6, %7 : vector<892x6xf32>
    %9 = vector.extract_strided_slice %8 {offsets = [0, 0], sizes = [891, 6], strides = [1, 1]} : vector<892x6xf32> to vector<891x6xf32>
    %10 = vector.extract_strided_slice %8 {offsets = [1, 0], sizes = [891, 6], strides = [1, 1]} : vector<892x6xf32> to vector<891x6xf32>
    %11 = arith.maximumf %9, %10 : vector<891x6xf32>
    %12 = vector.extract_strided_slice %11 {offsets = [0, 0], sizes = [859, 6], strides = [1, 1]} : vector<891x6xf32> to vector<859x6xf32>
    %13 = vector.extract_strided_slice %11 {offsets = [32, 0], sizes = [859, 6], strides = [1, 1]} : vector<891x6xf32> to vector<859x6xf32>
    %14 = arith.maximumf %12, %13 : vector<859x6xf32>
    %cst_7 = arith.constant 0.000000e+00 : f32
    %15 = vector.broadcast %cst_7 : f32 to vector<595x16xf32>
    %16 = vector.extract_strided_slice %14 {offsets = [0, 0], sizes = [595, 6], strides = [1, 1]} : vector<859x6xf32> to vector<595x6xf32>
    %c0_8 = arith.constant 0 : index
    %c0_9 = arith.constant 0 : index
    %c0_10 = arith.constant 0 : index
    %17 = vector.load %arg4[%c0_8, %c0_9, %c0_10] : memref<25x6x16xf32, #tpu.memory_space<vmem>>, vector<1x6x16xf32>
    %18 = vector.shape_cast %17 : vector<1x6x16xf32> to vector<6x16xf32>
    %cst_11 = arith.constant dense<0.000000e+00> : vector<595x16xf32>
    %19 = tpu.matmul %16, %18, %cst_11 {dimension_numbers = #tpu.dot_dimension_numbers<[1], [0], [0], [1], [0, 0, 1, 1], [], []>} : vector<595x6xf32>, vector<6x16xf32>, vector<595x16xf32> -> vector<595x16xf32>
    %20 = arith.addf %15, %19 : vector<595x16xf32>
    %21 = vector.extract_strided_slice %14 {offsets = [2, 0], sizes = [595, 6], strides = [1, 1]} : vector<859x6xf32> to vector<595x6xf32>
    %c1 = arith.constant 1 : index
    %c0_12 = arith.constant 0 : index
    %c0_13 = arith.constant 0 : index
    %22 = vector.load %arg4[%c1, %c0_12, %c0_13] : memref<25x6x16xf32, #tpu.memory_space<vmem>>, vector<1x6x16xf32>
    %23 = vector.shape_cast %22 : vector<1x6x16xf32> to vector<6x16xf32>
    %cst_14 = arith.constant dense<0.000000e+00> : vector<595x16xf32>
    %24 = tpu.matmul %21, %23, %cst_14 {dimension_numbers = #tpu.dot_dimension_numbers<[1], [0], [0], [1], [0, 0, 1, 1], [], []>} : vector<595x6xf32>, vector<6x16xf32>, vector<595x16xf32> -> vector<595x16xf32>
    %25 = arith.addf %20, %24 : vector<595x16xf32>
    %26 = vector.extract_strided_slice %14 {offsets = [4, 0], sizes = [595, 6], strides = [1, 1]} : vector<859x6xf32> to vector<595x6xf32>
    %c2 = arith.constant 2 : index
    %c0_15 = arith.constant 0 : index
    %c0_16 = arith.constant 0 : index
    %27 = vector.load %arg4[%c2, %c0_15, %c0_16] : memref<25x6x16xf32, #tpu.memory_space<vmem>>, vector<1x6x16xf32>
    %28 = vector.shape_cast %27 : vector<1x6x16xf32> to vector<6x16xf32>
    %cst_17 = arith.constant dense<0.000000e+00> : vector<595x16xf32>
    %29 = tpu.matmul %26, %28, %cst_17 {dimension_numbers = #tpu.dot_dimension_numbers<[1], [0], [0], [1], [0, 0, 1, 1], [], []>} : vector<595x6xf32>, vector<6x16xf32>, vector<595x16xf32> -> vector<595x16xf32>
    %30 = arith.addf %25, %29 : vector<595x16xf32>
    %31 = vector.extract_strided_slice %14 {offsets = [6, 0], sizes = [595, 6], strides = [1, 1]} : vector<859x6xf32> to vector<595x6xf32>
    %c3 = arith.constant 3 : index
    %c0_18 = arith.constant 0 : index
    %c0_19 = arith.constant 0 : index
    %32 = vector.load %arg4[%c3, %c0_18, %c0_19] : memref<25x6x16xf32, #tpu.memory_space<vmem>>, vector<1x6x16xf32>
    %33 = vector.shape_cast %32 : vector<1x6x16xf32> to vector<6x16xf32>
    %cst_20 = arith.constant dense<0.000000e+00> : vector<595x16xf32>
    %34 = tpu.matmul %31, %33, %cst_20 {dimension_numbers = #tpu.dot_dimension_numbers<[1], [0], [0], [1], [0, 0, 1, 1], [], []>} : vector<595x6xf32>, vector<6x16xf32>, vector<595x16xf32> -> vector<595x16xf32>
    %35 = arith.addf %30, %34 : vector<595x16xf32>
    %36 = vector.extract_strided_slice %14 {offsets = [8, 0], sizes = [595, 6], strides = [1, 1]} : vector<859x6xf32> to vector<595x6xf32>
    %c4 = arith.constant 4 : index
    %c0_21 = arith.constant 0 : index
    %c0_22 = arith.constant 0 : index
    %37 = vector.load %arg4[%c4, %c0_21, %c0_22] : memref<25x6x16xf32, #tpu.memory_space<vmem>>, vector<1x6x16xf32>
    %38 = vector.shape_cast %37 : vector<1x6x16xf32> to vector<6x16xf32>
    %cst_23 = arith.constant dense<0.000000e+00> : vector<595x16xf32>
    %39 = tpu.matmul %36, %38, %cst_23 {dimension_numbers = #tpu.dot_dimension_numbers<[1], [0], [0], [1], [0, 0, 1, 1], [], []>} : vector<595x6xf32>, vector<6x16xf32>, vector<595x16xf32> -> vector<595x16xf32>
    %40 = arith.addf %35, %39 : vector<595x16xf32>
    %41 = vector.extract_strided_slice %14 {offsets = [64, 0], sizes = [595, 6], strides = [1, 1]} : vector<859x6xf32> to vector<595x6xf32>
    %c5 = arith.constant 5 : index
    %c0_24 = arith.constant 0 : index
    %c0_25 = arith.constant 0 : index
    %42 = vector.load %arg4[%c5, %c0_24, %c0_25] : memref<25x6x16xf32, #tpu.memory_space<vmem>>, vector<1x6x16xf32>
    %43 = vector.shape_cast %42 : vector<1x6x16xf32> to vector<6x16xf32>
    %cst_26 = arith.constant dense<0.000000e+00> : vector<595x16xf32>
    %44 = tpu.matmul %41, %43, %cst_26 {dimension_numbers = #tpu.dot_dimension_numbers<[1], [0], [0], [1], [0, 0, 1, 1], [], []>} : vector<595x6xf32>, vector<6x16xf32>, vector<595x16xf32> -> vector<595x16xf32>
    %45 = arith.addf %40, %44 : vector<595x16xf32>
    %46 = vector.extract_strided_slice %14 {offsets = [66, 0], sizes = [595, 6], strides = [1, 1]} : vector<859x6xf32> to vector<595x6xf32>
    %c6 = arith.constant 6 : index
    %c0_27 = arith.constant 0 : index
    %c0_28 = arith.constant 0 : index
    %47 = vector.load %arg4[%c6, %c0_27, %c0_28] : memref<25x6x16xf32, #tpu.memory_space<vmem>>, vector<1x6x16xf32>
    %48 = vector.shape_cast %47 : vector<1x6x16xf32> to vector<6x16xf32>
    %cst_29 = arith.constant dense<0.000000e+00> : vector<595x16xf32>
    %49 = tpu.matmul %46, %48, %cst_29 {dimension_numbers = #tpu.dot_dimension_numbers<[1], [0], [0], [1], [0, 0, 1, 1], [], []>} : vector<595x6xf32>, vector<6x16xf32>, vector<595x16xf32> -> vector<595x16xf32>
    %50 = arith.addf %45, %49 : vector<595x16xf32>
    %51 = vector.extract_strided_slice %14 {offsets = [68, 0], sizes = [595, 6], strides = [1, 1]} : vector<859x6xf32> to vector<595x6xf32>
    %c7 = arith.constant 7 : index
    %c0_30 = arith.constant 0 : index
    %c0_31 = arith.constant 0 : index
    %52 = vector.load %arg4[%c7, %c0_30, %c0_31] : memref<25x6x16xf32, #tpu.memory_space<vmem>>, vector<1x6x16xf32>
    %53 = vector.shape_cast %52 : vector<1x6x16xf32> to vector<6x16xf32>
    %cst_32 = arith.constant dense<0.000000e+00> : vector<595x16xf32>
    %54 = tpu.matmul %51, %53, %cst_32 {dimension_numbers = #tpu.dot_dimension_numbers<[1], [0], [0], [1], [0, 0, 1, 1], [], []>} : vector<595x6xf32>, vector<6x16xf32>, vector<595x16xf32> -> vector<595x16xf32>
    %55 = arith.addf %50, %54 : vector<595x16xf32>
    %56 = vector.extract_strided_slice %14 {offsets = [70, 0], sizes = [595, 6], strides = [1, 1]} : vector<859x6xf32> to vector<595x6xf32>
    %c8 = arith.constant 8 : index
    %c0_33 = arith.constant 0 : index
    %c0_34 = arith.constant 0 : index
    %57 = vector.load %arg4[%c8, %c0_33, %c0_34] : memref<25x6x16xf32, #tpu.memory_space<vmem>>, vector<1x6x16xf32>
    %58 = vector.shape_cast %57 : vector<1x6x16xf32> to vector<6x16xf32>
    %cst_35 = arith.constant dense<0.000000e+00> : vector<595x16xf32>
    %59 = tpu.matmul %56, %58, %cst_35 {dimension_numbers = #tpu.dot_dimension_numbers<[1], [0], [0], [1], [0, 0, 1, 1], [], []>} : vector<595x6xf32>, vector<6x16xf32>, vector<595x16xf32> -> vector<595x16xf32>
    %60 = arith.addf %55, %59 : vector<595x16xf32>
    %61 = vector.extract_strided_slice %14 {offsets = [72, 0], sizes = [595, 6], strides = [1, 1]} : vector<859x6xf32> to vector<595x6xf32>
    %c9 = arith.constant 9 : index
    %c0_36 = arith.constant 0 : index
    %c0_37 = arith.constant 0 : index
    %62 = vector.load %arg4[%c9, %c0_36, %c0_37] : memref<25x6x16xf32, #tpu.memory_space<vmem>>, vector<1x6x16xf32>
    %63 = vector.shape_cast %62 : vector<1x6x16xf32> to vector<6x16xf32>
    %cst_38 = arith.constant dense<0.000000e+00> : vector<595x16xf32>
    %64 = tpu.matmul %61, %63, %cst_38 {dimension_numbers = #tpu.dot_dimension_numbers<[1], [0], [0], [1], [0, 0, 1, 1], [], []>} : vector<595x6xf32>, vector<6x16xf32>, vector<595x16xf32> -> vector<595x16xf32>
    %65 = arith.addf %60, %64 : vector<595x16xf32>
    %66 = vector.extract_strided_slice %14 {offsets = [128, 0], sizes = [595, 6], strides = [1, 1]} : vector<859x6xf32> to vector<595x6xf32>
    %c10 = arith.constant 10 : index
    %c0_39 = arith.constant 0 : index
    %c0_40 = arith.constant 0 : index
    %67 = vector.load %arg4[%c10, %c0_39, %c0_40] : memref<25x6x16xf32, #tpu.memory_space<vmem>>, vector<1x6x16xf32>
    %68 = vector.shape_cast %67 : vector<1x6x16xf32> to vector<6x16xf32>
    %cst_41 = arith.constant dense<0.000000e+00> : vector<595x16xf32>
    %69 = tpu.matmul %66, %68, %cst_41 {dimension_numbers = #tpu.dot_dimension_numbers<[1], [0], [0], [1], [0, 0, 1, 1], [], []>} : vector<595x6xf32>, vector<6x16xf32>, vector<595x16xf32> -> vector<595x16xf32>
    %70 = arith.addf %65, %69 : vector<595x16xf32>
    %71 = vector.extract_strided_slice %14 {offsets = [130, 0], sizes = [595, 6], strides = [1, 1]} : vector<859x6xf32> to vector<595x6xf32>
    %c11 = arith.constant 11 : index
    %c0_42 = arith.constant 0 : index
    %c0_43 = arith.constant 0 : index
    %72 = vector.load %arg4[%c11, %c0_42, %c0_43] : memref<25x6x16xf32, #tpu.memory_space<vmem>>, vector<1x6x16xf32>
    %73 = vector.shape_cast %72 : vector<1x6x16xf32> to vector<6x16xf32>
    %cst_44 = arith.constant dense<0.000000e+00> : vector<595x16xf32>
    %74 = tpu.matmul %71, %73, %cst_44 {dimension_numbers = #tpu.dot_dimension_numbers<[1], [0], [0], [1], [0, 0, 1, 1], [], []>} : vector<595x6xf32>, vector<6x16xf32>, vector<595x16xf32> -> vector<595x16xf32>
    %75 = arith.addf %70, %74 : vector<595x16xf32>
    %76 = vector.extract_strided_slice %14 {offsets = [132, 0], sizes = [595, 6], strides = [1, 1]} : vector<859x6xf32> to vector<595x6xf32>
    %c12 = arith.constant 12 : index
    %c0_45 = arith.constant 0 : index
    %c0_46 = arith.constant 0 : index
    %77 = vector.load %arg4[%c12, %c0_45, %c0_46] : memref<25x6x16xf32, #tpu.memory_space<vmem>>, vector<1x6x16xf32>
    %78 = vector.shape_cast %77 : vector<1x6x16xf32> to vector<6x16xf32>
    %cst_47 = arith.constant dense<0.000000e+00> : vector<595x16xf32>
    %79 = tpu.matmul %76, %78, %cst_47 {dimension_numbers = #tpu.dot_dimension_numbers<[1], [0], [0], [1], [0, 0, 1, 1], [], []>} : vector<595x6xf32>, vector<6x16xf32>, vector<595x16xf32> -> vector<595x16xf32>
    %80 = arith.addf %75, %79 : vector<595x16xf32>
    %81 = vector.extract_strided_slice %14 {offsets = [134, 0], sizes = [595, 6], strides = [1, 1]} : vector<859x6xf32> to vector<595x6xf32>
    %c13 = arith.constant 13 : index
    %c0_48 = arith.constant 0 : index
    %c0_49 = arith.constant 0 : index
    %82 = vector.load %arg4[%c13, %c0_48, %c0_49] : memref<25x6x16xf32, #tpu.memory_space<vmem>>, vector<1x6x16xf32>
    %83 = vector.shape_cast %82 : vector<1x6x16xf32> to vector<6x16xf32>
    %cst_50 = arith.constant dense<0.000000e+00> : vector<595x16xf32>
    %84 = tpu.matmul %81, %83, %cst_50 {dimension_numbers = #tpu.dot_dimension_numbers<[1], [0], [0], [1], [0, 0, 1, 1], [], []>} : vector<595x6xf32>, vector<6x16xf32>, vector<595x16xf32> -> vector<595x16xf32>
    %85 = arith.addf %80, %84 : vector<595x16xf32>
    %86 = vector.extract_strided_slice %14 {offsets = [136, 0], sizes = [595, 6], strides = [1, 1]} : vector<859x6xf32> to vector<595x6xf32>
    %c14 = arith.constant 14 : index
    %c0_51 = arith.constant 0 : index
    %c0_52 = arith.constant 0 : index
    %87 = vector.load %arg4[%c14, %c0_51, %c0_52] : memref<25x6x16xf32, #tpu.memory_space<vmem>>, vector<1x6x16xf32>
    %88 = vector.shape_cast %87 : vector<1x6x16xf32> to vector<6x16xf32>
    %cst_53 = arith.constant dense<0.000000e+00> : vector<595x16xf32>
    %89 = tpu.matmul %86, %88, %cst_53 {dimension_numbers = #tpu.dot_dimension_numbers<[1], [0], [0], [1], [0, 0, 1, 1], [], []>} : vector<595x6xf32>, vector<6x16xf32>, vector<595x16xf32> -> vector<595x16xf32>
    %90 = arith.addf %85, %89 : vector<595x16xf32>
    %91 = vector.extract_strided_slice %14 {offsets = [192, 0], sizes = [595, 6], strides = [1, 1]} : vector<859x6xf32> to vector<595x6xf32>
    %c15 = arith.constant 15 : index
    %c0_54 = arith.constant 0 : index
    %c0_55 = arith.constant 0 : index
    %92 = vector.load %arg4[%c15, %c0_54, %c0_55] : memref<25x6x16xf32, #tpu.memory_space<vmem>>, vector<1x6x16xf32>
    %93 = vector.shape_cast %92 : vector<1x6x16xf32> to vector<6x16xf32>
    %cst_56 = arith.constant dense<0.000000e+00> : vector<595x16xf32>
    %94 = tpu.matmul %91, %93, %cst_56 {dimension_numbers = #tpu.dot_dimension_numbers<[1], [0], [0], [1], [0, 0, 1, 1], [], []>} : vector<595x6xf32>, vector<6x16xf32>, vector<595x16xf32> -> vector<595x16xf32>
    %95 = arith.addf %90, %94 : vector<595x16xf32>
    %96 = vector.extract_strided_slice %14 {offsets = [194, 0], sizes = [595, 6], strides = [1, 1]} : vector<859x6xf32> to vector<595x6xf32>
    %c16 = arith.constant 16 : index
    %c0_57 = arith.constant 0 : index
    %c0_58 = arith.constant 0 : index
    %97 = vector.load %arg4[%c16, %c0_57, %c0_58] : memref<25x6x16xf32, #tpu.memory_space<vmem>>, vector<1x6x16xf32>
    %98 = vector.shape_cast %97 : vector<1x6x16xf32> to vector<6x16xf32>
    %cst_59 = arith.constant dense<0.000000e+00> : vector<595x16xf32>
    %99 = tpu.matmul %96, %98, %cst_59 {dimension_numbers = #tpu.dot_dimension_numbers<[1], [0], [0], [1], [0, 0, 1, 1], [], []>} : vector<595x6xf32>, vector<6x16xf32>, vector<595x16xf32> -> vector<595x16xf32>
    %100 = arith.addf %95, %99 : vector<595x16xf32>
    %101 = vector.extract_strided_slice %14 {offsets = [196, 0], sizes = [595, 6], strides = [1, 1]} : vector<859x6xf32> to vector<595x6xf32>
    %c17 = arith.constant 17 : index
    %c0_60 = arith.constant 0 : index
    %c0_61 = arith.constant 0 : index
    %102 = vector.load %arg4[%c17, %c0_60, %c0_61] : memref<25x6x16xf32, #tpu.memory_space<vmem>>, vector<1x6x16xf32>
    %103 = vector.shape_cast %102 : vector<1x6x16xf32> to vector<6x16xf32>
    %cst_62 = arith.constant dense<0.000000e+00> : vector<595x16xf32>
    %104 = tpu.matmul %101, %103, %cst_62 {dimension_numbers = #tpu.dot_dimension_numbers<[1], [0], [0], [1], [0, 0, 1, 1], [], []>} : vector<595x6xf32>, vector<6x16xf32>, vector<595x16xf32> -> vector<595x16xf32>
    %105 = arith.addf %100, %104 : vector<595x16xf32>
    %106 = vector.extract_strided_slice %14 {offsets = [198, 0], sizes = [595, 6], strides = [1, 1]} : vector<859x6xf32> to vector<595x6xf32>
    %c18 = arith.constant 18 : index
    %c0_63 = arith.constant 0 : index
    %c0_64 = arith.constant 0 : index
    %107 = vector.load %arg4[%c18, %c0_63, %c0_64] : memref<25x6x16xf32, #tpu.memory_space<vmem>>, vector<1x6x16xf32>
    %108 = vector.shape_cast %107 : vector<1x6x16xf32> to vector<6x16xf32>
    %cst_65 = arith.constant dense<0.000000e+00> : vector<595x16xf32>
    %109 = tpu.matmul %106, %108, %cst_65 {dimension_numbers = #tpu.dot_dimension_numbers<[1], [0], [0], [1], [0, 0, 1, 1], [], []>} : vector<595x6xf32>, vector<6x16xf32>, vector<595x16xf32> -> vector<595x16xf32>
    %110 = arith.addf %105, %109 : vector<595x16xf32>
    %111 = vector.extract_strided_slice %14 {offsets = [200, 0], sizes = [595, 6], strides = [1, 1]} : vector<859x6xf32> to vector<595x6xf32>
    %c19 = arith.constant 19 : index
    %c0_66 = arith.constant 0 : index
    %c0_67 = arith.constant 0 : index
    %112 = vector.load %arg4[%c19, %c0_66, %c0_67] : memref<25x6x16xf32, #tpu.memory_space<vmem>>, vector<1x6x16xf32>
    %113 = vector.shape_cast %112 : vector<1x6x16xf32> to vector<6x16xf32>
    %cst_68 = arith.constant dense<0.000000e+00> : vector<595x16xf32>
    %114 = tpu.matmul %111, %113, %cst_68 {dimension_numbers = #tpu.dot_dimension_numbers<[1], [0], [0], [1], [0, 0, 1, 1], [], []>} : vector<595x6xf32>, vector<6x16xf32>, vector<595x16xf32> -> vector<595x16xf32>
    %115 = arith.addf %110, %114 : vector<595x16xf32>
    %116 = vector.extract_strided_slice %14 {offsets = [256, 0], sizes = [595, 6], strides = [1, 1]} : vector<859x6xf32> to vector<595x6xf32>
    %c20 = arith.constant 20 : index
    %c0_69 = arith.constant 0 : index
    %c0_70 = arith.constant 0 : index
    %117 = vector.load %arg4[%c20, %c0_69, %c0_70] : memref<25x6x16xf32, #tpu.memory_space<vmem>>, vector<1x6x16xf32>
    %118 = vector.shape_cast %117 : vector<1x6x16xf32> to vector<6x16xf32>
    %cst_71 = arith.constant dense<0.000000e+00> : vector<595x16xf32>
    %119 = tpu.matmul %116, %118, %cst_71 {dimension_numbers = #tpu.dot_dimension_numbers<[1], [0], [0], [1], [0, 0, 1, 1], [], []>} : vector<595x6xf32>, vector<6x16xf32>, vector<595x16xf32> -> vector<595x16xf32>
    %120 = arith.addf %115, %119 : vector<595x16xf32>
    %121 = vector.extract_strided_slice %14 {offsets = [258, 0], sizes = [595, 6], strides = [1, 1]} : vector<859x6xf32> to vector<595x6xf32>
    %c21 = arith.constant 21 : index
    %c0_72 = arith.constant 0 : index
    %c0_73 = arith.constant 0 : index
    %122 = vector.load %arg4[%c21, %c0_72, %c0_73] : memref<25x6x16xf32, #tpu.memory_space<vmem>>, vector<1x6x16xf32>
    %123 = vector.shape_cast %122 : vector<1x6x16xf32> to vector<6x16xf32>
    %cst_74 = arith.constant dense<0.000000e+00> : vector<595x16xf32>
    %124 = tpu.matmul %121, %123, %cst_74 {dimension_numbers = #tpu.dot_dimension_numbers<[1], [0], [0], [1], [0, 0, 1, 1], [], []>} : vector<595x6xf32>, vector<6x16xf32>, vector<595x16xf32> -> vector<595x16xf32>
    %125 = arith.addf %120, %124 : vector<595x16xf32>
    %126 = vector.extract_strided_slice %14 {offsets = [260, 0], sizes = [595, 6], strides = [1, 1]} : vector<859x6xf32> to vector<595x6xf32>
    %c22 = arith.constant 22 : index
    %c0_75 = arith.constant 0 : index
    %c0_76 = arith.constant 0 : index
    %127 = vector.load %arg4[%c22, %c0_75, %c0_76] : memref<25x6x16xf32, #tpu.memory_space<vmem>>, vector<1x6x16xf32>
    %128 = vector.shape_cast %127 : vector<1x6x16xf32> to vector<6x16xf32>
    %cst_77 = arith.constant dense<0.000000e+00> : vector<595x16xf32>
    %129 = tpu.matmul %126, %128, %cst_77 {dimension_numbers = #tpu.dot_dimension_numbers<[1], [0], [0], [1], [0, 0, 1, 1], [], []>} : vector<595x6xf32>, vector<6x16xf32>, vector<595x16xf32> -> vector<595x16xf32>
    %130 = arith.addf %125, %129 : vector<595x16xf32>
    %131 = vector.extract_strided_slice %14 {offsets = [262, 0], sizes = [595, 6], strides = [1, 1]} : vector<859x6xf32> to vector<595x6xf32>
    %c23 = arith.constant 23 : index
    %c0_78 = arith.constant 0 : index
    %c0_79 = arith.constant 0 : index
    %132 = vector.load %arg4[%c23, %c0_78, %c0_79] : memref<25x6x16xf32, #tpu.memory_space<vmem>>, vector<1x6x16xf32>
    %133 = vector.shape_cast %132 : vector<1x6x16xf32> to vector<6x16xf32>
    %cst_80 = arith.constant dense<0.000000e+00> : vector<595x16xf32>
    %134 = tpu.matmul %131, %133, %cst_80 {dimension_numbers = #tpu.dot_dimension_numbers<[1], [0], [0], [1], [0, 0, 1, 1], [], []>} : vector<595x6xf32>, vector<6x16xf32>, vector<595x16xf32> -> vector<595x16xf32>
    %135 = arith.addf %130, %134 : vector<595x16xf32>
    %136 = vector.extract_strided_slice %14 {offsets = [264, 0], sizes = [595, 6], strides = [1, 1]} : vector<859x6xf32> to vector<595x6xf32>
    %c24 = arith.constant 24 : index
    %c0_81 = arith.constant 0 : index
    %c0_82 = arith.constant 0 : index
    %137 = vector.load %arg4[%c24, %c0_81, %c0_82] : memref<25x6x16xf32, #tpu.memory_space<vmem>>, vector<1x6x16xf32>
    %138 = vector.shape_cast %137 : vector<1x6x16xf32> to vector<6x16xf32>
    %cst_83 = arith.constant dense<0.000000e+00> : vector<595x16xf32>
    %139 = tpu.matmul %136, %138, %cst_83 {dimension_numbers = #tpu.dot_dimension_numbers<[1], [0], [0], [1], [0, 0, 1, 1], [], []>} : vector<595x6xf32>, vector<6x16xf32>, vector<595x16xf32> -> vector<595x16xf32>
    %140 = arith.addf %135, %139 : vector<595x16xf32>
    %c0_84 = arith.constant 0 : index
    %c0_85 = arith.constant 0 : index
    %141 = vector.load %arg5[%c0_84, %c0_85] : memref<1x16xf32, #tpu.memory_space<vmem>>, vector<1x16xf32>
    %142 = vector.broadcast %141 : vector<1x16xf32> to vector<595x16xf32>
    %143 = arith.addf %140, %142 : vector<595x16xf32>
    %cst_86 = arith.constant 0.000000e+00 : f32
    %144 = vector.broadcast %cst_86 : f32 to vector<595x16xf32>
    %145 = arith.maximumf %143, %144 : vector<595x16xf32>
    %146 = vector.extract_strided_slice %145 {offsets = [0, 0], sizes = [593, 16], strides = [1, 1]} : vector<595x16xf32> to vector<593x16xf32>
    %147 = vector.extract_strided_slice %145 {offsets = [2, 0], sizes = [593, 16], strides = [1, 1]} : vector<595x16xf32> to vector<593x16xf32>
    %148 = arith.maximumf %146, %147 : vector<593x16xf32>
    %149 = vector.extract_strided_slice %148 {offsets = [0, 0], sizes = [529, 16], strides = [1, 1]} : vector<593x16xf32> to vector<529x16xf32>
    %150 = vector.extract_strided_slice %148 {offsets = [64, 0], sizes = [529, 16], strides = [1, 1]} : vector<593x16xf32> to vector<529x16xf32>
    %151 = arith.maximumf %149, %150 : vector<529x16xf32>
    %c0_87 = arith.constant 0 : index
    %c0_88 = arith.constant 0 : index
    %152 = vector.load %arg7[%c0_87, %c0_88] : memref<1x120xf32, #tpu.memory_space<vmem>>, vector<1x120xf32>
    %153 = vector.extract_strided_slice %151 {offsets = [0, 0], sizes = [1, 16], strides = [1, 1]} : vector<529x16xf32> to vector<1x16xf32>
    %c0_89 = arith.constant 0 : index
    %c0_90 = arith.constant 0 : index
    %c0_91 = arith.constant 0 : index
    %154 = vector.load %arg6[%c0_89, %c0_90, %c0_91] : memref<25x16x120xf32, #tpu.memory_space<vmem>>, vector<1x16x120xf32>
    %155 = vector.shape_cast %154 : vector<1x16x120xf32> to vector<16x120xf32>
    %cst_92 = arith.constant dense<0.000000e+00> : vector<1x120xf32>
    %156 = tpu.matmul %153, %155, %cst_92 {dimension_numbers = #tpu.dot_dimension_numbers<[1], [0], [0], [1], [0, 0, 1, 1], [], []>} : vector<1x16xf32>, vector<16x120xf32>, vector<1x120xf32> -> vector<1x120xf32>
    %157 = arith.addf %152, %156 : vector<1x120xf32>
    %158 = vector.extract_strided_slice %151 {offsets = [4, 0], sizes = [1, 16], strides = [1, 1]} : vector<529x16xf32> to vector<1x16xf32>
    %c1_93 = arith.constant 1 : index
    %c0_94 = arith.constant 0 : index
    %c0_95 = arith.constant 0 : index
    %159 = vector.load %arg6[%c1_93, %c0_94, %c0_95] : memref<25x16x120xf32, #tpu.memory_space<vmem>>, vector<1x16x120xf32>
    %160 = vector.shape_cast %159 : vector<1x16x120xf32> to vector<16x120xf32>
    %cst_96 = arith.constant dense<0.000000e+00> : vector<1x120xf32>
    %161 = tpu.matmul %158, %160, %cst_96 {dimension_numbers = #tpu.dot_dimension_numbers<[1], [0], [0], [1], [0, 0, 1, 1], [], []>} : vector<1x16xf32>, vector<16x120xf32>, vector<1x120xf32> -> vector<1x120xf32>
    %162 = arith.addf %157, %161 : vector<1x120xf32>
    %163 = vector.extract_strided_slice %151 {offsets = [8, 0], sizes = [1, 16], strides = [1, 1]} : vector<529x16xf32> to vector<1x16xf32>
    %c2_97 = arith.constant 2 : index
    %c0_98 = arith.constant 0 : index
    %c0_99 = arith.constant 0 : index
    %164 = vector.load %arg6[%c2_97, %c0_98, %c0_99] : memref<25x16x120xf32, #tpu.memory_space<vmem>>, vector<1x16x120xf32>
    %165 = vector.shape_cast %164 : vector<1x16x120xf32> to vector<16x120xf32>
    %cst_100 = arith.constant dense<0.000000e+00> : vector<1x120xf32>
    %166 = tpu.matmul %163, %165, %cst_100 {dimension_numbers = #tpu.dot_dimension_numbers<[1], [0], [0], [1], [0, 0, 1, 1], [], []>} : vector<1x16xf32>, vector<16x120xf32>, vector<1x120xf32> -> vector<1x120xf32>
    %167 = arith.addf %162, %166 : vector<1x120xf32>
    %168 = vector.extract_strided_slice %151 {offsets = [12, 0], sizes = [1, 16], strides = [1, 1]} : vector<529x16xf32> to vector<1x16xf32>
    %c3_101 = arith.constant 3 : index
    %c0_102 = arith.constant 0 : index
    %c0_103 = arith.constant 0 : index
    %169 = vector.load %arg6[%c3_101, %c0_102, %c0_103] : memref<25x16x120xf32, #tpu.memory_space<vmem>>, vector<1x16x120xf32>
    %170 = vector.shape_cast %169 : vector<1x16x120xf32> to vector<16x120xf32>
    %cst_104 = arith.constant dense<0.000000e+00> : vector<1x120xf32>
    %171 = tpu.matmul %168, %170, %cst_104 {dimension_numbers = #tpu.dot_dimension_numbers<[1], [0], [0], [1], [0, 0, 1, 1], [], []>} : vector<1x16xf32>, vector<16x120xf32>, vector<1x120xf32> -> vector<1x120xf32>
    %172 = arith.addf %167, %171 : vector<1x120xf32>
    %173 = vector.extract_strided_slice %151 {offsets = [16, 0], sizes = [1, 16], strides = [1, 1]} : vector<529x16xf32> to vector<1x16xf32>
    %c4_105 = arith.constant 4 : index
    %c0_106 = arith.constant 0 : index
    %c0_107 = arith.constant 0 : index
    %174 = vector.load %arg6[%c4_105, %c0_106, %c0_107] : memref<25x16x120xf32, #tpu.memory_space<vmem>>, vector<1x16x120xf32>
    %175 = vector.shape_cast %174 : vector<1x16x120xf32> to vector<16x120xf32>
    %cst_108 = arith.constant dense<0.000000e+00> : vector<1x120xf32>
    %176 = tpu.matmul %173, %175, %cst_108 {dimension_numbers = #tpu.dot_dimension_numbers<[1], [0], [0], [1], [0, 0, 1, 1], [], []>} : vector<1x16xf32>, vector<16x120xf32>, vector<1x120xf32> -> vector<1x120xf32>
    %177 = arith.addf %172, %176 : vector<1x120xf32>
    %178 = vector.extract_strided_slice %151 {offsets = [128, 0], sizes = [1, 16], strides = [1, 1]} : vector<529x16xf32> to vector<1x16xf32>
    %c5_109 = arith.constant 5 : index
    %c0_110 = arith.constant 0 : index
    %c0_111 = arith.constant 0 : index
    %179 = vector.load %arg6[%c5_109, %c0_110, %c0_111] : memref<25x16x120xf32, #tpu.memory_space<vmem>>, vector<1x16x120xf32>
    %180 = vector.shape_cast %179 : vector<1x16x120xf32> to vector<16x120xf32>
    %cst_112 = arith.constant dense<0.000000e+00> : vector<1x120xf32>
    %181 = tpu.matmul %178, %180, %cst_112 {dimension_numbers = #tpu.dot_dimension_numbers<[1], [0], [0], [1], [0, 0, 1, 1], [], []>} : vector<1x16xf32>, vector<16x120xf32>, vector<1x120xf32> -> vector<1x120xf32>
    %182 = arith.addf %177, %181 : vector<1x120xf32>
    %183 = vector.extract_strided_slice %151 {offsets = [132, 0], sizes = [1, 16], strides = [1, 1]} : vector<529x16xf32> to vector<1x16xf32>
    %c6_113 = arith.constant 6 : index
    %c0_114 = arith.constant 0 : index
    %c0_115 = arith.constant 0 : index
    %184 = vector.load %arg6[%c6_113, %c0_114, %c0_115] : memref<25x16x120xf32, #tpu.memory_space<vmem>>, vector<1x16x120xf32>
    %185 = vector.shape_cast %184 : vector<1x16x120xf32> to vector<16x120xf32>
    %cst_116 = arith.constant dense<0.000000e+00> : vector<1x120xf32>
    %186 = tpu.matmul %183, %185, %cst_116 {dimension_numbers = #tpu.dot_dimension_numbers<[1], [0], [0], [1], [0, 0, 1, 1], [], []>} : vector<1x16xf32>, vector<16x120xf32>, vector<1x120xf32> -> vector<1x120xf32>
    %187 = arith.addf %182, %186 : vector<1x120xf32>
    %188 = vector.extract_strided_slice %151 {offsets = [136, 0], sizes = [1, 16], strides = [1, 1]} : vector<529x16xf32> to vector<1x16xf32>
    %c7_117 = arith.constant 7 : index
    %c0_118 = arith.constant 0 : index
    %c0_119 = arith.constant 0 : index
    %189 = vector.load %arg6[%c7_117, %c0_118, %c0_119] : memref<25x16x120xf32, #tpu.memory_space<vmem>>, vector<1x16x120xf32>
    %190 = vector.shape_cast %189 : vector<1x16x120xf32> to vector<16x120xf32>
    %cst_120 = arith.constant dense<0.000000e+00> : vector<1x120xf32>
    %191 = tpu.matmul %188, %190, %cst_120 {dimension_numbers = #tpu.dot_dimension_numbers<[1], [0], [0], [1], [0, 0, 1, 1], [], []>} : vector<1x16xf32>, vector<16x120xf32>, vector<1x120xf32> -> vector<1x120xf32>
    %192 = arith.addf %187, %191 : vector<1x120xf32>
    %193 = vector.extract_strided_slice %151 {offsets = [140, 0], sizes = [1, 16], strides = [1, 1]} : vector<529x16xf32> to vector<1x16xf32>
    %c8_121 = arith.constant 8 : index
    %c0_122 = arith.constant 0 : index
    %c0_123 = arith.constant 0 : index
    %194 = vector.load %arg6[%c8_121, %c0_122, %c0_123] : memref<25x16x120xf32, #tpu.memory_space<vmem>>, vector<1x16x120xf32>
    %195 = vector.shape_cast %194 : vector<1x16x120xf32> to vector<16x120xf32>
    %cst_124 = arith.constant dense<0.000000e+00> : vector<1x120xf32>
    %196 = tpu.matmul %193, %195, %cst_124 {dimension_numbers = #tpu.dot_dimension_numbers<[1], [0], [0], [1], [0, 0, 1, 1], [], []>} : vector<1x16xf32>, vector<16x120xf32>, vector<1x120xf32> -> vector<1x120xf32>
    %197 = arith.addf %192, %196 : vector<1x120xf32>
    %198 = vector.extract_strided_slice %151 {offsets = [144, 0], sizes = [1, 16], strides = [1, 1]} : vector<529x16xf32> to vector<1x16xf32>
    %c9_125 = arith.constant 9 : index
    %c0_126 = arith.constant 0 : index
    %c0_127 = arith.constant 0 : index
    %199 = vector.load %arg6[%c9_125, %c0_126, %c0_127] : memref<25x16x120xf32, #tpu.memory_space<vmem>>, vector<1x16x120xf32>
    %200 = vector.shape_cast %199 : vector<1x16x120xf32> to vector<16x120xf32>
    %cst_128 = arith.constant dense<0.000000e+00> : vector<1x120xf32>
    %201 = tpu.matmul %198, %200, %cst_128 {dimension_numbers = #tpu.dot_dimension_numbers<[1], [0], [0], [1], [0, 0, 1, 1], [], []>} : vector<1x16xf32>, vector<16x120xf32>, vector<1x120xf32> -> vector<1x120xf32>
    %202 = arith.addf %197, %201 : vector<1x120xf32>
    %203 = vector.extract_strided_slice %151 {offsets = [256, 0], sizes = [1, 16], strides = [1, 1]} : vector<529x16xf32> to vector<1x16xf32>
    %c10_129 = arith.constant 10 : index
    %c0_130 = arith.constant 0 : index
    %c0_131 = arith.constant 0 : index
    %204 = vector.load %arg6[%c10_129, %c0_130, %c0_131] : memref<25x16x120xf32, #tpu.memory_space<vmem>>, vector<1x16x120xf32>
    %205 = vector.shape_cast %204 : vector<1x16x120xf32> to vector<16x120xf32>
    %cst_132 = arith.constant dense<0.000000e+00> : vector<1x120xf32>
    %206 = tpu.matmul %203, %205, %cst_132 {dimension_numbers = #tpu.dot_dimension_numbers<[1], [0], [0], [1], [0, 0, 1, 1], [], []>} : vector<1x16xf32>, vector<16x120xf32>, vector<1x120xf32> -> vector<1x120xf32>
    %207 = arith.addf %202, %206 : vector<1x120xf32>
    %208 = vector.extract_strided_slice %151 {offsets = [260, 0], sizes = [1, 16], strides = [1, 1]} : vector<529x16xf32> to vector<1x16xf32>
    %c11_133 = arith.constant 11 : index
    %c0_134 = arith.constant 0 : index
    %c0_135 = arith.constant 0 : index
    %209 = vector.load %arg6[%c11_133, %c0_134, %c0_135] : memref<25x16x120xf32, #tpu.memory_space<vmem>>, vector<1x16x120xf32>
    %210 = vector.shape_cast %209 : vector<1x16x120xf32> to vector<16x120xf32>
    %cst_136 = arith.constant dense<0.000000e+00> : vector<1x120xf32>
    %211 = tpu.matmul %208, %210, %cst_136 {dimension_numbers = #tpu.dot_dimension_numbers<[1], [0], [0], [1], [0, 0, 1, 1], [], []>} : vector<1x16xf32>, vector<16x120xf32>, vector<1x120xf32> -> vector<1x120xf32>
    %212 = arith.addf %207, %211 : vector<1x120xf32>
    %213 = vector.extract_strided_slice %151 {offsets = [264, 0], sizes = [1, 16], strides = [1, 1]} : vector<529x16xf32> to vector<1x16xf32>
    %c12_137 = arith.constant 12 : index
    %c0_138 = arith.constant 0 : index
    %c0_139 = arith.constant 0 : index
    %214 = vector.load %arg6[%c12_137, %c0_138, %c0_139] : memref<25x16x120xf32, #tpu.memory_space<vmem>>, vector<1x16x120xf32>
    %215 = vector.shape_cast %214 : vector<1x16x120xf32> to vector<16x120xf32>
    %cst_140 = arith.constant dense<0.000000e+00> : vector<1x120xf32>
    %216 = tpu.matmul %213, %215, %cst_140 {dimension_numbers = #tpu.dot_dimension_numbers<[1], [0], [0], [1], [0, 0, 1, 1], [], []>} : vector<1x16xf32>, vector<16x120xf32>, vector<1x120xf32> -> vector<1x120xf32>
    %217 = arith.addf %212, %216 : vector<1x120xf32>
    %218 = vector.extract_strided_slice %151 {offsets = [268, 0], sizes = [1, 16], strides = [1, 1]} : vector<529x16xf32> to vector<1x16xf32>
    %c13_141 = arith.constant 13 : index
    %c0_142 = arith.constant 0 : index
    %c0_143 = arith.constant 0 : index
    %219 = vector.load %arg6[%c13_141, %c0_142, %c0_143] : memref<25x16x120xf32, #tpu.memory_space<vmem>>, vector<1x16x120xf32>
    %220 = vector.shape_cast %219 : vector<1x16x120xf32> to vector<16x120xf32>
    %cst_144 = arith.constant dense<0.000000e+00> : vector<1x120xf32>
    %221 = tpu.matmul %218, %220, %cst_144 {dimension_numbers = #tpu.dot_dimension_numbers<[1], [0], [0], [1], [0, 0, 1, 1], [], []>} : vector<1x16xf32>, vector<16x120xf32>, vector<1x120xf32> -> vector<1x120xf32>
    %222 = arith.addf %217, %221 : vector<1x120xf32>
    %223 = vector.extract_strided_slice %151 {offsets = [272, 0], sizes = [1, 16], strides = [1, 1]} : vector<529x16xf32> to vector<1x16xf32>
    %c14_145 = arith.constant 14 : index
    %c0_146 = arith.constant 0 : index
    %c0_147 = arith.constant 0 : index
    %224 = vector.load %arg6[%c14_145, %c0_146, %c0_147] : memref<25x16x120xf32, #tpu.memory_space<vmem>>, vector<1x16x120xf32>
    %225 = vector.shape_cast %224 : vector<1x16x120xf32> to vector<16x120xf32>
    %cst_148 = arith.constant dense<0.000000e+00> : vector<1x120xf32>
    %226 = tpu.matmul %223, %225, %cst_148 {dimension_numbers = #tpu.dot_dimension_numbers<[1], [0], [0], [1], [0, 0, 1, 1], [], []>} : vector<1x16xf32>, vector<16x120xf32>, vector<1x120xf32> -> vector<1x120xf32>
    %227 = arith.addf %222, %226 : vector<1x120xf32>
    %228 = vector.extract_strided_slice %151 {offsets = [384, 0], sizes = [1, 16], strides = [1, 1]} : vector<529x16xf32> to vector<1x16xf32>
    %c15_149 = arith.constant 15 : index
    %c0_150 = arith.constant 0 : index
    %c0_151 = arith.constant 0 : index
    %229 = vector.load %arg6[%c15_149, %c0_150, %c0_151] : memref<25x16x120xf32, #tpu.memory_space<vmem>>, vector<1x16x120xf32>
    %230 = vector.shape_cast %229 : vector<1x16x120xf32> to vector<16x120xf32>
    %cst_152 = arith.constant dense<0.000000e+00> : vector<1x120xf32>
    %231 = tpu.matmul %228, %230, %cst_152 {dimension_numbers = #tpu.dot_dimension_numbers<[1], [0], [0], [1], [0, 0, 1, 1], [], []>} : vector<1x16xf32>, vector<16x120xf32>, vector<1x120xf32> -> vector<1x120xf32>
    %232 = arith.addf %227, %231 : vector<1x120xf32>
    %233 = vector.extract_strided_slice %151 {offsets = [388, 0], sizes = [1, 16], strides = [1, 1]} : vector<529x16xf32> to vector<1x16xf32>
    %c16_153 = arith.constant 16 : index
    %c0_154 = arith.constant 0 : index
    %c0_155 = arith.constant 0 : index
    %234 = vector.load %arg6[%c16_153, %c0_154, %c0_155] : memref<25x16x120xf32, #tpu.memory_space<vmem>>, vector<1x16x120xf32>
    %235 = vector.shape_cast %234 : vector<1x16x120xf32> to vector<16x120xf32>
    %cst_156 = arith.constant dense<0.000000e+00> : vector<1x120xf32>
    %236 = tpu.matmul %233, %235, %cst_156 {dimension_numbers = #tpu.dot_dimension_numbers<[1], [0], [0], [1], [0, 0, 1, 1], [], []>} : vector<1x16xf32>, vector<16x120xf32>, vector<1x120xf32> -> vector<1x120xf32>
    %237 = arith.addf %232, %236 : vector<1x120xf32>
    %238 = vector.extract_strided_slice %151 {offsets = [392, 0], sizes = [1, 16], strides = [1, 1]} : vector<529x16xf32> to vector<1x16xf32>
    %c17_157 = arith.constant 17 : index
    %c0_158 = arith.constant 0 : index
    %c0_159 = arith.constant 0 : index
    %239 = vector.load %arg6[%c17_157, %c0_158, %c0_159] : memref<25x16x120xf32, #tpu.memory_space<vmem>>, vector<1x16x120xf32>
    %240 = vector.shape_cast %239 : vector<1x16x120xf32> to vector<16x120xf32>
    %cst_160 = arith.constant dense<0.000000e+00> : vector<1x120xf32>
    %241 = tpu.matmul %238, %240, %cst_160 {dimension_numbers = #tpu.dot_dimension_numbers<[1], [0], [0], [1], [0, 0, 1, 1], [], []>} : vector<1x16xf32>, vector<16x120xf32>, vector<1x120xf32> -> vector<1x120xf32>
    %242 = arith.addf %237, %241 : vector<1x120xf32>
    %243 = vector.extract_strided_slice %151 {offsets = [396, 0], sizes = [1, 16], strides = [1, 1]} : vector<529x16xf32> to vector<1x16xf32>
    %c18_161 = arith.constant 18 : index
    %c0_162 = arith.constant 0 : index
    %c0_163 = arith.constant 0 : index
    %244 = vector.load %arg6[%c18_161, %c0_162, %c0_163] : memref<25x16x120xf32, #tpu.memory_space<vmem>>, vector<1x16x120xf32>
    %245 = vector.shape_cast %244 : vector<1x16x120xf32> to vector<16x120xf32>
    %cst_164 = arith.constant dense<0.000000e+00> : vector<1x120xf32>
    %246 = tpu.matmul %243, %245, %cst_164 {dimension_numbers = #tpu.dot_dimension_numbers<[1], [0], [0], [1], [0, 0, 1, 1], [], []>} : vector<1x16xf32>, vector<16x120xf32>, vector<1x120xf32> -> vector<1x120xf32>
    %247 = arith.addf %242, %246 : vector<1x120xf32>
    %248 = vector.extract_strided_slice %151 {offsets = [400, 0], sizes = [1, 16], strides = [1, 1]} : vector<529x16xf32> to vector<1x16xf32>
    %c19_165 = arith.constant 19 : index
    %c0_166 = arith.constant 0 : index
    %c0_167 = arith.constant 0 : index
    %249 = vector.load %arg6[%c19_165, %c0_166, %c0_167] : memref<25x16x120xf32, #tpu.memory_space<vmem>>, vector<1x16x120xf32>
    %250 = vector.shape_cast %249 : vector<1x16x120xf32> to vector<16x120xf32>
    %cst_168 = arith.constant dense<0.000000e+00> : vector<1x120xf32>
    %251 = tpu.matmul %248, %250, %cst_168 {dimension_numbers = #tpu.dot_dimension_numbers<[1], [0], [0], [1], [0, 0, 1, 1], [], []>} : vector<1x16xf32>, vector<16x120xf32>, vector<1x120xf32> -> vector<1x120xf32>
    %252 = arith.addf %247, %251 : vector<1x120xf32>
    %253 = vector.extract_strided_slice %151 {offsets = [512, 0], sizes = [1, 16], strides = [1, 1]} : vector<529x16xf32> to vector<1x16xf32>
    %c20_169 = arith.constant 20 : index
    %c0_170 = arith.constant 0 : index
    %c0_171 = arith.constant 0 : index
    %254 = vector.load %arg6[%c20_169, %c0_170, %c0_171] : memref<25x16x120xf32, #tpu.memory_space<vmem>>, vector<1x16x120xf32>
    %255 = vector.shape_cast %254 : vector<1x16x120xf32> to vector<16x120xf32>
    %cst_172 = arith.constant dense<0.000000e+00> : vector<1x120xf32>
    %256 = tpu.matmul %253, %255, %cst_172 {dimension_numbers = #tpu.dot_dimension_numbers<[1], [0], [0], [1], [0, 0, 1, 1], [], []>} : vector<1x16xf32>, vector<16x120xf32>, vector<1x120xf32> -> vector<1x120xf32>
    %257 = arith.addf %252, %256 : vector<1x120xf32>
    %258 = vector.extract_strided_slice %151 {offsets = [516, 0], sizes = [1, 16], strides = [1, 1]} : vector<529x16xf32> to vector<1x16xf32>
    %c21_173 = arith.constant 21 : index
    %c0_174 = arith.constant 0 : index
    %c0_175 = arith.constant 0 : index
    %259 = vector.load %arg6[%c21_173, %c0_174, %c0_175] : memref<25x16x120xf32, #tpu.memory_space<vmem>>, vector<1x16x120xf32>
    %260 = vector.shape_cast %259 : vector<1x16x120xf32> to vector<16x120xf32>
    %cst_176 = arith.constant dense<0.000000e+00> : vector<1x120xf32>
    %261 = tpu.matmul %258, %260, %cst_176 {dimension_numbers = #tpu.dot_dimension_numbers<[1], [0], [0], [1], [0, 0, 1, 1], [], []>} : vector<1x16xf32>, vector<16x120xf32>, vector<1x120xf32> -> vector<1x120xf32>
    %262 = arith.addf %257, %261 : vector<1x120xf32>
    %263 = vector.extract_strided_slice %151 {offsets = [520, 0], sizes = [1, 16], strides = [1, 1]} : vector<529x16xf32> to vector<1x16xf32>
    %c22_177 = arith.constant 22 : index
    %c0_178 = arith.constant 0 : index
    %c0_179 = arith.constant 0 : index
    %264 = vector.load %arg6[%c22_177, %c0_178, %c0_179] : memref<25x16x120xf32, #tpu.memory_space<vmem>>, vector<1x16x120xf32>
    %265 = vector.shape_cast %264 : vector<1x16x120xf32> to vector<16x120xf32>
    %cst_180 = arith.constant dense<0.000000e+00> : vector<1x120xf32>
    %266 = tpu.matmul %263, %265, %cst_180 {dimension_numbers = #tpu.dot_dimension_numbers<[1], [0], [0], [1], [0, 0, 1, 1], [], []>} : vector<1x16xf32>, vector<16x120xf32>, vector<1x120xf32> -> vector<1x120xf32>
    %267 = arith.addf %262, %266 : vector<1x120xf32>
    %268 = vector.extract_strided_slice %151 {offsets = [524, 0], sizes = [1, 16], strides = [1, 1]} : vector<529x16xf32> to vector<1x16xf32>
    %c23_181 = arith.constant 23 : index
    %c0_182 = arith.constant 0 : index
    %c0_183 = arith.constant 0 : index
    %269 = vector.load %arg6[%c23_181, %c0_182, %c0_183] : memref<25x16x120xf32, #tpu.memory_space<vmem>>, vector<1x16x120xf32>
    %270 = vector.shape_cast %269 : vector<1x16x120xf32> to vector<16x120xf32>
    %cst_184 = arith.constant dense<0.000000e+00> : vector<1x120xf32>
    %271 = tpu.matmul %268, %270, %cst_184 {dimension_numbers = #tpu.dot_dimension_numbers<[1], [0], [0], [1], [0, 0, 1, 1], [], []>} : vector<1x16xf32>, vector<16x120xf32>, vector<1x120xf32> -> vector<1x120xf32>
    %272 = arith.addf %267, %271 : vector<1x120xf32>
    %273 = vector.extract_strided_slice %151 {offsets = [528, 0], sizes = [1, 16], strides = [1, 1]} : vector<529x16xf32> to vector<1x16xf32>
    %c24_185 = arith.constant 24 : index
    %c0_186 = arith.constant 0 : index
    %c0_187 = arith.constant 0 : index
    %274 = vector.load %arg6[%c24_185, %c0_186, %c0_187] : memref<25x16x120xf32, #tpu.memory_space<vmem>>, vector<1x16x120xf32>
    %275 = vector.shape_cast %274 : vector<1x16x120xf32> to vector<16x120xf32>
    %cst_188 = arith.constant dense<0.000000e+00> : vector<1x120xf32>
    %276 = tpu.matmul %273, %275, %cst_188 {dimension_numbers = #tpu.dot_dimension_numbers<[1], [0], [0], [1], [0, 0, 1, 1], [], []>} : vector<1x16xf32>, vector<16x120xf32>, vector<1x120xf32> -> vector<1x120xf32>
    %277 = arith.addf %272, %276 : vector<1x120xf32>
    %cst_189 = arith.constant 0.000000e+00 : f32
    %278 = vector.broadcast %cst_189 : f32 to vector<1x120xf32>
    %279 = arith.maximumf %277, %278 : vector<1x120xf32>
    %c0_190 = arith.constant 0 : index
    %c0_191 = arith.constant 0 : index
    %280 = vector.load %arg8[%c0_190, %c0_191] : memref<120x84xf32, #tpu.memory_space<vmem>>, vector<120x84xf32>
    %cst_192 = arith.constant dense<0.000000e+00> : vector<1x84xf32>
    %281 = tpu.matmul %279, %280, %cst_192 {dimension_numbers = #tpu.dot_dimension_numbers<[1], [0], [0], [1], [0, 0, 1, 1], [], []>} : vector<1x120xf32>, vector<120x84xf32>, vector<1x84xf32> -> vector<1x84xf32>
    %c0_193 = arith.constant 0 : index
    %c0_194 = arith.constant 0 : index
    %282 = vector.load %arg9[%c0_193, %c0_194] : memref<1x84xf32, #tpu.memory_space<vmem>>, vector<1x84xf32>
    %283 = arith.addf %281, %282 : vector<1x84xf32>
    %cst_195 = arith.constant 0.000000e+00 : f32
    %284 = vector.broadcast %cst_195 : f32 to vector<1x84xf32>
    %285 = arith.maximumf %283, %284 : vector<1x84xf32>
    %c0_196 = arith.constant 0 : index
    %c0_197 = arith.constant 0 : index
    %286 = vector.load %arg10[%c0_196, %c0_197] : memref<84x10xf32, #tpu.memory_space<vmem>>, vector<84x10xf32>
    %cst_198 = arith.constant dense<0.000000e+00> : vector<1x10xf32>
    %287 = tpu.matmul %285, %286, %cst_198 {dimension_numbers = #tpu.dot_dimension_numbers<[1], [0], [0], [1], [0, 0, 1, 1], [], []>} : vector<1x84xf32>, vector<84x10xf32>, vector<1x10xf32> -> vector<1x10xf32>
    %c0_199 = arith.constant 0 : index
    %c0_200 = arith.constant 0 : index
    %288 = vector.load %arg11[%c0_199, %c0_200] : memref<1x10xf32, #tpu.memory_space<vmem>>, vector<1x10xf32>
    %289 = arith.addf %287, %288 : vector<1x10xf32>
    %c0_201 = arith.constant 0 : index
    %c0_202 = arith.constant 0 : index
    %c0_203 = arith.constant 0 : index
    %290 = vector.load %arg12[%c0_201, %c0_202, %c0_203] : memref<1x1x10xf32, #tpu.memory_space<vmem>>, vector<1x1x10xf32>
    %291 = vector.shape_cast %290 : vector<1x1x10xf32> to vector<1x10xf32>
    %292 = vector.shape_cast %289 : vector<1x10xf32> to vector<1x1x10xf32>
    tpu.vector_store %arg12[%c0_201, %c0_202, %c0_203], %292 {strides = array<i32>} : memref<1x1x10xf32, #tpu.memory_space<vmem>>, vector<1x1x10xf32>,
    return
  }
  func.func @transform_0(%arg0: i32) -> (i32, i32, i32) {
    %c0_i32 = arith.constant 0 : i32
    %c0_i32_0 = arith.constant 0 : i32
    %c0_i32_1 = arith.constant 0 : i32
    return %arg0, %c0_i32, %c0_i32_0 : i32, i32, i32
  }
  func.func @transform_1(%arg0: i32) -> (i32, i32) {
    %c0_i32 = arith.constant 0 : i32
    %c0_i32_0 = arith.constant 0 : i32
    %c0_i32_1 = arith.constant 0 : i32
    return %c0_i32, %c0_i32_0 : i32, i32
  }
  func.func @transform_2(%arg0: i32) -> (i32, i32) {
    %c0_i32 = arith.constant 0 : i32
    %c0_i32_0 = arith.constant 0 : i32
    %c0_i32_1 = arith.constant 0 : i32
    return %c0_i32, %c0_i32_0 : i32, i32
  }
  func.func @transform_3(%arg0: i32) -> (i32, i32, i32) {
    %c0_i32 = arith.constant 0 : i32
    %c0_i32_0 = arith.constant 0 : i32
    %c0_i32_1 = arith.constant 0 : i32
    %c0_i32_2 = arith.constant 0 : i32
    return %c0_i32, %c0_i32_0, %c0_i32_1 : i32, i32, i32
  }
  func.func @transform_4(%arg0: i32) -> (i32, i32) {
    %c0_i32 = arith.constant 0 : i32
    %c0_i32_0 = arith.constant 0 : i32
    %c0_i32_1 = arith.constant 0 : i32
    return %c0_i32, %c0_i32_0 : i32, i32
  }
  func.func @transform_5(%arg0: i32) -> (i32, i32, i32) {
    %c0_i32 = arith.constant 0 : i32
    %c0_i32_0 = arith.constant 0 : i32
    %c0_i32_1 = arith.constant 0 : i32
    %c0_i32_2 = arith.constant 0 : i32
    return %c0_i32, %c0_i32_0, %c0_i32_1 : i32, i32, i32
  }
  func.func @transform_6(%arg0: i32) -> (i32, i32) {
    %c0_i32 = arith.constant 0 : i32
    %c0_i32_0 = arith.constant 0 : i32
    %c0_i32_1 = arith.constant 0 : i32
    return %c0_i32, %c0_i32_0 : i32, i32
  }
  func.func @transform_7(%arg0: i32) -> (i32, i32) {
    %c0_i32 = arith.constant 0 : i32
    %c0_i32_0 = arith.constant 0 : i32
    %c0_i32_1 = arith.constant 0 : i32
    return %c0_i32, %c0_i32_0 : i32, i32
  }
  func.func @transform_8(%arg0: i32) -> (i32, i32) {
    %c0_i32 = arith.constant 0 : i32
    %c0_i32_0 = arith.constant 0 : i32
    %c0_i32_1 = arith.constant 0 : i32
    return %c0_i32, %c0_i32_0 : i32, i32
  }
  func.func @transform_9(%arg0: i32) -> (i32, i32) {
    %c0_i32 = arith.constant 0 : i32
    %c0_i32_0 = arith.constant 0 : i32
    %c0_i32_1 = arith.constant 0 : i32
    return %c0_i32, %c0_i32_0 : i32, i32
  }
  func.func @transform_10(%arg0: i32) -> (i32, i32) {
    %c0_i32 = arith.constant 0 : i32
    %c0_i32_0 = arith.constant 0 : i32
    %c0_i32_1 = arith.constant 0 : i32
    return %c0_i32, %c0_i32_0 : i32, i32
  }
  func.func @transform_11(%arg0: i32) -> (i32, i32, i32) {
    %c0_i32 = arith.constant 0 : i32
    %c0_i32_0 = arith.constant 0 : i32
    %c0_i32_1 = arith.constant 0 : i32
    return %arg0, %c0_i32, %c0_i32_0 : i32, i32, i32
  }
}

</mosaic_0001>

<llo_original>
// kernel: tpu_custom_call.1
$region0: #{tpu_custom_call.1}
  #allocation0 [shape = 'u32[]', space=smem, size = 0x4, offset = 0x4, fixed_abs, tag = 'smem constant byte address 0x4 - core index']
  #allocation1 [shape = 'u32[72,128]{1,0:T(1,128)}', space=vmem, size = 0x9000, scoped, tag = 'internal scratch']
  %s0 = inlined_call_operand.vmem [shape: f32[2,1024,75], index: 0, kind: input, shape index: {}]
  %s1 = inlined_call_operand.vmem [shape: f32[75,6], index: 1, kind: input, shape index: {}]
  %s2 = inlined_call_operand.vmem [shape: f32[1,6], index: 2, kind: input, shape index: {}]
  %s3 = inlined_call_operand.vmem [shape: f32[25,6,16], index: 3, kind: input, shape index: {}]
  %s4 = inlined_call_operand.vmem [shape: f32[1,16], index: 4, kind: input, shape index: {}]
  %s5 = inlined_call_operand.vmem [shape: f32[25,16,120], index: 5, kind: input, shape index: {}]
  %s6 = inlined_call_operand.vmem [shape: f32[1,120], index: 6, kind: input, shape index: {}]
  %s7 = inlined_call_operand.vmem [shape: f32[120,84], index: 7, kind: input, shape index: {}]
  %s8 = inlined_call_operand.vmem [shape: f32[1,84], index: 8, kind: input, shape index: {}]
  %s9 = inlined_call_operand.vmem [shape: f32[84,10], index: 9, kind: input, shape index: {}]
  %s10 = inlined_call_operand.vmem [shape: f32[1,10], index: 10, kind: input, shape index: {}]
  %s11 = inlined_call_operand.hbm [shape: f32[2,1,10], index: 11, kind: output, shape index: {}]
  %s12 = sld [smem:[#allocation0]]
  $region77: #{tpu_custom_call.1} parent=0
    _
  %s14 = ssub.s32 1, %s12
  %s15 = scalar_select 0, %s14, %s12
  $region1: #{tpu_custom_call.1} parent=0
    #allocation2 [shape = 'u8[1024]{0}', space=vmem, size = 0x400, scoped, tag = 'output window, operand 0']
    #allocation3 [shape = 's32[2]{0}', space=sflag, size = 0x8, scoped, tag = 'scoped memory for tpu_custom_call.1']
    %16 = vsyncpa [#allocation3], 0
    %s17 = scalar_lea.sflag [#allocation3], 1
    %18 = vsyncpa %s17, 0
    loop: start=0, step=1, limit=4
    $region2: #{tpu_custom_call.1} parent=1 // loop_pre_header
      _
    $region3: #{tpu_custom_call.1} parent=1 // loop_header
      %s20 = sphi 0, %s24
      %p21 = scmp.ge.s32.totalorder %s20, 4
      %s30 = sphi 0, %s32
      %s33 = sphi 0, %s30
      %s34 = sphi 0, %s33
      %s50 = sphi 0, %s34
      %s54 = sphi 0, %s54
      %s56 = sphi 0, %s54
      %s57 = sphi 0, %s56
      %s71 = sphi 0, %s57
      %s75 = sphi 0, %s75
      %s77 = sphi 0, %s75
      %s78 = sphi 0, %s77
      %s92 = sphi 0, %s78
      %s96 = sphi 0, %s96
      %s98 = sphi 0, %s96
      %s99 = sphi 0, %s98
      %s113 = sphi 0, %s99
      %s117 = sphi 0, %s117
      %s119 = sphi 0, %s117
      %s120 = sphi 0, %s119
      %s134 = sphi 0, %s120
      %s138 = sphi 0, %s138
      %s140 = sphi 0, %s138
      %s141 = sphi 0, %s140
      %s155 = sphi 0, %s141
      %s159 = sphi 0, %s159
      %s161 = sphi 0, %s159
      %s162 = sphi 0, %s161
      %s176 = sphi 0, %s162
      %s180 = sphi 0, %s180
      %s182 = sphi 0, %s180
      %s183 = sphi 0, %s182
      %s197 = sphi 0, %s183
      %s201 = sphi 0, %s201
      %s203 = sphi 0, %s201
      %s204 = sphi 0, %s203
      %s218 = sphi 0, %s204
      %s222 = sphi 0, %s222
      %s224 = sphi 0, %s222
      %s225 = sphi 0, %s224
      %s239 = sphi 0, %s225
      %s243 = sphi 0, %s243
      %s245 = sphi 0, %s243
      %s246 = sphi 0, %s245
      %s260 = sphi 0, %s246
      %s266 = sphi 0, %s268
      %s269 = sphi 0, %s266
      %s270 = sphi 0, %s269
      %s286 = sphi 0, %s270
    $region4: #{tpu_custom_call.1} parent=1 // loop_header_branch
      %23 = sbr.rel (%p21) target = $region8
    $region5: #{tpu_custom_call.1} parent=1 // loop_body
      %s25 = ssub.s32 %s20, 1
      %s26 = ssub.s32 %s20, 2
      %s27 = sadd.s32 %s20, 1
      %s28 = ssub.s32 %s20, %s27
      %p29 = scmp.eq.s32.totalorder %s28, 0
      %s31 = sadd.s32 %s30, 1
      %s32 = scalar_select %p29, %s30, %s31
      %p35 = pneg %p29
      %p36 = scmp.eq.s32.totalorder %s20, 1
      %p37 = por %p35, %p36
      %p38 = scmp.ne.s32.totalorder %s30, %s33
      %p39 = scmp.eq.s32.totalorder %s20, 0
      %p40 = por %p38, %p39
      %p41 = scmp.ne.s32.totalorder %s30, %s33
      %p42 = scmp.eq.s32.totalorder %s25, 1
      %p43 = por %p41, %p42
      %p44 = scmp.ne.s32.totalorder %s33, %s34
      %p45 = scmp.eq.s32.totalorder %s25, 0
      %p46 = por %p44, %p45
      %p47 = scmp.ne.s32.totalorder %s33, %s34
      %p48 = scmp.eq.s32.totalorder %s26, 1
      %p49 = por %p47, %p48
      %p51 = scmp.ne.s32.totalorder %s34, %s50
      %p52 = scmp.eq.s32.totalorder %s26, 0
      %p53 = por %p51, %p52
      %s55 = sadd.s32 %s54, 1
      %p58 = scmp.eq.s32.totalorder %s20, 1
      %p59 = scmp.ne.s32.totalorder %s54, %s56
      %p60 = scmp.eq.s32.totalorder %s20, 0
      %p61 = por %p59, %p60
      %p62 = scmp.ne.s32.totalorder %s54, %s56
      %p63 = scmp.eq.s32.totalorder %s25, 1
      %p64 = por %p62, %p63
      %p65 = scmp.ne.s32.totalorder %s56, %s57
      %p66 = scmp.eq.s32.totalorder %s25, 0
      %p67 = por %p65, %p66
      %p68 = scmp.ne.s32.totalorder %s56, %s57
      %p69 = scmp.eq.s32.totalorder %s26, 1
      %p70 = por %p68, %p69
      %p72 = scmp.ne.s32.totalorder %s57, %s71
      %p73 = scmp.eq.s32.totalorder %s26, 0
      %p74 = por %p72, %p73
      %s76 = sadd.s32 %s75, 1
      %p79 = scmp.eq.s32.totalorder %s20, 1
      %p80 = scmp.ne.s32.totalorder %s75, %s77
      %p81 = scmp.eq.s32.totalorder %s20, 0
      %p82 = por %p80, %p81
      %p83 = scmp.ne.s32.totalorder %s75, %s77
      %p84 = scmp.eq.s32.totalorder %s25, 1
      %p85 = por %p83, %p84
      %p86 = scmp.ne.s32.totalorder %s77, %s78
      %p87 = scmp.eq.s32.totalorder %s25, 0
      %p88 = por %p86, %p87
      %p89 = scmp.ne.s32.totalorder %s77, %s78
      %p90 = scmp.eq.s32.totalorder %s26, 1
      %p91 = por %p89, %p90
      %p93 = scmp.ne.s32.totalorder %s78, %s92
      %p94 = scmp.eq.s32.totalorder %s26, 0
      %p95 = por %p93, %p94
      %s97 = sadd.s32 %s96, 1
      %p100 = scmp.eq.s32.totalorder %s20, 1
      %p101 = scmp.ne.s32.totalorder %s96, %s98
      %p102 = scmp.eq.s32.totalorder %s20, 0
      %p103 = por %p101, %p102
      %p104 = scmp.ne.s32.totalorder %s96, %s98
      %p105 = scmp.eq.s32.totalorder %s25, 1
      %p106 = por %p104, %p105
      %p107 = scmp.ne.s32.totalorder %s98, %s99
      %p108 = scmp.eq.s32.totalorder %s25, 0
      %p109 = por %p107, %p108
      %p110 = scmp.ne.s32.totalorder %s98, %s99
      %p111 = scmp.eq.s32.totalorder %s26, 1
      %p112 = por %p110, %p111
      %p114 = scmp.ne.s32.totalorder %s99, %s113
      %p115 = scmp.eq.s32.totalorder %s26, 0
      %p116 = por %p114, %p115
      %s118 = sadd.s32 %s117, 1
      %p121 = scmp.eq.s32.totalorder %s20, 1
      %p122 = scmp.ne.s32.totalorder %s117, %s119
      %p123 = scmp.eq.s32.totalorder %s20, 0
      %p124 = por %p122, %p123
      %p125 = scmp.ne.s32.totalorder %s117, %s119
      %p126 = scmp.eq.s32.totalorder %s25, 1
      %p127 = por %p125, %p126
      %p128 = scmp.ne.s32.totalorder %s119, %s120
      %p129 = scmp.eq.s32.totalorder %s25, 0
      %p130 = por %p128, %p129
      %p131 = scmp.ne.s32.totalorder %s119, %s120
      %p132 = scmp.eq.s32.totalorder %s26, 1
      %p133 = por %p131, %p132
      %p135 = scmp.ne.s32.totalorder %s120, %s134
      %p136 = scmp.eq.s32.totalorder %s26, 0
      %p137 = por %p135, %p136
      %s139 = sadd.s32 %s138, 1
      %p142 = scmp.eq.s32.totalorder %s20, 1
      %p143 = scmp.ne.s32.totalorder %s138, %s140
      %p144 = scmp.eq.s32.totalorder %s20, 0
      %p145 = por %p143, %p144
      %p146 = scmp.ne.s32.totalorder %s138, %s140
      %p147 = scmp.eq.s32.totalorder %s25, 1
      %p148 = por %p146, %p147
      %p149 = scmp.ne.s32.totalorder %s140, %s141
      %p150 = scmp.eq.s32.totalorder %s25, 0
      %p151 = por %p149, %p150
      %p152 = scmp.ne.s32.totalorder %s140, %s141
      %p153 = scmp.eq.s32.totalorder %s26, 1
      %p154 = por %p152, %p153
      %p156 = scmp.ne.s32.totalorder %s141, %s155
      %p157 = scmp.eq.s32.totalorder %s26, 0
      %p158 = por %p156, %p157
      %s160 = sadd.s32 %s159, 1
      %p163 = scmp.eq.s32.totalorder %s20, 1
      %p164 = scmp.ne.s32.totalorder %s159, %s161
      %p165 = scmp.eq.s32.totalorder %s20, 0
      %p166 = por %p164, %p165
      %p167 = scmp.ne.s32.totalorder %s159, %s161
      %p168 = scmp.eq.s32.totalorder %s25, 1
      %p169 = por %p167, %p168
      %p170 = scmp.ne.s32.totalorder %s161, %s162
      %p171 = scmp.eq.s32.totalorder %s25, 0
      %p172 = por %p170, %p171
      %p173 = scmp.ne.s32.totalorder %s161, %s162
      %p174 = scmp.eq.s32.totalorder %s26, 1
      %p175 = por %p173, %p174
      %p177 = scmp.ne.s32.totalorder %s162, %s176
      %p178 = scmp.eq.s32.totalorder %s26, 0
      %p179 = por %p177, %p178
      %s181 = sadd.s32 %s180, 1
      %p184 = scmp.eq.s32.totalorder %s20, 1
      %p185 = scmp.ne.s32.totalorder %s180, %s182
      %p186 = scmp.eq.s32.totalorder %s20, 0
      %p187 = por %p185, %p186
      %p188 = scmp.ne.s32.totalorder %s180, %s182
      %p189 = scmp.eq.s32.totalorder %s25, 1
      %p190 = por %p188, %p189
      %p191 = scmp.ne.s32.totalorder %s182, %s183
      %p192 = scmp.eq.s32.totalorder %s25, 0
      %p193 = por %p191, %p192
      %p194 = scmp.ne.s32.totalorder %s182, %s183
      %p195 = scmp.eq.s32.totalorder %s26, 1
      %p196 = por %p194, %p195
      %p198 = scmp.ne.s32.totalorder %s183, %s197
      %p199 = scmp.eq.s32.totalorder %s26, 0
      %p200 = por %p198, %p199
      %s202 = sadd.s32 %s201, 1
      %p205 = scmp.eq.s32.totalorder %s20, 1
      %p206 = scmp.ne.s32.totalorder %s201, %s203
      %p207 = scmp.eq.s32.totalorder %s20, 0
      %p208 = por %p206, %p207
      %p209 = scmp.ne.s32.totalorder %s201, %s203
      %p210 = scmp.eq.s32.totalorder %s25, 1
      %p211 = por %p209, %p210
      %p212 = scmp.ne.s32.totalorder %s203, %s204
      %p213 = scmp.eq.s32.totalorder %s25, 0
      %p214 = por %p212, %p213
      %p215 = scmp.ne.s32.totalorder %s203, %s204
      %p216 = scmp.eq.s32.totalorder %s26, 1
      %p217 = por %p215, %p216
      %p219 = scmp.ne.s32.totalorder %s204, %s218
      %p220 = scmp.eq.s32.totalorder %s26, 0
      %p221 = por %p219, %p220
      %s223 = sadd.s32 %s222, 1
      %p226 = scmp.eq.s32.totalorder %s20, 1
      %p227 = scmp.ne.s32.totalorder %s222, %s224
      %p228 = scmp.eq.s32.totalorder %s20, 0
      %p229 = por %p227, %p228
      %p230 = scmp.ne.s32.totalorder %s222, %s224
      %p231 = scmp.eq.s32.totalorder %s25, 1
      %p232 = por %p230, %p231
      %p233 = scmp.ne.s32.totalorder %s224, %s225
      %p234 = scmp.eq.s32.totalorder %s25, 0
      %p235 = por %p233, %p234
      %p236 = scmp.ne.s32.totalorder %s224, %s225
      %p237 = scmp.eq.s32.totalorder %s26, 1
      %p238 = por %p236, %p237
      %p240 = scmp.ne.s32.totalorder %s225, %s239
      %p241 = scmp.eq.s32.totalorder %s26, 0
      %p242 = por %p240, %p241
      %s244 = sadd.s32 %s243, 1
      %p247 = scmp.eq.s32.totalorder %s20, 1
      %p248 = scmp.ne.s32.totalorder %s243, %s245
      %p249 = scmp.eq.s32.totalorder %s20, 0
      %p250 = por %p248, %p249
      %p251 = scmp.ne.s32.totalorder %s243, %s245
      %p252 = scmp.eq.s32.totalorder %s25, 1
      %p253 = por %p251, %p252
      %p254 = scmp.ne.s32.totalorder %s245, %s246
      %p255 = scmp.eq.s32.totalorder %s25, 0
      %p256 = por %p254, %p255
      %p257 = scmp.ne.s32.totalorder %s245, %s246
      %p258 = scmp.eq.s32.totalorder %s26, 1
      %p259 = por %p257, %p258
      %p261 = scmp.ne.s32.totalorder %s246, %s260
      %p262 = scmp.eq.s32.totalorder %s26, 0
      %p263 = por %p261, %p262
      %s264 = ssub.s32 %s20, %s27
      %p265 = scmp.eq.s32.totalorder %s264, 0
      %s267 = sadd.s32 %s266, 1
      %s268 = scalar_select %p265, %s266, %s267
      %p271 = pneg %p265
      %p272 = scmp.eq.s32.totalorder %s20, 1
      %p273 = por %p271, %p272
      %p274 = scmp.ne.s32.totalorder %s266, %s269
      %p275 = scmp.eq.s32.totalorder %s20, 0
      %p276 = por %p274, %p275
      %p277 = scmp.ne.s32.totalorder %s266, %s269
      %p278 = scmp.eq.s32.totalorder %s25, 1
      %p279 = por %p277, %p278
      %p280 = scmp.ne.s32.totalorder %s269, %s270
      %p281 = scmp.eq.s32.totalorder %s25, 0
      %p282 = por %p280, %p281
      %p283 = scmp.ne.s32.totalorder %s269, %s270
      %p284 = scmp.eq.s32.totalorder %s26, 1
      %p285 = por %p283, %p284
      %p287 = scmp.ne.s32.totalorder %s270, %s286
      %p288 = scmp.eq.s32.totalorder %s26, 0
      %p289 = por %p287, %p288
      %p290 = scmp.le.s32.totalorder 1, %s20
      %p291 = scmp.lt.s32.totalorder %s20, 3
      %p292 = pnand %p290, %p291
      %p293 = pneg %p292
      // Predicated region
      $region9: #{tpu_custom_call.1} parent=5 // pred_check
        _
      $region10: #{tpu_custom_call.1} parent=5 // pred_check_branch
        %295 = sbr.rel (%p292) target = $region12
      $region11: #{tpu_custom_call.1} parent=5 // pred_region
        %s296 = ssub.s32 %s20, 1
        // Predicated region
        $region13: #{tpu_custom_call.1} parent=11 // pred_check
          %p297 = pneg %p67
        $region14: #{tpu_custom_call.1} parent=11 // pred_check_branch
          %299 = sbr.rel (%p297) target = $region16
        $region15: #{tpu_custom_call.1} parent=11 // pred_region
          _
        $region16: #{tpu_custom_call.1} parent=11 // pred_fallthru
          _
        // Predicated region
        $region17: #{tpu_custom_call.1} parent=11 // pred_check
          %p300 = pneg %p88
        $region18: #{tpu_custom_call.1} parent=11 // pred_check_branch
          %302 = sbr.rel (%p300) target = $region20
        $region19: #{tpu_custom_call.1} parent=11 // pred_region
          _
        $region20: #{tpu_custom_call.1} parent=11 // pred_fallthru
          _
        // Predicated region
        $region21: #{tpu_custom_call.1} parent=11 // pred_check
          %p303 = pneg %p109
        $region22: #{tpu_custom_call.1} parent=11 // pred_check_branch
          %305 = sbr.rel (%p303) target = $region24
        $region23: #{tpu_custom_call.1} parent=11 // pred_region
          _
        $region24: #{tpu_custom_call.1} parent=11 // pred_fallthru
          _
        // Predicated region
        $region25: #{tpu_custom_call.1} parent=11 // pred_check
          %p306 = pneg %p130
        $region26: #{tpu_custom_call.1} parent=11 // pred_check_branch
          %308 = sbr.rel (%p306) target = $region28
        $region27: #{tpu_custom_call.1} parent=11 // pred_region
          _
        $region28: #{tpu_custom_call.1} parent=11 // pred_fallthru
          _
        // Predicated region
        $region29: #{tpu_custom_call.1} parent=11 // pred_check
          %p309 = pneg %p151
        $region30: #{tpu_custom_call.1} parent=11 // pred_check_branch
          %311 = sbr.rel (%p309) target = $region32
        $region31: #{tpu_custom_call.1} parent=11 // pred_region
          _
        $region32: #{tpu_custom_call.1} parent=11 // pred_fallthru
          _
        // Predicated region
        $region33: #{tpu_custom_call.1} parent=11 // pred_check
          %p312 = pneg %p172
        $region34: #{tpu_custom_call.1} parent=11 // pred_check_branch
          %314 = sbr.rel (%p312) target = $region36
        $region35: #{tpu_custom_call.1} parent=11 // pred_region
          _
        $region36: #{tpu_custom_call.1} parent=11 // pred_fallthru
          _
        // Predicated region
        $region37: #{tpu_custom_call.1} parent=11 // pred_check
          %p315 = pneg %p193
        $region38: #{tpu_custom_call.1} parent=11 // pred_check_branch
          %317 = sbr.rel (%p315) target = $region40
        $region39: #{tpu_custom_call.1} parent=11 // pred_region
          _
        $region40: #{tpu_custom_call.1} parent=11 // pred_fallthru
          _
        // Predicated region
        $region41: #{tpu_custom_call.1} parent=11 // pred_check
          %p318 = pneg %p214
        $region42: #{tpu_custom_call.1} parent=11 // pred_check_branch
          %320 = sbr.rel (%p318) target = $region44
        $region43: #{tpu_custom_call.1} parent=11 // pred_region
          _
        $region44: #{tpu_custom_call.1} parent=11 // pred_fallthru
          _
        // Predicated region
        $region45: #{tpu_custom_call.1} parent=11 // pred_check
          %p321 = pneg %p235
        $region46: #{tpu_custom_call.1} parent=11 // pred_check_branch
          %323 = sbr.rel (%p321) target = $region48
        $region47: #{tpu_custom_call.1} parent=11 // pred_region
          _
        $region48: #{tpu_custom_call.1} parent=11 // pred_fallthru
          _
        // Predicated region
        $region49: #{tpu_custom_call.1} parent=11 // pred_check
          %p324 = pneg %p256
        $region50: #{tpu_custom_call.1} parent=11 // pred_check_branch
          %326 = sbr.rel (%p324) target = $region52
        $region51: #{tpu_custom_call.1} parent=11 // pred_region
          _
        $region52: #{tpu_custom_call.1} parent=11 // pred_fallthru
          _
      $region12: #{tpu_custom_call.1} parent=5 // pred_fallthru
        _
      %p327 = scmp.lt.s32.totalorder %s20, 2
      // Predicated region
      $region53: #{tpu_custom_call.1} parent=5 // pred_check
        %p328 = pneg %p327
      $region54: #{tpu_custom_call.1} parent=5 // pred_check_branch
        %330 = sbr.rel (%p328) target = $region56
      $region55: #{tpu_custom_call.1} parent=5 // pred_region
        // Predicated region
        $region57: #{tpu_custom_call.1} parent=55 // pred_check
          %p331 = pneg %p40
        $region58: #{tpu_custom_call.1} parent=55 // pred_check_branch
          %333 = sbr.rel (%p331) target = $region60
        $region59: #{tpu_custom_call.1} parent=55 // pred_region
          %p334 = scmp.lt.s32.totalorder %s20, 1
          %s335 = scalar_select %p334, %s20, 1
          %s336 = smul.addr %s335, 128
          %s337 = smul.addr %s336, 8
          %s338 = scalar_lea.vmem %s0, %s337
        $region60: #{tpu_custom_call.1} parent=55 // pred_fallthru
          _
      $region56: #{tpu_custom_call.1} parent=5 // pred_fallthru
        _
      %p339 = scmp.le.s32.totalorder 1, %s20
      %p340 = scmp.lt.s32.totalorder %s20, 3
      %p341 = pnand %p339, %p340
      %p342 = pneg %p341
      // Predicated region
      $region61: #{tpu_custom_call.1} parent=5 // pred_check
        _
      $region62: #{tpu_custom_call.1} parent=5 // pred_check_branch
        %344 = sbr.rel (%p341) target = $region64
      $region63: #{tpu_custom_call.1} parent=5 // pred_region
        %s345 = ssub.s32 %s20, 1
        %p346 = scmp.lt.s32.totalorder %s25, 1
        %s347 = scalar_select %p346, %s25, 1
        %s348 = smul.addr %s347, 128
        %s349 = smul.addr %s348, 8
        %s350 = scalar_lea.vmem %s0, %s349
        %p351 = pneg %p46
        %p352 = pneg %p43
        %p353 = pneg %p67
        %p354 = pneg %p64
        %p355 = pneg %p88
        %p356 = pneg %p85
        %p357 = pneg %p109
        %p358 = pneg %p106
        %p359 = pneg %p130
        %p360 = pneg %p127
        %p361 = pneg %p151
        %p362 = pneg %p148
        %p363 = pneg %p172
        %p364 = pneg %p169
        %p365 = pneg %p193
        %p366 = pneg %p190
        %p367 = pneg %p214
        %p368 = pneg %p211
        %p369 = pneg %p235
        %p370 = pneg %p232
        %p371 = pneg %p256
        %p372 = pneg %p253
        %p373 = pneg %p282
        %p374 = pneg %p279
        %s375 = sand.u32 %s269, 1
        %s376 = scalar_lea.sflag [#allocation3], %s375
        %s377 = sand.u32 %s269, 1
        %s378 = scalar_lea.vmem [#allocation2], %s377
        %p379 = scmp.lt.s32.totalorder %s25, 1
        %s380 = scalar_select %p379, %s25, 1
        %s381 = smul.addr %s380, 128
        %s382 = smul.addr %s381, 8
        %s383 = scalar_lea.vmem %s0, %s382
        %v384 = vld [vmem:[%s383] sm:$0xff]
        %v385 = vld [vmem:[%s383 + $0x8] sm:$0xff]
        %v386 = vld [vmem:[%s383 + $0x10] sm:$0xff]
        %v387 = vld [vmem:[%s383 + $0x18] sm:$0xff]
        %v388 = vld [vmem:[%s383 + $0x20] sm:$0xff]
        %v389 = vld [vmem:[%s383 + $0x28] sm:$0xff]
        %v390 = vld [vmem:[%s383 + $0x30] sm:$0xff]
        %v391 = vld [vmem:[%s383 + $0x38] sm:$0xff]
        %v392 = vld [vmem:[%s383 + $0x40] sm:$0xff]
        %v393 = vld [vmem:[%s383 + $0x48] sm:$0xff]
        %v394 = vld [vmem:[%s383 + $0x50] sm:$0xff]
        %v395 = vld [vmem:[%s383 + $0x58] sm:$0xff]
        %v396 = vld [vmem:[%s383 + $0x60] sm:$0xff]
        %v397 = vld [vmem:[%s383 + $0x68] sm:$0xff]
        %v398 = vld [vmem:[%s383 + $0x70] sm:$0xff]
        %v399 = vld [vmem:[%s383 + $0x78] sm:$0xff]
        %v400 = vld [vmem:[%s383 + $0x80] sm:$0xff]
        %v401 = vld [vmem:[%s383 + $0x88] sm:$0xff]
        %v402 = vld [vmem:[%s383 + $0x90] sm:$0xff]
        %v403 = vld [vmem:[%s383 + $0x98] sm:$0xff]
        %v404 = vld [vmem:[%s383 + $0xa0] sm:$0xff]
        %v405 = vld [vmem:[%s383 + $0xa8] sm:$0xff]
        %v406 = vld [vmem:[%s383 + $0xb0] sm:$0xff]
        %v407 = vld [vmem:[%s383 + $0xb8] sm:$0xff]
        %v408 = vld [vmem:[%s383 + $0xc0] sm:$0xff]
        %v409 = vld [vmem:[%s383 + $0xc8] sm:$0xff]
        %v410 = vld [vmem:[%s383 + $0xd0] sm:$0xff]
        %v411 = vld [vmem:[%s383 + $0xd8] sm:$0xff]
        %v412 = vld [vmem:[%s383 + $0xe0] sm:$0xff]
        %v413 = vld [vmem:[%s383 + $0xe8] sm:$0xff]
        %v414 = vld [vmem:[%s383 + $0xf0] sm:$0xff]
        %v415 = vld [vmem:[%s383 + $0xf8] sm:$0xff]
        %v416 = vld [vmem:[%s383 + $0x100] sm:$0xff]
        %v417 = vld [vmem:[%s383 + $0x108] sm:$0xff]
        %v418 = vld [vmem:[%s383 + $0x110] sm:$0xff]
        %v419 = vld [vmem:[%s383 + $0x118] sm:$0xff]
        %v420 = vld [vmem:[%s383 + $0x120] sm:$0xff]
        %v421 = vld [vmem:[%s383 + $0x128] sm:$0xff]
        %v422 = vld [vmem:[%s383 + $0x130] sm:$0xff]
        %v423 = vld [vmem:[%s383 + $0x138] sm:$0xff]
        %v424 = vld [vmem:[%s383 + $0x140] sm:$0xff]
        %v425 = vld [vmem:[%s383 + $0x148] sm:$0xff]
        %v426 = vld [vmem:[%s383 + $0x150] sm:$0xff]
        %v427 = vld [vmem:[%s383 + $0x158] sm:$0xff]
        %v428 = vld [vmem:[%s383 + $0x160] sm:$0xff]
        %v429 = vld [vmem:[%s383 + $0x168] sm:$0xff]
        %v430 = vld [vmem:[%s383 + $0x170] sm:$0xff]
        %v431 = vld [vmem:[%s383 + $0x178] sm:$0xff]
        %v432 = vld [vmem:[%s383 + $0x180] sm:$0xff]
        %v433 = vld [vmem:[%s383 + $0x188] sm:$0xff]
        %v434 = vld [vmem:[%s383 + $0x190] sm:$0xff]
        %v435 = vld [vmem:[%s383 + $0x198] sm:$0xff]
        %v436 = vld [vmem:[%s383 + $0x1a0] sm:$0xff]
        %v437 = vld [vmem:[%s383 + $0x1a8] sm:$0xff]
        %v438 = vld [vmem:[%s383 + $0x1b0] sm:$0xff]
        %v439 = vld [vmem:[%s383 + $0x1b8] sm:$0xff]
        %v440 = vld [vmem:[%s383 + $0x1c0] sm:$0xff]
        %v441 = vld [vmem:[%s383 + $0x1c8] sm:$0xff]
        %v442 = vld [vmem:[%s383 + $0x1d0] sm:$0xff]
        %v443 = vld [vmem:[%s383 + $0x1d8] sm:$0xff]
        %v444 = vld [vmem:[%s383 + $0x1e0] sm:$0xff]
        %v445 = vld [vmem:[%s383 + $0x1e8] sm:$0xff]
        %v446 = vld [vmem:[%s383 + $0x1f0] sm:$0xff]
        %v447 = vld [vmem:[%s383 + $0x1f8] sm:$0xff]
        %v448 = vld [vmem:[%s383 + $0x200] sm:$0xff]
        %v449 = vld [vmem:[%s383 + $0x208] sm:$0xff]
        %v450 = vld [vmem:[%s383 + $0x210] sm:$0xff]
        %v451 = vld [vmem:[%s383 + $0x218] sm:$0xff]
        %v452 = vld [vmem:[%s383 + $0x220] sm:$0xff]
        %v453 = vld [vmem:[%s383 + $0x228] sm:$0xff]
        %v454 = vld [vmem:[%s383 + $0x230] sm:$0xff]
        %v455 = vld [vmem:[%s383 + $0x238] sm:$0xff]
        %v456 = vld [vmem:[%s383 + $0x240] sm:$0xff]
        %v457 = vld [vmem:[%s383 + $0x248] sm:$0xff]
        %v458 = vld [vmem:[%s383 + $0x250] sm:$0xff]
        %v459 = vld [vmem:[%s383 + $0x258] sm:$0xff]
        %v460 = vld [vmem:[%s383 + $0x260] sm:$0xff]
        %v461 = vld [vmem:[%s383 + $0x268] sm:$0xff]
        %v462 = vld [vmem:[%s383 + $0x270] sm:$0xff]
        %v463 = vld [vmem:[%s383 + $0x278] sm:$0xff]
        %v464 = vld [vmem:[%s383 + $0x280] sm:$0xff]
        %v465 = vld [vmem:[%s383 + $0x288] sm:$0xff]
        %v466 = vld [vmem:[%s383 + $0x290] sm:$0xff]
        %v467 = vld [vmem:[%s383 + $0x298] sm:$0xff]
        %v468 = vld [vmem:[%s383 + $0x2a0] sm:$0xff]
        %v469 = vld [vmem:[%s383 + $0x2a8] sm:$0xff]
        %v470 = vld [vmem:[%s383 + $0x2b0] sm:$0xff]
        %v471 = vld [vmem:[%s383 + $0x2b8] sm:$0xff]
        %v472 = vld [vmem:[%s383 + $0x2c0] sm:$0xff]
        %v473 = vld [vmem:[%s383 + $0x2c8] sm:$0xff]
        %v474 = vld [vmem:[%s383 + $0x2d0] sm:$0xff]
        %v475 = vld [vmem:[%s383 + $0x2d8] sm:$0xff]
        %v476 = vld [vmem:[%s383 + $0x2e0] sm:$0xff]
        %v477 = vld [vmem:[%s383 + $0x2e8] sm:$0xff]
        %v478 = vld [vmem:[%s383 + $0x2f0] sm:$0xff]
        %v479 = vld [vmem:[%s383 + $0x2f8] sm:$0xff]
        %v480 = vld [vmem:[%s383 + $0x300] sm:$0xff]
        %v481 = vld [vmem:[%s383 + $0x308] sm:$0xff]
        %v482 = vld [vmem:[%s383 + $0x310] sm:$0xff]
        %v483 = vld [vmem:[%s383 + $0x318] sm:$0xff]
        %v484 = vld [vmem:[%s383 + $0x320] sm:$0xff]
        %v485 = vld [vmem:[%s383 + $0x328] sm:$0xff]
        %v486 = vld [vmem:[%s383 + $0x330] sm:$0xff]
        %v487 = vld [vmem:[%s383 + $0x338] sm:$0xff]
        %v488 = vld [vmem:[%s383 + $0x340] sm:$0xff]
        %v489 = vld [vmem:[%s383 + $0x348] sm:$0xff]
        %v490 = vld [vmem:[%s383 + $0x350] sm:$0xff]
        %v491 = vld [vmem:[%s383 + $0x358] sm:$0xff]
        %v492 = vld [vmem:[%s383 + $0x360] sm:$0xff]
        %v493 = vld [vmem:[%s383 + $0x368] sm:$0xff]
        %v494 = vld [vmem:[%s383 + $0x370] sm:$0xff]
        %v495 = vld [vmem:[%s383 + $0x378] sm:$0xf]
        %v496 = vld [vmem:[%s1] sm:$0xff]
        %v497 = vld [vmem:[%s1 + $0x8] sm:$0xff]
        %v498 = vld [vmem:[%s1 + $0x10] sm:$0xff]
        %v499 = vld [vmem:[%s1 + $0x18] sm:$0xff]
        %v500 = vld [vmem:[%s1 + $0x20] sm:$0xff]
        %v501 = vld [vmem:[%s1 + $0x28] sm:$0xff]
        %v502 = vld [vmem:[%s1 + $0x30] sm:$0xff]
        %v503 = vld [vmem:[%s1 + $0x38] sm:$0xff]
        %v504 = vld [vmem:[%s1 + $0x40] sm:$0xff]
        %v505 = vld [vmem:[%s1 + $0x48] sm:$0x7]
        %v506 = vld [vmem:[%s2] sm:$0x1]
        %v508 = vperm.slane %v506, 0
        %vm510 = vcmask 613376
        %v512 = vsel %vm510, %v384, 0
        %v515 = vsel %vm510, %v385, 0
        %v518 = vsel %vm510, %v386, 0
        %v521 = vsel %vm510, %v387, 0
        %v524 = vsel %vm510, %v388, 0
        %v527 = vsel %vm510, %v389, 0
        %v530 = vsel %vm510, %v390, 0
        %v533 = vsel %vm510, %v391, 0
        %v536 = vsel %vm510, %v392, 0
        %v539 = vsel %vm510, %v393, 0
        %v542 = vsel %vm510, %v394, 0
        %v545 = vsel %vm510, %v395, 0
        %v548 = vsel %vm510, %v396, 0
        %v551 = vsel %vm510, %v397, 0
        %v554 = vsel %vm510, %v398, 0
        %v557 = vsel %vm510, %v399, 0
        %v560 = vsel %vm510, %v400, 0
        %v563 = vsel %vm510, %v401, 0
        %v566 = vsel %vm510, %v402, 0
        %v569 = vsel %vm510, %v403, 0
        %v572 = vsel %vm510, %v404, 0
        %v575 = vsel %vm510, %v405, 0
        %v578 = vsel %vm510, %v406, 0
        %v581 = vsel %vm510, %v407, 0
        %v584 = vsel %vm510, %v408, 0
        %v587 = vsel %vm510, %v409, 0
        %v590 = vsel %vm510, %v410, 0
        %v593 = vsel %vm510, %v411, 0
        %v596 = vsel %vm510, %v412, 0
        %v599 = vsel %vm510, %v413, 0
        %v602 = vsel %vm510, %v414, 0
        %v605 = vsel %vm510, %v415, 0
        %v608 = vsel %vm510, %v416, 0
        %v611 = vsel %vm510, %v417, 0
        %v614 = vsel %vm510, %v418, 0
        %v617 = vsel %vm510, %v419, 0
        %v620 = vsel %vm510, %v420, 0
        %v623 = vsel %vm510, %v421, 0
        %v626 = vsel %vm510, %v422, 0
        %v629 = vsel %vm510, %v423, 0
        %v632 = vsel %vm510, %v424, 0
        %v635 = vsel %vm510, %v425, 0
        %v638 = vsel %vm510, %v426, 0
        %v641 = vsel %vm510, %v427, 0
        %v644 = vsel %vm510, %v428, 0
        %v647 = vsel %vm510, %v429, 0
        %v650 = vsel %vm510, %v430, 0
        %v653 = vsel %vm510, %v431, 0
        %v656 = vsel %vm510, %v432, 0
        %v659 = vsel %vm510, %v433, 0
        %v662 = vsel %vm510, %v434, 0
        %v665 = vsel %vm510, %v435, 0
        %v668 = vsel %vm510, %v436, 0
        %v671 = vsel %vm510, %v437, 0
        %v674 = vsel %vm510, %v438, 0
        %v677 = vsel %vm510, %v439, 0
        %v680 = vsel %vm510, %v440, 0
        %v683 = vsel %vm510, %v441, 0
        %v686 = vsel %vm510, %v442, 0
        %v689 = vsel %vm510, %v443, 0
        %v692 = vsel %vm510, %v444, 0
        %v695 = vsel %vm510, %v445, 0
        %v698 = vsel %vm510, %v446, 0
        %v701 = vsel %vm510, %v447, 0
        %v704 = vsel %vm510, %v448, 0
        %v707 = vsel %vm510, %v449, 0
        %v710 = vsel %vm510, %v450, 0
        %v713 = vsel %vm510, %v451, 0
        %v716 = vsel %vm510, %v452, 0
        %v719 = vsel %vm510, %v453, 0
        %v722 = vsel %vm510, %v454, 0
        %v725 = vsel %vm510, %v455, 0
        %v728 = vsel %vm510, %v456, 0
        %v731 = vsel %vm510, %v457, 0
        %v734 = vsel %vm510, %v458, 0
        %v737 = vsel %vm510, %v459, 0
        %v740 = vsel %vm510, %v460, 0
        %v743 = vsel %vm510, %v461, 0
        %v746 = vsel %vm510, %v462, 0
        %v749 = vsel %vm510, %v463, 0
        %v752 = vsel %vm510, %v464, 0
        %v755 = vsel %vm510, %v465, 0
        %v758 = vsel %vm510, %v466, 0
        %v761 = vsel %vm510, %v467, 0
        %v764 = vsel %vm510, %v468, 0
        %v767 = vsel %vm510, %v469, 0
        %v770 = vsel %vm510, %v470, 0
        %v773 = vsel %vm510, %v471, 0
        %v776 = vsel %vm510, %v472, 0
        %v779 = vsel %vm510, %v473, 0
        %v782 = vsel %vm510, %v474, 0
        %v785 = vsel %vm510, %v475, 0
        %v788 = vsel %vm510, %v476, 0
        %v791 = vsel %vm510, %v477, 0
        %v794 = vsel %vm510, %v478, 0
        %v797 = vsel %vm510, %v479, 0
        %v800 = vsel %vm510, %v480, 0
        %v803 = vsel %vm510, %v481, 0
        %v806 = vsel %vm510, %v482, 0
        %v809 = vsel %vm510, %v483, 0
        %v812 = vsel %vm510, %v484, 0
        %v815 = vsel %vm510, %v485, 0
        %v818 = vsel %vm510, %v486, 0
        %v821 = vsel %vm510, %v487, 0
        %v824 = vsel %vm510, %v488, 0
        %v827 = vsel %vm510, %v489, 0
        %v830 = vsel %vm510, %v490, 0
        %v833 = vsel %vm510, %v491, 0
        %v836 = vsel %vm510, %v492, 0
        %v839 = vsel %vm510, %v493, 0
        %v842 = vsel %vm510, %v494, 0
        %v845 = vsel %vm510, %v495, 0
        %vm847 = vcmask 1042432
        %v849 = vsel %vm847, %v505, 0
        %851 = vmatpush.msra.mxu0 0.0
        %852 = vmatpush.msra.mxu0 0.0
        %853 = vmatpush.msra.mxu0 0.0
        %854 = vmatpush.msra.mxu0 0.0
        %855 = vmatpush.msra.mxu0 0.0
        %856 = vmatpush.msra.mxu0 0.0
        %857 = vmatpush.msra.mxu0 %v849
        %858 = vmatpush.msra.mxu0 %v504
        %859 = vmatpush.msra.mxu0 %v503
        %860 = vmatpush.msra.mxu0 %v502
        %861 = vmatpush.msra.mxu0 %v501
        %862 = vmatpush.msra.mxu0 %v500
        %863 = vmatpush.msra.mxu0 %v499
        %864 = vmatpush.msra.mxu0 %v498
        %865 = vmatpush.msra.mxu0 %v497
        %866 = vmatpush.msra.mxu0 %v496
        %867 = vmatmul.f32.gmra.mxu0 %v512
        %v868 = vpop.f32.mrf.mxu0
        %v869 = vadd.f32 %v508, %v868
        %870 = vmatmul.f32.gmra.mxu0 %v515
        %v871 = vpop.f32.mrf.mxu0
        %v872 = vadd.f32 %v508, %v871
        %873 = vmatmul.f32.gmra.mxu0 %v518
        %v874 = vpop.f32.mrf.mxu0
        %v875 = vadd.f32 %v508, %v874
        %876 = vmatmul.f32.gmra.mxu0 %v521
        %v877 = vpop.f32.mrf.mxu0
        %v878 = vadd.f32 %v508, %v877
        %879 = vmatmul.f32.gmra.mxu0 %v524
        %v880 = vpop.f32.mrf.mxu0
        %v881 = vadd.f32 %v508, %v880
        %882 = vmatmul.f32.gmra.mxu0 %v527
        %v883 = vpop.f32.mrf.mxu0
        %v884 = vadd.f32 %v508, %v883
        %885 = vmatmul.f32.gmra.mxu0 %v530
        %v886 = vpop.f32.mrf.mxu0
        %v887 = vadd.f32 %v508, %v886
        %888 = vmatmul.f32.gmra.mxu0 %v533
        %v889 = vpop.f32.mrf.mxu0
        %v890 = vadd.f32 %v508, %v889
        %891 = vmatmul.f32.gmra.mxu0 %v536
        %v892 = vpop.f32.mrf.mxu0
        %v893 = vadd.f32 %v508, %v892
        %894 = vmatmul.f32.gmra.mxu0 %v539
        %v895 = vpop.f32.mrf.mxu0
        %v896 = vadd.f32 %v508, %v895
        %897 = vmatmul.f32.gmra.mxu0 %v542
        %v898 = vpop.f32.mrf.mxu0
        %v899 = vadd.f32 %v508, %v898
        %900 = vmatmul.f32.gmra.mxu0 %v545
        %v901 = vpop.f32.mrf.mxu0
        %v902 = vadd.f32 %v508, %v901
        %903 = vmatmul.f32.gmra.mxu0 %v548
        %v904 = vpop.f32.mrf.mxu0
        %v905 = vadd.f32 %v508, %v904
        %906 = vmatmul.f32.gmra.mxu0 %v551
        %v907 = vpop.f32.mrf.mxu0
        %v908 = vadd.f32 %v508, %v907
        %909 = vmatmul.f32.gmra.mxu0 %v554
        %v910 = vpop.f32.mrf.mxu0
        %v911 = vadd.f32 %v508, %v910
        %912 = vmatmul.f32.gmra.mxu0 %v557
        %v913 = vpop.f32.mrf.mxu0
        %v914 = vadd.f32 %v508, %v913
        %915 = vmatmul.f32.gmra.mxu0 %v560
        %v916 = vpop.f32.mrf.mxu0
        %v917 = vadd.f32 %v508, %v916
        %918 = vmatmul.f32.gmra.mxu0 %v563
        %v919 = vpop.f32.mrf.mxu0
        %v920 = vadd.f32 %v508, %v919
        %921 = vmatmul.f32.gmra.mxu0 %v566
        %v922 = vpop.f32.mrf.mxu0
        %v923 = vadd.f32 %v508, %v922
        %924 = vmatmul.f32.gmra.mxu0 %v569
        %v925 = vpop.f32.mrf.mxu0
        %v926 = vadd.f32 %v508, %v925
        %927 = vmatmul.f32.gmra.mxu0 %v572
        %v928 = vpop.f32.mrf.mxu0
        %v929 = vadd.f32 %v508, %v928
        %930 = vmatmul.f32.gmra.mxu0 %v575
        %v931 = vpop.f32.mrf.mxu0
        %v932 = vadd.f32 %v508, %v931
        %933 = vmatmul.f32.gmra.mxu0 %v578
        %v934 = vpop.f32.mrf.mxu0
        %v935 = vadd.f32 %v508, %v934
        %936 = vmatmul.f32.gmra.mxu0 %v581
        %v937 = vpop.f32.mrf.mxu0
        %v938 = vadd.f32 %v508, %v937
        %939 = vmatmul.f32.gmra.mxu0 %v584
        %v940 = vpop.f32.mrf.mxu0
        %v941 = vadd.f32 %v508, %v940
        %942 = vmatmul.f32.gmra.mxu0 %v587
        %v943 = vpop.f32.mrf.mxu0
        %v944 = vadd.f32 %v508, %v943
        %945 = vmatmul.f32.gmra.mxu0 %v590
        %v946 = vpop.f32.mrf.mxu0
        %v947 = vadd.f32 %v508, %v946
        %948 = vmatmul.f32.gmra.mxu0 %v593
        %v949 = vpop.f32.mrf.mxu0
        %v950 = vadd.f32 %v508, %v949
        %951 = vmatmul.f32.gmra.mxu0 %v596
        %v952 = vpop.f32.mrf.mxu0
        %v953 = vadd.f32 %v508, %v952
        %954 = vmatmul.f32.gmra.mxu0 %v599
        %v955 = vpop.f32.mrf.mxu0
        %v956 = vadd.f32 %v508, %v955
        %957 = vmatmul.f32.gmra.mxu0 %v602
        %v958 = vpop.f32.mrf.mxu0
        %v959 = vadd.f32 %v508, %v958
        %960 = vmatmul.f32.gmra.mxu0 %v605
        %v961 = vpop.f32.mrf.mxu0
        %v962 = vadd.f32 %v508, %v961
        %963 = vmatmul.f32.gmra.mxu0 %v608
        %v964 = vpop.f32.mrf.mxu0
        %v965 = vadd.f32 %v508, %v964
        %966 = vmatmul.f32.gmra.mxu0 %v611
        %v967 = vpop.f32.mrf.mxu0
        %v968 = vadd.f32 %v508, %v967
        %969 = vmatmul.f32.gmra.mxu0 %v614
        %v970 = vpop.f32.mrf.mxu0
        %v971 = vadd.f32 %v508, %v970
        %972 = vmatmul.f32.gmra.mxu0 %v617
        %v973 = vpop.f32.mrf.mxu0
        %v974 = vadd.f32 %v508, %v973
        %975 = vmatmul.f32.gmra.mxu0 %v620
        %v976 = vpop.f32.mrf.mxu0
        %v977 = vadd.f32 %v508, %v976
        %978 = vmatmul.f32.gmra.mxu0 %v623
        %v979 = vpop.f32.mrf.mxu0
        %v980 = vadd.f32 %v508, %v979
        %981 = vmatmul.f32.gmra.mxu0 %v626
        %v982 = vpop.f32.mrf.mxu0
        %v983 = vadd.f32 %v508, %v982
        %984 = vmatmul.f32.gmra.mxu0 %v629
        %v985 = vpop.f32.mrf.mxu0
        %v986 = vadd.f32 %v508, %v985
        %987 = vmatmul.f32.gmra.mxu0 %v632
        %v988 = vpop.f32.mrf.mxu0
        %v989 = vadd.f32 %v508, %v988
        %990 = vmatmul.f32.gmra.mxu0 %v635
        %v991 = vpop.f32.mrf.mxu0
        %v992 = vadd.f32 %v508, %v991
        %993 = vmatmul.f32.gmra.mxu0 %v638
        %v994 = vpop.f32.mrf.mxu0
        %v995 = vadd.f32 %v508, %v994
        %996 = vmatmul.f32.gmra.mxu0 %v641
        %v997 = vpop.f32.mrf.mxu0
        %v998 = vadd.f32 %v508, %v997
        %999 = vmatmul.f32.gmra.mxu0 %v644
        %v1000 = vpop.f32.mrf.mxu0
        %v1001 = vadd.f32 %v508, %v1000
        %1002 = vmatmul.f32.gmra.mxu0 %v647
        %v1003 = vpop.f32.mrf.mxu0
        %v1004 = vadd.f32 %v508, %v1003
        %1005 = vmatmul.f32.gmra.mxu0 %v650
        %v1006 = vpop.f32.mrf.mxu0
        %v1007 = vadd.f32 %v508, %v1006
        %1008 = vmatmul.f32.gmra.mxu0 %v653
        %v1009 = vpop.f32.mrf.mxu0
        %v1010 = vadd.f32 %v508, %v1009
        %1011 = vmatmul.f32.gmra.mxu0 %v656
        %v1012 = vpop.f32.mrf.mxu0
        %v1013 = vadd.f32 %v508, %v1012
        %1014 = vmatmul.f32.gmra.mxu0 %v659
        %v1015 = vpop.f32.mrf.mxu0
        %v1016 = vadd.f32 %v508, %v1015
        %1017 = vmatmul.f32.gmra.mxu0 %v662
        %v1018 = vpop.f32.mrf.mxu0
        %v1019 = vadd.f32 %v508, %v1018
        %1020 = vmatmul.f32.gmra.mxu0 %v665
        %v1021 = vpop.f32.mrf.mxu0
        %v1022 = vadd.f32 %v508, %v1021
        %1023 = vmatmul.f32.gmra.mxu0 %v668
        %v1024 = vpop.f32.mrf.mxu0
        %v1025 = vadd.f32 %v508, %v1024
        %1026 = vmatmul.f32.gmra.mxu0 %v671
        %v1027 = vpop.f32.mrf.mxu0
        %v1028 = vadd.f32 %v508, %v1027
        %1029 = vmatmul.f32.gmra.mxu0 %v674
        %v1030 = vpop.f32.mrf.mxu0
        %v1031 = vadd.f32 %v508, %v1030
        %1032 = vmatmul.f32.gmra.mxu0 %v677
        %v1033 = vpop.f32.mrf.mxu0
        %v1034 = vadd.f32 %v508, %v1033
        %1035 = vmatmul.f32.gmra.mxu0 %v680
        %v1036 = vpop.f32.mrf.mxu0
        %v1037 = vadd.f32 %v508, %v1036
        %1038 = vmatmul.f32.gmra.mxu0 %v683
        %v1039 = vpop.f32.mrf.mxu0
        %v1040 = vadd.f32 %v508, %v1039
        %1041 = vmatmul.f32.gmra.mxu0 %v686
        %v1042 = vpop.f32.mrf.mxu0
        %v1043 = vadd.f32 %v508, %v1042
        %1044 = vmatmul.f32.gmra.mxu0 %v689
        %v1045 = vpop.f32.mrf.mxu0
        %v1046 = vadd.f32 %v508, %v1045
        %1047 = vmatmul.f32.gmra.mxu0 %v692
        %v1048 = vpop.f32.mrf.mxu0
        %v1049 = vadd.f32 %v508, %v1048
        %1050 = vmatmul.f32.gmra.mxu0 %v695
        %v1051 = vpop.f32.mrf.mxu0
        %v1052 = vadd.f32 %v508, %v1051
        %1053 = vmatmul.f32.gmra.mxu0 %v698
        %v1054 = vpop.f32.mrf.mxu0
        %v1055 = vadd.f32 %v508, %v1054
        %1056 = vmatmul.f32.gmra.mxu0 %v701
        %v1057 = vpop.f32.mrf.mxu0
        %v1058 = vadd.f32 %v508, %v1057
        %1059 = vmatmul.f32.gmra.mxu0 %v704
        %v1060 = vpop.f32.mrf.mxu0
        %v1061 = vadd.f32 %v508, %v1060
        %1062 = vmatmul.f32.gmra.mxu0 %v707
        %v1063 = vpop.f32.mrf.mxu0
        %v1064 = vadd.f32 %v508, %v1063
        %1065 = vmatmul.f32.gmra.mxu0 %v710
        %v1066 = vpop.f32.mrf.mxu0
        %v1067 = vadd.f32 %v508, %v1066
        %1068 = vmatmul.f32.gmra.mxu0 %v713
        %v1069 = vpop.f32.mrf.mxu0
        %v1070 = vadd.f32 %v508, %v1069
        %1071 = vmatmul.f32.gmra.mxu0 %v716
        %v1072 = vpop.f32.mrf.mxu0
        %v1073 = vadd.f32 %v508, %v1072
        %1074 = vmatmul.f32.gmra.mxu0 %v719
        %v1075 = vpop.f32.mrf.mxu0
        %v1076 = vadd.f32 %v508, %v1075
        %1077 = vmatmul.f32.gmra.mxu0 %v722
        %v1078 = vpop.f32.mrf.mxu0
        %v1079 = vadd.f32 %v508, %v1078
        %1080 = vmatmul.f32.gmra.mxu0 %v725
        %v1081 = vpop.f32.mrf.mxu0
        %v1082 = vadd.f32 %v508, %v1081
        %1083 = vmatmul.f32.gmra.mxu0 %v728
        %v1084 = vpop.f32.mrf.mxu0
        %v1085 = vadd.f32 %v508, %v1084
        %1086 = vmatmul.f32.gmra.mxu0 %v731
        %v1087 = vpop.f32.mrf.mxu0
        %v1088 = vadd.f32 %v508, %v1087
        %1089 = vmatmul.f32.gmra.mxu0 %v734
        %v1090 = vpop.f32.mrf.mxu0
        %v1091 = vadd.f32 %v508, %v1090
        %1092 = vmatmul.f32.gmra.mxu0 %v737
        %v1093 = vpop.f32.mrf.mxu0
        %v1094 = vadd.f32 %v508, %v1093
        %1095 = vmatmul.f32.gmra.mxu0 %v740
        %v1096 = vpop.f32.mrf.mxu0
        %v1097 = vadd.f32 %v508, %v1096
        %1098 = vmatmul.f32.gmra.mxu0 %v743
        %v1099 = vpop.f32.mrf.mxu0
        %v1100 = vadd.f32 %v508, %v1099
        %1101 = vmatmul.f32.gmra.mxu0 %v746
        %v1102 = vpop.f32.mrf.mxu0
        %v1103 = vadd.f32 %v508, %v1102
        %1104 = vmatmul.f32.gmra.mxu0 %v749
        %v1105 = vpop.f32.mrf.mxu0
        %v1106 = vadd.f32 %v508, %v1105
        %1107 = vmatmul.f32.gmra.mxu0 %v752
        %v1108 = vpop.f32.mrf.mxu0
        %v1109 = vadd.f32 %v508, %v1108
        %1110 = vmatmul.f32.gmra.mxu0 %v755
        %v1111 = vpop.f32.mrf.mxu0
        %v1112 = vadd.f32 %v508, %v1111
        %1113 = vmatmul.f32.gmra.mxu0 %v758
        %v1114 = vpop.f32.mrf.mxu0
        %v1115 = vadd.f32 %v508, %v1114
        %1116 = vmatmul.f32.gmra.mxu0 %v761
        %v1117 = vpop.f32.mrf.mxu0
        %v1118 = vadd.f32 %v508, %v1117
        %1119 = vmatmul.f32.gmra.mxu0 %v764
        %v1120 = vpop.f32.mrf.mxu0
        %v1121 = vadd.f32 %v508, %v1120
        %1122 = vmatmul.f32.gmra.mxu0 %v767
        %v1123 = vpop.f32.mrf.mxu0
        %v1124 = vadd.f32 %v508, %v1123
        %1125 = vmatmul.f32.gmra.mxu0 %v770
        %v1126 = vpop.f32.mrf.mxu0
        %v1127 = vadd.f32 %v508, %v1126
        %1128 = vmatmul.f32.gmra.mxu0 %v773
        %v1129 = vpop.f32.mrf.mxu0
        %v1130 = vadd.f32 %v508, %v1129
        %1131 = vmatmul.f32.gmra.mxu0 %v776
        %v1132 = vpop.f32.mrf.mxu0
        %v1133 = vadd.f32 %v508, %v1132
        %1134 = vmatmul.f32.gmra.mxu0 %v779
        %v1135 = vpop.f32.mrf.mxu0
        %v1136 = vadd.f32 %v508, %v1135
        %1137 = vmatmul.f32.gmra.mxu0 %v782
        %v1138 = vpop.f32.mrf.mxu0
        %v1139 = vadd.f32 %v508, %v1138
        %1140 = vmatmul.f32.gmra.mxu0 %v785
        %v1141 = vpop.f32.mrf.mxu0
        %v1142 = vadd.f32 %v508, %v1141
        %1143 = vmatmul.f32.gmra.mxu0 %v788
        %v1144 = vpop.f32.mrf.mxu0
        %v1145 = vadd.f32 %v508, %v1144
        %1146 = vmatmul.f32.gmra.mxu0 %v791
        %v1147 = vpop.f32.mrf.mxu0
        %v1148 = vadd.f32 %v508, %v1147
        %1149 = vmatmul.f32.gmra.mxu0 %v794
        %v1150 = vpop.f32.mrf.mxu0
        %v1151 = vadd.f32 %v508, %v1150
        %1152 = vmatmul.f32.gmra.mxu0 %v797
        %v1153 = vpop.f32.mrf.mxu0
        %v1154 = vadd.f32 %v508, %v1153
        %1155 = vmatmul.f32.gmra.mxu0 %v800
        %v1156 = vpop.f32.mrf.mxu0
        %v1157 = vadd.f32 %v508, %v1156
        %1158 = vmatmul.f32.gmra.mxu0 %v803
        %v1159 = vpop.f32.mrf.mxu0
        %v1160 = vadd.f32 %v508, %v1159
        %1161 = vmatmul.f32.gmra.mxu0 %v806
        %v1162 = vpop.f32.mrf.mxu0
        %v1163 = vadd.f32 %v508, %v1162
        %1164 = vmatmul.f32.gmra.mxu0 %v809
        %v1165 = vpop.f32.mrf.mxu0
        %v1166 = vadd.f32 %v508, %v1165
        %1167 = vmatmul.f32.gmra.mxu0 %v812
        %v1168 = vpop.f32.mrf.mxu0
        %v1169 = vadd.f32 %v508, %v1168
        %1170 = vmatmul.f32.gmra.mxu0 %v815
        %v1171 = vpop.f32.mrf.mxu0
        %v1172 = vadd.f32 %v508, %v1171
        %1173 = vmatmul.f32.gmra.mxu0 %v818
        %v1174 = vpop.f32.mrf.mxu0
        %v1175 = vadd.f32 %v508, %v1174
        %1176 = vmatmul.f32.gmra.mxu0 %v821
        %v1177 = vpop.f32.mrf.mxu0
        %v1178 = vadd.f32 %v508, %v1177
        %1179 = vmatmul.f32.gmra.mxu0 %v824
        %v1180 = vpop.f32.mrf.mxu0
        %v1181 = vadd.f32 %v508, %v1180
        %1182 = vmatmul.f32.gmra.mxu0 %v827
        %v1183 = vpop.f32.mrf.mxu0
        %v1184 = vadd.f32 %v508, %v1183
        %1185 = vmatmul.f32.gmra.mxu0 %v830
        %v1186 = vpop.f32.mrf.mxu0
        %v1187 = vadd.f32 %v508, %v1186
        %1188 = vmatmul.f32.gmra.mxu0 %v833
        %v1189 = vpop.f32.mrf.mxu0
        %v1190 = vadd.f32 %v508, %v1189
        %1191 = vmatmul.f32.gmra.mxu0 %v836
        %v1192 = vpop.f32.mrf.mxu0
        %v1193 = vadd.f32 %v508, %v1192
        %1194 = vmatmul.f32.gmra.mxu0 %v839
        %v1195 = vpop.f32.mrf.mxu0
        %v1196 = vadd.f32 %v508, %v1195
        %1197 = vmatmul.f32.gmra.mxu0 %v842
        %v1198 = vpop.f32.mrf.mxu0
        %v1199 = vadd.f32 %v508, %v1198
        %1200 = vmatmul.f32.gmra.mxu0 %v845
        %v1201 = vpop.f32.mrf.mxu0
        %v1202 = vadd.f32 %v508, %v1201
        %1203 = vdwg.mxu0
        %v1204 = vmax.f32 %v869, 0.0
        %v1205 = vmax.f32 %v872, 0.0
        %v1206 = vmax.f32 %v875, 0.0
        %v1207 = vmax.f32 %v878, 0.0
        %v1208 = vmax.f32 %v881, 0.0
        %v1209 = vmax.f32 %v884, 0.0
        %v1210 = vmax.f32 %v887, 0.0
        %v1211 = vmax.f32 %v890, 0.0
        %v1212 = vmax.f32 %v893, 0.0
        %v1213 = vmax.f32 %v896, 0.0
        %v1214 = vmax.f32 %v899, 0.0
        %v1215 = vmax.f32 %v902, 0.0
        %v1216 = vmax.f32 %v905, 0.0
        %v1217 = vmax.f32 %v908, 0.0
        %v1218 = vmax.f32 %v911, 0.0
        %v1219 = vmax.f32 %v914, 0.0
        %v1220 = vmax.f32 %v917, 0.0
        %v1221 = vmax.f32 %v920, 0.0
        %v1222 = vmax.f32 %v923, 0.0
        %v1223 = vmax.f32 %v926, 0.0
        %v1224 = vmax.f32 %v929, 0.0
        %v1225 = vmax.f32 %v932, 0.0
        %v1226 = vmax.f32 %v935, 0.0
        %v1227 = vmax.f32 %v938, 0.0
        %v1228 = vmax.f32 %v941, 0.0
        %v1229 = vmax.f32 %v944, 0.0
        %v1230 = vmax.f32 %v947, 0.0
        %v1231 = vmax.f32 %v950, 0.0
        %v1232 = vmax.f32 %v953, 0.0
        %v1233 = vmax.f32 %v956, 0.0
        %v1234 = vmax.f32 %v959, 0.0
        %v1235 = vmax.f32 %v962, 0.0
        %v1236 = vmax.f32 %v965, 0.0
        %v1237 = vmax.f32 %v968, 0.0
        %v1238 = vmax.f32 %v971, 0.0
        %v1239 = vmax.f32 %v974, 0.0
        %v1240 = vmax.f32 %v977, 0.0
        %v1241 = vmax.f32 %v980, 0.0
        %v1242 = vmax.f32 %v983, 0.0
        %v1243 = vmax.f32 %v986, 0.0
        %v1244 = vmax.f32 %v989, 0.0
        %v1245 = vmax.f32 %v992, 0.0
        %v1246 = vmax.f32 %v995, 0.0
        %v1247 = vmax.f32 %v998, 0.0
        %v1248 = vmax.f32 %v1001, 0.0
        %v1249 = vmax.f32 %v1004, 0.0
        %v1250 = vmax.f32 %v1007, 0.0
        %v1251 = vmax.f32 %v1010, 0.0
        %v1252 = vmax.f32 %v1013, 0.0
        %v1253 = vmax.f32 %v1016, 0.0
        %v1254 = vmax.f32 %v1019, 0.0
        %v1255 = vmax.f32 %v1022, 0.0
        %v1256 = vmax.f32 %v1025, 0.0
        %v1257 = vmax.f32 %v1028, 0.0
        %v1258 = vmax.f32 %v1031, 0.0
        %v1259 = vmax.f32 %v1034, 0.0
        %v1260 = vmax.f32 %v1037, 0.0
        %v1261 = vmax.f32 %v1040, 0.0
        %v1262 = vmax.f32 %v1043, 0.0
        %v1263 = vmax.f32 %v1046, 0.0
        %v1264 = vmax.f32 %v1049, 0.0
        %v1265 = vmax.f32 %v1052, 0.0
        %v1266 = vmax.f32 %v1055, 0.0
        %v1267 = vmax.f32 %v1058, 0.0
        %v1268 = vmax.f32 %v1061, 0.0
        %v1269 = vmax.f32 %v1064, 0.0
        %v1270 = vmax.f32 %v1067, 0.0
        %v1271 = vmax.f32 %v1070, 0.0
        %v1272 = vmax.f32 %v1073, 0.0
        %v1273 = vmax.f32 %v1076, 0.0
        %v1274 = vmax.f32 %v1079, 0.0
        %v1275 = vmax.f32 %v1082, 0.0
        %v1276 = vmax.f32 %v1085, 0.0
        %v1277 = vmax.f32 %v1088, 0.0
        %v1278 = vmax.f32 %v1091, 0.0
        %v1279 = vmax.f32 %v1094, 0.0
        %v1280 = vmax.f32 %v1097, 0.0
        %v1281 = vmax.f32 %v1100, 0.0
        %v1282 = vmax.f32 %v1103, 0.0
        %v1283 = vmax.f32 %v1106, 0.0
        %v1284 = vmax.f32 %v1109, 0.0
        %v1285 = vmax.f32 %v1112, 0.0
        %v1286 = vmax.f32 %v1115, 0.0
        %v1287 = vmax.f32 %v1118, 0.0
        %v1288 = vmax.f32 %v1121, 0.0
        %v1289 = vmax.f32 %v1124, 0.0
        %v1290 = vmax.f32 %v1127, 0.0
        %v1291 = vmax.f32 %v1130, 0.0
        %v1292 = vmax.f32 %v1133, 0.0
        %v1293 = vmax.f32 %v1136, 0.0
        %v1294 = vmax.f32 %v1139, 0.0
        %v1295 = vmax.f32 %v1142, 0.0
        %v1296 = vmax.f32 %v1145, 0.0
        %v1297 = vmax.f32 %v1148, 0.0
        %v1298 = vmax.f32 %v1151, 0.0
        %v1299 = vmax.f32 %v1154, 0.0
        %v1300 = vmax.f32 %v1157, 0.0
        %v1301 = vmax.f32 %v1160, 0.0
        %v1302 = vmax.f32 %v1163, 0.0
        %v1303 = vmax.f32 %v1166, 0.0
        %v1304 = vmax.f32 %v1169, 0.0
        %v1305 = vmax.f32 %v1172, 0.0
        %v1306 = vmax.f32 %v1175, 0.0
        %v1307 = vmax.f32 %v1178, 0.0
        %v1308 = vmax.f32 %v1181, 0.0
        %v1309 = vmax.f32 %v1184, 0.0
        %v1310 = vmax.f32 %v1187, 0.0
        %v1311 = vmax.f32 %v1190, 0.0
        %v1312 = vmax.f32 %v1193, 0.0
        %v1313 = vmax.f32 %v1196, 0.0
        %v1314 = vmax.f32 %v1199, 0.0
        %v1315 = vmax.f32 %v1202, 0.0
        %vm1428 = vcmask 1046528
        %v1429 = vrot.slane %v1204, 1
        %v1430 = vrot.slane %v1205, 1
        %v1431 = vsel %vm1428, %v1429, %v1430
        %v1432 = vrot.slane %v1206, 1
        %v1433 = vsel %vm1428, %v1430, %v1432
        %v1434 = vrot.slane %v1207, 1
        %v1435 = vsel %vm1428, %v1432, %v1434
        %v1436 = vrot.slane %v1208, 1
        %v1437 = vsel %vm1428, %v1434, %v1436
        %v1438 = vrot.slane %v1209, 1
        %v1439 = vsel %vm1428, %v1436, %v1438
        %v1440 = vrot.slane %v1210, 1
        %v1441 = vsel %vm1428, %v1438, %v1440
        %v1442 = vrot.slane %v1211, 1
        %v1443 = vsel %vm1428, %v1440, %v1442
        %v1444 = vrot.slane %v1212, 1
        %v1445 = vsel %vm1428, %v1442, %v1444
        %v1446 = vrot.slane %v1213, 1
        %v1447 = vsel %vm1428, %v1444, %v1446
        %v1448 = vrot.slane %v1214, 1
        %v1449 = vsel %vm1428, %v1446, %v1448
        %v1450 = vrot.slane %v1215, 1
        %v1451 = vsel %vm1428, %v1448, %v1450
        %v1452 = vrot.slane %v1216, 1
        %v1453 = vsel %vm1428, %v1450, %v1452
        %v1454 = vrot.slane %v1217, 1
        %v1455 = vsel %vm1428, %v1452, %v1454
        %v1456 = vrot.slane %v1218, 1
        %v1457 = vsel %vm1428, %v1454, %v1456
        %v1458 = vrot.slane %v1219, 1
        %v1459 = vsel %vm1428, %v1456, %v1458
        %v1460 = vrot.slane %v1220, 1
        %v1461 = vsel %vm1428, %v1458, %v1460
        %v1462 = vrot.slane %v1221, 1
        %v1463 = vsel %vm1428, %v1460, %v1462
        %v1464 = vrot.slane %v1222, 1
        %v1465 = vsel %vm1428, %v1462, %v1464
        %v1466 = vrot.slane %v1223, 1
        %v1467 = vsel %vm1428, %v1464, %v1466
        %v1468 = vrot.slane %v1224, 1
        %v1469 = vsel %vm1428, %v1466, %v1468
        %v1470 = vrot.slane %v1225, 1
        %v1471 = vsel %vm1428, %v1468, %v1470
        %v1472 = vrot.slane %v1226, 1
        %v1473 = vsel %vm1428, %v1470, %v1472
        %v1474 = vrot.slane %v1227, 1
        %v1475 = vsel %vm1428, %v1472, %v1474
        %v1476 = vrot.slane %v1228, 1
        %v1477 = vsel %vm1428, %v1474, %v1476
        %v1478 = vrot.slane %v1229, 1
        %v1479 = vsel %vm1428, %v1476, %v1478
        %v1480 = vrot.slane %v1230, 1
        %v1481 = vsel %vm1428, %v1478, %v1480
        %v1482 = vrot.slane %v1231, 1
        %v1483 = vsel %vm1428, %v1480, %v1482
        %v1484 = vrot.slane %v1232, 1
        %v1485 = vsel %vm1428, %v1482, %v1484
        %v1486 = vrot.slane %v1233, 1
        %v1487 = vsel %vm1428, %v1484, %v1486
        %v1488 = vrot.slane %v1234, 1
        %v1489 = vsel %vm1428, %v1486, %v1488
        %v1490 = vrot.slane %v1235, 1
        %v1491 = vsel %vm1428, %v1488, %v1490
        %v1492 = vrot.slane %v1236, 1
        %v1493 = vsel %vm1428, %v1490, %v1492
        %v1494 = vrot.slane %v1237, 1
        %v1495 = vsel %vm1428, %v1492, %v1494
        %v1496 = vrot.slane %v1238, 1
        %v1497 = vsel %vm1428, %v1494, %v1496
        %v1498 = vrot.slane %v1239, 1
        %v1499 = vsel %vm1428, %v1496, %v1498
        %v1500 = vrot.slane %v1240, 1
        %v1501 = vsel %vm1428, %v1498, %v1500
        %v1502 = vrot.slane %v1241, 1
        %v1503 = vsel %vm1428, %v1500, %v1502
        %v1504 = vrot.slane %v1242, 1
        %v1505 = vsel %vm1428, %v1502, %v1504
        %v1506 = vrot.slane %v1243, 1
        %v1507 = vsel %vm1428, %v1504, %v1506
        %v1508 = vrot.slane %v1244, 1
        %v1509 = vsel %vm1428, %v1506, %v1508
        %v1510 = vrot.slane %v1245, 1
        %v1511 = vsel %vm1428, %v1508, %v1510
        %v1512 = vrot.slane %v1246, 1
        %v1513 = vsel %vm1428, %v1510, %v1512
        %v1514 = vrot.slane %v1247, 1
        %v1515 = vsel %vm1428, %v1512, %v1514
        %v1516 = vrot.slane %v1248, 1
        %v1517 = vsel %vm1428, %v1514, %v1516
        %v1518 = vrot.slane %v1249, 1
        %v1519 = vsel %vm1428, %v1516, %v1518
        %v1520 = vrot.slane %v1250, 1
        %v1521 = vsel %vm1428, %v1518, %v1520
        %v1522 = vrot.slane %v1251, 1
        %v1523 = vsel %vm1428, %v1520, %v1522
        %v1524 = vrot.slane %v1252, 1
        %v1525 = vsel %vm1428, %v1522, %v1524
        %v1526 = vrot.slane %v1253, 1
        %v1527 = vsel %vm1428, %v1524, %v1526
        %v1528 = vrot.slane %v1254, 1
        %v1529 = vsel %vm1428, %v1526, %v1528
        %v1530 = vrot.slane %v1255, 1
        %v1531 = vsel %vm1428, %v1528, %v1530
        %v1532 = vrot.slane %v1256, 1
        %v1533 = vsel %vm1428, %v1530, %v1532
        %v1534 = vrot.slane %v1257, 1
        %v1535 = vsel %vm1428, %v1532, %v1534
        %v1536 = vrot.slane %v1258, 1
        %v1537 = vsel %vm1428, %v1534, %v1536
        %v1538 = vrot.slane %v1259, 1
        %v1539 = vsel %vm1428, %v1536, %v1538
        %v1540 = vrot.slane %v1260, 1
        %v1541 = vsel %vm1428, %v1538, %v1540
        %v1542 = vrot.slane %v1261, 1
        %v1543 = vsel %vm1428, %v1540, %v1542
        %v1544 = vrot.slane %v1262, 1
        %v1545 = vsel %vm1428, %v1542, %v1544
        %v1546 = vrot.slane %v1263, 1
        %v1547 = vsel %vm1428, %v1544, %v1546
        %v1548 = vrot.slane %v1264, 1
        %v1549 = vsel %vm1428, %v1546, %v1548
        %v1550 = vrot.slane %v1265, 1
        %v1551 = vsel %vm1428, %v1548, %v1550
        %v1552 = vrot.slane %v1266, 1
        %v1553 = vsel %vm1428, %v1550, %v1552
        %v1554 = vrot.slane %v1267, 1
        %v1555 = vsel %vm1428, %v1552, %v1554
        %v1556 = vrot.slane %v1268, 1
        %v1557 = vsel %vm1428, %v1554, %v1556
        %v1558 = vrot.slane %v1269, 1
        %v1559 = vsel %vm1428, %v1556, %v1558
        %v1560 = vrot.slane %v1270, 1
        %v1561 = vsel %vm1428, %v1558, %v1560
        %v1562 = vrot.slane %v1271, 1
        %v1563 = vsel %vm1428, %v1560, %v1562
        %v1564 = vrot.slane %v1272, 1
        %v1565 = vsel %vm1428, %v1562, %v1564
        %v1566 = vrot.slane %v1273, 1
        %v1567 = vsel %vm1428, %v1564, %v1566
        %v1568 = vrot.slane %v1274, 1
        %v1569 = vsel %vm1428, %v1566, %v1568
        %v1570 = vrot.slane %v1275, 1
        %v1571 = vsel %vm1428, %v1568, %v1570
        %v1572 = vrot.slane %v1276, 1
        %v1573 = vsel %vm1428, %v1570, %v1572
        %v1574 = vrot.slane %v1277, 1
        %v1575 = vsel %vm1428, %v1572, %v1574
        %v1576 = vrot.slane %v1278, 1
        %v1577 = vsel %vm1428, %v1574, %v1576
        %v1578 = vrot.slane %v1279, 1
        %v1579 = vsel %vm1428, %v1576, %v1578
        %v1580 = vrot.slane %v1280, 1
        %v1581 = vsel %vm1428, %v1578, %v1580
        %v1582 = vrot.slane %v1281, 1
        %v1583 = vsel %vm1428, %v1580, %v1582
        %v1584 = vrot.slane %v1282, 1
        %v1585 = vsel %vm1428, %v1582, %v1584
        %v1586 = vrot.slane %v1283, 1
        %v1587 = vsel %vm1428, %v1584, %v1586
        %v1588 = vrot.slane %v1284, 1
        %v1589 = vsel %vm1428, %v1586, %v1588
        %v1590 = vrot.slane %v1285, 1
        %v1591 = vsel %vm1428, %v1588, %v1590
        %v1592 = vrot.slane %v1286, 1
        %v1593 = vsel %vm1428, %v1590, %v1592
        %v1594 = vrot.slane %v1287, 1
        %v1595 = vsel %vm1428, %v1592, %v1594
        %v1596 = vrot.slane %v1288, 1
        %v1597 = vsel %vm1428, %v1594, %v1596
        %v1598 = vrot.slane %v1289, 1
        %v1599 = vsel %vm1428, %v1596, %v1598
        %v1600 = vrot.slane %v1290, 1
        %v1601 = vsel %vm1428, %v1598, %v1600
        %v1602 = vrot.slane %v1291, 1
        %v1603 = vsel %vm1428, %v1600, %v1602
        %v1604 = vrot.slane %v1292, 1
        %v1605 = vsel %vm1428, %v1602, %v1604
        %v1606 = vrot.slane %v1293, 1
        %v1607 = vsel %vm1428, %v1604, %v1606
        %v1608 = vrot.slane %v1294, 1
        %v1609 = vsel %vm1428, %v1606, %v1608
        %v1610 = vrot.slane %v1295, 1
        %v1611 = vsel %vm1428, %v1608, %v1610
        %v1612 = vrot.slane %v1296, 1
        %v1613 = vsel %vm1428, %v1610, %v1612
        %v1614 = vrot.slane %v1297, 1
        %v1615 = vsel %vm1428, %v1612, %v1614
        %v1616 = vrot.slane %v1298, 1
        %v1617 = vsel %vm1428, %v1614, %v1616
        %v1618 = vrot.slane %v1299, 1
        %v1619 = vsel %vm1428, %v1616, %v1618
        %v1620 = vrot.slane %v1300, 1
        %v1621 = vsel %vm1428, %v1618, %v1620
        %v1622 = vrot.slane %v1301, 1
        %v1623 = vsel %vm1428, %v1620, %v1622
        %v1624 = vrot.slane %v1302, 1
        %v1625 = vsel %vm1428, %v1622, %v1624
        %v1626 = vrot.slane %v1303, 1
        %v1627 = vsel %vm1428, %v1624, %v1626
        %v1628 = vrot.slane %v1304, 1
        %v1629 = vsel %vm1428, %v1626, %v1628
        %v1630 = vrot.slane %v1305, 1
        %v1631 = vsel %vm1428, %v1628, %v1630
        %v1632 = vrot.slane %v1306, 1
        %v1633 = vsel %vm1428, %v1630, %v1632
        %v1634 = vrot.slane %v1307, 1
        %v1635 = vsel %vm1428, %v1632, %v1634
        %v1636 = vrot.slane %v1308, 1
        %v1637 = vsel %vm1428, %v1634, %v1636
        %v1638 = vrot.slane %v1309, 1
        %v1639 = vsel %vm1428, %v1636, %v1638
        %v1640 = vrot.slane %v1310, 1
        %v1641 = vsel %vm1428, %v1638, %v1640
        %v1642 = vrot.slane %v1311, 1
        %v1643 = vsel %vm1428, %v1640, %v1642
        %v1644 = vrot.slane %v1312, 1
        %v1645 = vsel %vm1428, %v1642, %v1644
        %v1646 = vrot.slane %v1313, 1
        %v1647 = vsel %vm1428, %v1644, %v1646
        %v1648 = vrot.slane %v1314, 1
        %v1649 = vsel %vm1428, %v1646, %v1648
        %v1650 = vrot.slane %v1315, 1
        %v1651 = vsel %vm1428, %v1648, %v1650
        %v1764 = vmax.f32 %v1204, %v1431
        %v1765 = vmax.f32 %v1205, %v1433
        %v1766 = vmax.f32 %v1206, %v1435
        %v1767 = vmax.f32 %v1207, %v1437
        %v1768 = vmax.f32 %v1208, %v1439
        %v1769 = vmax.f32 %v1209, %v1441
        %v1770 = vmax.f32 %v1210, %v1443
        %v1771 = vmax.f32 %v1211, %v1445
        %v1772 = vmax.f32 %v1212, %v1447
        %v1773 = vmax.f32 %v1213, %v1449
        %v1774 = vmax.f32 %v1214, %v1451
        %v1775 = vmax.f32 %v1215, %v1453
        %v1776 = vmax.f32 %v1216, %v1455
        %v1777 = vmax.f32 %v1217, %v1457
        %v1778 = vmax.f32 %v1218, %v1459
        %v1779 = vmax.f32 %v1219, %v1461
        %v1780 = vmax.f32 %v1220, %v1463
        %v1781 = vmax.f32 %v1221, %v1465
        %v1782 = vmax.f32 %v1222, %v1467
        %v1783 = vmax.f32 %v1223, %v1469
        %v1784 = vmax.f32 %v1224, %v1471
        %v1785 = vmax.f32 %v1225, %v1473
        %v1786 = vmax.f32 %v1226, %v1475
        %v1787 = vmax.f32 %v1227, %v1477
        %v1788 = vmax.f32 %v1228, %v1479
        %v1789 = vmax.f32 %v1229, %v1481
        %v1790 = vmax.f32 %v1230, %v1483
        %v1791 = vmax.f32 %v1231, %v1485
        %v1792 = vmax.f32 %v1232, %v1487
        %v1793 = vmax.f32 %v1233, %v1489
        %v1794 = vmax.f32 %v1234, %v1491
        %v1795 = vmax.f32 %v1235, %v1493
        %v1796 = vmax.f32 %v1236, %v1495
        %v1797 = vmax.f32 %v1237, %v1497
        %v1798 = vmax.f32 %v1238, %v1499
        %v1799 = vmax.f32 %v1239, %v1501
        %v1800 = vmax.f32 %v1240, %v1503
        %v1801 = vmax.f32 %v1241, %v1505
        %v1802 = vmax.f32 %v1242, %v1507
        %v1803 = vmax.f32 %v1243, %v1509
        %v1804 = vmax.f32 %v1244, %v1511
        %v1805 = vmax.f32 %v1245, %v1513
        %v1806 = vmax.f32 %v1246, %v1515
        %v1807 = vmax.f32 %v1247, %v1517
        %v1808 = vmax.f32 %v1248, %v1519
        %v1809 = vmax.f32 %v1249, %v1521
        %v1810 = vmax.f32 %v1250, %v1523
        %v1811 = vmax.f32 %v1251, %v1525
        %v1812 = vmax.f32 %v1252, %v1527
        %v1813 = vmax.f32 %v1253, %v1529
        %v1814 = vmax.f32 %v1254, %v1531
        %v1815 = vmax.f32 %v1255, %v1533
        %v1816 = vmax.f32 %v1256, %v1535
        %v1817 = vmax.f32 %v1257, %v1537
        %v1818 = vmax.f32 %v1258, %v1539
        %v1819 = vmax.f32 %v1259, %v1541
        %v1820 = vmax.f32 %v1260, %v1543
        %v1821 = vmax.f32 %v1261, %v1545
        %v1822 = vmax.f32 %v1262, %v1547
        %v1823 = vmax.f32 %v1263, %v1549
        %v1824 = vmax.f32 %v1264, %v1551
        %v1825 = vmax.f32 %v1265, %v1553
        %v1826 = vmax.f32 %v1266, %v1555
        %v1827 = vmax.f32 %v1267, %v1557
        %v1828 = vmax.f32 %v1268, %v1559
        %v1829 = vmax.f32 %v1269, %v1561
        %v1830 = vmax.f32 %v1270, %v1563
        %v1831 = vmax.f32 %v1271, %v1565
        %v1832 = vmax.f32 %v1272, %v1567
        %v1833 = vmax.f32 %v1273, %v1569
        %v1834 = vmax.f32 %v1274, %v1571
        %v1835 = vmax.f32 %v1275, %v1573
        %v1836 = vmax.f32 %v1276, %v1575
        %v1837 = vmax.f32 %v1277, %v1577
        %v1838 = vmax.f32 %v1278, %v1579
        %v1839 = vmax.f32 %v1279, %v1581
        %v1840 = vmax.f32 %v1280, %v1583
        %v1841 = vmax.f32 %v1281, %v1585
        %v1842 = vmax.f32 %v1282, %v1587
        %v1843 = vmax.f32 %v1283, %v1589
        %v1844 = vmax.f32 %v1284, %v1591
        %v1845 = vmax.f32 %v1285, %v1593
        %v1846 = vmax.f32 %v1286, %v1595
        %v1847 = vmax.f32 %v1287, %v1597
        %v1848 = vmax.f32 %v1288, %v1599
        %v1849 = vmax.f32 %v1289, %v1601
        %v1850 = vmax.f32 %v1290, %v1603
        %v1851 = vmax.f32 %v1291, %v1605
        %v1852 = vmax.f32 %v1292, %v1607
        %v1853 = vmax.f32 %v1293, %v1609
        %v1854 = vmax.f32 %v1294, %v1611
        %v1855 = vmax.f32 %v1295, %v1613
        %v1856 = vmax.f32 %v1296, %v1615
        %v1857 = vmax.f32 %v1297, %v1617
        %v1858 = vmax.f32 %v1298, %v1619
        %v1859 = vmax.f32 %v1299, %v1621
        %v1860 = vmax.f32 %v1300, %v1623
        %v1861 = vmax.f32 %v1301, %v1625
        %v1862 = vmax.f32 %v1302, %v1627
        %v1863 = vmax.f32 %v1303, %v1629
        %v1864 = vmax.f32 %v1304, %v1631
        %v1865 = vmax.f32 %v1305, %v1633
        %v1866 = vmax.f32 %v1306, %v1635
        %v1867 = vmax.f32 %v1307, %v1637
        %v1868 = vmax.f32 %v1308, %v1639
        %v1869 = vmax.f32 %v1309, %v1641
        %v1870 = vmax.f32 %v1310, %v1643
        %v1871 = vmax.f32 %v1311, %v1645
        %v1872 = vmax.f32 %v1312, %v1647
        %v1873 = vmax.f32 %v1313, %v1649
        %v1874 = vmax.f32 %v1314, %v1651
        %v1875 = vmax.f32 %v1315, %v1650
        %v1876 = vmax.f32 %v1764, %v1768
        %v1877 = vmax.f32 %v1765, %v1769
        %v1878 = vmax.f32 %v1766, %v1770
        %v1879 = vmax.f32 %v1767, %v1771
        %v1880 = vmax.f32 %v1768, %v1772
        %v1881 = vmax.f32 %v1769, %v1773
        %v1882 = vmax.f32 %v1770, %v1774
        %v1883 = vmax.f32 %v1771, %v1775
        %v1884 = vmax.f32 %v1772, %v1776
        %v1885 = vmax.f32 %v1773, %v1777
        %v1886 = vmax.f32 %v1774, %v1778
        %v1887 = vmax.f32 %v1775, %v1779
        %v1888 = vmax.f32 %v1776, %v1780
        %v1889 = vmax.f32 %v1777, %v1781
        %v1890 = vmax.f32 %v1778, %v1782
        %v1891 = vmax.f32 %v1779, %v1783
        %v1892 = vmax.f32 %v1780, %v1784
        %v1893 = vmax.f32 %v1781, %v1785
        %v1894 = vmax.f32 %v1782, %v1786
        %v1895 = vmax.f32 %v1783, %v1787
        %v1896 = vmax.f32 %v1784, %v1788
        %v1897 = vmax.f32 %v1785, %v1789
        %v1898 = vmax.f32 %v1786, %v1790
        %v1899 = vmax.f32 %v1787, %v1791
        %v1900 = vmax.f32 %v1788, %v1792
        %v1901 = vmax.f32 %v1789, %v1793
        %v1902 = vmax.f32 %v1790, %v1794
        %v1903 = vmax.f32 %v1791, %v1795
        %v1904 = vmax.f32 %v1792, %v1796
        %v1905 = vmax.f32 %v1793, %v1797
        %v1906 = vmax.f32 %v1794, %v1798
        %v1907 = vmax.f32 %v1795, %v1799
        %v1908 = vmax.f32 %v1796, %v1800
        %v1909 = vmax.f32 %v1797, %v1801
        %v1910 = vmax.f32 %v1798, %v1802
        %v1911 = vmax.f32 %v1799, %v1803
        %v1912 = vmax.f32 %v1800, %v1804
        %v1913 = vmax.f32 %v1801, %v1805
        %v1914 = vmax.f32 %v1802, %v1806
        %v1915 = vmax.f32 %v1803, %v1807
        %v1916 = vmax.f32 %v1804, %v1808
        %v1917 = vmax.f32 %v1805, %v1809
        %v1918 = vmax.f32 %v1806, %v1810
        %v1919 = vmax.f32 %v1807, %v1811
        %v1920 = vmax.f32 %v1808, %v1812
        %v1921 = vmax.f32 %v1809, %v1813
        %v1922 = vmax.f32 %v1810, %v1814
        %v1923 = vmax.f32 %v1811, %v1815
        %v1924 = vmax.f32 %v1812, %v1816
        %v1925 = vmax.f32 %v1813, %v1817
        %v1926 = vmax.f32 %v1814, %v1818
        %v1927 = vmax.f32 %v1815, %v1819
        %v1928 = vmax.f32 %v1816, %v1820
        %v1929 = vmax.f32 %v1817, %v1821
        %v1930 = vmax.f32 %v1818, %v1822
        %v1931 = vmax.f32 %v1819, %v1823
        %v1932 = vmax.f32 %v1820, %v1824
        %v1933 = vmax.f32 %v1821, %v1825
        %v1934 = vmax.f32 %v1822, %v1826
        %v1935 = vmax.f32 %v1823, %v1827
        %v1936 = vmax.f32 %v1824, %v1828
        %v1937 = vmax.f32 %v1825, %v1829
        %v1938 = vmax.f32 %v1826, %v1830
        %v1939 = vmax.f32 %v1827, %v1831
        %v1940 = vmax.f32 %v1828, %v1832
        %v1941 = vmax.f32 %v1829, %v1833
        %v1942 = vmax.f32 %v1830, %v1834
        %v1943 = vmax.f32 %v1831, %v1835
        %v1944 = vmax.f32 %v1832, %v1836
        %v1945 = vmax.f32 %v1833, %v1837
        %v1946 = vmax.f32 %v1834, %v1838
        %v1947 = vmax.f32 %v1835, %v1839
        %v1948 = vmax.f32 %v1836, %v1840
        %v1949 = vmax.f32 %v1837, %v1841
        %v1950 = vmax.f32 %v1838, %v1842
        %v1951 = vmax.f32 %v1839, %v1843
        %v1952 = vmax.f32 %v1840, %v1844
        %v1953 = vmax.f32 %v1841, %v1845
        %v1954 = vmax.f32 %v1842, %v1846
        %v1955 = vmax.f32 %v1843, %v1847
        %v1956 = vmax.f32 %v1844, %v1848
        %v1957 = vmax.f32 %v1845, %v1849
        %v1958 = vmax.f32 %v1846, %v1850
        %v1959 = vmax.f32 %v1847, %v1851
        %v1960 = vmax.f32 %v1848, %v1852
        %v1961 = vmax.f32 %v1849, %v1853
        %v1962 = vmax.f32 %v1850, %v1854
        %v1963 = vmax.f32 %v1851, %v1855
        %v1964 = vmax.f32 %v1852, %v1856
        %v1965 = vmax.f32 %v1853, %v1857
        %v1966 = vmax.f32 %v1854, %v1858
        %v1967 = vmax.f32 %v1855, %v1859
        %v1968 = vmax.f32 %v1856, %v1860
        %v1969 = vmax.f32 %v1857, %v1861
        %v1970 = vmax.f32 %v1858, %v1862
        %v1971 = vmax.f32 %v1859, %v1863
        %v1972 = vmax.f32 %v1860, %v1864
        %v1973 = vmax.f32 %v1861, %v1865
        %v1974 = vmax.f32 %v1862, %v1866
        %v1975 = vmax.f32 %v1863, %v1867
        %v1976 = vmax.f32 %v1864, %v1868
        %v1977 = vmax.f32 %v1865, %v1869
        %v1978 = vmax.f32 %v1866, %v1870
        %v1979 = vmax.f32 %v1867, %v1871
        %v1980 = vmax.f32 %v1868, %v1872
        %v1981 = vmax.f32 %v1869, %v1873
        %v1982 = vmax.f32 %v1870, %v1874
        %v1983 = vmax.f32 %v1871, %v1875
        %v1984 = vld [vmem:[%s3] sm:$0x3f]
        %s1985 = scalar_lea.vmem %s3, 8
        %v1986 = vld [vmem:[%s1985] sm:$0x3f]
        %vm2062 = vcmask 1045504
        %v2063 = vrot.slane %v1876, 2
        %v2064 = vrot.slane %v1877, 2
        %v2065 = vsel %vm2062, %v2063, %v2064
        %v2066 = vrot.slane %v1878, 2
        %v2067 = vsel %vm2062, %v2064, %v2066
        %v2068 = vrot.slane %v1879, 2
        %v2069 = vsel %vm2062, %v2066, %v2068
        %v2070 = vrot.slane %v1880, 2
        %v2071 = vsel %vm2062, %v2068, %v2070
        %v2072 = vrot.slane %v1881, 2
        %v2073 = vsel %vm2062, %v2070, %v2072
        %v2074 = vrot.slane %v1882, 2
        %v2075 = vsel %vm2062, %v2072, %v2074
        %v2076 = vrot.slane %v1883, 2
        %v2077 = vsel %vm2062, %v2074, %v2076
        %v2078 = vrot.slane %v1884, 2
        %v2079 = vsel %vm2062, %v2076, %v2078
        %v2080 = vrot.slane %v1885, 2
        %v2081 = vsel %vm2062, %v2078, %v2080
        %v2082 = vrot.slane %v1886, 2
        %v2083 = vsel %vm2062, %v2080, %v2082
        %v2084 = vrot.slane %v1887, 2
        %v2085 = vsel %vm2062, %v2082, %v2084
        %v2086 = vrot.slane %v1888, 2
        %v2087 = vsel %vm2062, %v2084, %v2086
        %v2088 = vrot.slane %v1889, 2
        %v2089 = vsel %vm2062, %v2086, %v2088
        %v2090 = vrot.slane %v1890, 2
        %v2091 = vsel %vm2062, %v2088, %v2090
        %v2092 = vrot.slane %v1891, 2
        %v2093 = vsel %vm2062, %v2090, %v2092
        %v2094 = vrot.slane %v1892, 2
        %v2095 = vsel %vm2062, %v2092, %v2094
        %v2096 = vrot.slane %v1893, 2
        %v2097 = vsel %vm2062, %v2094, %v2096
        %v2098 = vrot.slane %v1894, 2
        %v2099 = vsel %vm2062, %v2096, %v2098
        %v2100 = vrot.slane %v1895, 2
        %v2101 = vsel %vm2062, %v2098, %v2100
        %v2102 = vrot.slane %v1896, 2
        %v2103 = vsel %vm2062, %v2100, %v2102
        %v2104 = vrot.slane %v1897, 2
        %v2105 = vsel %vm2062, %v2102, %v2104
        %v2106 = vrot.slane %v1898, 2
        %v2107 = vsel %vm2062, %v2104, %v2106
        %v2108 = vrot.slane %v1899, 2
        %v2109 = vsel %vm2062, %v2106, %v2108
        %v2110 = vrot.slane %v1900, 2
        %v2111 = vsel %vm2062, %v2108, %v2110
        %v2112 = vrot.slane %v1901, 2
        %v2113 = vsel %vm2062, %v2110, %v2112
        %v2114 = vrot.slane %v1902, 2
        %v2115 = vsel %vm2062, %v2112, %v2114
        %v2116 = vrot.slane %v1903, 2
        %v2117 = vsel %vm2062, %v2114, %v2116
        %v2118 = vrot.slane %v1904, 2
        %v2119 = vsel %vm2062, %v2116, %v2118
        %v2120 = vrot.slane %v1905, 2
        %v2121 = vsel %vm2062, %v2118, %v2120
        %v2122 = vrot.slane %v1906, 2
        %v2123 = vsel %vm2062, %v2120, %v2122
        %v2124 = vrot.slane %v1907, 2
        %v2125 = vsel %vm2062, %v2122, %v2124
        %v2126 = vrot.slane %v1908, 2
        %v2127 = vsel %vm2062, %v2124, %v2126
        %v2128 = vrot.slane %v1909, 2
        %v2129 = vsel %vm2062, %v2126, %v2128
        %v2130 = vrot.slane %v1910, 2
        %v2131 = vsel %vm2062, %v2128, %v2130
        %v2132 = vrot.slane %v1911, 2
        %v2133 = vsel %vm2062, %v2130, %v2132
        %v2134 = vrot.slane %v1912, 2
        %v2135 = vsel %vm2062, %v2132, %v2134
        %v2136 = vrot.slane %v1913, 2
        %v2137 = vsel %vm2062, %v2134, %v2136
        %v2138 = vrot.slane %v1914, 2
        %v2139 = vsel %vm2062, %v2136, %v2138
        %v2140 = vrot.slane %v1915, 2
        %v2141 = vsel %vm2062, %v2138, %v2140
        %v2142 = vrot.slane %v1916, 2
        %v2143 = vsel %vm2062, %v2140, %v2142
        %v2144 = vrot.slane %v1917, 2
        %v2145 = vsel %vm2062, %v2142, %v2144
        %v2146 = vrot.slane %v1918, 2
        %v2147 = vsel %vm2062, %v2144, %v2146
        %v2148 = vrot.slane %v1919, 2
        %v2149 = vsel %vm2062, %v2146, %v2148
        %v2150 = vrot.slane %v1920, 2
        %v2151 = vsel %vm2062, %v2148, %v2150
        %v2152 = vrot.slane %v1921, 2
        %v2153 = vsel %vm2062, %v2150, %v2152
        %v2154 = vrot.slane %v1922, 2
        %v2155 = vsel %vm2062, %v2152, %v2154
        %v2156 = vrot.slane %v1923, 2
        %v2157 = vsel %vm2062, %v2154, %v2156
        %v2158 = vrot.slane %v1924, 2
        %v2159 = vsel %vm2062, %v2156, %v2158
        %v2160 = vrot.slane %v1925, 2
        %v2161 = vsel %vm2062, %v2158, %v2160
        %v2162 = vrot.slane %v1926, 2
        %v2163 = vsel %vm2062, %v2160, %v2162
        %v2164 = vrot.slane %v1927, 2
        %v2165 = vsel %vm2062, %v2162, %v2164
        %v2166 = vrot.slane %v1928, 2
        %v2167 = vsel %vm2062, %v2164, %v2166
        %v2168 = vrot.slane %v1929, 2
        %v2169 = vsel %vm2062, %v2166, %v2168
        %v2170 = vrot.slane %v1930, 2
        %v2171 = vsel %vm2062, %v2168, %v2170
        %v2172 = vrot.slane %v1931, 2
        %v2173 = vsel %vm2062, %v2170, %v2172
        %v2174 = vrot.slane %v1932, 2
        %v2175 = vsel %vm2062, %v2172, %v2174
        %v2176 = vrot.slane %v1933, 2
        %v2177 = vsel %vm2062, %v2174, %v2176
        %v2178 = vrot.slane %v1934, 2
        %v2179 = vsel %vm2062, %v2176, %v2178
        %v2180 = vrot.slane %v1935, 2
        %v2181 = vsel %vm2062, %v2178, %v2180
        %v2182 = vrot.slane %v1936, 2
        %v2183 = vsel %vm2062, %v2180, %v2182
        %v2184 = vrot.slane %v1937, 2
        %v2185 = vsel %vm2062, %v2182, %v2184
        %v2186 = vrot.slane %v1938, 2
        %v2187 = vsel %vm2062, %v2184, %v2186
        %v2188 = vrot.slane %v1939, 2
        %v2189 = vsel %vm2062, %v2186, %v2188
        %v2190 = vrot.slane %v1940, 2
        %v2191 = vsel %vm2062, %v2188, %v2190
        %v2192 = vrot.slane %v1941, 2
        %v2193 = vsel %vm2062, %v2190, %v2192
        %v2194 = vrot.slane %v1942, 2
        %v2195 = vsel %vm2062, %v2192, %v2194
        %v2196 = vrot.slane %v1943, 2
        %v2197 = vsel %vm2062, %v2194, %v2196
        %v2198 = vrot.slane %v1944, 2
        %v2199 = vsel %vm2062, %v2196, %v2198
        %v2200 = vrot.slane %v1945, 2
        %v2201 = vsel %vm2062, %v2198, %v2200
        %v2202 = vrot.slane %v1946, 2
        %v2203 = vsel %vm2062, %v2200, %v2202
        %v2204 = vrot.slane %v1947, 2
        %v2205 = vsel %vm2062, %v2202, %v2204
        %v2206 = vrot.slane %v1948, 2
        %v2207 = vsel %vm2062, %v2204, %v2206
        %v2208 = vrot.slane %v1949, 2
        %v2209 = vsel %vm2062, %v2206, %v2208
        %v2210 = vrot.slane %v1950, 2
        %v2211 = vsel %vm2062, %v2208, %v2210
        %vm2212 = vcmask 48128
        %v2213 = vsel %vm2212, %v2065, 0
        %v2215 = vsel %vm2212, %v2067, 0
        %v2217 = vsel %vm2212, %v2069, 0
        %v2219 = vsel %vm2212, %v2071, 0
        %v2221 = vsel %vm2212, %v2073, 0
        %v2223 = vsel %vm2212, %v2075, 0
        %v2225 = vsel %vm2212, %v2077, 0
        %v2227 = vsel %vm2212, %v2079, 0
        %v2229 = vsel %vm2212, %v2081, 0
        %v2231 = vsel %vm2212, %v2083, 0
        %v2233 = vsel %vm2212, %v2085, 0
        %v2235 = vsel %vm2212, %v2087, 0
        %v2237 = vsel %vm2212, %v2089, 0
        %v2239 = vsel %vm2212, %v2091, 0
        %v2241 = vsel %vm2212, %v2093, 0
        %v2243 = vsel %vm2212, %v2095, 0
        %v2245 = vsel %vm2212, %v2097, 0
        %v2247 = vsel %vm2212, %v2099, 0
        %v2249 = vsel %vm2212, %v2101, 0
        %v2251 = vsel %vm2212, %v2103, 0
        %v2253 = vsel %vm2212, %v2105, 0
        %v2255 = vsel %vm2212, %v2107, 0
        %v2257 = vsel %vm2212, %v2109, 0
        %v2259 = vsel %vm2212, %v2111, 0
        %v2261 = vsel %vm2212, %v2113, 0
        %v2263 = vsel %vm2212, %v2115, 0
        %v2265 = vsel %vm2212, %v2117, 0
        %v2267 = vsel %vm2212, %v2119, 0
        %v2269 = vsel %vm2212, %v2121, 0
        %v2271 = vsel %vm2212, %v2123, 0
        %v2273 = vsel %vm2212, %v2125, 0
        %v2275 = vsel %vm2212, %v2127, 0
        %v2277 = vsel %vm2212, %v2129, 0
        %v2279 = vsel %vm2212, %v2131, 0
        %v2281 = vsel %vm2212, %v2133, 0
        %v2283 = vsel %vm2212, %v2135, 0
        %v2285 = vsel %vm2212, %v2137, 0
        %v2287 = vsel %vm2212, %v2139, 0
        %v2289 = vsel %vm2212, %v2141, 0
        %v2291 = vsel %vm2212, %v2143, 0
        %v2293 = vsel %vm2212, %v2145, 0
        %v2295 = vsel %vm2212, %v2147, 0
        %v2297 = vsel %vm2212, %v2149, 0
        %v2299 = vsel %vm2212, %v2151, 0
        %v2301 = vsel %vm2212, %v2153, 0
        %v2303 = vsel %vm2212, %v2155, 0
        %v2305 = vsel %vm2212, %v2157, 0
        %v2307 = vsel %vm2212, %v2159, 0
        %v2309 = vsel %vm2212, %v2161, 0
        %v2311 = vsel %vm2212, %v2163, 0
        %v2313 = vsel %vm2212, %v2165, 0
        %v2315 = vsel %vm2212, %v2167, 0
        %v2317 = vsel %vm2212, %v2169, 0
        %v2319 = vsel %vm2212, %v2171, 0
        %v2321 = vsel %vm2212, %v2173, 0
        %v2323 = vsel %vm2212, %v2175, 0
        %v2325 = vsel %vm2212, %v2177, 0
        %v2327 = vsel %vm2212, %v2179, 0
        %v2329 = vsel %vm2212, %v2181, 0
        %v2331 = vsel %vm2212, %v2183, 0
        %v2333 = vsel %vm2212, %v2185, 0
        %v2335 = vsel %vm2212, %v2187, 0
        %v2337 = vsel %vm2212, %v2189, 0
        %v2339 = vsel %vm2212, %v2191, 0
        %v2341 = vsel %vm2212, %v2193, 0
        %v2343 = vsel %vm2212, %v2195, 0
        %v2345 = vsel %vm2212, %v2197, 0
        %v2347 = vsel %vm2212, %v2199, 0
        %v2349 = vsel %vm2212, %v2201, 0
        %v2351 = vsel %vm2212, %v2203, 0
        %v2353 = vsel %vm2212, %v2205, 0
        %v2355 = vsel %vm2212, %v2207, 0
        %v2357 = vsel %vm2212, %v2209, 0
        %v2359 = vsel %vm2212, %v2211, 0
        %v2361 = vsel %vm2212, %v2210, 0
        %v2364 = vsel %vm2062, %v1986, 0
        %2366 = vmatpush.msra.mxu0 0.0
        %2367 = vmatpush.msra.mxu0 0.0
        %2368 = vmatpush.msra.mxu0 0.0
        %2369 = vmatpush.msra.mxu0 0.0
        %2370 = vmatpush.msra.mxu0 0.0
        %2371 = vmatpush.msra.mxu0 0.0
        %2372 = vmatpush.msra.mxu0 0.0
        %2373 = vmatpush.msra.mxu0 0.0
        %2374 = vmatpush.msra.mxu0 0.0
        %2375 = vmatpush.msra.mxu0 0.0
        %2376 = vmatpush.msra.mxu0 0.0
        %2377 = vmatpush.msra.mxu0 0.0
        %2378 = vmatpush.msra.mxu0 0.0
        %2379 = vmatpush.msra.mxu0 0.0
        %2380 = vmatpush.msra.mxu0 0.0
        %2381 = vmatpush.msra.mxu0 %v2364
        %2382 = vmatmul.f32.gmra.mxu0 %v2213
        %v2383 = vpop.f32.mrf.mxu0
        %v2384 = vadd.f32 0.0, %v2383
        %2385 = vmatmul.f32.gmra.mxu0 %v2215
        %v2386 = vpop.f32.mrf.mxu0
        %v2387 = vadd.f32 0.0, %v2386
        %2388 = vmatmul.f32.gmra.mxu0 %v2217
        %v2389 = vpop.f32.mrf.mxu0
        %v2390 = vadd.f32 0.0, %v2389
        %2391 = vmatmul.f32.gmra.mxu0 %v2219
        %v2392 = vpop.f32.mrf.mxu0
        %v2393 = vadd.f32 0.0, %v2392
        %2394 = vmatmul.f32.gmra.mxu0 %v2221
        %v2395 = vpop.f32.mrf.mxu0
        %2396 = vmatmul.f32.gmra.mxu0 %v2223
        %v2397 = vpop.f32.mrf.mxu0
        %2398 = vmatmul.f32.gmra.mxu0 %v2225
        %v2399 = vpop.f32.mrf.mxu0
        %2400 = vmatmul.f32.gmra.mxu0 %v2227
        %v2401 = vpop.f32.mrf.mxu0
        %2402 = vmatmul.f32.gmra.mxu0 %v2229
        %v2403 = vpop.f32.mrf.mxu0
        %v2404 = vadd.f32 0.0, %v2403
        %2405 = vmatmul.f32.gmra.mxu0 %v2231
        %v2406 = vpop.f32.mrf.mxu0
        %v2407 = vadd.f32 0.0, %v2406
        %2408 = vmatmul.f32.gmra.mxu0 %v2233
        %v2409 = vpop.f32.mrf.mxu0
        %v2410 = vadd.f32 0.0, %v2409
        %2411 = vmatmul.f32.gmra.mxu0 %v2235
        %v2412 = vpop.f32.mrf.mxu0
        %v2413 = vadd.f32 0.0, %v2412
        %2414 = vmatmul.f32.gmra.mxu0 %v2237
        %v2415 = vpop.f32.mrf.mxu0
        %2416 = vmatmul.f32.gmra.mxu0 %v2239
        %v2417 = vpop.f32.mrf.mxu0
        %2418 = vmatmul.f32.gmra.mxu0 %v2241
        %v2419 = vpop.f32.mrf.mxu0
        %2420 = vmatmul.f32.gmra.mxu0 %v2243
        %v2421 = vpop.f32.mrf.mxu0
        %2422 = vmatmul.f32.gmra.mxu0 %v2245
        %v2423 = vpop.f32.mrf.mxu0
        %v2424 = vadd.f32 0.0, %v2423
        %2425 = vmatmul.f32.gmra.mxu0 %v2247
        %v2426 = vpop.f32.mrf.mxu0
        %v2427 = vadd.f32 0.0, %v2426
        %2428 = vmatmul.f32.gmra.mxu0 %v2249
        %v2429 = vpop.f32.mrf.mxu0
        %v2430 = vadd.f32 0.0, %v2429
        %2431 = vmatmul.f32.gmra.mxu0 %v2251
        %v2432 = vpop.f32.mrf.mxu0
        %v2433 = vadd.f32 0.0, %v2432
        %2434 = vmatmul.f32.gmra.mxu0 %v2253
        %v2435 = vpop.f32.mrf.mxu0
        %2436 = vmatmul.f32.gmra.mxu0 %v2255
        %v2437 = vpop.f32.mrf.mxu0
        %2438 = vmatmul.f32.gmra.mxu0 %v2257
        %v2439 = vpop.f32.mrf.mxu0
        %2440 = vmatmul.f32.gmra.mxu0 %v2259
        %v2441 = vpop.f32.mrf.mxu0
        %2442 = vmatmul.f32.gmra.mxu0 %v2261
        %v2443 = vpop.f32.mrf.mxu0
        %v2444 = vadd.f32 0.0, %v2443
        %2445 = vmatmul.f32.gmra.mxu0 %v2263
        %v2446 = vpop.f32.mrf.mxu0
        %v2447 = vadd.f32 0.0, %v2446
        %2448 = vmatmul.f32.gmra.mxu0 %v2265
        %v2449 = vpop.f32.mrf.mxu0
        %v2450 = vadd.f32 0.0, %v2449
        %2451 = vmatmul.f32.gmra.mxu0 %v2267
        %v2452 = vpop.f32.mrf.mxu0
        %v2453 = vadd.f32 0.0, %v2452
        %2454 = vmatmul.f32.gmra.mxu0 %v2269
        %v2455 = vpop.f32.mrf.mxu0
        %2456 = vmatmul.f32.gmra.mxu0 %v2271
        %v2457 = vpop.f32.mrf.mxu0
        %2458 = vmatmul.f32.gmra.mxu0 %v2273
        %v2459 = vpop.f32.mrf.mxu0
        %2460 = vmatmul.f32.gmra.mxu0 %v2275
        %v2461 = vpop.f32.mrf.mxu0
        %2462 = vmatmul.f32.gmra.mxu0 %v2277
        %v2463 = vpop.f32.mrf.mxu0
        %v2464 = vadd.f32 0.0, %v2463
        %2465 = vmatmul.f32.gmra.mxu0 %v2279
        %v2466 = vpop.f32.mrf.mxu0
        %v2467 = vadd.f32 0.0, %v2466
        %2468 = vmatmul.f32.gmra.mxu0 %v2281
        %v2469 = vpop.f32.mrf.mxu0
        %v2470 = vadd.f32 0.0, %v2469
        %2471 = vmatmul.f32.gmra.mxu0 %v2283
        %v2472 = vpop.f32.mrf.mxu0
        %v2473 = vadd.f32 0.0, %v2472
        %2474 = vmatmul.f32.gmra.mxu0 %v2285
        %v2475 = vpop.f32.mrf.mxu0
        %2476 = vmatmul.f32.gmra.mxu0 %v2287
        %v2477 = vpop.f32.mrf.mxu0
        %2478 = vmatmul.f32.gmra.mxu0 %v2289
        %v2479 = vpop.f32.mrf.mxu0
        %2480 = vmatmul.f32.gmra.mxu0 %v2291
        %v2481 = vpop.f32.mrf.mxu0
        %2482 = vmatmul.f32.gmra.mxu0 %v2293
        %v2483 = vpop.f32.mrf.mxu0
        %v2484 = vadd.f32 0.0, %v2483
        %2485 = vmatmul.f32.gmra.mxu0 %v2295
        %v2486 = vpop.f32.mrf.mxu0
        %v2487 = vadd.f32 0.0, %v2486
        %2488 = vmatmul.f32.gmra.mxu0 %v2297
        %v2489 = vpop.f32.mrf.mxu0
        %v2490 = vadd.f32 0.0, %v2489
        %2491 = vmatmul.f32.gmra.mxu0 %v2299
        %v2492 = vpop.f32.mrf.mxu0
        %v2493 = vadd.f32 0.0, %v2492
        %2494 = vmatmul.f32.gmra.mxu0 %v2301
        %v2495 = vpop.f32.mrf.mxu0
        %2496 = vmatmul.f32.gmra.mxu0 %v2303
        %v2497 = vpop.f32.mrf.mxu0
        %2498 = vmatmul.f32.gmra.mxu0 %v2305
        %v2499 = vpop.f32.mrf.mxu0
        %2500 = vmatmul.f32.gmra.mxu0 %v2307
        %v2501 = vpop.f32.mrf.mxu0
        %2502 = vmatmul.f32.gmra.mxu0 %v2309
        %v2503 = vpop.f32.mrf.mxu0
        %v2504 = vadd.f32 0.0, %v2503
        %2505 = vmatmul.f32.gmra.mxu0 %v2311
        %v2506 = vpop.f32.mrf.mxu0
        %v2507 = vadd.f32 0.0, %v2506
        %2508 = vmatmul.f32.gmra.mxu0 %v2313
        %v2509 = vpop.f32.mrf.mxu0
        %v2510 = vadd.f32 0.0, %v2509
        %2511 = vmatmul.f32.gmra.mxu0 %v2315
        %v2512 = vpop.f32.mrf.mxu0
        %v2513 = vadd.f32 0.0, %v2512
        %2514 = vmatmul.f32.gmra.mxu0 %v2317
        %v2515 = vpop.f32.mrf.mxu0
        %2516 = vmatmul.f32.gmra.mxu0 %v2319
        %v2517 = vpop.f32.mrf.mxu0
        %2518 = vmatmul.f32.gmra.mxu0 %v2321
        %v2519 = vpop.f32.mrf.mxu0
        %2520 = vmatmul.f32.gmra.mxu0 %v2323
        %v2521 = vpop.f32.mrf.mxu0
        %2522 = vmatmul.f32.gmra.mxu0 %v2325
        %v2523 = vpop.f32.mrf.mxu0
        %v2524 = vadd.f32 0.0, %v2523
        %2525 = vmatmul.f32.gmra.mxu0 %v2327
        %v2526 = vpop.f32.mrf.mxu0
        %v2527 = vadd.f32 0.0, %v2526
        %2528 = vmatmul.f32.gmra.mxu0 %v2329
        %v2529 = vpop.f32.mrf.mxu0
        %v2530 = vadd.f32 0.0, %v2529
        %2531 = vmatmul.f32.gmra.mxu0 %v2331
        %v2532 = vpop.f32.mrf.mxu0
        %v2533 = vadd.f32 0.0, %v2532
        %2534 = vmatmul.f32.gmra.mxu0 %v2333
        %v2535 = vpop.f32.mrf.mxu0
        %2536 = vmatmul.f32.gmra.mxu0 %v2335
        %v2537 = vpop.f32.mrf.mxu0
        %2538 = vmatmul.f32.gmra.mxu0 %v2337
        %v2539 = vpop.f32.mrf.mxu0
        %2540 = vmatmul.f32.gmra.mxu0 %v2339
        %v2541 = vpop.f32.mrf.mxu0
        %2542 = vmatmul.f32.gmra.mxu0 %v2341
        %v2543 = vpop.f32.mrf.mxu0
        %v2544 = vadd.f32 0.0, %v2543
        %2545 = vmatmul.f32.gmra.mxu0 %v2343
        %v2546 = vpop.f32.mrf.mxu0
        %v2547 = vadd.f32 0.0, %v2546
        %2548 = vmatmul.f32.gmra.mxu0 %v2345
        %v2549 = vpop.f32.mrf.mxu0
        %v2550 = vadd.f32 0.0, %v2549
        %2551 = vmatmul.f32.gmra.mxu0 %v2347
        %v2552 = vpop.f32.mrf.mxu0
        %v2553 = vadd.f32 0.0, %v2552
        %2554 = vmatmul.f32.gmra.mxu0 %v2349
        %v2555 = vpop.f32.mrf.mxu0
        %2556 = vmatmul.f32.gmra.mxu0 %v2351
        %v2557 = vpop.f32.mrf.mxu0
        %2558 = vmatmul.f32.gmra.mxu0 %v2353
        %v2559 = vpop.f32.mrf.mxu0
        %2560 = vmatmul.f32.gmra.mxu0 %v2355
        %v2561 = vpop.f32.mrf.mxu0
        %2562 = vmatmul.f32.gmra.mxu0 %v2357
        %v2563 = vpop.f32.mrf.mxu0
        %v2564 = vadd.f32 0.0, %v2563
        %2565 = vmatmul.f32.gmra.mxu0 %v2359
        %v2566 = vpop.f32.mrf.mxu0
        %v2567 = vadd.f32 0.0, %v2566
        %2568 = vmatmul.f32.gmra.mxu0 %v2361
        %v2569 = vpop.f32.mrf.mxu0
        %v2570 = vadd.f32 0.0, %v2569
        %2571 = vdwg.mxu0
        %v2572 = vsel %vm2212, %v1876, 0
        %v2574 = vsel %vm2212, %v1877, 0
        %v2576 = vsel %vm2212, %v1878, 0
        %v2578 = vsel %vm2212, %v1879, 0
        %v2580 = vsel %vm2212, %v1880, 0
        %v2582 = vsel %vm2212, %v1881, 0
        %v2584 = vsel %vm2212, %v1882, 0
        %v2586 = vsel %vm2212, %v1883, 0
        %v2588 = vsel %vm2212, %v1884, 0
        %v2590 = vsel %vm2212, %v1885, 0
        %v2592 = vsel %vm2212, %v1886, 0
        %v2594 = vsel %vm2212, %v1887, 0
        %v2596 = vsel %vm2212, %v1888, 0
        %v2598 = vsel %vm2212, %v1889, 0
        %v2600 = vsel %vm2212, %v1890, 0
        %v2602 = vsel %vm2212, %v1891, 0
        %v2604 = vsel %vm2212, %v1892, 0
        %v2606 = vsel %vm2212, %v1893, 0
        %v2608 = vsel %vm2212, %v1894, 0
        %v2610 = vsel %vm2212, %v1895, 0
        %v2612 = vsel %vm2212, %v1896, 0
        %v2614 = vsel %vm2212, %v1897, 0
        %v2616 = vsel %vm2212, %v1898, 0
        %v2618 = vsel %vm2212, %v1899, 0
        %v2620 = vsel %vm2212, %v1900, 0
        %v2622 = vsel %vm2212, %v1901, 0
        %v2624 = vsel %vm2212, %v1902, 0
        %v2626 = vsel %vm2212, %v1903, 0
        %v2628 = vsel %vm2212, %v1904, 0
        %v2630 = vsel %vm2212, %v1905, 0
        %v2632 = vsel %vm2212, %v1906, 0
        %v2634 = vsel %vm2212, %v1907, 0
        %v2636 = vsel %vm2212, %v1908, 0
        %v2638 = vsel %vm2212, %v1909, 0
        %v2640 = vsel %vm2212, %v1910, 0
        %v2642 = vsel %vm2212, %v1911, 0
        %v2644 = vsel %vm2212, %v1912, 0
        %v2646 = vsel %vm2212, %v1913, 0
        %v2648 = vsel %vm2212, %v1914, 0
        %v2650 = vsel %vm2212, %v1915, 0
        %v2652 = vsel %vm2212, %v1916, 0
        %v2654 = vsel %vm2212, %v1917, 0
        %v2656 = vsel %vm2212, %v1918, 0
        %v2658 = vsel %vm2212, %v1919, 0
        %v2660 = vsel %vm2212, %v1920, 0
        %v2662 = vsel %vm2212, %v1921, 0
        %v2664 = vsel %vm2212, %v1922, 0
        %v2666 = vsel %vm2212, %v1923, 0
        %v2668 = vsel %vm2212, %v1924, 0
        %v2670 = vsel %vm2212, %v1925, 0
        %v2672 = vsel %vm2212, %v1926, 0
        %v2674 = vsel %vm2212, %v1927, 0
        %v2676 = vsel %vm2212, %v1928, 0
        %v2678 = vsel %vm2212, %v1929, 0
        %v2680 = vsel %vm2212, %v1930, 0
        %v2682 = vsel %vm2212, %v1931, 0
        %v2684 = vsel %vm2212, %v1932, 0
        %v2686 = vsel %vm2212, %v1933, 0
        %v2688 = vsel %vm2212, %v1934, 0
        %v2690 = vsel %vm2212, %v1935, 0
        %v2692 = vsel %vm2212, %v1936, 0
        %v2694 = vsel %vm2212, %v1937, 0
        %v2696 = vsel %vm2212, %v1938, 0
        %v2698 = vsel %vm2212, %v1939, 0
        %v2700 = vsel %vm2212, %v1940, 0
        %v2702 = vsel %vm2212, %v1941, 0
        %v2704 = vsel %vm2212, %v1942, 0
        %v2706 = vsel %vm2212, %v1943, 0
        %v2708 = vsel %vm2212, %v1944, 0
        %v2710 = vsel %vm2212, %v1945, 0
        %v2712 = vsel %vm2212, %v1946, 0
        %v2714 = vsel %vm2212, %v1947, 0
        %v2716 = vsel %vm2212, %v1948, 0
        %v2718 = vsel %vm2212, %v1949, 0
        %v2720 = vsel %vm2212, %v1950, 0
        %v2723 = vsel %vm2062, %v1984, 0
        %2725 = vmatpush.msra.mxu0 0.0
        %2726 = vmatpush.msra.mxu0 0.0
        %2727 = vmatpush.msra.mxu0 0.0
        %2728 = vmatpush.msra.mxu0 0.0
        %2729 = vmatpush.msra.mxu0 0.0
        %2730 = vmatpush.msra.mxu0 0.0
        %2731 = vmatpush.msra.mxu0 0.0
        %2732 = vmatpush.msra.mxu0 0.0
        %2733 = vmatpush.msra.mxu0 0.0
        %2734 = vmatpush.msra.mxu0 0.0
        %2735 = vmatpush.msra.mxu0 0.0
        %2736 = vmatpush.msra.mxu0 0.0
        %2737 = vmatpush.msra.mxu0 0.0
        %2738 = vmatpush.msra.mxu0 0.0
        %2739 = vmatpush.msra.mxu0 0.0
        %2740 = vmatpush.msra.mxu0 %v2723
        %2741 = vmatmul.f32.gmra.mxu0 %v2572
        %v2742 = vpop.f32.mrf.mxu0
        %v2743 = vadd.f32 %v2384, %v2742
        %2744 = vmatmul.f32.gmra.mxu0 %v2574
        %v2745 = vpop.f32.mrf.mxu0
        %v2746 = vadd.f32 %v2387, %v2745
        %2747 = vmatmul.f32.gmra.mxu0 %v2576
        %v2748 = vpop.f32.mrf.mxu0
        %v2749 = vadd.f32 %v2390, %v2748
        %2750 = vmatmul.f32.gmra.mxu0 %v2578
        %v2751 = vpop.f32.mrf.mxu0
        %v2752 = vadd.f32 %v2393, %v2751
        %2753 = vmatmul.f32.gmra.mxu0 %v2580
        %v2754 = vpop.f32.mrf.mxu0
        %2755 = vmatmul.f32.gmra.mxu0 %v2582
        %v2756 = vpop.f32.mrf.mxu0
        %2757 = vmatmul.f32.gmra.mxu0 %v2584
        %v2758 = vpop.f32.mrf.mxu0
        %2759 = vmatmul.f32.gmra.mxu0 %v2586
        %v2760 = vpop.f32.mrf.mxu0
        %2761 = vmatmul.f32.gmra.mxu0 %v2588
        %v2762 = vpop.f32.mrf.mxu0
        %v2763 = vadd.f32 %v2404, %v2762
        %2764 = vmatmul.f32.gmra.mxu0 %v2590
        %v2765 = vpop.f32.mrf.mxu0
        %v2766 = vadd.f32 %v2407, %v2765
        %2767 = vmatmul.f32.gmra.mxu0 %v2592
        %v2768 = vpop.f32.mrf.mxu0
        %v2769 = vadd.f32 %v2410, %v2768
        %2770 = vmatmul.f32.gmra.mxu0 %v2594
        %v2771 = vpop.f32.mrf.mxu0
        %v2772 = vadd.f32 %v2413, %v2771
        %2773 = vmatmul.f32.gmra.mxu0 %v2596
        %v2774 = vpop.f32.mrf.mxu0
        %2775 = vmatmul.f32.gmra.mxu0 %v2598
        %v2776 = vpop.f32.mrf.mxu0
        %2777 = vmatmul.f32.gmra.mxu0 %v2600
        %v2778 = vpop.f32.mrf.mxu0
        %2779 = vmatmul.f32.gmra.mxu0 %v2602
        %v2780 = vpop.f32.mrf.mxu0
        %2781 = vmatmul.f32.gmra.mxu0 %v2604
        %v2782 = vpop.f32.mrf.mxu0
        %v2783 = vadd.f32 %v2424, %v2782
        %2784 = vmatmul.f32.gmra.mxu0 %v2606
        %v2785 = vpop.f32.mrf.mxu0
        %v2786 = vadd.f32 %v2427, %v2785
        %2787 = vmatmul.f32.gmra.mxu0 %v2608
        %v2788 = vpop.f32.mrf.mxu0
        %v2789 = vadd.f32 %v2430, %v2788
        %2790 = vmatmul.f32.gmra.mxu0 %v2610
        %v2791 = vpop.f32.mrf.mxu0
        %v2792 = vadd.f32 %v2433, %v2791
        %2793 = vmatmul.f32.gmra.mxu0 %v2612
        %v2794 = vpop.f32.mrf.mxu0
        %2795 = vmatmul.f32.gmra.mxu0 %v2614
        %v2796 = vpop.f32.mrf.mxu0
        %2797 = vmatmul.f32.gmra.mxu0 %v2616
        %v2798 = vpop.f32.mrf.mxu0
        %2799 = vmatmul.f32.gmra.mxu0 %v2618
        %v2800 = vpop.f32.mrf.mxu0
        %2801 = vmatmul.f32.gmra.mxu0 %v2620
        %v2802 = vpop.f32.mrf.mxu0
        %v2803 = vadd.f32 %v2444, %v2802
        %2804 = vmatmul.f32.gmra.mxu0 %v2622
        %v2805 = vpop.f32.mrf.mxu0
        %v2806 = vadd.f32 %v2447, %v2805
        %2807 = vmatmul.f32.gmra.mxu0 %v2624
        %v2808 = vpop.f32.mrf.mxu0
        %v2809 = vadd.f32 %v2450, %v2808
        %2810 = vmatmul.f32.gmra.mxu0 %v2626
        %v2811 = vpop.f32.mrf.mxu0
        %v2812 = vadd.f32 %v2453, %v2811
        %2813 = vmatmul.f32.gmra.mxu0 %v2628
        %v2814 = vpop.f32.mrf.mxu0
        %2815 = vmatmul.f32.gmra.mxu0 %v2630
        %v2816 = vpop.f32.mrf.mxu0
        %2817 = vmatmul.f32.gmra.mxu0 %v2632
        %v2818 = vpop.f32.mrf.mxu0
        %2819 = vmatmul.f32.gmra.mxu0 %v2634
        %v2820 = vpop.f32.mrf.mxu0
        %2821 = vmatmul.f32.gmra.mxu0 %v2636
        %v2822 = vpop.f32.mrf.mxu0
        %v2823 = vadd.f32 %v2464, %v2822
        %2824 = vmatmul.f32.gmra.mxu0 %v2638
        %v2825 = vpop.f32.mrf.mxu0
        %v2826 = vadd.f32 %v2467, %v2825
        %2827 = vmatmul.f32.gmra.mxu0 %v2640
        %v2828 = vpop.f32.mrf.mxu0
        %v2829 = vadd.f32 %v2470, %v2828
        %2830 = vmatmul.f32.gmra.mxu0 %v2642
        %v2831 = vpop.f32.mrf.mxu0
        %v2832 = vadd.f32 %v2473, %v2831
        %2833 = vmatmul.f32.gmra.mxu0 %v2644
        %v2834 = vpop.f32.mrf.mxu0
        %2835 = vmatmul.f32.gmra.mxu0 %v2646
        %v2836 = vpop.f32.mrf.mxu0
        %2837 = vmatmul.f32.gmra.mxu0 %v2648
        %v2838 = vpop.f32.mrf.mxu0
        %2839 = vmatmul.f32.gmra.mxu0 %v2650
        %v2840 = vpop.f32.mrf.mxu0
        %2841 = vmatmul.f32.gmra.mxu0 %v2652
        %v2842 = vpop.f32.mrf.mxu0
        %v2843 = vadd.f32 %v2484, %v2842
        %2844 = vmatmul.f32.gmra.mxu0 %v2654
        %v2845 = vpop.f32.mrf.mxu0
        %v2846 = vadd.f32 %v2487, %v2845
        %2847 = vmatmul.f32.gmra.mxu0 %v2656
        %v2848 = vpop.f32.mrf.mxu0
        %v2849 = vadd.f32 %v2490, %v2848
        %2850 = vmatmul.f32.gmra.mxu0 %v2658
        %v2851 = vpop.f32.mrf.mxu0
        %v2852 = vadd.f32 %v2493, %v2851
        %2853 = vmatmul.f32.gmra.mxu0 %v2660
        %v2854 = vpop.f32.mrf.mxu0
        %2855 = vmatmul.f32.gmra.mxu0 %v2662
        %v2856 = vpop.f32.mrf.mxu0
        %2857 = vmatmul.f32.gmra.mxu0 %v2664
        %v2858 = vpop.f32.mrf.mxu0
        %2859 = vmatmul.f32.gmra.mxu0 %v2666
        %v2860 = vpop.f32.mrf.mxu0
        %2861 = vmatmul.f32.gmra.mxu0 %v2668
        %v2862 = vpop.f32.mrf.mxu0
        %v2863 = vadd.f32 %v2504, %v2862
        %2864 = vmatmul.f32.gmra.mxu0 %v2670
        %v2865 = vpop.f32.mrf.mxu0
        %v2866 = vadd.f32 %v2507, %v2865
        %2867 = vmatmul.f32.gmra.mxu0 %v2672
        %v2868 = vpop.f32.mrf.mxu0
        %v2869 = vadd.f32 %v2510, %v2868
        %2870 = vmatmul.f32.gmra.mxu0 %v2674
        %v2871 = vpop.f32.mrf.mxu0
        %v2872 = vadd.f32 %v2513, %v2871
        %2873 = vmatmul.f32.gmra.mxu0 %v2676
        %v2874 = vpop.f32.mrf.mxu0
        %2875 = vmatmul.f32.gmra.mxu0 %v2678
        %v2876 = vpop.f32.mrf.mxu0
        %2877 = vmatmul.f32.gmra.mxu0 %v2680
        %v2878 = vpop.f32.mrf.mxu0
        %2879 = vmatmul.f32.gmra.mxu0 %v2682
        %v2880 = vpop.f32.mrf.mxu0
        %2881 = vmatmul.f32.gmra.mxu0 %v2684
        %v2882 = vpop.f32.mrf.mxu0
        %v2883 = vadd.f32 %v2524, %v2882
        %2884 = vmatmul.f32.gmra.mxu0 %v2686
        %v2885 = vpop.f32.mrf.mxu0
        %v2886 = vadd.f32 %v2527, %v2885
        %2887 = vmatmul.f32.gmra.mxu0 %v2688
        %v2888 = vpop.f32.mrf.mxu0
        %v2889 = vadd.f32 %v2530, %v2888
        %2890 = vmatmul.f32.gmra.mxu0 %v2690
        %v2891 = vpop.f32.mrf.mxu0
        %v2892 = vadd.f32 %v2533, %v2891
        %2893 = vmatmul.f32.gmra.mxu0 %v2692
        %v2894 = vpop.f32.mrf.mxu0
        %2895 = vmatmul.f32.gmra.mxu0 %v2694
        %v2896 = vpop.f32.mrf.mxu0
        %2897 = vmatmul.f32.gmra.mxu0 %v2696
        %v2898 = vpop.f32.mrf.mxu0
        %2899 = vmatmul.f32.gmra.mxu0 %v2698
        %v2900 = vpop.f32.mrf.mxu0
        %2901 = vmatmul.f32.gmra.mxu0 %v2700
        %v2902 = vpop.f32.mrf.mxu0
        %v2903 = vadd.f32 %v2544, %v2902
        %2904 = vmatmul.f32.gmra.mxu0 %v2702
        %v2905 = vpop.f32.mrf.mxu0
        %v2906 = vadd.f32 %v2547, %v2905
        %2907 = vmatmul.f32.gmra.mxu0 %v2704
        %v2908 = vpop.f32.mrf.mxu0
        %v2909 = vadd.f32 %v2550, %v2908
        %2910 = vmatmul.f32.gmra.mxu0 %v2706
        %v2911 = vpop.f32.mrf.mxu0
        %v2912 = vadd.f32 %v2553, %v2911
        %2913 = vmatmul.f32.gmra.mxu0 %v2708
        %v2914 = vpop.f32.mrf.mxu0
        %2915 = vmatmul.f32.gmra.mxu0 %v2710
        %v2916 = vpop.f32.mrf.mxu0
        %2917 = vmatmul.f32.gmra.mxu0 %v2712
        %v2918 = vpop.f32.mrf.mxu0
        %2919 = vmatmul.f32.gmra.mxu0 %v2714
        %v2920 = vpop.f32.mrf.mxu0
        %2921 = vmatmul.f32.gmra.mxu0 %v2716
        %v2922 = vpop.f32.mrf.mxu0
        %v2923 = vadd.f32 %v2564, %v2922
        %2924 = vmatmul.f32.gmra.mxu0 %v2718
        %v2925 = vpop.f32.mrf.mxu0
        %v2926 = vadd.f32 %v2567, %v2925
        %2927 = vmatmul.f32.gmra.mxu0 %v2720
        %v2928 = vpop.f32.mrf.mxu0
        %v2929 = vadd.f32 %v2570, %v2928
        %2930 = vdwg.mxu0
        %s2931 = scalar_lea.vmem %s3, 16
        %v2932 = vld [vmem:[%s2931] sm:$0x3f]
        %vm2933 = vcmask 1043456
        %v2934 = vrot.slane %v1876, 4
        %v2935 = vrot.slane %v1877, 4
        %v2936 = vsel %vm2933, %v2934, %v2935
        %v2937 = vrot.slane %v1878, 4
        %v2938 = vsel %vm2933, %v2935, %v2937
        %v2939 = vrot.slane %v1879, 4
        %v2940 = vsel %vm2933, %v2937, %v2939
        %v2941 = vrot.slane %v1880, 4
        %v2942 = vsel %vm2933, %v2939, %v2941
        %v2943 = vrot.slane %v1881, 4
        %v2944 = vsel %vm2933, %v2941, %v2943
        %v2945 = vrot.slane %v1882, 4
        %v2946 = vsel %vm2933, %v2943, %v2945
        %v2947 = vrot.slane %v1883, 4
        %v2948 = vsel %vm2933, %v2945, %v2947
        %v2949 = vrot.slane %v1884, 4
        %v2950 = vsel %vm2933, %v2947, %v2949
        %v2951 = vrot.slane %v1885, 4
        %v2952 = vsel %vm2933, %v2949, %v2951
        %v2953 = vrot.slane %v1886, 4
        %v2954 = vsel %vm2933, %v2951, %v2953
        %v2955 = vrot.slane %v1887, 4
        %v2956 = vsel %vm2933, %v2953, %v2955
        %v2957 = vrot.slane %v1888, 4
        %v2958 = vsel %vm2933, %v2955, %v2957
        %v2959 = vrot.slane %v1889, 4
        %v2960 = vsel %vm2933, %v2957, %v2959
        %v2961 = vrot.slane %v1890, 4
        %v2962 = vsel %vm2933, %v2959, %v2961
        %v2963 = vrot.slane %v1891, 4
        %v2964 = vsel %vm2933, %v2961, %v2963
        %v2965 = vrot.slane %v1892, 4
        %v2966 = vsel %vm2933, %v2963, %v2965
        %v2967 = vrot.slane %v1893, 4
        %v2968 = vsel %vm2933, %v2965, %v2967
        %v2969 = vrot.slane %v1894, 4
        %v2970 = vsel %vm2933, %v2967, %v2969
        %v2971 = vrot.slane %v1895, 4
        %v2972 = vsel %vm2933, %v2969, %v2971
        %v2973 = vrot.slane %v1896, 4
        %v2974 = vsel %vm2933, %v2971, %v2973
        %v2975 = vrot.slane %v1897, 4
        %v2976 = vsel %vm2933, %v2973, %v2975
        %v2977 = vrot.slane %v1898, 4
        %v2978 = vsel %vm2933, %v2975, %v2977
        %v2979 = vrot.slane %v1899, 4
        %v2980 = vsel %vm2933, %v2977, %v2979
        %v2981 = vrot.slane %v1900, 4
        %v2982 = vsel %vm2933, %v2979, %v2981
        %v2983 = vrot.slane %v1901, 4
        %v2984 = vsel %vm2933, %v2981, %v2983
        %v2985 = vrot.slane %v1902, 4
        %v2986 = vsel %vm2933, %v2983, %v2985
        %v2987 = vrot.slane %v1903, 4
        %v2988 = vsel %vm2933, %v2985, %v2987
        %v2989 = vrot.slane %v1904, 4
        %v2990 = vsel %vm2933, %v2987, %v2989
        %v2991 = vrot.slane %v1905, 4
        %v2992 = vsel %vm2933, %v2989, %v2991
        %v2993 = vrot.slane %v1906, 4
        %v2994 = vsel %vm2933, %v2991, %v2993
        %v2995 = vrot.slane %v1907, 4
        %v2996 = vsel %vm2933, %v2993, %v2995
        %v2997 = vrot.slane %v1908, 4
        %v2998 = vsel %vm2933, %v2995, %v2997
        %v2999 = vrot.slane %v1909, 4
        %v3000 = vsel %vm2933, %v2997, %v2999
        %v3001 = vrot.slane %v1910, 4
        %v3002 = vsel %vm2933, %v2999, %v3001
        %v3003 = vrot.slane %v1911, 4
        %v3004 = vsel %vm2933, %v3001, %v3003
        %v3005 = vrot.slane %v1912, 4
        %v3006 = vsel %vm2933, %v3003, %v3005
        %v3007 = vrot.slane %v1913, 4
        %v3008 = vsel %vm2933, %v3005, %v3007
        %v3009 = vrot.slane %v1914, 4
        %v3010 = vsel %vm2933, %v3007, %v3009
        %v3011 = vrot.slane %v1915, 4
        %v3012 = vsel %vm2933, %v3009, %v3011
        %v3013 = vrot.slane %v1916, 4
        %v3014 = vsel %vm2933, %v3011, %v3013
        %v3015 = vrot.slane %v1917, 4
        %v3016 = vsel %vm2933, %v3013, %v3015
        %v3017 = vrot.slane %v1918, 4
        %v3018 = vsel %vm2933, %v3015, %v3017
        %v3019 = vrot.slane %v1919, 4
        %v3020 = vsel %vm2933, %v3017, %v3019
        %v3021 = vrot.slane %v1920, 4
        %v3022 = vsel %vm2933, %v3019, %v3021
        %v3023 = vrot.slane %v1921, 4
        %v3024 = vsel %vm2933, %v3021, %v3023
        %v3025 = vrot.slane %v1922, 4
        %v3026 = vsel %vm2933, %v3023, %v3025
        %v3027 = vrot.slane %v1923, 4
        %v3028 = vsel %vm2933, %v3025, %v3027
        %v3029 = vrot.slane %v1924, 4
        %v3030 = vsel %vm2933, %v3027, %v3029
        %v3031 = vrot.slane %v1925, 4
        %v3032 = vsel %vm2933, %v3029, %v3031
        %v3033 = vrot.slane %v1926, 4
        %v3034 = vsel %vm2933, %v3031, %v3033
        %v3035 = vrot.slane %v1927, 4
        %v3036 = vsel %vm2933, %v3033, %v3035
        %v3037 = vrot.slane %v1928, 4
        %v3038 = vsel %vm2933, %v3035, %v3037
        %v3039 = vrot.slane %v1929, 4
        %v3040 = vsel %vm2933, %v3037, %v3039
        %v3041 = vrot.slane %v1930, 4
        %v3042 = vsel %vm2933, %v3039, %v3041
        %v3043 = vrot.slane %v1931, 4
        %v3044 = vsel %vm2933, %v3041, %v3043
        %v3045 = vrot.slane %v1932, 4
        %v3046 = vsel %vm2933, %v3043, %v3045
        %v3047 = vrot.slane %v1933, 4
        %v3048 = vsel %vm2933, %v3045, %v3047
        %v3049 = vrot.slane %v1934, 4
        %v3050 = vsel %vm2933, %v3047, %v3049
        %v3051 = vrot.slane %v1935, 4
        %v3052 = vsel %vm2933, %v3049, %v3051
        %v3053 = vrot.slane %v1936, 4
        %v3054 = vsel %vm2933, %v3051, %v3053
        %v3055 = vrot.slane %v1937, 4
        %v3056 = vsel %vm2933, %v3053, %v3055
        %v3057 = vrot.slane %v1938, 4
        %v3058 = vsel %vm2933, %v3055, %v3057
        %v3059 = vrot.slane %v1939, 4
        %v3060 = vsel %vm2933, %v3057, %v3059
        %v3061 = vrot.slane %v1940, 4
        %v3062 = vsel %vm2933, %v3059, %v3061
        %v3063 = vrot.slane %v1941, 4
        %v3064 = vsel %vm2933, %v3061, %v3063
        %v3065 = vrot.slane %v1942, 4
        %v3066 = vsel %vm2933, %v3063, %v3065
        %v3067 = vrot.slane %v1943, 4
        %v3068 = vsel %vm2933, %v3065, %v3067
        %v3069 = vrot.slane %v1944, 4
        %v3070 = vsel %vm2933, %v3067, %v3069
        %v3071 = vrot.slane %v1945, 4
        %v3072 = vsel %vm2933, %v3069, %v3071
        %v3073 = vrot.slane %v1946, 4
        %v3074 = vsel %vm2933, %v3071, %v3073
        %v3075 = vrot.slane %v1947, 4
        %v3076 = vsel %vm2933, %v3073, %v3075
        %v3077 = vrot.slane %v1948, 4
        %v3078 = vsel %vm2933, %v3075, %v3077
        %v3079 = vrot.slane %v1949, 4
        %v3080 = vsel %vm2933, %v3077, %v3079
        %v3081 = vrot.slane %v1950, 4
        %v3082 = vsel %vm2933, %v3079, %v3081
        %v3083 = vsel %vm2212, %v2936, 0
        %v3085 = vsel %vm2212, %v2938, 0
        %v3087 = vsel %vm2212, %v2940, 0
        %v3089 = vsel %vm2212, %v2942, 0
        %v3091 = vsel %vm2212, %v2944, 0
        %v3093 = vsel %vm2212, %v2946, 0
        %v3095 = vsel %vm2212, %v2948, 0
        %v3097 = vsel %vm2212, %v2950, 0
        %v3099 = vsel %vm2212, %v2952, 0
        %v3101 = vsel %vm2212, %v2954, 0
        %v3103 = vsel %vm2212, %v2956, 0
        %v3105 = vsel %vm2212, %v2958, 0
        %v3107 = vsel %vm2212, %v2960, 0
        %v3109 = vsel %vm2212, %v2962, 0
        %v3111 = vsel %vm2212, %v2964, 0
        %v3113 = vsel %vm2212, %v2966, 0
        %v3115 = vsel %vm2212, %v2968, 0
        %v3117 = vsel %vm2212, %v2970, 0
        %v3119 = vsel %vm2212, %v2972, 0
        %v3121 = vsel %vm2212, %v2974, 0
        %v3123 = vsel %vm2212, %v2976, 0
        %v3125 = vsel %vm2212, %v2978, 0
        %v3127 = vsel %vm2212, %v2980, 0
        %v3129 = vsel %vm2212, %v2982, 0
        %v3131 = vsel %vm2212, %v2984, 0
        %v3133 = vsel %vm2212, %v2986, 0
        %v3135 = vsel %vm2212, %v2988, 0
        %v3137 = vsel %vm2212, %v2990, 0
        %v3139 = vsel %vm2212, %v2992, 0
        %v3141 = vsel %vm2212, %v2994, 0
        %v3143 = vsel %vm2212, %v2996, 0
        %v3145 = vsel %vm2212, %v2998, 0
        %v3147 = vsel %vm2212, %v3000, 0
        %v3149 = vsel %vm2212, %v3002, 0
        %v3151 = vsel %vm2212, %v3004, 0
        %v3153 = vsel %vm2212, %v3006, 0
        %v3155 = vsel %vm2212, %v3008, 0
        %v3157 = vsel %vm2212, %v3010, 0
        %v3159 = vsel %vm2212, %v3012, 0
        %v3161 = vsel %vm2212, %v3014, 0
        %v3163 = vsel %vm2212, %v3016, 0
        %v3165 = vsel %vm2212, %v3018, 0
        %v3167 = vsel %vm2212, %v3020, 0
        %v3169 = vsel %vm2212, %v3022, 0
        %v3171 = vsel %vm2212, %v3024, 0
        %v3173 = vsel %vm2212, %v3026, 0
        %v3175 = vsel %vm2212, %v3028, 0
        %v3177 = vsel %vm2212, %v3030, 0
        %v3179 = vsel %vm2212, %v3032, 0
        %v3181 = vsel %vm2212, %v3034, 0
        %v3183 = vsel %vm2212, %v3036, 0
        %v3185 = vsel %vm2212, %v3038, 0
        %v3187 = vsel %vm2212, %v3040, 0
        %v3189 = vsel %vm2212, %v3042, 0
        %v3191 = vsel %vm2212, %v3044, 0
        %v3193 = vsel %vm2212, %v3046, 0
        %v3195 = vsel %vm2212, %v3048, 0
        %v3197 = vsel %vm2212, %v3050, 0
        %v3199 = vsel %vm2212, %v3052, 0
        %v3201 = vsel %vm2212, %v3054, 0
        %v3203 = vsel %vm2212, %v3056, 0
        %v3205 = vsel %vm2212, %v3058, 0
        %v3207 = vsel %vm2212, %v3060, 0
        %v3209 = vsel %vm2212, %v3062, 0
        %v3211 = vsel %vm2212, %v3064, 0
        %v3213 = vsel %vm2212, %v3066, 0
        %v3215 = vsel %vm2212, %v3068, 0
        %v3217 = vsel %vm2212, %v3070, 0
        %v3219 = vsel %vm2212, %v3072, 0
        %v3221 = vsel %vm2212, %v3074, 0
        %v3223 = vsel %vm2212, %v3076, 0
        %v3225 = vsel %vm2212, %v3078, 0
        %v3227 = vsel %vm2212, %v3080, 0
        %v3229 = vsel %vm2212, %v3082, 0
        %v3231 = vsel %vm2212, %v3081, 0
        %v3234 = vsel %vm2062, %v2932, 0
        %3236 = vmatpush.msra.mxu0 0.0
        %3237 = vmatpush.msra.mxu0 0.0
        %3238 = vmatpush.msra.mxu0 0.0
        %3239 = vmatpush.msra.mxu0 0.0
        %3240 = vmatpush.msra.mxu0 0.0
        %3241 = vmatpush.msra.mxu0 0.0
        %3242 = vmatpush.msra.mxu0 0.0
        %3243 = vmatpush.msra.mxu0 0.0
        %3244 = vmatpush.msra.mxu0 0.0
        %3245 = vmatpush.msra.mxu0 0.0
        %3246 = vmatpush.msra.mxu0 0.0
        %3247 = vmatpush.msra.mxu0 0.0
        %3248 = vmatpush.msra.mxu0 0.0
        %3249 = vmatpush.msra.mxu0 0.0
        %3250 = vmatpush.msra.mxu0 0.0
        %3251 = vmatpush.msra.mxu0 %v3234
        %3252 = vmatmul.f32.gmra.mxu0 %v3083
        %v3253 = vpop.f32.mrf.mxu0
        %v3254 = vadd.f32 0.0, %v3253
        %3255 = vmatmul.f32.gmra.mxu0 %v3085
        %v3256 = vpop.f32.mrf.mxu0
        %v3257 = vadd.f32 0.0, %v3256
        %3258 = vmatmul.f32.gmra.mxu0 %v3087
        %v3259 = vpop.f32.mrf.mxu0
        %v3260 = vadd.f32 0.0, %v3259
        %3261 = vmatmul.f32.gmra.mxu0 %v3089
        %v3262 = vpop.f32.mrf.mxu0
        %v3263 = vadd.f32 0.0, %v3262
        %3264 = vmatmul.f32.gmra.mxu0 %v3091
        %v3265 = vpop.f32.mrf.mxu0
        %3266 = vmatmul.f32.gmra.mxu0 %v3093
        %v3267 = vpop.f32.mrf.mxu0
        %3268 = vmatmul.f32.gmra.mxu0 %v3095
        %v3269 = vpop.f32.mrf.mxu0
        %3270 = vmatmul.f32.gmra.mxu0 %v3097
        %v3271 = vpop.f32.mrf.mxu0
        %3272 = vmatmul.f32.gmra.mxu0 %v3099
        %v3273 = vpop.f32.mrf.mxu0
        %v3274 = vadd.f32 0.0, %v3273
        %3275 = vmatmul.f32.gmra.mxu0 %v3101
        %v3276 = vpop.f32.mrf.mxu0
        %v3277 = vadd.f32 0.0, %v3276
        %3278 = vmatmul.f32.gmra.mxu0 %v3103
        %v3279 = vpop.f32.mrf.mxu0
        %v3280 = vadd.f32 0.0, %v3279
        %3281 = vmatmul.f32.gmra.mxu0 %v3105
        %v3282 = vpop.f32.mrf.mxu0
        %v3283 = vadd.f32 0.0, %v3282
        %3284 = vmatmul.f32.gmra.mxu0 %v3107
        %v3285 = vpop.f32.mrf.mxu0
        %3286 = vmatmul.f32.gmra.mxu0 %v3109
        %v3287 = vpop.f32.mrf.mxu0
        %3288 = vmatmul.f32.gmra.mxu0 %v3111
        %v3289 = vpop.f32.mrf.mxu0
        %3290 = vmatmul.f32.gmra.mxu0 %v3113
        %v3291 = vpop.f32.mrf.mxu0
        %3292 = vmatmul.f32.gmra.mxu0 %v3115
        %v3293 = vpop.f32.mrf.mxu0
        %v3294 = vadd.f32 0.0, %v3293
        %3295 = vmatmul.f32.gmra.mxu0 %v3117
        %v3296 = vpop.f32.mrf.mxu0
        %v3297 = vadd.f32 0.0, %v3296
        %3298 = vmatmul.f32.gmra.mxu0 %v3119
        %v3299 = vpop.f32.mrf.mxu0
        %v3300 = vadd.f32 0.0, %v3299
        %3301 = vmatmul.f32.gmra.mxu0 %v3121
        %v3302 = vpop.f32.mrf.mxu0
        %v3303 = vadd.f32 0.0, %v3302
        %3304 = vmatmul.f32.gmra.mxu0 %v3123
        %v3305 = vpop.f32.mrf.mxu0
        %3306 = vmatmul.f32.gmra.mxu0 %v3125
        %v3307 = vpop.f32.mrf.mxu0
        %3308 = vmatmul.f32.gmra.mxu0 %v3127
        %v3309 = vpop.f32.mrf.mxu0
        %3310 = vmatmul.f32.gmra.mxu0 %v3129
        %v3311 = vpop.f32.mrf.mxu0
        %3312 = vmatmul.f32.gmra.mxu0 %v3131
        %v3313 = vpop.f32.mrf.mxu0
        %v3314 = vadd.f32 0.0, %v3313
        %3315 = vmatmul.f32.gmra.mxu0 %v3133
        %v3316 = vpop.f32.mrf.mxu0
        %v3317 = vadd.f32 0.0, %v3316
        %3318 = vmatmul.f32.gmra.mxu0 %v3135
        %v3319 = vpop.f32.mrf.mxu0
        %v3320 = vadd.f32 0.0, %v3319
        %3321 = vmatmul.f32.gmra.mxu0 %v3137
        %v3322 = vpop.f32.mrf.mxu0
        %v3323 = vadd.f32 0.0, %v3322
        %3324 = vmatmul.f32.gmra.mxu0 %v3139
        %v3325 = vpop.f32.mrf.mxu0
        %3326 = vmatmul.f32.gmra.mxu0 %v3141
        %v3327 = vpop.f32.mrf.mxu0
        %3328 = vmatmul.f32.gmra.mxu0 %v3143
        %v3329 = vpop.f32.mrf.mxu0
        %3330 = vmatmul.f32.gmra.mxu0 %v3145
        %v3331 = vpop.f32.mrf.mxu0
        %3332 = vmatmul.f32.gmra.mxu0 %v3147
        %v3333 = vpop.f32.mrf.mxu0
        %v3334 = vadd.f32 0.0, %v3333
        %3335 = vmatmul.f32.gmra.mxu0 %v3149
        %v3336 = vpop.f32.mrf.mxu0
        %v3337 = vadd.f32 0.0, %v3336
        %3338 = vmatmul.f32.gmra.mxu0 %v3151
        %v3339 = vpop.f32.mrf.mxu0
        %v3340 = vadd.f32 0.0, %v3339
        %3341 = vmatmul.f32.gmra.mxu0 %v3153
        %v3342 = vpop.f32.mrf.mxu0
        %v3343 = vadd.f32 0.0, %v3342
        %3344 = vmatmul.f32.gmra.mxu0 %v3155
        %v3345 = vpop.f32.mrf.mxu0
        %3346 = vmatmul.f32.gmra.mxu0 %v3157
        %v3347 = vpop.f32.mrf.mxu0
        %3348 = vmatmul.f32.gmra.mxu0 %v3159
        %v3349 = vpop.f32.mrf.mxu0
        %3350 = vmatmul.f32.gmra.mxu0 %v3161
        %v3351 = vpop.f32.mrf.mxu0
        %3352 = vmatmul.f32.gmra.mxu0 %v3163
        %v3353 = vpop.f32.mrf.mxu0
        %v3354 = vadd.f32 0.0, %v3353
        %3355 = vmatmul.f32.gmra.mxu0 %v3165
        %v3356 = vpop.f32.mrf.mxu0
        %v3357 = vadd.f32 0.0, %v3356
        %3358 = vmatmul.f32.gmra.mxu0 %v3167
        %v3359 = vpop.f32.mrf.mxu0
        %v3360 = vadd.f32 0.0, %v3359
        %3361 = vmatmul.f32.gmra.mxu0 %v3169
        %v3362 = vpop.f32.mrf.mxu0
        %v3363 = vadd.f32 0.0, %v3362
        %3364 = vmatmul.f32.gmra.mxu0 %v3171
        %v3365 = vpop.f32.mrf.mxu0
        %3366 = vmatmul.f32.gmra.mxu0 %v3173
        %v3367 = vpop.f32.mrf.mxu0
        %3368 = vmatmul.f32.gmra.mxu0 %v3175
        %v3369 = vpop.f32.mrf.mxu0
        %3370 = vmatmul.f32.gmra.mxu0 %v3177
        %v3371 = vpop.f32.mrf.mxu0
        %3372 = vmatmul.f32.gmra.mxu0 %v3179
        %v3373 = vpop.f32.mrf.mxu0
        %v3374 = vadd.f32 0.0, %v3373
        %3375 = vmatmul.f32.gmra.mxu0 %v3181
        %v3376 = vpop.f32.mrf.mxu0
        %v3377 = vadd.f32 0.0, %v3376
        %3378 = vmatmul.f32.gmra.mxu0 %v3183
        %v3379 = vpop.f32.mrf.mxu0
        %v3380 = vadd.f32 0.0, %v3379
        %3381 = vmatmul.f32.gmra.mxu0 %v3185
        %v3382 = vpop.f32.mrf.mxu0
        %v3383 = vadd.f32 0.0, %v3382
        %3384 = vmatmul.f32.gmra.mxu0 %v3187
        %v3385 = vpop.f32.mrf.mxu0
        %3386 = vmatmul.f32.gmra.mxu0 %v3189
        %v3387 = vpop.f32.mrf.mxu0
        %3388 = vmatmul.f32.gmra.mxu0 %v3191
        %v3389 = vpop.f32.mrf.mxu0
        %3390 = vmatmul.f32.gmra.mxu0 %v3193
        %v3391 = vpop.f32.mrf.mxu0
        %3392 = vmatmul.f32.gmra.mxu0 %v3195
        %v3393 = vpop.f32.mrf.mxu0
        %v3394 = vadd.f32 0.0, %v3393
        %3395 = vmatmul.f32.gmra.mxu0 %v3197
        %v3396 = vpop.f32.mrf.mxu0
        %v3397 = vadd.f32 0.0, %v3396
        %3398 = vmatmul.f32.gmra.mxu0 %v3199
        %v3399 = vpop.f32.mrf.mxu0
        %v3400 = vadd.f32 0.0, %v3399
        %3401 = vmatmul.f32.gmra.mxu0 %v3201
        %v3402 = vpop.f32.mrf.mxu0
        %v3403 = vadd.f32 0.0, %v3402
        %3404 = vmatmul.f32.gmra.mxu0 %v3203
        %v3405 = vpop.f32.mrf.mxu0
        %3406 = vmatmul.f32.gmra.mxu0 %v3205
        %v3407 = vpop.f32.mrf.mxu0
        %3408 = vmatmul.f32.gmra.mxu0 %v3207
        %v3409 = vpop.f32.mrf.mxu0
        %3410 = vmatmul.f32.gmra.mxu0 %v3209
        %v3411 = vpop.f32.mrf.mxu0
        %3412 = vmatmul.f32.gmra.mxu0 %v3211
        %v3413 = vpop.f32.mrf.mxu0
        %v3414 = vadd.f32 0.0, %v3413
        %3415 = vmatmul.f32.gmra.mxu0 %v3213
        %v3416 = vpop.f32.mrf.mxu0
        %v3417 = vadd.f32 0.0, %v3416
        %3418 = vmatmul.f32.gmra.mxu0 %v3215
        %v3419 = vpop.f32.mrf.mxu0
        %v3420 = vadd.f32 0.0, %v3419
        %3421 = vmatmul.f32.gmra.mxu0 %v3217
        %v3422 = vpop.f32.mrf.mxu0
        %v3423 = vadd.f32 0.0, %v3422
        %3424 = vmatmul.f32.gmra.mxu0 %v3219
        %v3425 = vpop.f32.mrf.mxu0
        %3426 = vmatmul.f32.gmra.mxu0 %v3221
        %v3427 = vpop.f32.mrf.mxu0
        %3428 = vmatmul.f32.gmra.mxu0 %v3223
        %v3429 = vpop.f32.mrf.mxu0
        %3430 = vmatmul.f32.gmra.mxu0 %v3225
        %v3431 = vpop.f32.mrf.mxu0
        %3432 = vmatmul.f32.gmra.mxu0 %v3227
        %v3433 = vpop.f32.mrf.mxu0
        %v3434 = vadd.f32 0.0, %v3433
        %3435 = vmatmul.f32.gmra.mxu0 %v3229
        %v3436 = vpop.f32.mrf.mxu0
        %v3437 = vadd.f32 0.0, %v3436
        %3438 = vmatmul.f32.gmra.mxu0 %v3231
        %v3439 = vpop.f32.mrf.mxu0
        %v3440 = vadd.f32 0.0, %v3439
        %3441 = vdwg.mxu0
        %v3442 = vadd.f32 %v2743, %v3254
        %v3443 = vadd.f32 %v2746, %v3257
        %v3444 = vadd.f32 %v2749, %v3260
        %v3445 = vadd.f32 %v2752, %v3263
        %v3446 = vadd.f32 %v2763, %v3274
        %v3447 = vadd.f32 %v2766, %v3277
        %v3448 = vadd.f32 %v2769, %v3280
        %v3449 = vadd.f32 %v2772, %v3283
        %v3450 = vadd.f32 %v2783, %v3294
        %v3451 = vadd.f32 %v2786, %v3297
        %v3452 = vadd.f32 %v2789, %v3300
        %v3453 = vadd.f32 %v2792, %v3303
        %v3454 = vadd.f32 %v2803, %v3314
        %v3455 = vadd.f32 %v2806, %v3317
        %v3456 = vadd.f32 %v2809, %v3320
        %v3457 = vadd.f32 %v2812, %v3323
        %v3458 = vadd.f32 %v2823, %v3334
        %v3459 = vadd.f32 %v2826, %v3337
        %v3460 = vadd.f32 %v2829, %v3340
        %v3461 = vadd.f32 %v2832, %v3343
        %v3462 = vadd.f32 %v2843, %v3354
        %v3463 = vadd.f32 %v2846, %v3357
        %v3464 = vadd.f32 %v2849, %v3360
        %v3465 = vadd.f32 %v2852, %v3363
        %v3466 = vadd.f32 %v2863, %v3374
        %v3467 = vadd.f32 %v2866, %v3377
        %v3468 = vadd.f32 %v2869, %v3380
        %v3469 = vadd.f32 %v2872, %v3383
        %v3470 = vadd.f32 %v2883, %v3394
        %v3471 = vadd.f32 %v2886, %v3397
        %v3472 = vadd.f32 %v2889, %v3400
        %v3473 = vadd.f32 %v2892, %v3403
        %v3474 = vadd.f32 %v2903, %v3414
        %v3475 = vadd.f32 %v2906, %v3417
        %v3476 = vadd.f32 %v2909, %v3420
        %v3477 = vadd.f32 %v2912, %v3423
        %v3478 = vadd.f32 %v2923, %v3434
        %v3479 = vadd.f32 %v2926, %v3437
        %v3480 = vadd.f32 %v2929, %v3440
        %s3481 = scalar_lea.vmem %s3, 24
        %v3482 = vld [vmem:[%s3481] sm:$0x3f]
        %vm3484 = vcmask 1041408
        %v3485 = vrot.slane %v1876, 6
        %v3486 = vrot.slane %v1877, 6
        %v3487 = vsel %vm3484, %v3485, %v3486
        %v3488 = vrot.slane %v1878, 6
        %v3489 = vsel %vm3484, %v3486, %v3488
        %v3490 = vrot.slane %v1879, 6
        %v3491 = vsel %vm3484, %v3488, %v3490
        %v3492 = vrot.slane %v1880, 6
        %v3493 = vsel %vm3484, %v3490, %v3492
        %v3494 = vrot.slane %v1881, 6
        %v3495 = vsel %vm3484, %v3492, %v3494
        %v3496 = vrot.slane %v1882, 6
        %v3497 = vsel %vm3484, %v3494, %v3496
        %v3498 = vrot.slane %v1883, 6
        %v3499 = vsel %vm3484, %v3496, %v3498
        %v3500 = vrot.slane %v1884, 6
        %v3501 = vsel %vm3484, %v3498, %v3500
        %v3502 = vrot.slane %v1885, 6
        %v3503 = vsel %vm3484, %v3500, %v3502
        %v3504 = vrot.slane %v1886, 6
        %v3505 = vsel %vm3484, %v3502, %v3504
        %v3506 = vrot.slane %v1887, 6
        %v3507 = vsel %vm3484, %v3504, %v3506
        %v3508 = vrot.slane %v1888, 6
        %v3509 = vsel %vm3484, %v3506, %v3508
        %v3510 = vrot.slane %v1889, 6
        %v3511 = vsel %vm3484, %v3508, %v3510
        %v3512 = vrot.slane %v1890, 6
        %v3513 = vsel %vm3484, %v3510, %v3512
        %v3514 = vrot.slane %v1891, 6
        %v3515 = vsel %vm3484, %v3512, %v3514
        %v3516 = vrot.slane %v1892, 6
        %v3517 = vsel %vm3484, %v3514, %v3516
        %v3518 = vrot.slane %v1893, 6
        %v3519 = vsel %vm3484, %v3516, %v3518
        %v3520 = vrot.slane %v1894, 6
        %v3521 = vsel %vm3484, %v3518, %v3520
        %v3522 = vrot.slane %v1895, 6
        %v3523 = vsel %vm3484, %v3520, %v3522
        %v3524 = vrot.slane %v1896, 6
        %v3525 = vsel %vm3484, %v3522, %v3524
        %v3526 = vrot.slane %v1897, 6
        %v3527 = vsel %vm3484, %v3524, %v3526
        %v3528 = vrot.slane %v1898, 6
        %v3529 = vsel %vm3484, %v3526, %v3528
        %v3530 = vrot.slane %v1899, 6
        %v3531 = vsel %vm3484, %v3528, %v3530
        %v3532 = vrot.slane %v1900, 6
        %v3533 = vsel %vm3484, %v3530, %v3532
        %v3534 = vrot.slane %v1901, 6
        %v3535 = vsel %vm3484, %v3532, %v3534
        %v3536 = vrot.slane %v1902, 6
        %v3537 = vsel %vm3484, %v3534, %v3536
        %v3538 = vrot.slane %v1903, 6
        %v3539 = vsel %vm3484, %v3536, %v3538
        %v3540 = vrot.slane %v1904, 6
        %v3541 = vsel %vm3484, %v3538, %v3540
        %v3542 = vrot.slane %v1905, 6
        %v3543 = vsel %vm3484, %v3540, %v3542
        %v3544 = vrot.slane %v1906, 6
        %v3545 = vsel %vm3484, %v3542, %v3544
        %v3546 = vrot.slane %v1907, 6
        %v3547 = vsel %vm3484, %v3544, %v3546
        %v3548 = vrot.slane %v1908, 6
        %v3549 = vsel %vm3484, %v3546, %v3548
        %v3550 = vrot.slane %v1909, 6
        %v3551 = vsel %vm3484, %v3548, %v3550
        %v3552 = vrot.slane %v1910, 6
        %v3553 = vsel %vm3484, %v3550, %v3552
        %v3554 = vrot.slane %v1911, 6
        %v3555 = vsel %vm3484, %v3552, %v3554
        %v3556 = vrot.slane %v1912, 6
        %v3557 = vsel %vm3484, %v3554, %v3556
        %v3558 = vrot.slane %v1913, 6
        %v3559 = vsel %vm3484, %v3556, %v3558
        %v3560 = vrot.slane %v1914, 6
        %v3561 = vsel %vm3484, %v3558, %v3560
        %v3562 = vrot.slane %v1915, 6
        %v3563 = vsel %vm3484, %v3560, %v3562
        %v3564 = vrot.slane %v1916, 6
        %v3565 = vsel %vm3484, %v3562, %v3564
        %v3566 = vrot.slane %v1917, 6
        %v3567 = vsel %vm3484, %v3564, %v3566
        %v3568 = vrot.slane %v1918, 6
        %v3569 = vsel %vm3484, %v3566, %v3568
        %v3570 = vrot.slane %v1919, 6
        %v3571 = vsel %vm3484, %v3568, %v3570
        %v3572 = vrot.slane %v1920, 6
        %v3573 = vsel %vm3484, %v3570, %v3572
        %v3574 = vrot.slane %v1921, 6
        %v3575 = vsel %vm3484, %v3572, %v3574
        %v3576 = vrot.slane %v1922, 6
        %v3577 = vsel %vm3484, %v3574, %v3576
        %v3578 = vrot.slane %v1923, 6
        %v3579 = vsel %vm3484, %v3576, %v3578
        %v3580 = vrot.slane %v1924, 6
        %v3581 = vsel %vm3484, %v3578, %v3580
        %v3582 = vrot.slane %v1925, 6
        %v3583 = vsel %vm3484, %v3580, %v3582
        %v3584 = vrot.slane %v1926, 6
        %v3585 = vsel %vm3484, %v3582, %v3584
        %v3586 = vrot.slane %v1927, 6
        %v3587 = vsel %vm3484, %v3584, %v3586
        %v3588 = vrot.slane %v1928, 6
        %v3589 = vsel %vm3484, %v3586, %v3588
        %v3590 = vrot.slane %v1929, 6
        %v3591 = vsel %vm3484, %v3588, %v3590
        %v3592 = vrot.slane %v1930, 6
        %v3593 = vsel %vm3484, %v3590, %v3592
        %v3594 = vrot.slane %v1931, 6
        %v3595 = vsel %vm3484, %v3592, %v3594
        %v3596 = vrot.slane %v1932, 6
        %v3597 = vsel %vm3484, %v3594, %v3596
        %v3598 = vrot.slane %v1933, 6
        %v3599 = vsel %vm3484, %v3596, %v3598
        %v3600 = vrot.slane %v1934, 6
        %v3601 = vsel %vm3484, %v3598, %v3600
        %v3602 = vrot.slane %v1935, 6
        %v3603 = vsel %vm3484, %v3600, %v3602
        %v3604 = vrot.slane %v1936, 6
        %v3605 = vsel %vm3484, %v3602, %v3604
        %v3606 = vrot.slane %v1937, 6
        %v3607 = vsel %vm3484, %v3604, %v3606
        %v3608 = vrot.slane %v1938, 6
        %v3609 = vsel %vm3484, %v3606, %v3608
        %v3610 = vrot.slane %v1939, 6
        %v3611 = vsel %vm3484, %v3608, %v3610
        %v3612 = vrot.slane %v1940, 6
        %v3613 = vsel %vm3484, %v3610, %v3612
        %v3614 = vrot.slane %v1941, 6
        %v3615 = vsel %vm3484, %v3612, %v3614
        %v3616 = vrot.slane %v1942, 6
        %v3617 = vsel %vm3484, %v3614, %v3616
        %v3618 = vrot.slane %v1943, 6
        %v3619 = vsel %vm3484, %v3616, %v3618
        %v3620 = vrot.slane %v1944, 6
        %v3621 = vsel %vm3484, %v3618, %v3620
        %v3622 = vrot.slane %v1945, 6
        %v3623 = vsel %vm3484, %v3620, %v3622
        %v3624 = vrot.slane %v1946, 6
        %v3625 = vsel %vm3484, %v3622, %v3624
        %v3626 = vrot.slane %v1947, 6
        %v3627 = vsel %vm3484, %v3624, %v3626
        %v3628 = vrot.slane %v1948, 6
        %v3629 = vsel %vm3484, %v3626, %v3628
        %v3630 = vrot.slane %v1949, 6
        %v3631 = vsel %vm3484, %v3628, %v3630
        %v3632 = vrot.slane %v1950, 6
        %v3633 = vsel %vm3484, %v3630, %v3632
        %v3634 = vrot.slane %v1951, 6
        %v3635 = vsel %vm3484, %v3632, %v3634
        %v3636 = vsel %vm2212, %v3487, 0
        %v3638 = vsel %vm2212, %v3489, 0
        %v3640 = vsel %vm2212, %v3491, 0
        %v3642 = vsel %vm2212, %v3493, 0
        %v3644 = vsel %vm2212, %v3495, 0
        %v3646 = vsel %vm2212, %v3497, 0
        %v3648 = vsel %vm2212, %v3499, 0
        %v3650 = vsel %vm2212, %v3501, 0
        %v3652 = vsel %vm2212, %v3503, 0
        %v3654 = vsel %vm2212, %v3505, 0
        %v3656 = vsel %vm2212, %v3507, 0
        %v3658 = vsel %vm2212, %v3509, 0
        %v3660 = vsel %vm2212, %v3511, 0
        %v3662 = vsel %vm2212, %v3513, 0
        %v3664 = vsel %vm2212, %v3515, 0
        %v3666 = vsel %vm2212, %v3517, 0
        %v3668 = vsel %vm2212, %v3519, 0
        %v3670 = vsel %vm2212, %v3521, 0
        %v3672 = vsel %vm2212, %v3523, 0
        %v3674 = vsel %vm2212, %v3525, 0
        %v3676 = vsel %vm2212, %v3527, 0
        %v3678 = vsel %vm2212, %v3529, 0
        %v3680 = vsel %vm2212, %v3531, 0
        %v3682 = vsel %vm2212, %v3533, 0
        %v3684 = vsel %vm2212, %v3535, 0
        %v3686 = vsel %vm2212, %v3537, 0
        %v3688 = vsel %vm2212, %v3539, 0
        %v3690 = vsel %vm2212, %v3541, 0
        %v3692 = vsel %vm2212, %v3543, 0
        %v3694 = vsel %vm2212, %v3545, 0
        %v3696 = vsel %vm2212, %v3547, 0
        %v3698 = vsel %vm2212, %v3549, 0
        %v3700 = vsel %vm2212, %v3551, 0
        %v3702 = vsel %vm2212, %v3553, 0
        %v3704 = vsel %vm2212, %v3555, 0
        %v3706 = vsel %vm2212, %v3557, 0
        %v3708 = vsel %vm2212, %v3559, 0
        %v3710 = vsel %vm2212, %v3561, 0
        %v3712 = vsel %vm2212, %v3563, 0
        %v3714 = vsel %vm2212, %v3565, 0
        %v3716 = vsel %vm2212, %v3567, 0
        %v3718 = vsel %vm2212, %v3569, 0
        %v3720 = vsel %vm2212, %v3571, 0
        %v3722 = vsel %vm2212, %v3573, 0
        %v3724 = vsel %vm2212, %v3575, 0
        %v3726 = vsel %vm2212, %v3577, 0
        %v3728 = vsel %vm2212, %v3579, 0
        %v3730 = vsel %vm2212, %v3581, 0
        %v3732 = vsel %vm2212, %v3583, 0
        %v3734 = vsel %vm2212, %v3585, 0
        %v3736 = vsel %vm2212, %v3587, 0
        %v3738 = vsel %vm2212, %v3589, 0
        %v3740 = vsel %vm2212, %v3591, 0
        %v3742 = vsel %vm2212, %v3593, 0
        %v3744 = vsel %vm2212, %v3595, 0
        %v3746 = vsel %vm2212, %v3597, 0
        %v3748 = vsel %vm2212, %v3599, 0
        %v3750 = vsel %vm2212, %v3601, 0
        %v3752 = vsel %vm2212, %v3603, 0
        %v3754 = vsel %vm2212, %v3605, 0
        %v3756 = vsel %vm2212, %v3607, 0
        %v3758 = vsel %vm2212, %v3609, 0
        %v3760 = vsel %vm2212, %v3611, 0
        %v3762 = vsel %vm2212, %v3613, 0
        %v3764 = vsel %vm2212, %v3615, 0
        %v3766 = vsel %vm2212, %v3617, 0
        %v3768 = vsel %vm2212, %v3619, 0
        %v3770 = vsel %vm2212, %v3621, 0
        %v3772 = vsel %vm2212, %v3623, 0
        %v3774 = vsel %vm2212, %v3625, 0
        %v3776 = vsel %vm2212, %v3627, 0
        %v3778 = vsel %vm2212, %v3629, 0
        %v3780 = vsel %vm2212, %v3631, 0
        %v3782 = vsel %vm2212, %v3633, 0
        %v3784 = vsel %vm2212, %v3635, 0
        %v3787 = vsel %vm2062, %v3482, 0
        %3789 = vmatpush.msra.mxu0 0.0
        %3790 = vmatpush.msra.mxu0 0.0
        %3791 = vmatpush.msra.mxu0 0.0
        %3792 = vmatpush.msra.mxu0 0.0
        %3793 = vmatpush.msra.mxu0 0.0
        %3794 = vmatpush.msra.mxu0 0.0
        %3795 = vmatpush.msra.mxu0 0.0
        %3796 = vmatpush.msra.mxu0 0.0
        %3797 = vmatpush.msra.mxu0 0.0
        %3798 = vmatpush.msra.mxu0 0.0
        %3799 = vmatpush.msra.mxu0 0.0
        %3800 = vmatpush.msra.mxu0 0.0
        %3801 = vmatpush.msra.mxu0 0.0
        %3802 = vmatpush.msra.mxu0 0.0
        %3803 = vmatpush.msra.mxu0 0.0
        %3804 = vmatpush.msra.mxu0 %v3787
        %3805 = vmatmul.f32.gmra.mxu0 %v3636
        %v3806 = vpop.f32.mrf.mxu0
        %v3807 = vadd.f32 0.0, %v3806
        %3808 = vmatmul.f32.gmra.mxu0 %v3638
        %v3809 = vpop.f32.mrf.mxu0
        %v3810 = vadd.f32 0.0, %v3809
        %3811 = vmatmul.f32.gmra.mxu0 %v3640
        %v3812 = vpop.f32.mrf.mxu0
        %v3813 = vadd.f32 0.0, %v3812
        %3814 = vmatmul.f32.gmra.mxu0 %v3642
        %v3815 = vpop.f32.mrf.mxu0
        %v3816 = vadd.f32 0.0, %v3815
        %3817 = vmatmul.f32.gmra.mxu0 %v3644
        %v3818 = vpop.f32.mrf.mxu0
        %3819 = vmatmul.f32.gmra.mxu0 %v3646
        %v3820 = vpop.f32.mrf.mxu0
        %3821 = vmatmul.f32.gmra.mxu0 %v3648
        %v3822 = vpop.f32.mrf.mxu0
        %3823 = vmatmul.f32.gmra.mxu0 %v3650
        %v3824 = vpop.f32.mrf.mxu0
        %3825 = vmatmul.f32.gmra.mxu0 %v3652
        %v3826 = vpop.f32.mrf.mxu0
        %v3827 = vadd.f32 0.0, %v3826
        %3828 = vmatmul.f32.gmra.mxu0 %v3654
        %v3829 = vpop.f32.mrf.mxu0
        %v3830 = vadd.f32 0.0, %v3829
        %3831 = vmatmul.f32.gmra.mxu0 %v3656
        %v3832 = vpop.f32.mrf.mxu0
        %v3833 = vadd.f32 0.0, %v3832
        %3834 = vmatmul.f32.gmra.mxu0 %v3658
        %v3835 = vpop.f32.mrf.mxu0
        %v3836 = vadd.f32 0.0, %v3835
        %3837 = vmatmul.f32.gmra.mxu0 %v3660
        %v3838 = vpop.f32.mrf.mxu0
        %3839 = vmatmul.f32.gmra.mxu0 %v3662
        %v3840 = vpop.f32.mrf.mxu0
        %3841 = vmatmul.f32.gmra.mxu0 %v3664
        %v3842 = vpop.f32.mrf.mxu0
        %3843 = vmatmul.f32.gmra.mxu0 %v3666
        %v3844 = vpop.f32.mrf.mxu0
        %3845 = vmatmul.f32.gmra.mxu0 %v3668
        %v3846 = vpop.f32.mrf.mxu0
        %v3847 = vadd.f32 0.0, %v3846
        %3848 = vmatmul.f32.gmra.mxu0 %v3670
        %v3849 = vpop.f32.mrf.mxu0
        %v3850 = vadd.f32 0.0, %v3849
        %3851 = vmatmul.f32.gmra.mxu0 %v3672
        %v3852 = vpop.f32.mrf.mxu0
        %v3853 = vadd.f32 0.0, %v3852
        %3854 = vmatmul.f32.gmra.mxu0 %v3674
        %v3855 = vpop.f32.mrf.mxu0
        %v3856 = vadd.f32 0.0, %v3855
        %3857 = vmatmul.f32.gmra.mxu0 %v3676
        %v3858 = vpop.f32.mrf.mxu0
        %3859 = vmatmul.f32.gmra.mxu0 %v3678
        %v3860 = vpop.f32.mrf.mxu0
        %3861 = vmatmul.f32.gmra.mxu0 %v3680
        %v3862 = vpop.f32.mrf.mxu0
        %3863 = vmatmul.f32.gmra.mxu0 %v3682
        %v3864 = vpop.f32.mrf.mxu0
        %3865 = vmatmul.f32.gmra.mxu0 %v3684
        %v3866 = vpop.f32.mrf.mxu0
        %v3867 = vadd.f32 0.0, %v3866
        %3868 = vmatmul.f32.gmra.mxu0 %v3686
        %v3869 = vpop.f32.mrf.mxu0
        %v3870 = vadd.f32 0.0, %v3869
        %3871 = vmatmul.f32.gmra.mxu0 %v3688
        %v3872 = vpop.f32.mrf.mxu0
        %v3873 = vadd.f32 0.0, %v3872
        %3874 = vmatmul.f32.gmra.mxu0 %v3690
        %v3875 = vpop.f32.mrf.mxu0
        %v3876 = vadd.f32 0.0, %v3875
        %3877 = vmatmul.f32.gmra.mxu0 %v3692
        %v3878 = vpop.f32.mrf.mxu0
        %3879 = vmatmul.f32.gmra.mxu0 %v3694
        %v3880 = vpop.f32.mrf.mxu0
        %3881 = vmatmul.f32.gmra.mxu0 %v3696
        %v3882 = vpop.f32.mrf.mxu0
        %3883 = vmatmul.f32.gmra.mxu0 %v3698
        %v3884 = vpop.f32.mrf.mxu0
        %3885 = vmatmul.f32.gmra.mxu0 %v3700
        %v3886 = vpop.f32.mrf.mxu0
        %v3887 = vadd.f32 0.0, %v3886
        %3888 = vmatmul.f32.gmra.mxu0 %v3702
        %v3889 = vpop.f32.mrf.mxu0
        %v3890 = vadd.f32 0.0, %v3889
        %3891 = vmatmul.f32.gmra.mxu0 %v3704
        %v3892 = vpop.f32.mrf.mxu0
        %v3893 = vadd.f32 0.0, %v3892
        %3894 = vmatmul.f32.gmra.mxu0 %v3706
        %v3895 = vpop.f32.mrf.mxu0
        %v3896 = vadd.f32 0.0, %v3895
        %3897 = vmatmul.f32.gmra.mxu0 %v3708
        %v3898 = vpop.f32.mrf.mxu0
        %3899 = vmatmul.f32.gmra.mxu0 %v3710
        %v3900 = vpop.f32.mrf.mxu0
        %3901 = vmatmul.f32.gmra.mxu0 %v3712
        %v3902 = vpop.f32.mrf.mxu0
        %3903 = vmatmul.f32.gmra.mxu0 %v3714
        %v3904 = vpop.f32.mrf.mxu0
        %3905 = vmatmul.f32.gmra.mxu0 %v3716
        %v3906 = vpop.f32.mrf.mxu0
        %v3907 = vadd.f32 0.0, %v3906
        %3908 = vmatmul.f32.gmra.mxu0 %v3718
        %v3909 = vpop.f32.mrf.mxu0
        %v3910 = vadd.f32 0.0, %v3909
        %3911 = vmatmul.f32.gmra.mxu0 %v3720
        %v3912 = vpop.f32.mrf.mxu0
        %v3913 = vadd.f32 0.0, %v3912
        %3914 = vmatmul.f32.gmra.mxu0 %v3722
        %v3915 = vpop.f32.mrf.mxu0
        %v3916 = vadd.f32 0.0, %v3915
        %3917 = vmatmul.f32.gmra.mxu0 %v3724
        %v3918 = vpop.f32.mrf.mxu0
        %3919 = vmatmul.f32.gmra.mxu0 %v3726
        %v3920 = vpop.f32.mrf.mxu0
        %3921 = vmatmul.f32.gmra.mxu0 %v3728
        %v3922 = vpop.f32.mrf.mxu0
        %3923 = vmatmul.f32.gmra.mxu0 %v3730
        %v3924 = vpop.f32.mrf.mxu0
        %3925 = vmatmul.f32.gmra.mxu0 %v3732
        %v3926 = vpop.f32.mrf.mxu0
        %v3927 = vadd.f32 0.0, %v3926
        %3928 = vmatmul.f32.gmra.mxu0 %v3734
        %v3929 = vpop.f32.mrf.mxu0
        %v3930 = vadd.f32 0.0, %v3929
        %3931 = vmatmul.f32.gmra.mxu0 %v3736
        %v3932 = vpop.f32.mrf.mxu0
        %v3933 = vadd.f32 0.0, %v3932
        %3934 = vmatmul.f32.gmra.mxu0 %v3738
        %v3935 = vpop.f32.mrf.mxu0
        %v3936 = vadd.f32 0.0, %v3935
        %3937 = vmatmul.f32.gmra.mxu0 %v3740
        %v3938 = vpop.f32.mrf.mxu0
        %3939 = vmatmul.f32.gmra.mxu0 %v3742
        %v3940 = vpop.f32.mrf.mxu0
        %3941 = vmatmul.f32.gmra.mxu0 %v3744
        %v3942 = vpop.f32.mrf.mxu0
        %3943 = vmatmul.f32.gmra.mxu0 %v3746
        %v3944 = vpop.f32.mrf.mxu0
        %3945 = vmatmul.f32.gmra.mxu0 %v3748
        %v3946 = vpop.f32.mrf.mxu0
        %v3947 = vadd.f32 0.0, %v3946
        %3948 = vmatmul.f32.gmra.mxu0 %v3750
        %v3949 = vpop.f32.mrf.mxu0
        %v3950 = vadd.f32 0.0, %v3949
        %3951 = vmatmul.f32.gmra.mxu0 %v3752
        %v3952 = vpop.f32.mrf.mxu0
        %v3953 = vadd.f32 0.0, %v3952
        %3954 = vmatmul.f32.gmra.mxu0 %v3754
        %v3955 = vpop.f32.mrf.mxu0
        %v3956 = vadd.f32 0.0, %v3955
        %3957 = vmatmul.f32.gmra.mxu0 %v3756
        %v3958 = vpop.f32.mrf.mxu0
        %3959 = vmatmul.f32.gmra.mxu0 %v3758
        %v3960 = vpop.f32.mrf.mxu0
        %3961 = vmatmul.f32.gmra.mxu0 %v3760
        %v3962 = vpop.f32.mrf.mxu0
        %3963 = vmatmul.f32.gmra.mxu0 %v3762
        %v3964 = vpop.f32.mrf.mxu0
        %3965 = vmatmul.f32.gmra.mxu0 %v3764
        %v3966 = vpop.f32.mrf.mxu0
        %v3967 = vadd.f32 0.0, %v3966
        %3968 = vmatmul.f32.gmra.mxu0 %v3766
        %v3969 = vpop.f32.mrf.mxu0
        %v3970 = vadd.f32 0.0, %v3969
        %3971 = vmatmul.f32.gmra.mxu0 %v3768
        %v3972 = vpop.f32.mrf.mxu0
        %v3973 = vadd.f32 0.0, %v3972
        %3974 = vmatmul.f32.gmra.mxu0 %v3770
        %v3975 = vpop.f32.mrf.mxu0
        %v3976 = vadd.f32 0.0, %v3975
        %3977 = vmatmul.f32.gmra.mxu0 %v3772
        %v3978 = vpop.f32.mrf.mxu0
        %3979 = vmatmul.f32.gmra.mxu0 %v3774
        %v3980 = vpop.f32.mrf.mxu0
        %3981 = vmatmul.f32.gmra.mxu0 %v3776
        %v3982 = vpop.f32.mrf.mxu0
        %3983 = vmatmul.f32.gmra.mxu0 %v3778
        %v3984 = vpop.f32.mrf.mxu0
        %3985 = vmatmul.f32.gmra.mxu0 %v3780
        %v3986 = vpop.f32.mrf.mxu0
        %v3987 = vadd.f32 0.0, %v3986
        %3988 = vmatmul.f32.gmra.mxu0 %v3782
        %v3989 = vpop.f32.mrf.mxu0
        %v3990 = vadd.f32 0.0, %v3989
        %3991 = vmatmul.f32.gmra.mxu0 %v3784
        %v3992 = vpop.f32.mrf.mxu0
        %v3993 = vadd.f32 0.0, %v3992
        %3994 = vdwg.mxu0
        %v3995 = vadd.f32 %v3442, %v3807
        %v3996 = vadd.f32 %v3443, %v3810
        %v3997 = vadd.f32 %v3444, %v3813
        %v3998 = vadd.f32 %v3445, %v3816
        %v3999 = vadd.f32 %v3446, %v3827
        %v4000 = vadd.f32 %v3447, %v3830
        %v4001 = vadd.f32 %v3448, %v3833
        %v4002 = vadd.f32 %v3449, %v3836
        %v4003 = vadd.f32 %v3450, %v3847
        %v4004 = vadd.f32 %v3451, %v3850
        %v4005 = vadd.f32 %v3452, %v3853
        %v4006 = vadd.f32 %v3453, %v3856
        %v4007 = vadd.f32 %v3454, %v3867
        %v4008 = vadd.f32 %v3455, %v3870
        %v4009 = vadd.f32 %v3456, %v3873
        %v4010 = vadd.f32 %v3457, %v3876
        %v4011 = vadd.f32 %v3458, %v3887
        %v4012 = vadd.f32 %v3459, %v3890
        %v4013 = vadd.f32 %v3460, %v3893
        %v4014 = vadd.f32 %v3461, %v3896
        %v4015 = vadd.f32 %v3462, %v3907
        %v4016 = vadd.f32 %v3463, %v3910
        %v4017 = vadd.f32 %v3464, %v3913
        %v4018 = vadd.f32 %v3465, %v3916
        %v4019 = vadd.f32 %v3466, %v3927
        %v4020 = vadd.f32 %v3467, %v3930
        %v4021 = vadd.f32 %v3468, %v3933
        %v4022 = vadd.f32 %v3469, %v3936
        %v4023 = vadd.f32 %v3470, %v3947
        %v4024 = vadd.f32 %v3471, %v3950
        %v4025 = vadd.f32 %v3472, %v3953
        %v4026 = vadd.f32 %v3473, %v3956
        %v4027 = vadd.f32 %v3474, %v3967
        %v4028 = vadd.f32 %v3475, %v3970
        %v4029 = vadd.f32 %v3476, %v3973
        %v4030 = vadd.f32 %v3477, %v3976
        %v4031 = vadd.f32 %v3478, %v3987
        %v4032 = vadd.f32 %v3479, %v3990
        %v4033 = vadd.f32 %v3480, %v3993
        %s4034 = scalar_lea.vmem %s3, 32
        %v4035 = vld [vmem:[%s4034] sm:$0x3f]
        %v4036 = vsel %vm2212, %v1951, 0
        %v4039 = vsel %vm2062, %v4035, 0
        %4041 = vmatpush.msra.mxu0 0.0
        %4042 = vmatpush.msra.mxu0 0.0
        %4043 = vmatpush.msra.mxu0 0.0
        %4044 = vmatpush.msra.mxu0 0.0
        %4045 = vmatpush.msra.mxu0 0.0
        %4046 = vmatpush.msra.mxu0 0.0
        %4047 = vmatpush.msra.mxu0 0.0
        %4048 = vmatpush.msra.mxu0 0.0
        %4049 = vmatpush.msra.mxu0 0.0
        %4050 = vmatpush.msra.mxu0 0.0
        %4051 = vmatpush.msra.mxu0 0.0
        %4052 = vmatpush.msra.mxu0 0.0
        %4053 = vmatpush.msra.mxu0 0.0
        %4054 = vmatpush.msra.mxu0 0.0
        %4055 = vmatpush.msra.mxu0 0.0
        %4056 = vmatpush.msra.mxu0 %v4039
        %4057 = vmatmul.f32.gmra.mxu0 %v2574
        %v4058 = vpop.f32.mrf.mxu0
        %v4059 = vadd.f32 0.0, %v4058
        %4060 = vmatmul.f32.gmra.mxu0 %v2576
        %v4061 = vpop.f32.mrf.mxu0
        %v4062 = vadd.f32 0.0, %v4061
        %4063 = vmatmul.f32.gmra.mxu0 %v2578
        %v4064 = vpop.f32.mrf.mxu0
        %v4065 = vadd.f32 0.0, %v4064
        %4066 = vmatmul.f32.gmra.mxu0 %v2580
        %v4067 = vpop.f32.mrf.mxu0
        %v4068 = vadd.f32 0.0, %v4067
        %4069 = vmatmul.f32.gmra.mxu0 %v2582
        %v4070 = vpop.f32.mrf.mxu0
        %4071 = vmatmul.f32.gmra.mxu0 %v2584
        %v4072 = vpop.f32.mrf.mxu0
        %4073 = vmatmul.f32.gmra.mxu0 %v2586
        %v4074 = vpop.f32.mrf.mxu0
        %4075 = vmatmul.f32.gmra.mxu0 %v2588
        %v4076 = vpop.f32.mrf.mxu0
        %4077 = vmatmul.f32.gmra.mxu0 %v2590
        %v4078 = vpop.f32.mrf.mxu0
        %v4079 = vadd.f32 0.0, %v4078
        %4080 = vmatmul.f32.gmra.mxu0 %v2592
        %v4081 = vpop.f32.mrf.mxu0
        %v4082 = vadd.f32 0.0, %v4081
        %4083 = vmatmul.f32.gmra.mxu0 %v2594
        %v4084 = vpop.f32.mrf.mxu0
        %v4085 = vadd.f32 0.0, %v4084
        %4086 = vmatmul.f32.gmra.mxu0 %v2596
        %v4087 = vpop.f32.mrf.mxu0
        %v4088 = vadd.f32 0.0, %v4087
        %4089 = vmatmul.f32.gmra.mxu0 %v2598
        %v4090 = vpop.f32.mrf.mxu0
        %4091 = vmatmul.f32.gmra.mxu0 %v2600
        %v4092 = vpop.f32.mrf.mxu0
        %4093 = vmatmul.f32.gmra.mxu0 %v2602
        %v4094 = vpop.f32.mrf.mxu0
        %4095 = vmatmul.f32.gmra.mxu0 %v2604
        %v4096 = vpop.f32.mrf.mxu0
        %4097 = vmatmul.f32.gmra.mxu0 %v2606
        %v4098 = vpop.f32.mrf.mxu0
        %v4099 = vadd.f32 0.0, %v4098
        %4100 = vmatmul.f32.gmra.mxu0 %v2608
        %v4101 = vpop.f32.mrf.mxu0
        %v4102 = vadd.f32 0.0, %v4101
        %4103 = vmatmul.f32.gmra.mxu0 %v2610
        %v4104 = vpop.f32.mrf.mxu0
        %v4105 = vadd.f32 0.0, %v4104
        %4106 = vmatmul.f32.gmra.mxu0 %v2612
        %v4107 = vpop.f32.mrf.mxu0
        %v4108 = vadd.f32 0.0, %v4107
        %4109 = vmatmul.f32.gmra.mxu0 %v2614
        %v4110 = vpop.f32.mrf.mxu0
        %4111 = vmatmul.f32.gmra.mxu0 %v2616
        %v4112 = vpop.f32.mrf.mxu0
        %4113 = vmatmul.f32.gmra.mxu0 %v2618
        %v4114 = vpop.f32.mrf.mxu0
        %4115 = vmatmul.f32.gmra.mxu0 %v2620
        %v4116 = vpop.f32.mrf.mxu0
        %4117 = vmatmul.f32.gmra.mxu0 %v2622
        %v4118 = vpop.f32.mrf.mxu0
        %v4119 = vadd.f32 0.0, %v4118
        %4120 = vmatmul.f32.gmra.mxu0 %v2624
        %v4121 = vpop.f32.mrf.mxu0
        %v4122 = vadd.f32 0.0, %v4121
        %4123 = vmatmul.f32.gmra.mxu0 %v2626
        %v4124 = vpop.f32.mrf.mxu0
        %v4125 = vadd.f32 0.0, %v4124
        %4126 = vmatmul.f32.gmra.mxu0 %v2628
        %v4127 = vpop.f32.mrf.mxu0
        %v4128 = vadd.f32 0.0, %v4127
        %4129 = vmatmul.f32.gmra.mxu0 %v2630
        %v4130 = vpop.f32.mrf.mxu0
        %4131 = vmatmul.f32.gmra.mxu0 %v2632
        %v4132 = vpop.f32.mrf.mxu0
        %4133 = vmatmul.f32.gmra.mxu0 %v2634
        %v4134 = vpop.f32.mrf.mxu0
        %4135 = vmatmul.f32.gmra.mxu0 %v2636
        %v4136 = vpop.f32.mrf.mxu0
        %4137 = vmatmul.f32.gmra.mxu0 %v2638
        %v4138 = vpop.f32.mrf.mxu0
        %v4139 = vadd.f32 0.0, %v4138
        %4140 = vmatmul.f32.gmra.mxu0 %v2640
        %v4141 = vpop.f32.mrf.mxu0
        %v4142 = vadd.f32 0.0, %v4141
        %4143 = vmatmul.f32.gmra.mxu0 %v2642
        %v4144 = vpop.f32.mrf.mxu0
        %v4145 = vadd.f32 0.0, %v4144
        %4146 = vmatmul.f32.gmra.mxu0 %v2644
        %v4147 = vpop.f32.mrf.mxu0
        %v4148 = vadd.f32 0.0, %v4147
        %4149 = vmatmul.f32.gmra.mxu0 %v2646
        %v4150 = vpop.f32.mrf.mxu0
        %4151 = vmatmul.f32.gmra.mxu0 %v2648
        %v4152 = vpop.f32.mrf.mxu0
        %4153 = vmatmul.f32.gmra.mxu0 %v2650
        %v4154 = vpop.f32.mrf.mxu0
        %4155 = vmatmul.f32.gmra.mxu0 %v2652
        %v4156 = vpop.f32.mrf.mxu0
        %4157 = vmatmul.f32.gmra.mxu0 %v2654
        %v4158 = vpop.f32.mrf.mxu0
        %v4159 = vadd.f32 0.0, %v4158
        %4160 = vmatmul.f32.gmra.mxu0 %v2656
        %v4161 = vpop.f32.mrf.mxu0
        %v4162 = vadd.f32 0.0, %v4161
        %4163 = vmatmul.f32.gmra.mxu0 %v2658
        %v4164 = vpop.f32.mrf.mxu0
        %v4165 = vadd.f32 0.0, %v4164
        %4166 = vmatmul.f32.gmra.mxu0 %v2660
        %v4167 = vpop.f32.mrf.mxu0
        %v4168 = vadd.f32 0.0, %v4167
        %4169 = vmatmul.f32.gmra.mxu0 %v2662
        %v4170 = vpop.f32.mrf.mxu0
        %4171 = vmatmul.f32.gmra.mxu0 %v2664
        %v4172 = vpop.f32.mrf.mxu0
        %4173 = vmatmul.f32.gmra.mxu0 %v2666
        %v4174 = vpop.f32.mrf.mxu0
        %4175 = vmatmul.f32.gmra.mxu0 %v2668
        %v4176 = vpop.f32.mrf.mxu0
        %4177 = vmatmul.f32.gmra.mxu0 %v2670
        %v4178 = vpop.f32.mrf.mxu0
        %v4179 = vadd.f32 0.0, %v4178
        %4180 = vmatmul.f32.gmra.mxu0 %v2672
        %v4181 = vpop.f32.mrf.mxu0
        %v4182 = vadd.f32 0.0, %v4181
        %4183 = vmatmul.f32.gmra.mxu0 %v2674
        %v4184 = vpop.f32.mrf.mxu0
        %v4185 = vadd.f32 0.0, %v4184
        %4186 = vmatmul.f32.gmra.mxu0 %v2676
        %v4187 = vpop.f32.mrf.mxu0
        %v4188 = vadd.f32 0.0, %v4187
        %4189 = vmatmul.f32.gmra.mxu0 %v2678
        %v4190 = vpop.f32.mrf.mxu0
        %4191 = vmatmul.f32.gmra.mxu0 %v2680
        %v4192 = vpop.f32.mrf.mxu0
        %4193 = vmatmul.f32.gmra.mxu0 %v2682
        %v4194 = vpop.f32.mrf.mxu0
        %4195 = vmatmul.f32.gmra.mxu0 %v2684
        %v4196 = vpop.f32.mrf.mxu0
        %4197 = vmatmul.f32.gmra.mxu0 %v2686
        %v4198 = vpop.f32.mrf.mxu0
        %v4199 = vadd.f32 0.0, %v4198
        %4200 = vmatmul.f32.gmra.mxu0 %v2688
        %v4201 = vpop.f32.mrf.mxu0
        %v4202 = vadd.f32 0.0, %v4201
        %4203 = vmatmul.f32.gmra.mxu0 %v2690
        %v4204 = vpop.f32.mrf.mxu0
        %v4205 = vadd.f32 0.0, %v4204
        %4206 = vmatmul.f32.gmra.mxu0 %v2692
        %v4207 = vpop.f32.mrf.mxu0
        %v4208 = vadd.f32 0.0, %v4207
        %4209 = vmatmul.f32.gmra.mxu0 %v2694
        %v4210 = vpop.f32.mrf.mxu0
        %4211 = vmatmul.f32.gmra.mxu0 %v2696
        %v4212 = vpop.f32.mrf.mxu0
        %4213 = vmatmul.f32.gmra.mxu0 %v2698
        %v4214 = vpop.f32.mrf.mxu0
        %4215 = vmatmul.f32.gmra.mxu0 %v2700
        %v4216 = vpop.f32.mrf.mxu0
        %4217 = vmatmul.f32.gmra.mxu0 %v2702
        %v4218 = vpop.f32.mrf.mxu0
        %v4219 = vadd.f32 0.0, %v4218
        %4220 = vmatmul.f32.gmra.mxu0 %v2704
        %v4221 = vpop.f32.mrf.mxu0
        %v4222 = vadd.f32 0.0, %v4221
        %4223 = vmatmul.f32.gmra.mxu0 %v2706
        %v4224 = vpop.f32.mrf.mxu0
        %v4225 = vadd.f32 0.0, %v4224
        %4226 = vmatmul.f32.gmra.mxu0 %v2708
        %v4227 = vpop.f32.mrf.mxu0
        %v4228 = vadd.f32 0.0, %v4227
        %4229 = vmatmul.f32.gmra.mxu0 %v2710
        %v4230 = vpop.f32.mrf.mxu0
        %4231 = vmatmul.f32.gmra.mxu0 %v2712
        %v4232 = vpop.f32.mrf.mxu0
        %4233 = vmatmul.f32.gmra.mxu0 %v2714
        %v4234 = vpop.f32.mrf.mxu0
        %4235 = vmatmul.f32.gmra.mxu0 %v2716
        %v4236 = vpop.f32.mrf.mxu0
        %4237 = vmatmul.f32.gmra.mxu0 %v2718
        %v4238 = vpop.f32.mrf.mxu0
        %v4239 = vadd.f32 0.0, %v4238
        %4240 = vmatmul.f32.gmra.mxu0 %v2720
        %v4241 = vpop.f32.mrf.mxu0
        %v4242 = vadd.f32 0.0, %v4241
        %4243 = vmatmul.f32.gmra.mxu0 %v4036
        %v4244 = vpop.f32.mrf.mxu0
        %v4245 = vadd.f32 0.0, %v4244
        %4246 = vdwg.mxu0
        %v4247 = vadd.f32 %v3995, %v4059
        %v4248 = vadd.f32 %v3996, %v4062
        %v4249 = vadd.f32 %v3997, %v4065
        %v4250 = vadd.f32 %v3998, %v4068
        %v4251 = vadd.f32 %v3999, %v4079
        %v4252 = vadd.f32 %v4000, %v4082
        %v4253 = vadd.f32 %v4001, %v4085
        %v4254 = vadd.f32 %v4002, %v4088
        %v4255 = vadd.f32 %v4003, %v4099
        %v4256 = vadd.f32 %v4004, %v4102
        %v4257 = vadd.f32 %v4005, %v4105
        %v4258 = vadd.f32 %v4006, %v4108
        %v4259 = vadd.f32 %v4007, %v4119
        %v4260 = vadd.f32 %v4008, %v4122
        %v4261 = vadd.f32 %v4009, %v4125
        %v4262 = vadd.f32 %v4010, %v4128
        %v4263 = vadd.f32 %v4011, %v4139
        %v4264 = vadd.f32 %v4012, %v4142
        %v4265 = vadd.f32 %v4013, %v4145
        %v4266 = vadd.f32 %v4014, %v4148
        %v4267 = vadd.f32 %v4015, %v4159
        %v4268 = vadd.f32 %v4016, %v4162
        %v4269 = vadd.f32 %v4017, %v4165
        %v4270 = vadd.f32 %v4018, %v4168
        %v4271 = vadd.f32 %v4019, %v4179
        %v4272 = vadd.f32 %v4020, %v4182
        %v4273 = vadd.f32 %v4021, %v4185
        %v4274 = vadd.f32 %v4022, %v4188
        %v4275 = vadd.f32 %v4023, %v4199
        %v4276 = vadd.f32 %v4024, %v4202
        %v4277 = vadd.f32 %v4025, %v4205
        %v4278 = vadd.f32 %v4026, %v4208
        %v4279 = vadd.f32 %v4027, %v4219
        %v4280 = vadd.f32 %v4028, %v4222
        %v4281 = vadd.f32 %v4029, %v4225
        %v4282 = vadd.f32 %v4030, %v4228
        %v4283 = vadd.f32 %v4031, %v4239
        %v4284 = vadd.f32 %v4032, %v4242
        %v4285 = vadd.f32 %v4033, %v4245
        %s4286 = scalar_lea.vmem %s3, 40
        %v4287 = vld [vmem:[%s4286] sm:$0x3f]
        %v4289 = vsel %vm2212, %v1952, 0
        %v4292 = vsel %vm2212, %v1953, 0
        %v4295 = vsel %vm2212, %v1954, 0
        %v4298 = vsel %vm2212, %v1955, 0
        %v4301 = vsel %vm2212, %v1956, 0
        %v4304 = vsel %vm2212, %v1957, 0
        %v4307 = vsel %vm2212, %v1958, 0
        %v4310 = vsel %vm2062, %v4287, 0
        %4312 = vmatpush.msra.mxu0 0.0
        %4313 = vmatpush.msra.mxu0 0.0
        %4314 = vmatpush.msra.mxu0 0.0
        %4315 = vmatpush.msra.mxu0 0.0
        %4316 = vmatpush.msra.mxu0 0.0
        %4317 = vmatpush.msra.mxu0 0.0
        %4318 = vmatpush.msra.mxu0 0.0
        %4319 = vmatpush.msra.mxu0 0.0
        %4320 = vmatpush.msra.mxu0 0.0
        %4321 = vmatpush.msra.mxu0 0.0
        %4322 = vmatpush.msra.mxu0 0.0
        %4323 = vmatpush.msra.mxu0 0.0
        %4324 = vmatpush.msra.mxu0 0.0
        %4325 = vmatpush.msra.mxu0 0.0
        %4326 = vmatpush.msra.mxu0 0.0
        %4327 = vmatpush.msra.mxu0 %v4310
        %4328 = vmatmul.f32.gmra.mxu0 %v2588
        %v4329 = vpop.f32.mrf.mxu0
        %v4330 = vadd.f32 0.0, %v4329
        %4331 = vmatmul.f32.gmra.mxu0 %v2590
        %v4332 = vpop.f32.mrf.mxu0
        %v4333 = vadd.f32 0.0, %v4332
        %4334 = vmatmul.f32.gmra.mxu0 %v2592
        %v4335 = vpop.f32.mrf.mxu0
        %v4336 = vadd.f32 0.0, %v4335
        %4337 = vmatmul.f32.gmra.mxu0 %v2594
        %v4338 = vpop.f32.mrf.mxu0
        %v4339 = vadd.f32 0.0, %v4338
        %4340 = vmatmul.f32.gmra.mxu0 %v2596
        %v4341 = vpop.f32.mrf.mxu0
        %4342 = vmatmul.f32.gmra.mxu0 %v2598
        %v4343 = vpop.f32.mrf.mxu0
        %4344 = vmatmul.f32.gmra.mxu0 %v2600
        %v4345 = vpop.f32.mrf.mxu0
        %4346 = vmatmul.f32.gmra.mxu0 %v2602
        %v4347 = vpop.f32.mrf.mxu0
        %4348 = vmatmul.f32.gmra.mxu0 %v2604
        %v4349 = vpop.f32.mrf.mxu0
        %v4350 = vadd.f32 0.0, %v4349
        %4351 = vmatmul.f32.gmra.mxu0 %v2606
        %v4352 = vpop.f32.mrf.mxu0
        %v4353 = vadd.f32 0.0, %v4352
        %4354 = vmatmul.f32.gmra.mxu0 %v2608
        %v4355 = vpop.f32.mrf.mxu0
        %v4356 = vadd.f32 0.0, %v4355
        %4357 = vmatmul.f32.gmra.mxu0 %v2610
        %v4358 = vpop.f32.mrf.mxu0
        %v4359 = vadd.f32 0.0, %v4358
        %4360 = vmatmul.f32.gmra.mxu0 %v2612
        %v4361 = vpop.f32.mrf.mxu0
        %4362 = vmatmul.f32.gmra.mxu0 %v2614
        %v4363 = vpop.f32.mrf.mxu0
        %4364 = vmatmul.f32.gmra.mxu0 %v2616
        %v4365 = vpop.f32.mrf.mxu0
        %4366 = vmatmul.f32.gmra.mxu0 %v2618
        %v4367 = vpop.f32.mrf.mxu0
        %4368 = vmatmul.f32.gmra.mxu0 %v2620
        %v4369 = vpop.f32.mrf.mxu0
        %v4370 = vadd.f32 0.0, %v4369
        %4371 = vmatmul.f32.gmra.mxu0 %v2622
        %v4372 = vpop.f32.mrf.mxu0
        %v4373 = vadd.f32 0.0, %v4372
        %4374 = vmatmul.f32.gmra.mxu0 %v2624
        %v4375 = vpop.f32.mrf.mxu0
        %v4376 = vadd.f32 0.0, %v4375
        %4377 = vmatmul.f32.gmra.mxu0 %v2626
        %v4378 = vpop.f32.mrf.mxu0
        %v4379 = vadd.f32 0.0, %v4378
        %4380 = vmatmul.f32.gmra.mxu0 %v2628
        %v4381 = vpop.f32.mrf.mxu0
        %4382 = vmatmul.f32.gmra.mxu0 %v2630
        %v4383 = vpop.f32.mrf.mxu0
        %4384 = vmatmul.f32.gmra.mxu0 %v2632
        %v4385 = vpop.f32.mrf.mxu0
        %4386 = vmatmul.f32.gmra.mxu0 %v2634
        %v4387 = vpop.f32.mrf.mxu0
        %4388 = vmatmul.f32.gmra.mxu0 %v2636
        %v4389 = vpop.f32.mrf.mxu0
        %v4390 = vadd.f32 0.0, %v4389
        %4391 = vmatmul.f32.gmra.mxu0 %v2638
        %v4392 = vpop.f32.mrf.mxu0
        %v4393 = vadd.f32 0.0, %v4392
        %4394 = vmatmul.f32.gmra.mxu0 %v2640
        %v4395 = vpop.f32.mrf.mxu0
        %v4396 = vadd.f32 0.0, %v4395
        %4397 = vmatmul.f32.gmra.mxu0 %v2642
        %v4398 = vpop.f32.mrf.mxu0
        %v4399 = vadd.f32 0.0, %v4398
        %4400 = vmatmul.f32.gmra.mxu0 %v2644
        %v4401 = vpop.f32.mrf.mxu0
        %4402 = vmatmul.f32.gmra.mxu0 %v2646
        %v4403 = vpop.f32.mrf.mxu0
        %4404 = vmatmul.f32.gmra.mxu0 %v2648
        %v4405 = vpop.f32.mrf.mxu0
        %4406 = vmatmul.f32.gmra.mxu0 %v2650
        %v4407 = vpop.f32.mrf.mxu0
        %4408 = vmatmul.f32.gmra.mxu0 %v2652
        %v4409 = vpop.f32.mrf.mxu0
        %v4410 = vadd.f32 0.0, %v4409
        %4411 = vmatmul.f32.gmra.mxu0 %v2654
        %v4412 = vpop.f32.mrf.mxu0
        %v4413 = vadd.f32 0.0, %v4412
        %4414 = vmatmul.f32.gmra.mxu0 %v2656
        %v4415 = vpop.f32.mrf.mxu0
        %v4416 = vadd.f32 0.0, %v4415
        %4417 = vmatmul.f32.gmra.mxu0 %v2658
        %v4418 = vpop.f32.mrf.mxu0
        %v4419 = vadd.f32 0.0, %v4418
        %4420 = vmatmul.f32.gmra.mxu0 %v2660
        %v4421 = vpop.f32.mrf.mxu0
        %4422 = vmatmul.f32.gmra.mxu0 %v2662
        %v4423 = vpop.f32.mrf.mxu0
        %4424 = vmatmul.f32.gmra.mxu0 %v2664
        %v4425 = vpop.f32.mrf.mxu0
        %4426 = vmatmul.f32.gmra.mxu0 %v2666
        %v4427 = vpop.f32.mrf.mxu0
        %4428 = vmatmul.f32.gmra.mxu0 %v2668
        %v4429 = vpop.f32.mrf.mxu0
        %v4430 = vadd.f32 0.0, %v4429
        %4431 = vmatmul.f32.gmra.mxu0 %v2670
        %v4432 = vpop.f32.mrf.mxu0
        %v4433 = vadd.f32 0.0, %v4432
        %4434 = vmatmul.f32.gmra.mxu0 %v2672
        %v4435 = vpop.f32.mrf.mxu0
        %v4436 = vadd.f32 0.0, %v4435
        %4437 = vmatmul.f32.gmra.mxu0 %v2674
        %v4438 = vpop.f32.mrf.mxu0
        %v4439 = vadd.f32 0.0, %v4438
        %4440 = vmatmul.f32.gmra.mxu0 %v2676
        %v4441 = vpop.f32.mrf.mxu0
        %4442 = vmatmul.f32.gmra.mxu0 %v2678
        %v4443 = vpop.f32.mrf.mxu0
        %4444 = vmatmul.f32.gmra.mxu0 %v2680
        %v4445 = vpop.f32.mrf.mxu0
        %4446 = vmatmul.f32.gmra.mxu0 %v2682
        %v4447 = vpop.f32.mrf.mxu0
        %4448 = vmatmul.f32.gmra.mxu0 %v2684
        %v4449 = vpop.f32.mrf.mxu0
        %v4450 = vadd.f32 0.0, %v4449
        %4451 = vmatmul.f32.gmra.mxu0 %v2686
        %v4452 = vpop.f32.mrf.mxu0
        %v4453 = vadd.f32 0.0, %v4452
        %4454 = vmatmul.f32.gmra.mxu0 %v2688
        %v4455 = vpop.f32.mrf.mxu0
        %v4456 = vadd.f32 0.0, %v4455
        %4457 = vmatmul.f32.gmra.mxu0 %v2690
        %v4458 = vpop.f32.mrf.mxu0
        %v4459 = vadd.f32 0.0, %v4458
        %4460 = vmatmul.f32.gmra.mxu0 %v2692
        %v4461 = vpop.f32.mrf.mxu0
        %4462 = vmatmul.f32.gmra.mxu0 %v2694
        %v4463 = vpop.f32.mrf.mxu0
        %4464 = vmatmul.f32.gmra.mxu0 %v2696
        %v4465 = vpop.f32.mrf.mxu0
        %4466 = vmatmul.f32.gmra.mxu0 %v2698
        %v4467 = vpop.f32.mrf.mxu0
        %4468 = vmatmul.f32.gmra.mxu0 %v2700
        %v4469 = vpop.f32.mrf.mxu0
        %v4470 = vadd.f32 0.0, %v4469
        %4471 = vmatmul.f32.gmra.mxu0 %v2702
        %v4472 = vpop.f32.mrf.mxu0
        %v4473 = vadd.f32 0.0, %v4472
        %4474 = vmatmul.f32.gmra.mxu0 %v2704
        %v4475 = vpop.f32.mrf.mxu0
        %v4476 = vadd.f32 0.0, %v4475
        %4477 = vmatmul.f32.gmra.mxu0 %v2706
        %v4478 = vpop.f32.mrf.mxu0
        %v4479 = vadd.f32 0.0, %v4478
        %4480 = vmatmul.f32.gmra.mxu0 %v2708
        %v4481 = vpop.f32.mrf.mxu0
        %4482 = vmatmul.f32.gmra.mxu0 %v2710
        %v4483 = vpop.f32.mrf.mxu0
        %4484 = vmatmul.f32.gmra.mxu0 %v2712
        %v4485 = vpop.f32.mrf.mxu0
        %4486 = vmatmul.f32.gmra.mxu0 %v2714
        %v4487 = vpop.f32.mrf.mxu0
        %4488 = vmatmul.f32.gmra.mxu0 %v2716
        %v4489 = vpop.f32.mrf.mxu0
        %v4490 = vadd.f32 0.0, %v4489
        %4491 = vmatmul.f32.gmra.mxu0 %v2718
        %v4492 = vpop.f32.mrf.mxu0
        %v4493 = vadd.f32 0.0, %v4492
        %4494 = vmatmul.f32.gmra.mxu0 %v2720
        %v4495 = vpop.f32.mrf.mxu0
        %v4496 = vadd.f32 0.0, %v4495
        %4497 = vmatmul.f32.gmra.mxu0 %v4036
        %v4498 = vpop.f32.mrf.mxu0
        %v4499 = vadd.f32 0.0, %v4498
        %4500 = vmatmul.f32.gmra.mxu0 %v4289
        %v4501 = vpop.f32.mrf.mxu0
        %4502 = vmatmul.f32.gmra.mxu0 %v4292
        %v4503 = vpop.f32.mrf.mxu0
        %4504 = vmatmul.f32.gmra.mxu0 %v4295
        %v4505 = vpop.f32.mrf.mxu0
        %4506 = vmatmul.f32.gmra.mxu0 %v4298
        %v4507 = vpop.f32.mrf.mxu0
        %4508 = vmatmul.f32.gmra.mxu0 %v4301
        %v4509 = vpop.f32.mrf.mxu0
        %v4510 = vadd.f32 0.0, %v4509
        %4511 = vmatmul.f32.gmra.mxu0 %v4304
        %v4512 = vpop.f32.mrf.mxu0
        %v4513 = vadd.f32 0.0, %v4512
        %4514 = vmatmul.f32.gmra.mxu0 %v4307
        %v4515 = vpop.f32.mrf.mxu0
        %v4516 = vadd.f32 0.0, %v4515
        %4517 = vdwg.mxu0
        %v4518 = vadd.f32 %v4247, %v4330
        %v4519 = vadd.f32 %v4248, %v4333
        %v4520 = vadd.f32 %v4249, %v4336
        %v4521 = vadd.f32 %v4250, %v4339
        %v4522 = vadd.f32 %v4251, %v4350
        %v4523 = vadd.f32 %v4252, %v4353
        %v4524 = vadd.f32 %v4253, %v4356
        %v4525 = vadd.f32 %v4254, %v4359
        %v4526 = vadd.f32 %v4255, %v4370
        %v4527 = vadd.f32 %v4256, %v4373
        %v4528 = vadd.f32 %v4257, %v4376
        %v4529 = vadd.f32 %v4258, %v4379
        %v4530 = vadd.f32 %v4259, %v4390
        %v4531 = vadd.f32 %v4260, %v4393
        %v4532 = vadd.f32 %v4261, %v4396
        %v4533 = vadd.f32 %v4262, %v4399
        %v4534 = vadd.f32 %v4263, %v4410
        %v4535 = vadd.f32 %v4264, %v4413
        %v4536 = vadd.f32 %v4265, %v4416
        %v4537 = vadd.f32 %v4266, %v4419
        %v4538 = vadd.f32 %v4267, %v4430
        %v4539 = vadd.f32 %v4268, %v4433
        %v4540 = vadd.f32 %v4269, %v4436
        %v4541 = vadd.f32 %v4270, %v4439
        %v4542 = vadd.f32 %v4271, %v4450
        %v4543 = vadd.f32 %v4272, %v4453
        %v4544 = vadd.f32 %v4273, %v4456
        %v4545 = vadd.f32 %v4274, %v4459
        %v4546 = vadd.f32 %v4275, %v4470
        %v4547 = vadd.f32 %v4276, %v4473
        %v4548 = vadd.f32 %v4277, %v4476
        %v4549 = vadd.f32 %v4278, %v4479
        %v4550 = vadd.f32 %v4279, %v4490
        %v4551 = vadd.f32 %v4280, %v4493
        %v4552 = vadd.f32 %v4281, %v4496
        %v4553 = vadd.f32 %v4282, %v4499
        %v4554 = vadd.f32 %v4283, %v4510
        %v4555 = vadd.f32 %v4284, %v4513
        %v4556 = vadd.f32 %v4285, %v4516
        %s4557 = scalar_lea.vmem %s3, 48
        %v4558 = vld [vmem:[%s4557] sm:$0x3f]
        %v4559 = vrot.slane %v1951, 2
        %v4560 = vsel %vm2062, %v2210, %v4559
        %v4561 = vrot.slane %v1952, 2
        %v4562 = vsel %vm2062, %v4559, %v4561
        %v4563 = vrot.slane %v1953, 2
        %v4564 = vsel %vm2062, %v4561, %v4563
        %v4565 = vrot.slane %v1954, 2
        %v4566 = vsel %vm2062, %v4563, %v4565
        %v4567 = vrot.slane %v1955, 2
        %v4568 = vsel %vm2062, %v4565, %v4567
        %v4569 = vrot.slane %v1956, 2
        %v4570 = vsel %vm2062, %v4567, %v4569
        %v4571 = vrot.slane %v1957, 2
        %v4572 = vsel %vm2062, %v4569, %v4571
        %v4573 = vrot.slane %v1958, 2
        %v4574 = vsel %vm2062, %v4571, %v4573
        %v4575 = vsel %vm2212, %v4560, 0
        %v4577 = vsel %vm2212, %v4562, 0
        %v4579 = vsel %vm2212, %v4564, 0
        %v4581 = vsel %vm2212, %v4566, 0
        %v4583 = vsel %vm2212, %v4568, 0
        %v4585 = vsel %vm2212, %v4570, 0
        %v4587 = vsel %vm2212, %v4572, 0
        %v4589 = vsel %vm2212, %v4574, 0
        %v4591 = vsel %vm2212, %v4573, 0
        %v4594 = vsel %vm2062, %v4558, 0
        %4596 = vmatpush.msra.mxu0 0.0
        %4597 = vmatpush.msra.mxu0 0.0
        %4598 = vmatpush.msra.mxu0 0.0
        %4599 = vmatpush.msra.mxu0 0.0
        %4600 = vmatpush.msra.mxu0 0.0
        %4601 = vmatpush.msra.mxu0 0.0
        %4602 = vmatpush.msra.mxu0 0.0
        %4603 = vmatpush.msra.mxu0 0.0
        %4604 = vmatpush.msra.mxu0 0.0
        %4605 = vmatpush.msra.mxu0 0.0
        %4606 = vmatpush.msra.mxu0 0.0
        %4607 = vmatpush.msra.mxu0 0.0
        %4608 = vmatpush.msra.mxu0 0.0
        %4609 = vmatpush.msra.mxu0 0.0
        %4610 = vmatpush.msra.mxu0 0.0
        %4611 = vmatpush.msra.mxu0 %v4594
        %4612 = vmatmul.f32.gmra.mxu0 %v2229
        %v4613 = vpop.f32.mrf.mxu0
        %v4614 = vadd.f32 0.0, %v4613
        %4615 = vmatmul.f32.gmra.mxu0 %v2231
        %v4616 = vpop.f32.mrf.mxu0
        %v4617 = vadd.f32 0.0, %v4616
        %4618 = vmatmul.f32.gmra.mxu0 %v2233
        %v4619 = vpop.f32.mrf.mxu0
        %v4620 = vadd.f32 0.0, %v4619
        %4621 = vmatmul.f32.gmra.mxu0 %v2235
        %v4622 = vpop.f32.mrf.mxu0
        %v4623 = vadd.f32 0.0, %v4622
        %4624 = vmatmul.f32.gmra.mxu0 %v2237
        %v4625 = vpop.f32.mrf.mxu0
        %4626 = vmatmul.f32.gmra.mxu0 %v2239
        %v4627 = vpop.f32.mrf.mxu0
        %4628 = vmatmul.f32.gmra.mxu0 %v2241
        %v4629 = vpop.f32.mrf.mxu0
        %4630 = vmatmul.f32.gmra.mxu0 %v2243
        %v4631 = vpop.f32.mrf.mxu0
        %4632 = vmatmul.f32.gmra.mxu0 %v2245
        %v4633 = vpop.f32.mrf.mxu0
        %v4634 = vadd.f32 0.0, %v4633
        %4635 = vmatmul.f32.gmra.mxu0 %v2247
        %v4636 = vpop.f32.mrf.mxu0
        %v4637 = vadd.f32 0.0, %v4636
        %4638 = vmatmul.f32.gmra.mxu0 %v2249
        %v4639 = vpop.f32.mrf.mxu0
        %v4640 = vadd.f32 0.0, %v4639
        %4641 = vmatmul.f32.gmra.mxu0 %v2251
        %v4642 = vpop.f32.mrf.mxu0
        %v4643 = vadd.f32 0.0, %v4642
        %4644 = vmatmul.f32.gmra.mxu0 %v2253
        %v4645 = vpop.f32.mrf.mxu0
        %4646 = vmatmul.f32.gmra.mxu0 %v2255
        %v4647 = vpop.f32.mrf.mxu0
        %4648 = vmatmul.f32.gmra.mxu0 %v2257
        %v4649 = vpop.f32.mrf.mxu0
        %4650 = vmatmul.f32.gmra.mxu0 %v2259
        %v4651 = vpop.f32.mrf.mxu0
        %4652 = vmatmul.f32.gmra.mxu0 %v2261
        %v4653 = vpop.f32.mrf.mxu0
        %v4654 = vadd.f32 0.0, %v4653
        %4655 = vmatmul.f32.gmra.mxu0 %v2263
        %v4656 = vpop.f32.mrf.mxu0
        %v4657 = vadd.f32 0.0, %v4656
        %4658 = vmatmul.f32.gmra.mxu0 %v2265
        %v4659 = vpop.f32.mrf.mxu0
        %v4660 = vadd.f32 0.0, %v4659
        %4661 = vmatmul.f32.gmra.mxu0 %v2267
        %v4662 = vpop.f32.mrf.mxu0
        %v4663 = vadd.f32 0.0, %v4662
        %4664 = vmatmul.f32.gmra.mxu0 %v2269
        %v4665 = vpop.f32.mrf.mxu0
        %4666 = vmatmul.f32.gmra.mxu0 %v2271
        %v4667 = vpop.f32.mrf.mxu0
        %4668 = vmatmul.f32.gmra.mxu0 %v2273
        %v4669 = vpop.f32.mrf.mxu0
        %4670 = vmatmul.f32.gmra.mxu0 %v2275
        %v4671 = vpop.f32.mrf.mxu0
        %4672 = vmatmul.f32.gmra.mxu0 %v2277
        %v4673 = vpop.f32.mrf.mxu0
        %v4674 = vadd.f32 0.0, %v4673
        %4675 = vmatmul.f32.gmra.mxu0 %v2279
        %v4676 = vpop.f32.mrf.mxu0
        %v4677 = vadd.f32 0.0, %v4676
        %4678 = vmatmul.f32.gmra.mxu0 %v2281
        %v4679 = vpop.f32.mrf.mxu0
        %v4680 = vadd.f32 0.0, %v4679
        %4681 = vmatmul.f32.gmra.mxu0 %v2283
        %v4682 = vpop.f32.mrf.mxu0
        %v4683 = vadd.f32 0.0, %v4682
        %4684 = vmatmul.f32.gmra.mxu0 %v2285
        %v4685 = vpop.f32.mrf.mxu0
        %4686 = vmatmul.f32.gmra.mxu0 %v2287
        %v4687 = vpop.f32.mrf.mxu0
        %4688 = vmatmul.f32.gmra.mxu0 %v2289
        %v4689 = vpop.f32.mrf.mxu0
        %4690 = vmatmul.f32.gmra.mxu0 %v2291
        %v4691 = vpop.f32.mrf.mxu0
        %4692 = vmatmul.f32.gmra.mxu0 %v2293
        %v4693 = vpop.f32.mrf.mxu0
        %v4694 = vadd.f32 0.0, %v4693
        %4695 = vmatmul.f32.gmra.mxu0 %v2295
        %v4696 = vpop.f32.mrf.mxu0
        %v4697 = vadd.f32 0.0, %v4696
        %4698 = vmatmul.f32.gmra.mxu0 %v2297
        %v4699 = vpop.f32.mrf.mxu0
        %v4700 = vadd.f32 0.0, %v4699
        %4701 = vmatmul.f32.gmra.mxu0 %v2299
        %v4702 = vpop.f32.mrf.mxu0
        %v4703 = vadd.f32 0.0, %v4702
        %4704 = vmatmul.f32.gmra.mxu0 %v2301
        %v4705 = vpop.f32.mrf.mxu0
        %4706 = vmatmul.f32.gmra.mxu0 %v2303
        %v4707 = vpop.f32.mrf.mxu0
        %4708 = vmatmul.f32.gmra.mxu0 %v2305
        %v4709 = vpop.f32.mrf.mxu0
        %4710 = vmatmul.f32.gmra.mxu0 %v2307
        %v4711 = vpop.f32.mrf.mxu0
        %4712 = vmatmul.f32.gmra.mxu0 %v2309
        %v4713 = vpop.f32.mrf.mxu0
        %v4714 = vadd.f32 0.0, %v4713
        %4715 = vmatmul.f32.gmra.mxu0 %v2311
        %v4716 = vpop.f32.mrf.mxu0
        %v4717 = vadd.f32 0.0, %v4716
        %4718 = vmatmul.f32.gmra.mxu0 %v2313
        %v4719 = vpop.f32.mrf.mxu0
        %v4720 = vadd.f32 0.0, %v4719
        %4721 = vmatmul.f32.gmra.mxu0 %v2315
        %v4722 = vpop.f32.mrf.mxu0
        %v4723 = vadd.f32 0.0, %v4722
        %4724 = vmatmul.f32.gmra.mxu0 %v2317
        %v4725 = vpop.f32.mrf.mxu0
        %4726 = vmatmul.f32.gmra.mxu0 %v2319
        %v4727 = vpop.f32.mrf.mxu0
        %4728 = vmatmul.f32.gmra.mxu0 %v2321
        %v4729 = vpop.f32.mrf.mxu0
        %4730 = vmatmul.f32.gmra.mxu0 %v2323
        %v4731 = vpop.f32.mrf.mxu0
        %4732 = vmatmul.f32.gmra.mxu0 %v2325
        %v4733 = vpop.f32.mrf.mxu0
        %v4734 = vadd.f32 0.0, %v4733
        %4735 = vmatmul.f32.gmra.mxu0 %v2327
        %v4736 = vpop.f32.mrf.mxu0
        %v4737 = vadd.f32 0.0, %v4736
        %4738 = vmatmul.f32.gmra.mxu0 %v2329
        %v4739 = vpop.f32.mrf.mxu0
        %v4740 = vadd.f32 0.0, %v4739
        %4741 = vmatmul.f32.gmra.mxu0 %v2331
        %v4742 = vpop.f32.mrf.mxu0
        %v4743 = vadd.f32 0.0, %v4742
        %4744 = vmatmul.f32.gmra.mxu0 %v2333
        %v4745 = vpop.f32.mrf.mxu0
        %4746 = vmatmul.f32.gmra.mxu0 %v2335
        %v4747 = vpop.f32.mrf.mxu0
        %4748 = vmatmul.f32.gmra.mxu0 %v2337
        %v4749 = vpop.f32.mrf.mxu0
        %4750 = vmatmul.f32.gmra.mxu0 %v2339
        %v4751 = vpop.f32.mrf.mxu0
        %4752 = vmatmul.f32.gmra.mxu0 %v2341
        %v4753 = vpop.f32.mrf.mxu0
        %v4754 = vadd.f32 0.0, %v4753
        %4755 = vmatmul.f32.gmra.mxu0 %v2343
        %v4756 = vpop.f32.mrf.mxu0
        %v4757 = vadd.f32 0.0, %v4756
        %4758 = vmatmul.f32.gmra.mxu0 %v2345
        %v4759 = vpop.f32.mrf.mxu0
        %v4760 = vadd.f32 0.0, %v4759
        %4761 = vmatmul.f32.gmra.mxu0 %v2347
        %v4762 = vpop.f32.mrf.mxu0
        %v4763 = vadd.f32 0.0, %v4762
        %4764 = vmatmul.f32.gmra.mxu0 %v2349
        %v4765 = vpop.f32.mrf.mxu0
        %4766 = vmatmul.f32.gmra.mxu0 %v2351
        %v4767 = vpop.f32.mrf.mxu0
        %4768 = vmatmul.f32.gmra.mxu0 %v2353
        %v4769 = vpop.f32.mrf.mxu0
        %4770 = vmatmul.f32.gmra.mxu0 %v2355
        %v4771 = vpop.f32.mrf.mxu0
        %4772 = vmatmul.f32.gmra.mxu0 %v2357
        %v4773 = vpop.f32.mrf.mxu0
        %v4774 = vadd.f32 0.0, %v4773
        %4775 = vmatmul.f32.gmra.mxu0 %v2359
        %v4776 = vpop.f32.mrf.mxu0
        %v4777 = vadd.f32 0.0, %v4776
        %4778 = vmatmul.f32.gmra.mxu0 %v4575
        %v4779 = vpop.f32.mrf.mxu0
        %v4780 = vadd.f32 0.0, %v4779
        %4781 = vmatmul.f32.gmra.mxu0 %v4577
        %v4782 = vpop.f32.mrf.mxu0
        %v4783 = vadd.f32 0.0, %v4782
        %4784 = vmatmul.f32.gmra.mxu0 %v4579
        %v4785 = vpop.f32.mrf.mxu0
        %4786 = vmatmul.f32.gmra.mxu0 %v4581
        %v4787 = vpop.f32.mrf.mxu0
        %4788 = vmatmul.f32.gmra.mxu0 %v4583
        %v4789 = vpop.f32.mrf.mxu0
        %4790 = vmatmul.f32.gmra.mxu0 %v4585
        %v4791 = vpop.f32.mrf.mxu0
        %4792 = vmatmul.f32.gmra.mxu0 %v4587
        %v4793 = vpop.f32.mrf.mxu0
        %v4794 = vadd.f32 0.0, %v4793
        %4795 = vmatmul.f32.gmra.mxu0 %v4589
        %v4796 = vpop.f32.mrf.mxu0
        %v4797 = vadd.f32 0.0, %v4796
        %4798 = vmatmul.f32.gmra.mxu0 %v4591
        %v4799 = vpop.f32.mrf.mxu0
        %v4800 = vadd.f32 0.0, %v4799
        %4801 = vdwg.mxu0
        %v4802 = vadd.f32 %v4518, %v4614
        %v4803 = vadd.f32 %v4519, %v4617
        %v4804 = vadd.f32 %v4520, %v4620
        %v4805 = vadd.f32 %v4521, %v4623
        %v4806 = vadd.f32 %v4522, %v4634
        %v4807 = vadd.f32 %v4523, %v4637
        %v4808 = vadd.f32 %v4524, %v4640
        %v4809 = vadd.f32 %v4525, %v4643
        %v4810 = vadd.f32 %v4526, %v4654
        %v4811 = vadd.f32 %v4527, %v4657
        %v4812 = vadd.f32 %v4528, %v4660
        %v4813 = vadd.f32 %v4529, %v4663
        %v4814 = vadd.f32 %v4530, %v4674
        %v4815 = vadd.f32 %v4531, %v4677
        %v4816 = vadd.f32 %v4532, %v4680
        %v4817 = vadd.f32 %v4533, %v4683
        %v4818 = vadd.f32 %v4534, %v4694
        %v4819 = vadd.f32 %v4535, %v4697
        %v4820 = vadd.f32 %v4536, %v4700
        %v4821 = vadd.f32 %v4537, %v4703
        %v4822 = vadd.f32 %v4538, %v4714
        %v4823 = vadd.f32 %v4539, %v4717
        %v4824 = vadd.f32 %v4540, %v4720
        %v4825 = vadd.f32 %v4541, %v4723
        %v4826 = vadd.f32 %v4542, %v4734
        %v4827 = vadd.f32 %v4543, %v4737
        %v4828 = vadd.f32 %v4544, %v4740
        %v4829 = vadd.f32 %v4545, %v4743
        %v4830 = vadd.f32 %v4546, %v4754
        %v4831 = vadd.f32 %v4547, %v4757
        %v4832 = vadd.f32 %v4548, %v4760
        %v4833 = vadd.f32 %v4549, %v4763
        %v4834 = vadd.f32 %v4550, %v4774
        %v4835 = vadd.f32 %v4551, %v4777
        %v4836 = vadd.f32 %v4552, %v4780
        %v4837 = vadd.f32 %v4553, %v4783
        %v4838 = vadd.f32 %v4554, %v4794
        %v4839 = vadd.f32 %v4555, %v4797
        %v4840 = vadd.f32 %v4556, %v4800
        %s4841 = scalar_lea.vmem %s3, 56
        %v4842 = vld [vmem:[%s4841] sm:$0x3f]
        %v4843 = vrot.slane %v1951, 4
        %v4844 = vsel %vm2933, %v3081, %v4843
        %v4845 = vrot.slane %v1952, 4
        %v4846 = vsel %vm2933, %v4843, %v4845
        %v4847 = vrot.slane %v1953, 4
        %v4848 = vsel %vm2933, %v4845, %v4847
        %v4849 = vrot.slane %v1954, 4
        %v4850 = vsel %vm2933, %v4847, %v4849
        %v4851 = vrot.slane %v1955, 4
        %v4852 = vsel %vm2933, %v4849, %v4851
        %v4853 = vrot.slane %v1956, 4
        %v4854 = vsel %vm2933, %v4851, %v4853
        %v4855 = vrot.slane %v1957, 4
        %v4856 = vsel %vm2933, %v4853, %v4855
        %v4857 = vrot.slane %v1958, 4
        %v4858 = vsel %vm2933, %v4855, %v4857
        %v4859 = vsel %vm2212, %v4844, 0
        %v4861 = vsel %vm2212, %v4846, 0
        %v4863 = vsel %vm2212, %v4848, 0
        %v4865 = vsel %vm2212, %v4850, 0
        %v4867 = vsel %vm2212, %v4852, 0
        %v4869 = vsel %vm2212, %v4854, 0
        %v4871 = vsel %vm2212, %v4856, 0
        %v4873 = vsel %vm2212, %v4858, 0
        %v4875 = vsel %vm2212, %v4857, 0
        %v4878 = vsel %vm2062, %v4842, 0
        %4880 = vmatpush.msra.mxu0 0.0
        %4881 = vmatpush.msra.mxu0 0.0
        %4882 = vmatpush.msra.mxu0 0.0
        %4883 = vmatpush.msra.mxu0 0.0
        %4884 = vmatpush.msra.mxu0 0.0
        %4885 = vmatpush.msra.mxu0 0.0
        %4886 = vmatpush.msra.mxu0 0.0
        %4887 = vmatpush.msra.mxu0 0.0
        %4888 = vmatpush.msra.mxu0 0.0
        %4889 = vmatpush.msra.mxu0 0.0
        %4890 = vmatpush.msra.mxu0 0.0
        %4891 = vmatpush.msra.mxu0 0.0
        %4892 = vmatpush.msra.mxu0 0.0
        %4893 = vmatpush.msra.mxu0 0.0
        %4894 = vmatpush.msra.mxu0 0.0
        %4895 = vmatpush.msra.mxu0 %v4878
        %4896 = vmatmul.f32.gmra.mxu0 %v3099
        %v4897 = vpop.f32.mrf.mxu0
        %v4898 = vadd.f32 0.0, %v4897
        %4899 = vmatmul.f32.gmra.mxu0 %v3101
        %v4900 = vpop.f32.mrf.mxu0
        %v4901 = vadd.f32 0.0, %v4900
        %4902 = vmatmul.f32.gmra.mxu0 %v3103
        %v4903 = vpop.f32.mrf.mxu0
        %v4904 = vadd.f32 0.0, %v4903
        %4905 = vmatmul.f32.gmra.mxu0 %v3105
        %v4906 = vpop.f32.mrf.mxu0
        %v4907 = vadd.f32 0.0, %v4906
        %4908 = vmatmul.f32.gmra.mxu0 %v3107
        %v4909 = vpop.f32.mrf.mxu0
        %4910 = vmatmul.f32.gmra.mxu0 %v3109
        %v4911 = vpop.f32.mrf.mxu0
        %4912 = vmatmul.f32.gmra.mxu0 %v3111
        %v4913 = vpop.f32.mrf.mxu0
        %4914 = vmatmul.f32.gmra.mxu0 %v3113
        %v4915 = vpop.f32.mrf.mxu0
        %4916 = vmatmul.f32.gmra.mxu0 %v3115
        %v4917 = vpop.f32.mrf.mxu0
        %v4918 = vadd.f32 0.0, %v4917
        %4919 = vmatmul.f32.gmra.mxu0 %v3117
        %v4920 = vpop.f32.mrf.mxu0
        %v4921 = vadd.f32 0.0, %v4920
        %4922 = vmatmul.f32.gmra.mxu0 %v3119
        %v4923 = vpop.f32.mrf.mxu0
        %v4924 = vadd.f32 0.0, %v4923
        %4925 = vmatmul.f32.gmra.mxu0 %v3121
        %v4926 = vpop.f32.mrf.mxu0
        %v4927 = vadd.f32 0.0, %v4926
        %4928 = vmatmul.f32.gmra.mxu0 %v3123
        %v4929 = vpop.f32.mrf.mxu0
        %4930 = vmatmul.f32.gmra.mxu0 %v3125
        %v4931 = vpop.f32.mrf.mxu0
        %4932 = vmatmul.f32.gmra.mxu0 %v3127
        %v4933 = vpop.f32.mrf.mxu0
        %4934 = vmatmul.f32.gmra.mxu0 %v3129
        %v4935 = vpop.f32.mrf.mxu0
        %4936 = vmatmul.f32.gmra.mxu0 %v3131
        %v4937 = vpop.f32.mrf.mxu0
        %v4938 = vadd.f32 0.0, %v4937
        %4939 = vmatmul.f32.gmra.mxu0 %v3133
        %v4940 = vpop.f32.mrf.mxu0
        %v4941 = vadd.f32 0.0, %v4940
        %4942 = vmatmul.f32.gmra.mxu0 %v3135
        %v4943 = vpop.f32.mrf.mxu0
        %v4944 = vadd.f32 0.0, %v4943
        %4945 = vmatmul.f32.gmra.mxu0 %v3137
        %v4946 = vpop.f32.mrf.mxu0
        %v4947 = vadd.f32 0.0, %v4946
        %4948 = vmatmul.f32.gmra.mxu0 %v3139
        %v4949 = vpop.f32.mrf.mxu0
        %4950 = vmatmul.f32.gmra.mxu0 %v3141
        %v4951 = vpop.f32.mrf.mxu0
        %4952 = vmatmul.f32.gmra.mxu0 %v3143
        %v4953 = vpop.f32.mrf.mxu0
        %4954 = vmatmul.f32.gmra.mxu0 %v3145
        %v4955 = vpop.f32.mrf.mxu0
        %4956 = vmatmul.f32.gmra.mxu0 %v3147
        %v4957 = vpop.f32.mrf.mxu0
        %v4958 = vadd.f32 0.0, %v4957
        %4959 = vmatmul.f32.gmra.mxu0 %v3149
        %v4960 = vpop.f32.mrf.mxu0
        %v4961 = vadd.f32 0.0, %v4960
        %4962 = vmatmul.f32.gmra.mxu0 %v3151
        %v4963 = vpop.f32.mrf.mxu0
        %v4964 = vadd.f32 0.0, %v4963
        %4965 = vmatmul.f32.gmra.mxu0 %v3153
        %v4966 = vpop.f32.mrf.mxu0
        %v4967 = vadd.f32 0.0, %v4966
        %4968 = vmatmul.f32.gmra.mxu0 %v3155
        %v4969 = vpop.f32.mrf.mxu0
        %4970 = vmatmul.f32.gmra.mxu0 %v3157
        %v4971 = vpop.f32.mrf.mxu0
        %4972 = vmatmul.f32.gmra.mxu0 %v3159
        %v4973 = vpop.f32.mrf.mxu0
        %4974 = vmatmul.f32.gmra.mxu0 %v3161
        %v4975 = vpop.f32.mrf.mxu0
        %4976 = vmatmul.f32.gmra.mxu0 %v3163
        %v4977 = vpop.f32.mrf.mxu0
        %v4978 = vadd.f32 0.0, %v4977
        %4979 = vmatmul.f32.gmra.mxu0 %v3165
        %v4980 = vpop.f32.mrf.mxu0
        %v4981 = vadd.f32 0.0, %v4980
        %4982 = vmatmul.f32.gmra.mxu0 %v3167
        %v4983 = vpop.f32.mrf.mxu0
        %v4984 = vadd.f32 0.0, %v4983
        %4985 = vmatmul.f32.gmra.mxu0 %v3169
        %v4986 = vpop.f32.mrf.mxu0
        %v4987 = vadd.f32 0.0, %v4986
        %4988 = vmatmul.f32.gmra.mxu0 %v3171
        %v4989 = vpop.f32.mrf.mxu0
        %4990 = vmatmul.f32.gmra.mxu0 %v3173
        %v4991 = vpop.f32.mrf.mxu0
        %4992 = vmatmul.f32.gmra.mxu0 %v3175
        %v4993 = vpop.f32.mrf.mxu0
        %4994 = vmatmul.f32.gmra.mxu0 %v3177
        %v4995 = vpop.f32.mrf.mxu0
        %4996 = vmatmul.f32.gmra.mxu0 %v3179
        %v4997 = vpop.f32.mrf.mxu0
        %v4998 = vadd.f32 0.0, %v4997
        %4999 = vmatmul.f32.gmra.mxu0 %v3181
        %v5000 = vpop.f32.mrf.mxu0
        %v5001 = vadd.f32 0.0, %v5000
        %5002 = vmatmul.f32.gmra.mxu0 %v3183
        %v5003 = vpop.f32.mrf.mxu0
        %v5004 = vadd.f32 0.0, %v5003
        %5005 = vmatmul.f32.gmra.mxu0 %v3185
        %v5006 = vpop.f32.mrf.mxu0
        %v5007 = vadd.f32 0.0, %v5006
        %5008 = vmatmul.f32.gmra.mxu0 %v3187
        %v5009 = vpop.f32.mrf.mxu0
        %5010 = vmatmul.f32.gmra.mxu0 %v3189
        %v5011 = vpop.f32.mrf.mxu0
        %5012 = vmatmul.f32.gmra.mxu0 %v3191
        %v5013 = vpop.f32.mrf.mxu0
        %5014 = vmatmul.f32.gmra.mxu0 %v3193
        %v5015 = vpop.f32.mrf.mxu0
        %5016 = vmatmul.f32.gmra.mxu0 %v3195
        %v5017 = vpop.f32.mrf.mxu0
        %v5018 = vadd.f32 0.0, %v5017
        %5019 = vmatmul.f32.gmra.mxu0 %v3197
        %v5020 = vpop.f32.mrf.mxu0
        %v5021 = vadd.f32 0.0, %v5020
        %5022 = vmatmul.f32.gmra.mxu0 %v3199
        %v5023 = vpop.f32.mrf.mxu0
        %v5024 = vadd.f32 0.0, %v5023
        %5025 = vmatmul.f32.gmra.mxu0 %v3201
        %v5026 = vpop.f32.mrf.mxu0
        %v5027 = vadd.f32 0.0, %v5026
        %5028 = vmatmul.f32.gmra.mxu0 %v3203
        %v5029 = vpop.f32.mrf.mxu0
        %5030 = vmatmul.f32.gmra.mxu0 %v3205
        %v5031 = vpop.f32.mrf.mxu0
        %5032 = vmatmul.f32.gmra.mxu0 %v3207
        %v5033 = vpop.f32.mrf.mxu0
        %5034 = vmatmul.f32.gmra.mxu0 %v3209
        %v5035 = vpop.f32.mrf.mxu0
        %5036 = vmatmul.f32.gmra.mxu0 %v3211
        %v5037 = vpop.f32.mrf.mxu0
        %v5038 = vadd.f32 0.0, %v5037
        %5039 = vmatmul.f32.gmra.mxu0 %v3213
        %v5040 = vpop.f32.mrf.mxu0
        %v5041 = vadd.f32 0.0, %v5040
        %5042 = vmatmul.f32.gmra.mxu0 %v3215
        %v5043 = vpop.f32.mrf.mxu0
        %v5044 = vadd.f32 0.0, %v5043
        %5045 = vmatmul.f32.gmra.mxu0 %v3217
        %v5046 = vpop.f32.mrf.mxu0
        %v5047 = vadd.f32 0.0, %v5046
        %5048 = vmatmul.f32.gmra.mxu0 %v3219
        %v5049 = vpop.f32.mrf.mxu0
        %5050 = vmatmul.f32.gmra.mxu0 %v3221
        %v5051 = vpop.f32.mrf.mxu0
        %5052 = vmatmul.f32.gmra.mxu0 %v3223
        %v5053 = vpop.f32.mrf.mxu0
        %5054 = vmatmul.f32.gmra.mxu0 %v3225
        %v5055 = vpop.f32.mrf.mxu0
        %5056 = vmatmul.f32.gmra.mxu0 %v3227
        %v5057 = vpop.f32.mrf.mxu0
        %v5058 = vadd.f32 0.0, %v5057
        %5059 = vmatmul.f32.gmra.mxu0 %v3229
        %v5060 = vpop.f32.mrf.mxu0
        %v5061 = vadd.f32 0.0, %v5060
        %5062 = vmatmul.f32.gmra.mxu0 %v4859
        %v5063 = vpop.f32.mrf.mxu0
        %v5064 = vadd.f32 0.0, %v5063
        %5065 = vmatmul.f32.gmra.mxu0 %v4861
        %v5066 = vpop.f32.mrf.mxu0
        %v5067 = vadd.f32 0.0, %v5066
        %5068 = vmatmul.f32.gmra.mxu0 %v4863
        %v5069 = vpop.f32.mrf.mxu0
        %5070 = vmatmul.f32.gmra.mxu0 %v4865
        %v5071 = vpop.f32.mrf.mxu0
        %5072 = vmatmul.f32.gmra.mxu0 %v4867
        %v5073 = vpop.f32.mrf.mxu0
        %5074 = vmatmul.f32.gmra.mxu0 %v4869
        %v5075 = vpop.f32.mrf.mxu0
        %5076 = vmatmul.f32.gmra.mxu0 %v4871
        %v5077 = vpop.f32.mrf.mxu0
        %v5078 = vadd.f32 0.0, %v5077
        %5079 = vmatmul.f32.gmra.mxu0 %v4873
        %v5080 = vpop.f32.mrf.mxu0
        %v5081 = vadd.f32 0.0, %v5080
        %5082 = vmatmul.f32.gmra.mxu0 %v4875
        %v5083 = vpop.f32.mrf.mxu0
        %v5084 = vadd.f32 0.0, %v5083
        %5085 = vdwg.mxu0
        %v5086 = vadd.f32 %v4802, %v4898
        %v5087 = vadd.f32 %v4803, %v4901
        %v5088 = vadd.f32 %v4804, %v4904
        %v5089 = vadd.f32 %v4805, %v4907
        %v5090 = vadd.f32 %v4806, %v4918
        %v5091 = vadd.f32 %v4807, %v4921
        %v5092 = vadd.f32 %v4808, %v4924
        %v5093 = vadd.f32 %v4809, %v4927
        %v5094 = vadd.f32 %v4810, %v4938
        %v5095 = vadd.f32 %v4811, %v4941
        %v5096 = vadd.f32 %v4812, %v4944
        %v5097 = vadd.f32 %v4813, %v4947
        %v5098 = vadd.f32 %v4814, %v4958
        %v5099 = vadd.f32 %v4815, %v4961
        %v5100 = vadd.f32 %v4816, %v4964
        %v5101 = vadd.f32 %v4817, %v4967
        %v5102 = vadd.f32 %v4818, %v4978
        %v5103 = vadd.f32 %v4819, %v4981
        %v5104 = vadd.f32 %v4820, %v4984
        %v5105 = vadd.f32 %v4821, %v4987
        %v5106 = vadd.f32 %v4822, %v4998
        %v5107 = vadd.f32 %v4823, %v5001
        %v5108 = vadd.f32 %v4824, %v5004
        %v5109 = vadd.f32 %v4825, %v5007
        %v5110 = vadd.f32 %v4826, %v5018
        %v5111 = vadd.f32 %v4827, %v5021
        %v5112 = vadd.f32 %v4828, %v5024
        %v5113 = vadd.f32 %v4829, %v5027
        %v5114 = vadd.f32 %v4830, %v5038
        %v5115 = vadd.f32 %v4831, %v5041
        %v5116 = vadd.f32 %v4832, %v5044
        %v5117 = vadd.f32 %v4833, %v5047
        %v5118 = vadd.f32 %v4834, %v5058
        %v5119 = vadd.f32 %v4835, %v5061
        %v5120 = vadd.f32 %v4836, %v5064
        %v5121 = vadd.f32 %v4837, %v5067
        %v5122 = vadd.f32 %v4838, %v5078
        %v5123 = vadd.f32 %v4839, %v5081
        %v5124 = vadd.f32 %v4840, %v5084
        %s5125 = scalar_lea.vmem %s3, 64
        %v5126 = vld [vmem:[%s5125] sm:$0x3f]
        %v5128 = vrot.slane %v1952, 6
        %v5129 = vsel %vm3484, %v3634, %v5128
        %v5130 = vrot.slane %v1953, 6
        %v5131 = vsel %vm3484, %v5128, %v5130
        %v5132 = vrot.slane %v1954, 6
        %v5133 = vsel %vm3484, %v5130, %v5132
        %v5134 = vrot.slane %v1955, 6
        %v5135 = vsel %vm3484, %v5132, %v5134
        %v5136 = vrot.slane %v1956, 6
        %v5137 = vsel %vm3484, %v5134, %v5136
        %v5138 = vrot.slane %v1957, 6
        %v5139 = vsel %vm3484, %v5136, %v5138
        %v5140 = vrot.slane %v1958, 6
        %v5141 = vsel %vm3484, %v5138, %v5140
        %v5142 = vrot.slane %v1959, 6
        %v5143 = vsel %vm3484, %v5140, %v5142
        %v5144 = vsel %vm2212, %v5129, 0
        %v5146 = vsel %vm2212, %v5131, 0
        %v5148 = vsel %vm2212, %v5133, 0
        %v5150 = vsel %vm2212, %v5135, 0
        %v5152 = vsel %vm2212, %v5137, 0
        %v5154 = vsel %vm2212, %v5139, 0
        %v5156 = vsel %vm2212, %v5141, 0
        %v5158 = vsel %vm2212, %v5143, 0
        %v5161 = vsel %vm2062, %v5126, 0
        %5163 = vmatpush.msra.mxu0 0.0
        %5164 = vmatpush.msra.mxu0 0.0
        %5165 = vmatpush.msra.mxu0 0.0
        %5166 = vmatpush.msra.mxu0 0.0
        %5167 = vmatpush.msra.mxu0 0.0
        %5168 = vmatpush.msra.mxu0 0.0
        %5169 = vmatpush.msra.mxu0 0.0
        %5170 = vmatpush.msra.mxu0 0.0
        %5171 = vmatpush.msra.mxu0 0.0
        %5172 = vmatpush.msra.mxu0 0.0
        %5173 = vmatpush.msra.mxu0 0.0
        %5174 = vmatpush.msra.mxu0 0.0
        %5175 = vmatpush.msra.mxu0 0.0
        %5176 = vmatpush.msra.mxu0 0.0
        %5177 = vmatpush.msra.mxu0 0.0
        %5178 = vmatpush.msra.mxu0 %v5161
        %5179 = vmatmul.f32.gmra.mxu0 %v3652
        %v5180 = vpop.f32.mrf.mxu0
        %v5181 = vadd.f32 0.0, %v5180
        %5182 = vmatmul.f32.gmra.mxu0 %v3654
        %v5183 = vpop.f32.mrf.mxu0
        %v5184 = vadd.f32 0.0, %v5183
        %5185 = vmatmul.f32.gmra.mxu0 %v3656
        %v5186 = vpop.f32.mrf.mxu0
        %v5187 = vadd.f32 0.0, %v5186
        %5188 = vmatmul.f32.gmra.mxu0 %v3658
        %v5189 = vpop.f32.mrf.mxu0
        %v5190 = vadd.f32 0.0, %v5189
        %5191 = vmatmul.f32.gmra.mxu0 %v3660
        %v5192 = vpop.f32.mrf.mxu0
        %5193 = vmatmul.f32.gmra.mxu0 %v3662
        %v5194 = vpop.f32.mrf.mxu0
        %5195 = vmatmul.f32.gmra.mxu0 %v3664
        %v5196 = vpop.f32.mrf.mxu0
        %5197 = vmatmul.f32.gmra.mxu0 %v3666
        %v5198 = vpop.f32.mrf.mxu0
        %5199 = vmatmul.f32.gmra.mxu0 %v3668
        %v5200 = vpop.f32.mrf.mxu0
        %v5201 = vadd.f32 0.0, %v5200
        %5202 = vmatmul.f32.gmra.mxu0 %v3670
        %v5203 = vpop.f32.mrf.mxu0
        %v5204 = vadd.f32 0.0, %v5203
        %5205 = vmatmul.f32.gmra.mxu0 %v3672
        %v5206 = vpop.f32.mrf.mxu0
        %v5207 = vadd.f32 0.0, %v5206
        %5208 = vmatmul.f32.gmra.mxu0 %v3674
        %v5209 = vpop.f32.mrf.mxu0
        %v5210 = vadd.f32 0.0, %v5209
        %5211 = vmatmul.f32.gmra.mxu0 %v3676
        %v5212 = vpop.f32.mrf.mxu0
        %5213 = vmatmul.f32.gmra.mxu0 %v3678
        %v5214 = vpop.f32.mrf.mxu0
        %5215 = vmatmul.f32.gmra.mxu0 %v3680
        %v5216 = vpop.f32.mrf.mxu0
        %5217 = vmatmul.f32.gmra.mxu0 %v3682
        %v5218 = vpop.f32.mrf.mxu0
        %5219 = vmatmul.f32.gmra.mxu0 %v3684
        %v5220 = vpop.f32.mrf.mxu0
        %v5221 = vadd.f32 0.0, %v5220
        %5222 = vmatmul.f32.gmra.mxu0 %v3686
        %v5223 = vpop.f32.mrf.mxu0
        %v5224 = vadd.f32 0.0, %v5223
        %5225 = vmatmul.f32.gmra.mxu0 %v3688
        %v5226 = vpop.f32.mrf.mxu0
        %v5227 = vadd.f32 0.0, %v5226
        %5228 = vmatmul.f32.gmra.mxu0 %v3690
        %v5229 = vpop.f32.mrf.mxu0
        %v5230 = vadd.f32 0.0, %v5229
        %5231 = vmatmul.f32.gmra.mxu0 %v3692
        %v5232 = vpop.f32.mrf.mxu0
        %5233 = vmatmul.f32.gmra.mxu0 %v3694
        %v5234 = vpop.f32.mrf.mxu0
        %5235 = vmatmul.f32.gmra.mxu0 %v3696
        %v5236 = vpop.f32.mrf.mxu0
        %5237 = vmatmul.f32.gmra.mxu0 %v3698
        %v5238 = vpop.f32.mrf.mxu0
        %5239 = vmatmul.f32.gmra.mxu0 %v3700
        %v5240 = vpop.f32.mrf.mxu0
        %v5241 = vadd.f32 0.0, %v5240
        %5242 = vmatmul.f32.gmra.mxu0 %v3702
        %v5243 = vpop.f32.mrf.mxu0
        %v5244 = vadd.f32 0.0, %v5243
        %5245 = vmatmul.f32.gmra.mxu0 %v3704
        %v5246 = vpop.f32.mrf.mxu0
        %v5247 = vadd.f32 0.0, %v5246
        %5248 = vmatmul.f32.gmra.mxu0 %v3706
        %v5249 = vpop.f32.mrf.mxu0
        %v5250 = vadd.f32 0.0, %v5249
        %5251 = vmatmul.f32.gmra.mxu0 %v3708
        %v5252 = vpop.f32.mrf.mxu0
        %5253 = vmatmul.f32.gmra.mxu0 %v3710
        %v5254 = vpop.f32.mrf.mxu0
        %5255 = vmatmul.f32.gmra.mxu0 %v3712
        %v5256 = vpop.f32.mrf.mxu0
        %5257 = vmatmul.f32.gmra.mxu0 %v3714
        %v5258 = vpop.f32.mrf.mxu0
        %5259 = vmatmul.f32.gmra.mxu0 %v3716
        %v5260 = vpop.f32.mrf.mxu0
        %v5261 = vadd.f32 0.0, %v5260
        %5262 = vmatmul.f32.gmra.mxu0 %v3718
        %v5263 = vpop.f32.mrf.mxu0
        %v5264 = vadd.f32 0.0, %v5263
        %5265 = vmatmul.f32.gmra.mxu0 %v3720
        %v5266 = vpop.f32.mrf.mxu0
        %v5267 = vadd.f32 0.0, %v5266
        %5268 = vmatmul.f32.gmra.mxu0 %v3722
        %v5269 = vpop.f32.mrf.mxu0
        %v5270 = vadd.f32 0.0, %v5269
        %5271 = vmatmul.f32.gmra.mxu0 %v3724
        %v5272 = vpop.f32.mrf.mxu0
        %5273 = vmatmul.f32.gmra.mxu0 %v3726
        %v5274 = vpop.f32.mrf.mxu0
        %5275 = vmatmul.f32.gmra.mxu0 %v3728
        %v5276 = vpop.f32.mrf.mxu0
        %5277 = vmatmul.f32.gmra.mxu0 %v3730
        %v5278 = vpop.f32.mrf.mxu0
        %5279 = vmatmul.f32.gmra.mxu0 %v3732
        %v5280 = vpop.f32.mrf.mxu0
        %v5281 = vadd.f32 0.0, %v5280
        %5282 = vmatmul.f32.gmra.mxu0 %v3734
        %v5283 = vpop.f32.mrf.mxu0
        %v5284 = vadd.f32 0.0, %v5283
        %5285 = vmatmul.f32.gmra.mxu0 %v3736
        %v5286 = vpop.f32.mrf.mxu0
        %v5287 = vadd.f32 0.0, %v5286
        %5288 = vmatmul.f32.gmra.mxu0 %v3738
        %v5289 = vpop.f32.mrf.mxu0
        %v5290 = vadd.f32 0.0, %v5289
        %5291 = vmatmul.f32.gmra.mxu0 %v3740
        %v5292 = vpop.f32.mrf.mxu0
        %5293 = vmatmul.f32.gmra.mxu0 %v3742
        %v5294 = vpop.f32.mrf.mxu0
        %5295 = vmatmul.f32.gmra.mxu0 %v3744
        %v5296 = vpop.f32.mrf.mxu0
        %5297 = vmatmul.f32.gmra.mxu0 %v3746
        %v5298 = vpop.f32.mrf.mxu0
        %5299 = vmatmul.f32.gmra.mxu0 %v3748
        %v5300 = vpop.f32.mrf.mxu0
        %v5301 = vadd.f32 0.0, %v5300
        %5302 = vmatmul.f32.gmra.mxu0 %v3750
        %v5303 = vpop.f32.mrf.mxu0
        %v5304 = vadd.f32 0.0, %v5303
        %5305 = vmatmul.f32.gmra.mxu0 %v3752
        %v5306 = vpop.f32.mrf.mxu0
        %v5307 = vadd.f32 0.0, %v5306
        %5308 = vmatmul.f32.gmra.mxu0 %v3754
        %v5309 = vpop.f32.mrf.mxu0
        %v5310 = vadd.f32 0.0, %v5309
        %5311 = vmatmul.f32.gmra.mxu0 %v3756
        %v5312 = vpop.f32.mrf.mxu0
        %5313 = vmatmul.f32.gmra.mxu0 %v3758
        %v5314 = vpop.f32.mrf.mxu0
        %5315 = vmatmul.f32.gmra.mxu0 %v3760
        %v5316 = vpop.f32.mrf.mxu0
        %5317 = vmatmul.f32.gmra.mxu0 %v3762
        %v5318 = vpop.f32.mrf.mxu0
        %5319 = vmatmul.f32.gmra.mxu0 %v3764
        %v5320 = vpop.f32.mrf.mxu0
        %v5321 = vadd.f32 0.0, %v5320
        %5322 = vmatmul.f32.gmra.mxu0 %v3766
        %v5323 = vpop.f32.mrf.mxu0
        %v5324 = vadd.f32 0.0, %v5323
        %5325 = vmatmul.f32.gmra.mxu0 %v3768
        %v5326 = vpop.f32.mrf.mxu0
        %v5327 = vadd.f32 0.0, %v5326
        %5328 = vmatmul.f32.gmra.mxu0 %v3770
        %v5329 = vpop.f32.mrf.mxu0
        %v5330 = vadd.f32 0.0, %v5329
        %5331 = vmatmul.f32.gmra.mxu0 %v3772
        %v5332 = vpop.f32.mrf.mxu0
        %5333 = vmatmul.f32.gmra.mxu0 %v3774
        %v5334 = vpop.f32.mrf.mxu0
        %5335 = vmatmul.f32.gmra.mxu0 %v3776
        %v5336 = vpop.f32.mrf.mxu0
        %5337 = vmatmul.f32.gmra.mxu0 %v3778
        %v5338 = vpop.f32.mrf.mxu0
        %5339 = vmatmul.f32.gmra.mxu0 %v3780
        %v5340 = vpop.f32.mrf.mxu0
        %v5341 = vadd.f32 0.0, %v5340
        %5342 = vmatmul.f32.gmra.mxu0 %v3782
        %v5343 = vpop.f32.mrf.mxu0
        %v5344 = vadd.f32 0.0, %v5343
        %5345 = vmatmul.f32.gmra.mxu0 %v3784
        %v5346 = vpop.f32.mrf.mxu0
        %v5347 = vadd.f32 0.0, %v5346
        %5348 = vmatmul.f32.gmra.mxu0 %v5144
        %v5349 = vpop.f32.mrf.mxu0
        %v5350 = vadd.f32 0.0, %v5349
        %5351 = vmatmul.f32.gmra.mxu0 %v5146
        %v5352 = vpop.f32.mrf.mxu0
        %5353 = vmatmul.f32.gmra.mxu0 %v5148
        %v5354 = vpop.f32.mrf.mxu0
        %5355 = vmatmul.f32.gmra.mxu0 %v5150
        %v5356 = vpop.f32.mrf.mxu0
        %5357 = vmatmul.f32.gmra.mxu0 %v5152
        %v5358 = vpop.f32.mrf.mxu0
        %5359 = vmatmul.f32.gmra.mxu0 %v5154
        %v5360 = vpop.f32.mrf.mxu0
        %v5361 = vadd.f32 0.0, %v5360
        %5362 = vmatmul.f32.gmra.mxu0 %v5156
        %v5363 = vpop.f32.mrf.mxu0
        %v5364 = vadd.f32 0.0, %v5363
        %5365 = vmatmul.f32.gmra.mxu0 %v5158
        %v5366 = vpop.f32.mrf.mxu0
        %v5367 = vadd.f32 0.0, %v5366
        %5368 = vdwg.mxu0
        %v5369 = vadd.f32 %v5086, %v5181
        %v5370 = vadd.f32 %v5087, %v5184
        %v5371 = vadd.f32 %v5088, %v5187
        %v5372 = vadd.f32 %v5089, %v5190
        %v5373 = vadd.f32 %v5090, %v5201
        %v5374 = vadd.f32 %v5091, %v5204
        %v5375 = vadd.f32 %v5092, %v5207
        %v5376 = vadd.f32 %v5093, %v5210
        %v5377 = vadd.f32 %v5094, %v5221
        %v5378 = vadd.f32 %v5095, %v5224
        %v5379 = vadd.f32 %v5096, %v5227
        %v5380 = vadd.f32 %v5097, %v5230
        %v5381 = vadd.f32 %v5098, %v5241
        %v5382 = vadd.f32 %v5099, %v5244
        %v5383 = vadd.f32 %v5100, %v5247
        %v5384 = vadd.f32 %v5101, %v5250
        %v5385 = vadd.f32 %v5102, %v5261
        %v5386 = vadd.f32 %v5103, %v5264
        %v5387 = vadd.f32 %v5104, %v5267
        %v5388 = vadd.f32 %v5105, %v5270
        %v5389 = vadd.f32 %v5106, %v5281
        %v5390 = vadd.f32 %v5107, %v5284
        %v5391 = vadd.f32 %v5108, %v5287
        %v5392 = vadd.f32 %v5109, %v5290
        %v5393 = vadd.f32 %v5110, %v5301
        %v5394 = vadd.f32 %v5111, %v5304
        %v5395 = vadd.f32 %v5112, %v5307
        %v5396 = vadd.f32 %v5113, %v5310
        %v5397 = vadd.f32 %v5114, %v5321
        %v5398 = vadd.f32 %v5115, %v5324
        %v5399 = vadd.f32 %v5116, %v5327
        %v5400 = vadd.f32 %v5117, %v5330
        %v5401 = vadd.f32 %v5118, %v5341
        %v5402 = vadd.f32 %v5119, %v5344
        %v5403 = vadd.f32 %v5120, %v5347
        %v5404 = vadd.f32 %v5121, %v5350
        %v5405 = vadd.f32 %v5122, %v5361
        %v5406 = vadd.f32 %v5123, %v5364
        %v5407 = vadd.f32 %v5124, %v5367
        %s5408 = scalar_lea.vmem %s3, 72
        %v5409 = vld [vmem:[%s5408] sm:$0x3f]
        %v5410 = vsel %vm2212, %v1959, 0
        %v5413 = vsel %vm2062, %v5409, 0
        %5415 = vmatpush.msra.mxu0 0.0
        %5416 = vmatpush.msra.mxu0 0.0
        %5417 = vmatpush.msra.mxu0 0.0
        %5418 = vmatpush.msra.mxu0 0.0
        %5419 = vmatpush.msra.mxu0 0.0
        %5420 = vmatpush.msra.mxu0 0.0
        %5421 = vmatpush.msra.mxu0 0.0
        %5422 = vmatpush.msra.mxu0 0.0
        %5423 = vmatpush.msra.mxu0 0.0
        %5424 = vmatpush.msra.mxu0 0.0
        %5425 = vmatpush.msra.mxu0 0.0
        %5426 = vmatpush.msra.mxu0 0.0
        %5427 = vmatpush.msra.mxu0 0.0
        %5428 = vmatpush.msra.mxu0 0.0
        %5429 = vmatpush.msra.mxu0 0.0
        %5430 = vmatpush.msra.mxu0 %v5413
        %5431 = vmatmul.f32.gmra.mxu0 %v2590
        %v5432 = vpop.f32.mrf.mxu0
        %v5433 = vadd.f32 0.0, %v5432
        %5434 = vmatmul.f32.gmra.mxu0 %v2592
        %v5435 = vpop.f32.mrf.mxu0
        %v5436 = vadd.f32 0.0, %v5435
        %5437 = vmatmul.f32.gmra.mxu0 %v2594
        %v5438 = vpop.f32.mrf.mxu0
        %v5439 = vadd.f32 0.0, %v5438
        %5440 = vmatmul.f32.gmra.mxu0 %v2596
        %v5441 = vpop.f32.mrf.mxu0
        %v5442 = vadd.f32 0.0, %v5441
        %5443 = vmatmul.f32.gmra.mxu0 %v2598
        %v5444 = vpop.f32.mrf.mxu0
        %5445 = vmatmul.f32.gmra.mxu0 %v2600
        %v5446 = vpop.f32.mrf.mxu0
        %5447 = vmatmul.f32.gmra.mxu0 %v2602
        %v5448 = vpop.f32.mrf.mxu0
        %5449 = vmatmul.f32.gmra.mxu0 %v2604
        %v5450 = vpop.f32.mrf.mxu0
        %5451 = vmatmul.f32.gmra.mxu0 %v2606
        %v5452 = vpop.f32.mrf.mxu0
        %v5453 = vadd.f32 0.0, %v5452
        %5454 = vmatmul.f32.gmra.mxu0 %v2608
        %v5455 = vpop.f32.mrf.mxu0
        %v5456 = vadd.f32 0.0, %v5455
        %5457 = vmatmul.f32.gmra.mxu0 %v2610
        %v5458 = vpop.f32.mrf.mxu0
        %v5459 = vadd.f32 0.0, %v5458
        %5460 = vmatmul.f32.gmra.mxu0 %v2612
        %v5461 = vpop.f32.mrf.mxu0
        %v5462 = vadd.f32 0.0, %v5461
        %5463 = vmatmul.f32.gmra.mxu0 %v2614
        %v5464 = vpop.f32.mrf.mxu0
        %5465 = vmatmul.f32.gmra.mxu0 %v2616
        %v5466 = vpop.f32.mrf.mxu0
        %5467 = vmatmul.f32.gmra.mxu0 %v2618
        %v5468 = vpop.f32.mrf.mxu0
        %5469 = vmatmul.f32.gmra.mxu0 %v2620
        %v5470 = vpop.f32.mrf.mxu0
        %5471 = vmatmul.f32.gmra.mxu0 %v2622
        %v5472 = vpop.f32.mrf.mxu0
        %v5473 = vadd.f32 0.0, %v5472
        %5474 = vmatmul.f32.gmra.mxu0 %v2624
        %v5475 = vpop.f32.mrf.mxu0
        %v5476 = vadd.f32 0.0, %v5475
        %5477 = vmatmul.f32.gmra.mxu0 %v2626
        %v5478 = vpop.f32.mrf.mxu0
        %v5479 = vadd.f32 0.0, %v5478
        %5480 = vmatmul.f32.gmra.mxu0 %v2628
        %v5481 = vpop.f32.mrf.mxu0
        %v5482 = vadd.f32 0.0, %v5481
        %5483 = vmatmul.f32.gmra.mxu0 %v2630
        %v5484 = vpop.f32.mrf.mxu0
        %5485 = vmatmul.f32.gmra.mxu0 %v2632
        %v5486 = vpop.f32.mrf.mxu0
        %5487 = vmatmul.f32.gmra.mxu0 %v2634
        %v5488 = vpop.f32.mrf.mxu0
        %5489 = vmatmul.f32.gmra.mxu0 %v2636
        %v5490 = vpop.f32.mrf.mxu0
        %5491 = vmatmul.f32.gmra.mxu0 %v2638
        %v5492 = vpop.f32.mrf.mxu0
        %v5493 = vadd.f32 0.0, %v5492
        %5494 = vmatmul.f32.gmra.mxu0 %v2640
        %v5495 = vpop.f32.mrf.mxu0
        %v5496 = vadd.f32 0.0, %v5495
        %5497 = vmatmul.f32.gmra.mxu0 %v2642
        %v5498 = vpop.f32.mrf.mxu0
        %v5499 = vadd.f32 0.0, %v5498
        %5500 = vmatmul.f32.gmra.mxu0 %v2644
        %v5501 = vpop.f32.mrf.mxu0
        %v5502 = vadd.f32 0.0, %v5501
        %5503 = vmatmul.f32.gmra.mxu0 %v2646
        %v5504 = vpop.f32.mrf.mxu0
        %5505 = vmatmul.f32.gmra.mxu0 %v2648
        %v5506 = vpop.f32.mrf.mxu0
        %5507 = vmatmul.f32.gmra.mxu0 %v2650
        %v5508 = vpop.f32.mrf.mxu0
        %5509 = vmatmul.f32.gmra.mxu0 %v2652
        %v5510 = vpop.f32.mrf.mxu0
        %5511 = vmatmul.f32.gmra.mxu0 %v2654
        %v5512 = vpop.f32.mrf.mxu0
        %v5513 = vadd.f32 0.0, %v5512
        %5514 = vmatmul.f32.gmra.mxu0 %v2656
        %v5515 = vpop.f32.mrf.mxu0
        %v5516 = vadd.f32 0.0, %v5515
        %5517 = vmatmul.f32.gmra.mxu0 %v2658
        %v5518 = vpop.f32.mrf.mxu0
        %v5519 = vadd.f32 0.0, %v5518
        %5520 = vmatmul.f32.gmra.mxu0 %v2660
        %v5521 = vpop.f32.mrf.mxu0
        %v5522 = vadd.f32 0.0, %v5521
        %5523 = vmatmul.f32.gmra.mxu0 %v2662
        %v5524 = vpop.f32.mrf.mxu0
        %5525 = vmatmul.f32.gmra.mxu0 %v2664
        %v5526 = vpop.f32.mrf.mxu0
        %5527 = vmatmul.f32.gmra.mxu0 %v2666
        %v5528 = vpop.f32.mrf.mxu0
        %5529 = vmatmul.f32.gmra.mxu0 %v2668
        %v5530 = vpop.f32.mrf.mxu0
        %5531 = vmatmul.f32.gmra.mxu0 %v2670
        %v5532 = vpop.f32.mrf.mxu0
        %v5533 = vadd.f32 0.0, %v5532
        %5534 = vmatmul.f32.gmra.mxu0 %v2672
        %v5535 = vpop.f32.mrf.mxu0
        %v5536 = vadd.f32 0.0, %v5535
        %5537 = vmatmul.f32.gmra.mxu0 %v2674
        %v5538 = vpop.f32.mrf.mxu0
        %v5539 = vadd.f32 0.0, %v5538
        %5540 = vmatmul.f32.gmra.mxu0 %v2676
        %v5541 = vpop.f32.mrf.mxu0
        %v5542 = vadd.f32 0.0, %v5541
        %5543 = vmatmul.f32.gmra.mxu0 %v2678
        %v5544 = vpop.f32.mrf.mxu0
        %5545 = vmatmul.f32.gmra.mxu0 %v2680
        %v5546 = vpop.f32.mrf.mxu0
        %5547 = vmatmul.f32.gmra.mxu0 %v2682
        %v5548 = vpop.f32.mrf.mxu0
        %5549 = vmatmul.f32.gmra.mxu0 %v2684
        %v5550 = vpop.f32.mrf.mxu0
        %5551 = vmatmul.f32.gmra.mxu0 %v2686
        %v5552 = vpop.f32.mrf.mxu0
        %v5553 = vadd.f32 0.0, %v5552
        %5554 = vmatmul.f32.gmra.mxu0 %v2688
        %v5555 = vpop.f32.mrf.mxu0
        %v5556 = vadd.f32 0.0, %v5555
        %5557 = vmatmul.f32.gmra.mxu0 %v2690
        %v5558 = vpop.f32.mrf.mxu0
        %v5559 = vadd.f32 0.0, %v5558
        %5560 = vmatmul.f32.gmra.mxu0 %v2692
        %v5561 = vpop.f32.mrf.mxu0
        %v5562 = vadd.f32 0.0, %v5561
        %5563 = vmatmul.f32.gmra.mxu0 %v2694
        %v5564 = vpop.f32.mrf.mxu0
        %5565 = vmatmul.f32.gmra.mxu0 %v2696
        %v5566 = vpop.f32.mrf.mxu0
        %5567 = vmatmul.f32.gmra.mxu0 %v2698
        %v5568 = vpop.f32.mrf.mxu0
        %5569 = vmatmul.f32.gmra.mxu0 %v2700
        %v5570 = vpop.f32.mrf.mxu0
        %5571 = vmatmul.f32.gmra.mxu0 %v2702
        %v5572 = vpop.f32.mrf.mxu0
        %v5573 = vadd.f32 0.0, %v5572
        %5574 = vmatmul.f32.gmra.mxu0 %v2704
        %v5575 = vpop.f32.mrf.mxu0
        %v5576 = vadd.f32 0.0, %v5575
        %5577 = vmatmul.f32.gmra.mxu0 %v2706
        %v5578 = vpop.f32.mrf.mxu0
        %v5579 = vadd.f32 0.0, %v5578
        %5580 = vmatmul.f32.gmra.mxu0 %v2708
        %v5581 = vpop.f32.mrf.mxu0
        %v5582 = vadd.f32 0.0, %v5581
        %5583 = vmatmul.f32.gmra.mxu0 %v2710
        %v5584 = vpop.f32.mrf.mxu0
        %5585 = vmatmul.f32.gmra.mxu0 %v2712
        %v5586 = vpop.f32.mrf.mxu0
        %5587 = vmatmul.f32.gmra.mxu0 %v2714
        %v5588 = vpop.f32.mrf.mxu0
        %5589 = vmatmul.f32.gmra.mxu0 %v2716
        %v5590 = vpop.f32.mrf.mxu0
        %5591 = vmatmul.f32.gmra.mxu0 %v2718
        %v5592 = vpop.f32.mrf.mxu0
        %v5593 = vadd.f32 0.0, %v5592
        %5594 = vmatmul.f32.gmra.mxu0 %v2720
        %v5595 = vpop.f32.mrf.mxu0
        %v5596 = vadd.f32 0.0, %v5595
        %5597 = vmatmul.f32.gmra.mxu0 %v4036
        %v5598 = vpop.f32.mrf.mxu0
        %v5599 = vadd.f32 0.0, %v5598
        %5600 = vmatmul.f32.gmra.mxu0 %v4289
        %v5601 = vpop.f32.mrf.mxu0
        %v5602 = vadd.f32 0.0, %v5601
        %5603 = vmatmul.f32.gmra.mxu0 %v4292
        %v5604 = vpop.f32.mrf.mxu0
        %5605 = vmatmul.f32.gmra.mxu0 %v4295
        %v5606 = vpop.f32.mrf.mxu0
        %5607 = vmatmul.f32.gmra.mxu0 %v4298
        %v5608 = vpop.f32.mrf.mxu0
        %5609 = vmatmul.f32.gmra.mxu0 %v4301
        %v5610 = vpop.f32.mrf.mxu0
        %5611 = vmatmul.f32.gmra.mxu0 %v4304
        %v5612 = vpop.f32.mrf.mxu0
        %v5613 = vadd.f32 0.0, %v5612
        %5614 = vmatmul.f32.gmra.mxu0 %v4307
        %v5615 = vpop.f32.mrf.mxu0
        %v5616 = vadd.f32 0.0, %v5615
        %5617 = vmatmul.f32.gmra.mxu0 %v5410
        %v5618 = vpop.f32.mrf.mxu0
        %v5619 = vadd.f32 0.0, %v5618
        %5620 = vdwg.mxu0
        %v5621 = vadd.f32 %v5369, %v5433
        %v5622 = vadd.f32 %v5370, %v5436
        %v5623 = vadd.f32 %v5371, %v5439
        %v5624 = vadd.f32 %v5372, %v5442
        %v5625 = vadd.f32 %v5373, %v5453
        %v5626 = vadd.f32 %v5374, %v5456
        %v5627 = vadd.f32 %v5375, %v5459
        %v5628 = vadd.f32 %v5376, %v5462
        %v5629 = vadd.f32 %v5377, %v5473
        %v5630 = vadd.f32 %v5378, %v5476
        %v5631 = vadd.f32 %v5379, %v5479
        %v5632 = vadd.f32 %v5380, %v5482
        %v5633 = vadd.f32 %v5381, %v5493
        %v5634 = vadd.f32 %v5382, %v5496
        %v5635 = vadd.f32 %v5383, %v5499
        %v5636 = vadd.f32 %v5384, %v5502
        %v5637 = vadd.f32 %v5385, %v5513
        %v5638 = vadd.f32 %v5386, %v5516
        %v5639 = vadd.f32 %v5387, %v5519
        %v5640 = vadd.f32 %v5388, %v5522
        %v5641 = vadd.f32 %v5389, %v5533
        %v5642 = vadd.f32 %v5390, %v5536
        %v5643 = vadd.f32 %v5391, %v5539
        %v5644 = vadd.f32 %v5392, %v5542
        %v5645 = vadd.f32 %v5393, %v5553
        %v5646 = vadd.f32 %v5394, %v5556
        %v5647 = vadd.f32 %v5395, %v5559
        %v5648 = vadd.f32 %v5396, %v5562
        %v5649 = vadd.f32 %v5397, %v5573
        %v5650 = vadd.f32 %v5398, %v5576
        %v5651 = vadd.f32 %v5399, %v5579
        %v5652 = vadd.f32 %v5400, %v5582
        %v5653 = vadd.f32 %v5401, %v5593
        %v5654 = vadd.f32 %v5402, %v5596
        %v5655 = vadd.f32 %v5403, %v5599
        %v5656 = vadd.f32 %v5404, %v5602
        %v5657 = vadd.f32 %v5405, %v5613
        %v5658 = vadd.f32 %v5406, %v5616
        %v5659 = vadd.f32 %v5407, %v5619
        %s5660 = scalar_lea.vmem %s3, 80
        %v5661 = vld [vmem:[%s5660] sm:$0x3f]
        %v5663 = vsel %vm2212, %v1960, 0
        %v5666 = vsel %vm2212, %v1961, 0
        %v5669 = vsel %vm2212, %v1962, 0
        %v5672 = vsel %vm2212, %v1963, 0
        %v5675 = vsel %vm2212, %v1964, 0
        %v5678 = vsel %vm2212, %v1965, 0
        %v5681 = vsel %vm2212, %v1966, 0
        %v5684 = vsel %vm2062, %v5661, 0
        %5686 = vmatpush.msra.mxu0 0.0
        %5687 = vmatpush.msra.mxu0 0.0
        %5688 = vmatpush.msra.mxu0 0.0
        %5689 = vmatpush.msra.mxu0 0.0
        %5690 = vmatpush.msra.mxu0 0.0
        %5691 = vmatpush.msra.mxu0 0.0
        %5692 = vmatpush.msra.mxu0 0.0
        %5693 = vmatpush.msra.mxu0 0.0
        %5694 = vmatpush.msra.mxu0 0.0
        %5695 = vmatpush.msra.mxu0 0.0
        %5696 = vmatpush.msra.mxu0 0.0
        %5697 = vmatpush.msra.mxu0 0.0
        %5698 = vmatpush.msra.mxu0 0.0
        %5699 = vmatpush.msra.mxu0 0.0
        %5700 = vmatpush.msra.mxu0 0.0
        %5701 = vmatpush.msra.mxu0 %v5684
        %5702 = vmatmul.f32.gmra.mxu0 %v2604
        %v5703 = vpop.f32.mrf.mxu0
        %v5704 = vadd.f32 0.0, %v5703
        %5705 = vmatmul.f32.gmra.mxu0 %v2606
        %v5706 = vpop.f32.mrf.mxu0
        %v5707 = vadd.f32 0.0, %v5706
        %5708 = vmatmul.f32.gmra.mxu0 %v2608
        %v5709 = vpop.f32.mrf.mxu0
        %v5710 = vadd.f32 0.0, %v5709
        %5711 = vmatmul.f32.gmra.mxu0 %v2610
        %v5712 = vpop.f32.mrf.mxu0
        %v5713 = vadd.f32 0.0, %v5712
        %5714 = vmatmul.f32.gmra.mxu0 %v2612
        %v5715 = vpop.f32.mrf.mxu0
        %5716 = vmatmul.f32.gmra.mxu0 %v2614
        %v5717 = vpop.f32.mrf.mxu0
        %5718 = vmatmul.f32.gmra.mxu0 %v2616
        %v5719 = vpop.f32.mrf.mxu0
        %5720 = vmatmul.f32.gmra.mxu0 %v2618
        %v5721 = vpop.f32.mrf.mxu0
        %5722 = vmatmul.f32.gmra.mxu0 %v2620
        %v5723 = vpop.f32.mrf.mxu0
        %v5724 = vadd.f32 0.0, %v5723
        %5725 = vmatmul.f32.gmra.mxu0 %v2622
        %v5726 = vpop.f32.mrf.mxu0
        %v5727 = vadd.f32 0.0, %v5726
        %5728 = vmatmul.f32.gmra.mxu0 %v2624
        %v5729 = vpop.f32.mrf.mxu0
        %v5730 = vadd.f32 0.0, %v5729
        %5731 = vmatmul.f32.gmra.mxu0 %v2626
        %v5732 = vpop.f32.mrf.mxu0
        %v5733 = vadd.f32 0.0, %v5732
        %5734 = vmatmul.f32.gmra.mxu0 %v2628
        %v5735 = vpop.f32.mrf.mxu0
        %5736 = vmatmul.f32.gmra.mxu0 %v2630
        %v5737 = vpop.f32.mrf.mxu0
        %5738 = vmatmul.f32.gmra.mxu0 %v2632
        %v5739 = vpop.f32.mrf.mxu0
        %5740 = vmatmul.f32.gmra.mxu0 %v2634
        %v5741 = vpop.f32.mrf.mxu0
        %5742 = vmatmul.f32.gmra.mxu0 %v2636
        %v5743 = vpop.f32.mrf.mxu0
        %v5744 = vadd.f32 0.0, %v5743
        %5745 = vmatmul.f32.gmra.mxu0 %v2638
        %v5746 = vpop.f32.mrf.mxu0
        %v5747 = vadd.f32 0.0, %v5746
        %5748 = vmatmul.f32.gmra.mxu0 %v2640
        %v5749 = vpop.f32.mrf.mxu0
        %v5750 = vadd.f32 0.0, %v5749
        %5751 = vmatmul.f32.gmra.mxu0 %v2642
        %v5752 = vpop.f32.mrf.mxu0
        %v5753 = vadd.f32 0.0, %v5752
        %5754 = vmatmul.f32.gmra.mxu0 %v2644
        %v5755 = vpop.f32.mrf.mxu0
        %5756 = vmatmul.f32.gmra.mxu0 %v2646
        %v5757 = vpop.f32.mrf.mxu0
        %5758 = vmatmul.f32.gmra.mxu0 %v2648
        %v5759 = vpop.f32.mrf.mxu0
        %5760 = vmatmul.f32.gmra.mxu0 %v2650
        %v5761 = vpop.f32.mrf.mxu0
        %5762 = vmatmul.f32.gmra.mxu0 %v2652
        %v5763 = vpop.f32.mrf.mxu0
        %v5764 = vadd.f32 0.0, %v5763
        %5765 = vmatmul.f32.gmra.mxu0 %v2654
        %v5766 = vpop.f32.mrf.mxu0
        %v5767 = vadd.f32 0.0, %v5766
        %5768 = vmatmul.f32.gmra.mxu0 %v2656
        %v5769 = vpop.f32.mrf.mxu0
        %v5770 = vadd.f32 0.0, %v5769
        %5771 = vmatmul.f32.gmra.mxu0 %v2658
        %v5772 = vpop.f32.mrf.mxu0
        %v5773 = vadd.f32 0.0, %v5772
        %5774 = vmatmul.f32.gmra.mxu0 %v2660
        %v5775 = vpop.f32.mrf.mxu0
        %5776 = vmatmul.f32.gmra.mxu0 %v2662
        %v5777 = vpop.f32.mrf.mxu0
        %5778 = vmatmul.f32.gmra.mxu0 %v2664
        %v5779 = vpop.f32.mrf.mxu0
        %5780 = vmatmul.f32.gmra.mxu0 %v2666
        %v5781 = vpop.f32.mrf.mxu0
        %5782 = vmatmul.f32.gmra.mxu0 %v2668
        %v5783 = vpop.f32.mrf.mxu0
        %v5784 = vadd.f32 0.0, %v5783
        %5785 = vmatmul.f32.gmra.mxu0 %v2670
        %v5786 = vpop.f32.mrf.mxu0
        %v5787 = vadd.f32 0.0, %v5786
        %5788 = vmatmul.f32.gmra.mxu0 %v2672
        %v5789 = vpop.f32.mrf.mxu0
        %v5790 = vadd.f32 0.0, %v5789
        %5791 = vmatmul.f32.gmra.mxu0 %v2674
        %v5792 = vpop.f32.mrf.mxu0
        %v5793 = vadd.f32 0.0, %v5792
        %5794 = vmatmul.f32.gmra.mxu0 %v2676
        %v5795 = vpop.f32.mrf.mxu0
        %5796 = vmatmul.f32.gmra.mxu0 %v2678
        %v5797 = vpop.f32.mrf.mxu0
        %5798 = vmatmul.f32.gmra.mxu0 %v2680
        %v5799 = vpop.f32.mrf.mxu0
        %5800 = vmatmul.f32.gmra.mxu0 %v2682
        %v5801 = vpop.f32.mrf.mxu0
        %5802 = vmatmul.f32.gmra.mxu0 %v2684
        %v5803 = vpop.f32.mrf.mxu0
        %v5804 = vadd.f32 0.0, %v5803
        %5805 = vmatmul.f32.gmra.mxu0 %v2686
        %v5806 = vpop.f32.mrf.mxu0
        %v5807 = vadd.f32 0.0, %v5806
        %5808 = vmatmul.f32.gmra.mxu0 %v2688
        %v5809 = vpop.f32.mrf.mxu0
        %v5810 = vadd.f32 0.0, %v5809
        %5811 = vmatmul.f32.gmra.mxu0 %v2690
        %v5812 = vpop.f32.mrf.mxu0
        %v5813 = vadd.f32 0.0, %v5812
        %5814 = vmatmul.f32.gmra.mxu0 %v2692
        %v5815 = vpop.f32.mrf.mxu0
        %5816 = vmatmul.f32.gmra.mxu0 %v2694
        %v5817 = vpop.f32.mrf.mxu0
        %5818 = vmatmul.f32.gmra.mxu0 %v2696
        %v5819 = vpop.f32.mrf.mxu0
        %5820 = vmatmul.f32.gmra.mxu0 %v2698
        %v5821 = vpop.f32.mrf.mxu0
        %5822 = vmatmul.f32.gmra.mxu0 %v2700
        %v5823 = vpop.f32.mrf.mxu0
        %v5824 = vadd.f32 0.0, %v5823
        %5825 = vmatmul.f32.gmra.mxu0 %v2702
        %v5826 = vpop.f32.mrf.mxu0
        %v5827 = vadd.f32 0.0, %v5826
        %5828 = vmatmul.f32.gmra.mxu0 %v2704
        %v5829 = vpop.f32.mrf.mxu0
        %v5830 = vadd.f32 0.0, %v5829
        %5831 = vmatmul.f32.gmra.mxu0 %v2706
        %v5832 = vpop.f32.mrf.mxu0
        %v5833 = vadd.f32 0.0, %v5832
        %5834 = vmatmul.f32.gmra.mxu0 %v2708
        %v5835 = vpop.f32.mrf.mxu0
        %5836 = vmatmul.f32.gmra.mxu0 %v2710
        %v5837 = vpop.f32.mrf.mxu0
        %5838 = vmatmul.f32.gmra.mxu0 %v2712
        %v5839 = vpop.f32.mrf.mxu0
        %5840 = vmatmul.f32.gmra.mxu0 %v2714
        %v5841 = vpop.f32.mrf.mxu0
        %5842 = vmatmul.f32.gmra.mxu0 %v2716
        %v5843 = vpop.f32.mrf.mxu0
        %v5844 = vadd.f32 0.0, %v5843
        %5845 = vmatmul.f32.gmra.mxu0 %v2718
        %v5846 = vpop.f32.mrf.mxu0
        %v5847 = vadd.f32 0.0, %v5846
        %5848 = vmatmul.f32.gmra.mxu0 %v2720
        %v5849 = vpop.f32.mrf.mxu0
        %v5850 = vadd.f32 0.0, %v5849
        %5851 = vmatmul.f32.gmra.mxu0 %v4036
        %v5852 = vpop.f32.mrf.mxu0
        %v5853 = vadd.f32 0.0, %v5852
        %5854 = vmatmul.f32.gmra.mxu0 %v4289
        %v5855 = vpop.f32.mrf.mxu0
        %5856 = vmatmul.f32.gmra.mxu0 %v4292
        %v5857 = vpop.f32.mrf.mxu0
        %5858 = vmatmul.f32.gmra.mxu0 %v4295
        %v5859 = vpop.f32.mrf.mxu0
        %5860 = vmatmul.f32.gmra.mxu0 %v4298
        %v5861 = vpop.f32.mrf.mxu0
        %5862 = vmatmul.f32.gmra.mxu0 %v4301
        %v5863 = vpop.f32.mrf.mxu0
        %v5864 = vadd.f32 0.0, %v5863
        %5865 = vmatmul.f32.gmra.mxu0 %v4304
        %v5866 = vpop.f32.mrf.mxu0
        %v5867 = vadd.f32 0.0, %v5866
        %5868 = vmatmul.f32.gmra.mxu0 %v4307
        %v5869 = vpop.f32.mrf.mxu0
        %v5870 = vadd.f32 0.0, %v5869
        %5871 = vmatmul.f32.gmra.mxu0 %v5410
        %v5872 = vpop.f32.mrf.mxu0
        %v5873 = vadd.f32 0.0, %v5872
        %5874 = vmatmul.f32.gmra.mxu0 %v5663
        %v5875 = vpop.f32.mrf.mxu0
        %5876 = vmatmul.f32.gmra.mxu0 %v5666
        %v5877 = vpop.f32.mrf.mxu0
        %5878 = vmatmul.f32.gmra.mxu0 %v5669
        %v5879 = vpop.f32.mrf.mxu0
        %5880 = vmatmul.f32.gmra.mxu0 %v5672
        %v5881 = vpop.f32.mrf.mxu0
        %5882 = vmatmul.f32.gmra.mxu0 %v5675
        %v5883 = vpop.f32.mrf.mxu0
        %v5884 = vadd.f32 0.0, %v5883
        %5885 = vmatmul.f32.gmra.mxu0 %v5678
        %v5886 = vpop.f32.mrf.mxu0
        %v5887 = vadd.f32 0.0, %v5886
        %5888 = vmatmul.f32.gmra.mxu0 %v5681
        %v5889 = vpop.f32.mrf.mxu0
        %v5890 = vadd.f32 0.0, %v5889
        %5891 = vdwg.mxu0
        %v5892 = vadd.f32 %v5621, %v5704
        %v5893 = vadd.f32 %v5622, %v5707
        %v5894 = vadd.f32 %v5623, %v5710
        %v5895 = vadd.f32 %v5624, %v5713
        %v5896 = vadd.f32 %v5625, %v5724
        %v5897 = vadd.f32 %v5626, %v5727
        %v5898 = vadd.f32 %v5627, %v5730
        %v5899 = vadd.f32 %v5628, %v5733
        %v5900 = vadd.f32 %v5629, %v5744
        %v5901 = vadd.f32 %v5630, %v5747
        %v5902 = vadd.f32 %v5631, %v5750
        %v5903 = vadd.f32 %v5632, %v5753
        %v5904 = vadd.f32 %v5633, %v5764
        %v5905 = vadd.f32 %v5634, %v5767
        %v5906 = vadd.f32 %v5635, %v5770
        %v5907 = vadd.f32 %v5636, %v5773
        %v5908 = vadd.f32 %v5637, %v5784
        %v5909 = vadd.f32 %v5638, %v5787
        %v5910 = vadd.f32 %v5639, %v5790
        %v5911 = vadd.f32 %v5640, %v5793
        %v5912 = vadd.f32 %v5641, %v5804
        %v5913 = vadd.f32 %v5642, %v5807
        %v5914 = vadd.f32 %v5643, %v5810
        %v5915 = vadd.f32 %v5644, %v5813
        %v5916 = vadd.f32 %v5645, %v5824
        %v5917 = vadd.f32 %v5646, %v5827
        %v5918 = vadd.f32 %v5647, %v5830
        %v5919 = vadd.f32 %v5648, %v5833
        %v5920 = vadd.f32 %v5649, %v5844
        %v5921 = vadd.f32 %v5650, %v5847
        %v5922 = vadd.f32 %v5651, %v5850
        %v5923 = vadd.f32 %v5652, %v5853
        %v5924 = vadd.f32 %v5653, %v5864
        %v5925 = vadd.f32 %v5654, %v5867
        %v5926 = vadd.f32 %v5655, %v5870
        %v5927 = vadd.f32 %v5656, %v5873
        %v5928 = vadd.f32 %v5657, %v5884
        %v5929 = vadd.f32 %v5658, %v5887
        %v5930 = vadd.f32 %v5659, %v5890
        %s5931 = scalar_lea.vmem %s3, 88
        %v5932 = vld [vmem:[%s5931] sm:$0x3f]
        %v5933 = vrot.slane %v1959, 2
        %v5934 = vsel %vm2062, %v4573, %v5933
        %v5935 = vrot.slane %v1960, 2
        %v5936 = vsel %vm2062, %v5933, %v5935
        %v5937 = vrot.slane %v1961, 2
        %v5938 = vsel %vm2062, %v5935, %v5937
        %v5939 = vrot.slane %v1962, 2
        %v5940 = vsel %vm2062, %v5937, %v5939
        %v5941 = vrot.slane %v1963, 2
        %v5942 = vsel %vm2062, %v5939, %v5941
        %v5943 = vrot.slane %v1964, 2
        %v5944 = vsel %vm2062, %v5941, %v5943
        %v5945 = vrot.slane %v1965, 2
        %v5946 = vsel %vm2062, %v5943, %v5945
        %v5947 = vrot.slane %v1966, 2
        %v5948 = vsel %vm2062, %v5945, %v5947
        %v5949 = vsel %vm2212, %v5934, 0
        %v5951 = vsel %vm2212, %v5936, 0
        %v5953 = vsel %vm2212, %v5938, 0
        %v5955 = vsel %vm2212, %v5940, 0
        %v5957 = vsel %vm2212, %v5942, 0
        %v5959 = vsel %vm2212, %v5944, 0
        %v5961 = vsel %vm2212, %v5946, 0
        %v5963 = vsel %vm2212, %v5948, 0
        %v5965 = vsel %vm2212, %v5947, 0
        %v5968 = vsel %vm2062, %v5932, 0
        %5970 = vmatpush.msra.mxu0 0.0
        %5971 = vmatpush.msra.mxu0 0.0
        %5972 = vmatpush.msra.mxu0 0.0
        %5973 = vmatpush.msra.mxu0 0.0
        %5974 = vmatpush.msra.mxu0 0.0
        %5975 = vmatpush.msra.mxu0 0.0
        %5976 = vmatpush.msra.mxu0 0.0
        %5977 = vmatpush.msra.mxu0 0.0
        %5978 = vmatpush.msra.mxu0 0.0
        %5979 = vmatpush.msra.mxu0 0.0
        %5980 = vmatpush.msra.mxu0 0.0
        %5981 = vmatpush.msra.mxu0 0.0
        %5982 = vmatpush.msra.mxu0 0.0
        %5983 = vmatpush.msra.mxu0 0.0
        %5984 = vmatpush.msra.mxu0 0.0
        %5985 = vmatpush.msra.mxu0 %v5968
        %5986 = vmatmul.f32.gmra.mxu0 %v2245
        %v5987 = vpop.f32.mrf.mxu0
        %v5988 = vadd.f32 0.0, %v5987
        %5989 = vmatmul.f32.gmra.mxu0 %v2247
        %v5990 = vpop.f32.mrf.mxu0
        %v5991 = vadd.f32 0.0, %v5990
        %5992 = vmatmul.f32.gmra.mxu0 %v2249
        %v5993 = vpop.f32.mrf.mxu0
        %v5994 = vadd.f32 0.0, %v5993
        %5995 = vmatmul.f32.gmra.mxu0 %v2251
        %v5996 = vpop.f32.mrf.mxu0
        %v5997 = vadd.f32 0.0, %v5996
        %5998 = vmatmul.f32.gmra.mxu0 %v2253
        %v5999 = vpop.f32.mrf.mxu0
        %6000 = vmatmul.f32.gmra.mxu0 %v2255
        %v6001 = vpop.f32.mrf.mxu0
        %6002 = vmatmul.f32.gmra.mxu0 %v2257
        %v6003 = vpop.f32.mrf.mxu0
        %6004 = vmatmul.f32.gmra.mxu0 %v2259
        %v6005 = vpop.f32.mrf.mxu0
        %6006 = vmatmul.f32.gmra.mxu0 %v2261
        %v6007 = vpop.f32.mrf.mxu0
        %v6008 = vadd.f32 0.0, %v6007
        %6009 = vmatmul.f32.gmra.mxu0 %v2263
        %v6010 = vpop.f32.mrf.mxu0
        %v6011 = vadd.f32 0.0, %v6010
        %6012 = vmatmul.f32.gmra.mxu0 %v2265
        %v6013 = vpop.f32.mrf.mxu0
        %v6014 = vadd.f32 0.0, %v6013
        %6015 = vmatmul.f32.gmra.mxu0 %v2267
        %v6016 = vpop.f32.mrf.mxu0
        %v6017 = vadd.f32 0.0, %v6016
        %6018 = vmatmul.f32.gmra.mxu0 %v2269
        %v6019 = vpop.f32.mrf.mxu0
        %6020 = vmatmul.f32.gmra.mxu0 %v2271
        %v6021 = vpop.f32.mrf.mxu0
        %6022 = vmatmul.f32.gmra.mxu0 %v2273
        %v6023 = vpop.f32.mrf.mxu0
        %6024 = vmatmul.f32.gmra.mxu0 %v2275
        %v6025 = vpop.f32.mrf.mxu0
        %6026 = vmatmul.f32.gmra.mxu0 %v2277
        %v6027 = vpop.f32.mrf.mxu0
        %v6028 = vadd.f32 0.0, %v6027
        %6029 = vmatmul.f32.gmra.mxu0 %v2279
        %v6030 = vpop.f32.mrf.mxu0
        %v6031 = vadd.f32 0.0, %v6030
        %6032 = vmatmul.f32.gmra.mxu0 %v2281
        %v6033 = vpop.f32.mrf.mxu0
        %v6034 = vadd.f32 0.0, %v6033
        %6035 = vmatmul.f32.gmra.mxu0 %v2283
        %v6036 = vpop.f32.mrf.mxu0
        %v6037 = vadd.f32 0.0, %v6036
        %6038 = vmatmul.f32.gmra.mxu0 %v2285
        %v6039 = vpop.f32.mrf.mxu0
        %6040 = vmatmul.f32.gmra.mxu0 %v2287
        %v6041 = vpop.f32.mrf.mxu0
        %6042 = vmatmul.f32.gmra.mxu0 %v2289
        %v6043 = vpop.f32.mrf.mxu0
        %6044 = vmatmul.f32.gmra.mxu0 %v2291
        %v6045 = vpop.f32.mrf.mxu0
        %6046 = vmatmul.f32.gmra.mxu0 %v2293
        %v6047 = vpop.f32.mrf.mxu0
        %v6048 = vadd.f32 0.0, %v6047
        %6049 = vmatmul.f32.gmra.mxu0 %v2295
        %v6050 = vpop.f32.mrf.mxu0
        %v6051 = vadd.f32 0.0, %v6050
        %6052 = vmatmul.f32.gmra.mxu0 %v2297
        %v6053 = vpop.f32.mrf.mxu0
        %v6054 = vadd.f32 0.0, %v6053
        %6055 = vmatmul.f32.gmra.mxu0 %v2299
        %v6056 = vpop.f32.mrf.mxu0
        %v6057 = vadd.f32 0.0, %v6056
        %6058 = vmatmul.f32.gmra.mxu0 %v2301
        %v6059 = vpop.f32.mrf.mxu0
        %6060 = vmatmul.f32.gmra.mxu0 %v2303
        %v6061 = vpop.f32.mrf.mxu0
        %6062 = vmatmul.f32.gmra.mxu0 %v2305
        %v6063 = vpop.f32.mrf.mxu0
        %6064 = vmatmul.f32.gmra.mxu0 %v2307
        %v6065 = vpop.f32.mrf.mxu0
        %6066 = vmatmul.f32.gmra.mxu0 %v2309
        %v6067 = vpop.f32.mrf.mxu0
        %v6068 = vadd.f32 0.0, %v6067
        %6069 = vmatmul.f32.gmra.mxu0 %v2311
        %v6070 = vpop.f32.mrf.mxu0
        %v6071 = vadd.f32 0.0, %v6070
        %6072 = vmatmul.f32.gmra.mxu0 %v2313
        %v6073 = vpop.f32.mrf.mxu0
        %v6074 = vadd.f32 0.0, %v6073
        %6075 = vmatmul.f32.gmra.mxu0 %v2315
        %v6076 = vpop.f32.mrf.mxu0
        %v6077 = vadd.f32 0.0, %v6076
        %6078 = vmatmul.f32.gmra.mxu0 %v2317
        %v6079 = vpop.f32.mrf.mxu0
        %6080 = vmatmul.f32.gmra.mxu0 %v2319
        %v6081 = vpop.f32.mrf.mxu0
        %6082 = vmatmul.f32.gmra.mxu0 %v2321
        %v6083 = vpop.f32.mrf.mxu0
        %6084 = vmatmul.f32.gmra.mxu0 %v2323
        %v6085 = vpop.f32.mrf.mxu0
        %6086 = vmatmul.f32.gmra.mxu0 %v2325
        %v6087 = vpop.f32.mrf.mxu0
        %v6088 = vadd.f32 0.0, %v6087
        %6089 = vmatmul.f32.gmra.mxu0 %v2327
        %v6090 = vpop.f32.mrf.mxu0
        %v6091 = vadd.f32 0.0, %v6090
        %6092 = vmatmul.f32.gmra.mxu0 %v2329
        %v6093 = vpop.f32.mrf.mxu0
        %v6094 = vadd.f32 0.0, %v6093
        %6095 = vmatmul.f32.gmra.mxu0 %v2331
        %v6096 = vpop.f32.mrf.mxu0
        %v6097 = vadd.f32 0.0, %v6096
        %6098 = vmatmul.f32.gmra.mxu0 %v2333
        %v6099 = vpop.f32.mrf.mxu0
        %6100 = vmatmul.f32.gmra.mxu0 %v2335
        %v6101 = vpop.f32.mrf.mxu0
        %6102 = vmatmul.f32.gmra.mxu0 %v2337
        %v6103 = vpop.f32.mrf.mxu0
        %6104 = vmatmul.f32.gmra.mxu0 %v2339
        %v6105 = vpop.f32.mrf.mxu0
        %6106 = vmatmul.f32.gmra.mxu0 %v2341
        %v6107 = vpop.f32.mrf.mxu0
        %v6108 = vadd.f32 0.0, %v6107
        %6109 = vmatmul.f32.gmra.mxu0 %v2343
        %v6110 = vpop.f32.mrf.mxu0
        %v6111 = vadd.f32 0.0, %v6110
        %6112 = vmatmul.f32.gmra.mxu0 %v2345
        %v6113 = vpop.f32.mrf.mxu0
        %v6114 = vadd.f32 0.0, %v6113
        %6115 = vmatmul.f32.gmra.mxu0 %v2347
        %v6116 = vpop.f32.mrf.mxu0
        %v6117 = vadd.f32 0.0, %v6116
        %6118 = vmatmul.f32.gmra.mxu0 %v2349
        %v6119 = vpop.f32.mrf.mxu0
        %6120 = vmatmul.f32.gmra.mxu0 %v2351
        %v6121 = vpop.f32.mrf.mxu0
        %6122 = vmatmul.f32.gmra.mxu0 %v2353
        %v6123 = vpop.f32.mrf.mxu0
        %6124 = vmatmul.f32.gmra.mxu0 %v2355
        %v6125 = vpop.f32.mrf.mxu0
        %6126 = vmatmul.f32.gmra.mxu0 %v2357
        %v6127 = vpop.f32.mrf.mxu0
        %v6128 = vadd.f32 0.0, %v6127
        %6129 = vmatmul.f32.gmra.mxu0 %v2359
        %v6130 = vpop.f32.mrf.mxu0
        %v6131 = vadd.f32 0.0, %v6130
        %6132 = vmatmul.f32.gmra.mxu0 %v4575
        %v6133 = vpop.f32.mrf.mxu0
        %v6134 = vadd.f32 0.0, %v6133
        %6135 = vmatmul.f32.gmra.mxu0 %v4577
        %v6136 = vpop.f32.mrf.mxu0
        %v6137 = vadd.f32 0.0, %v6136
        %6138 = vmatmul.f32.gmra.mxu0 %v4579
        %v6139 = vpop.f32.mrf.mxu0
        %6140 = vmatmul.f32.gmra.mxu0 %v4581
        %v6141 = vpop.f32.mrf.mxu0
        %6142 = vmatmul.f32.gmra.mxu0 %v4583
        %v6143 = vpop.f32.mrf.mxu0
        %6144 = vmatmul.f32.gmra.mxu0 %v4585
        %v6145 = vpop.f32.mrf.mxu0
        %6146 = vmatmul.f32.gmra.mxu0 %v4587
        %v6147 = vpop.f32.mrf.mxu0
        %v6148 = vadd.f32 0.0, %v6147
        %6149 = vmatmul.f32.gmra.mxu0 %v4589
        %v6150 = vpop.f32.mrf.mxu0
        %v6151 = vadd.f32 0.0, %v6150
        %6152 = vmatmul.f32.gmra.mxu0 %v5949
        %v6153 = vpop.f32.mrf.mxu0
        %v6154 = vadd.f32 0.0, %v6153
        %6155 = vmatmul.f32.gmra.mxu0 %v5951
        %v6156 = vpop.f32.mrf.mxu0
        %v6157 = vadd.f32 0.0, %v6156
        %6158 = vmatmul.f32.gmra.mxu0 %v5953
        %v6159 = vpop.f32.mrf.mxu0
        %6160 = vmatmul.f32.gmra.mxu0 %v5955
        %v6161 = vpop.f32.mrf.mxu0
        %6162 = vmatmul.f32.gmra.mxu0 %v5957
        %v6163 = vpop.f32.mrf.mxu0
        %6164 = vmatmul.f32.gmra.mxu0 %v5959
        %v6165 = vpop.f32.mrf.mxu0
        %6166 = vmatmul.f32.gmra.mxu0 %v5961
        %v6167 = vpop.f32.mrf.mxu0
        %v6168 = vadd.f32 0.0, %v6167
        %6169 = vmatmul.f32.gmra.mxu0 %v5963
        %v6170 = vpop.f32.mrf.mxu0
        %v6171 = vadd.f32 0.0, %v6170
        %6172 = vmatmul.f32.gmra.mxu0 %v5965
        %v6173 = vpop.f32.mrf.mxu0
        %v6174 = vadd.f32 0.0, %v6173
        %6175 = vdwg.mxu0
        %v6176 = vadd.f32 %v5892, %v5988
        %v6177 = vadd.f32 %v5893, %v5991
        %v6178 = vadd.f32 %v5894, %v5994
        %v6179 = vadd.f32 %v5895, %v5997
        %v6180 = vadd.f32 %v5896, %v6008
        %v6181 = vadd.f32 %v5897, %v6011
        %v6182 = vadd.f32 %v5898, %v6014
        %v6183 = vadd.f32 %v5899, %v6017
        %v6184 = vadd.f32 %v5900, %v6028
        %v6185 = vadd.f32 %v5901, %v6031
        %v6186 = vadd.f32 %v5902, %v6034
        %v6187 = vadd.f32 %v5903, %v6037
        %v6188 = vadd.f32 %v5904, %v6048
        %v6189 = vadd.f32 %v5905, %v6051
        %v6190 = vadd.f32 %v5906, %v6054
        %v6191 = vadd.f32 %v5907, %v6057
        %v6192 = vadd.f32 %v5908, %v6068
        %v6193 = vadd.f32 %v5909, %v6071
        %v6194 = vadd.f32 %v5910, %v6074
        %v6195 = vadd.f32 %v5911, %v6077
        %v6196 = vadd.f32 %v5912, %v6088
        %v6197 = vadd.f32 %v5913, %v6091
        %v6198 = vadd.f32 %v5914, %v6094
        %v6199 = vadd.f32 %v5915, %v6097
        %v6200 = vadd.f32 %v5916, %v6108
        %v6201 = vadd.f32 %v5917, %v6111
        %v6202 = vadd.f32 %v5918, %v6114
        %v6203 = vadd.f32 %v5919, %v6117
        %v6204 = vadd.f32 %v5920, %v6128
        %v6205 = vadd.f32 %v5921, %v6131
        %v6206 = vadd.f32 %v5922, %v6134
        %v6207 = vadd.f32 %v5923, %v6137
        %v6208 = vadd.f32 %v5924, %v6148
        %v6209 = vadd.f32 %v5925, %v6151
        %v6210 = vadd.f32 %v5926, %v6154
        %v6211 = vadd.f32 %v5927, %v6157
        %v6212 = vadd.f32 %v5928, %v6168
        %v6213 = vadd.f32 %v5929, %v6171
        %v6214 = vadd.f32 %v5930, %v6174
        %s6215 = scalar_lea.vmem %s3, 96
        %v6216 = vld [vmem:[%s6215] sm:$0x3f]
        %v6217 = vrot.slane %v1959, 4
        %v6218 = vsel %vm2933, %v4857, %v6217
        %v6219 = vrot.slane %v1960, 4
        %v6220 = vsel %vm2933, %v6217, %v6219
        %v6221 = vrot.slane %v1961, 4
        %v6222 = vsel %vm2933, %v6219, %v6221
        %v6223 = vrot.slane %v1962, 4
        %v6224 = vsel %vm2933, %v6221, %v6223
        %v6225 = vrot.slane %v1963, 4
        %v6226 = vsel %vm2933, %v6223, %v6225
        %v6227 = vrot.slane %v1964, 4
        %v6228 = vsel %vm2933, %v6225, %v6227
        %v6229 = vrot.slane %v1965, 4
        %v6230 = vsel %vm2933, %v6227, %v6229
        %v6231 = vrot.slane %v1966, 4
        %v6232 = vsel %vm2933, %v6229, %v6231
        %v6233 = vsel %vm2212, %v6218, 0
        %v6235 = vsel %vm2212, %v6220, 0
        %v6237 = vsel %vm2212, %v6222, 0
        %v6239 = vsel %vm2212, %v6224, 0
        %v6241 = vsel %vm2212, %v6226, 0
        %v6243 = vsel %vm2212, %v6228, 0
        %v6245 = vsel %vm2212, %v6230, 0
        %v6247 = vsel %vm2212, %v6232, 0
        %v6249 = vsel %vm2212, %v6231, 0
        %v6252 = vsel %vm2062, %v6216, 0
        %6254 = vmatpush.msra.mxu0 0.0
        %6255 = vmatpush.msra.mxu0 0.0
        %6256 = vmatpush.msra.mxu0 0.0
        %6257 = vmatpush.msra.mxu0 0.0
        %6258 = vmatpush.msra.mxu0 0.0
        %6259 = vmatpush.msra.mxu0 0.0
        %6260 = vmatpush.msra.mxu0 0.0
        %6261 = vmatpush.msra.mxu0 0.0
        %6262 = vmatpush.msra.mxu0 0.0
        %6263 = vmatpush.msra.mxu0 0.0
        %6264 = vmatpush.msra.mxu0 0.0
        %6265 = vmatpush.msra.mxu0 0.0
        %6266 = vmatpush.msra.mxu0 0.0
        %6267 = vmatpush.msra.mxu0 0.0
        %6268 = vmatpush.msra.mxu0 0.0
        %6269 = vmatpush.msra.mxu0 %v6252
        %6270 = vmatmul.f32.gmra.mxu0 %v3115
        %v6271 = vpop.f32.mrf.mxu0
        %v6272 = vadd.f32 0.0, %v6271
        %6273 = vmatmul.f32.gmra.mxu0 %v3117
        %v6274 = vpop.f32.mrf.mxu0
        %v6275 = vadd.f32 0.0, %v6274
        %6276 = vmatmul.f32.gmra.mxu0 %v3119
        %v6277 = vpop.f32.mrf.mxu0
        %v6278 = vadd.f32 0.0, %v6277
        %6279 = vmatmul.f32.gmra.mxu0 %v3121
        %v6280 = vpop.f32.mrf.mxu0
        %v6281 = vadd.f32 0.0, %v6280
        %6282 = vmatmul.f32.gmra.mxu0 %v3123
        %v6283 = vpop.f32.mrf.mxu0
        %6284 = vmatmul.f32.gmra.mxu0 %v3125
        %v6285 = vpop.f32.mrf.mxu0
        %6286 = vmatmul.f32.gmra.mxu0 %v3127
        %v6287 = vpop.f32.mrf.mxu0
        %6288 = vmatmul.f32.gmra.mxu0 %v3129
        %v6289 = vpop.f32.mrf.mxu0
        %6290 = vmatmul.f32.gmra.mxu0 %v3131
        %v6291 = vpop.f32.mrf.mxu0
        %v6292 = vadd.f32 0.0, %v6291
        %6293 = vmatmul.f32.gmra.mxu0 %v3133
        %v6294 = vpop.f32.mrf.mxu0
        %v6295 = vadd.f32 0.0, %v6294
        %6296 = vmatmul.f32.gmra.mxu0 %v3135
        %v6297 = vpop.f32.mrf.mxu0
        %v6298 = vadd.f32 0.0, %v6297
        %6299 = vmatmul.f32.gmra.mxu0 %v3137
        %v6300 = vpop.f32.mrf.mxu0
        %v6301 = vadd.f32 0.0, %v6300
        %6302 = vmatmul.f32.gmra.mxu0 %v3139
        %v6303 = vpop.f32.mrf.mxu0
        %6304 = vmatmul.f32.gmra.mxu0 %v3141
        %v6305 = vpop.f32.mrf.mxu0
        %6306 = vmatmul.f32.gmra.mxu0 %v3143
        %v6307 = vpop.f32.mrf.mxu0
        %6308 = vmatmul.f32.gmra.mxu0 %v3145
        %v6309 = vpop.f32.mrf.mxu0
        %6310 = vmatmul.f32.gmra.mxu0 %v3147
        %v6311 = vpop.f32.mrf.mxu0
        %v6312 = vadd.f32 0.0, %v6311
        %6313 = vmatmul.f32.gmra.mxu0 %v3149
        %v6314 = vpop.f32.mrf.mxu0
        %v6315 = vadd.f32 0.0, %v6314
        %6316 = vmatmul.f32.gmra.mxu0 %v3151
        %v6317 = vpop.f32.mrf.mxu0
        %v6318 = vadd.f32 0.0, %v6317
        %6319 = vmatmul.f32.gmra.mxu0 %v3153
        %v6320 = vpop.f32.mrf.mxu0
        %v6321 = vadd.f32 0.0, %v6320
        %6322 = vmatmul.f32.gmra.mxu0 %v3155
        %v6323 = vpop.f32.mrf.mxu0
        %6324 = vmatmul.f32.gmra.mxu0 %v3157
        %v6325 = vpop.f32.mrf.mxu0
        %6326 = vmatmul.f32.gmra.mxu0 %v3159
        %v6327 = vpop.f32.mrf.mxu0
        %6328 = vmatmul.f32.gmra.mxu0 %v3161
        %v6329 = vpop.f32.mrf.mxu0
        %6330 = vmatmul.f32.gmra.mxu0 %v3163
        %v6331 = vpop.f32.mrf.mxu0
        %v6332 = vadd.f32 0.0, %v6331
        %6333 = vmatmul.f32.gmra.mxu0 %v3165
        %v6334 = vpop.f32.mrf.mxu0
        %v6335 = vadd.f32 0.0, %v6334
        %6336 = vmatmul.f32.gmra.mxu0 %v3167
        %v6337 = vpop.f32.mrf.mxu0
        %v6338 = vadd.f32 0.0, %v6337
        %6339 = vmatmul.f32.gmra.mxu0 %v3169
        %v6340 = vpop.f32.mrf.mxu0
        %v6341 = vadd.f32 0.0, %v6340
        %6342 = vmatmul.f32.gmra.mxu0 %v3171
        %v6343 = vpop.f32.mrf.mxu0
        %6344 = vmatmul.f32.gmra.mxu0 %v3173
        %v6345 = vpop.f32.mrf.mxu0
        %6346 = vmatmul.f32.gmra.mxu0 %v3175
        %v6347 = vpop.f32.mrf.mxu0
        %6348 = vmatmul.f32.gmra.mxu0 %v3177
        %v6349 = vpop.f32.mrf.mxu0
        %6350 = vmatmul.f32.gmra.mxu0 %v3179
        %v6351 = vpop.f32.mrf.mxu0
        %v6352 = vadd.f32 0.0, %v6351
        %6353 = vmatmul.f32.gmra.mxu0 %v3181
        %v6354 = vpop.f32.mrf.mxu0
        %v6355 = vadd.f32 0.0, %v6354
        %6356 = vmatmul.f32.gmra.mxu0 %v3183
        %v6357 = vpop.f32.mrf.mxu0
        %v6358 = vadd.f32 0.0, %v6357
        %6359 = vmatmul.f32.gmra.mxu0 %v3185
        %v6360 = vpop.f32.mrf.mxu0
        %v6361 = vadd.f32 0.0, %v6360
        %6362 = vmatmul.f32.gmra.mxu0 %v3187
        %v6363 = vpop.f32.mrf.mxu0
        %6364 = vmatmul.f32.gmra.mxu0 %v3189
        %v6365 = vpop.f32.mrf.mxu0
        %6366 = vmatmul.f32.gmra.mxu0 %v3191
        %v6367 = vpop.f32.mrf.mxu0
        %6368 = vmatmul.f32.gmra.mxu0 %v3193
        %v6369 = vpop.f32.mrf.mxu0
        %6370 = vmatmul.f32.gmra.mxu0 %v3195
        %v6371 = vpop.f32.mrf.mxu0
        %v6372 = vadd.f32 0.0, %v6371
        %6373 = vmatmul.f32.gmra.mxu0 %v3197
        %v6374 = vpop.f32.mrf.mxu0
        %v6375 = vadd.f32 0.0, %v6374
        %6376 = vmatmul.f32.gmra.mxu0 %v3199
        %v6377 = vpop.f32.mrf.mxu0
        %v6378 = vadd.f32 0.0, %v6377
        %6379 = vmatmul.f32.gmra.mxu0 %v3201
        %v6380 = vpop.f32.mrf.mxu0
        %v6381 = vadd.f32 0.0, %v6380
        %6382 = vmatmul.f32.gmra.mxu0 %v3203
        %v6383 = vpop.f32.mrf.mxu0
        %6384 = vmatmul.f32.gmra.mxu0 %v3205
        %v6385 = vpop.f32.mrf.mxu0
        %6386 = vmatmul.f32.gmra.mxu0 %v3207
        %v6387 = vpop.f32.mrf.mxu0
        %6388 = vmatmul.f32.gmra.mxu0 %v3209
        %v6389 = vpop.f32.mrf.mxu0
        %6390 = vmatmul.f32.gmra.mxu0 %v3211
        %v6391 = vpop.f32.mrf.mxu0
        %v6392 = vadd.f32 0.0, %v6391
        %6393 = vmatmul.f32.gmra.mxu0 %v3213
        %v6394 = vpop.f32.mrf.mxu0
        %v6395 = vadd.f32 0.0, %v6394
        %6396 = vmatmul.f32.gmra.mxu0 %v3215
        %v6397 = vpop.f32.mrf.mxu0
        %v6398 = vadd.f32 0.0, %v6397
        %6399 = vmatmul.f32.gmra.mxu0 %v3217
        %v6400 = vpop.f32.mrf.mxu0
        %v6401 = vadd.f32 0.0, %v6400
        %6402 = vmatmul.f32.gmra.mxu0 %v3219
        %v6403 = vpop.f32.mrf.mxu0
        %6404 = vmatmul.f32.gmra.mxu0 %v3221
        %v6405 = vpop.f32.mrf.mxu0
        %6406 = vmatmul.f32.gmra.mxu0 %v3223
        %v6407 = vpop.f32.mrf.mxu0
        %6408 = vmatmul.f32.gmra.mxu0 %v3225
        %v6409 = vpop.f32.mrf.mxu0
        %6410 = vmatmul.f32.gmra.mxu0 %v3227
        %v6411 = vpop.f32.mrf.mxu0
        %v6412 = vadd.f32 0.0, %v6411
        %6413 = vmatmul.f32.gmra.mxu0 %v3229
        %v6414 = vpop.f32.mrf.mxu0
        %v6415 = vadd.f32 0.0, %v6414
        %6416 = vmatmul.f32.gmra.mxu0 %v4859
        %v6417 = vpop.f32.mrf.mxu0
        %v6418 = vadd.f32 0.0, %v6417
        %6419 = vmatmul.f32.gmra.mxu0 %v4861
        %v6420 = vpop.f32.mrf.mxu0
        %v6421 = vadd.f32 0.0, %v6420
        %6422 = vmatmul.f32.gmra.mxu0 %v4863
        %v6423 = vpop.f32.mrf.mxu0
        %6424 = vmatmul.f32.gmra.mxu0 %v4865
        %v6425 = vpop.f32.mrf.mxu0
        %6426 = vmatmul.f32.gmra.mxu0 %v4867
        %v6427 = vpop.f32.mrf.mxu0
        %6428 = vmatmul.f32.gmra.mxu0 %v4869
        %v6429 = vpop.f32.mrf.mxu0
        %6430 = vmatmul.f32.gmra.mxu0 %v4871
        %v6431 = vpop.f32.mrf.mxu0
        %v6432 = vadd.f32 0.0, %v6431
        %6433 = vmatmul.f32.gmra.mxu0 %v4873
        %v6434 = vpop.f32.mrf.mxu0
        %v6435 = vadd.f32 0.0, %v6434
        %6436 = vmatmul.f32.gmra.mxu0 %v6233
        %v6437 = vpop.f32.mrf.mxu0
        %v6438 = vadd.f32 0.0, %v6437
        %6439 = vmatmul.f32.gmra.mxu0 %v6235
        %v6440 = vpop.f32.mrf.mxu0
        %v6441 = vadd.f32 0.0, %v6440
        %6442 = vmatmul.f32.gmra.mxu0 %v6237
        %v6443 = vpop.f32.mrf.mxu0
        %6444 = vmatmul.f32.gmra.mxu0 %v6239
        %v6445 = vpop.f32.mrf.mxu0
        %6446 = vmatmul.f32.gmra.mxu0 %v6241
        %v6447 = vpop.f32.mrf.mxu0
        %6448 = vmatmul.f32.gmra.mxu0 %v6243
        %v6449 = vpop.f32.mrf.mxu0
        %6450 = vmatmul.f32.gmra.mxu0 %v6245
        %v6451 = vpop.f32.mrf.mxu0
        %v6452 = vadd.f32 0.0, %v6451
        %6453 = vmatmul.f32.gmra.mxu0 %v6247
        %v6454 = vpop.f32.mrf.mxu0
        %v6455 = vadd.f32 0.0, %v6454
        %6456 = vmatmul.f32.gmra.mxu0 %v6249
        %v6457 = vpop.f32.mrf.mxu0
        %v6458 = vadd.f32 0.0, %v6457
        %6459 = vdwg.mxu0
        %v6460 = vadd.f32 %v6176, %v6272
        %v6461 = vadd.f32 %v6177, %v6275
        %v6462 = vadd.f32 %v6178, %v6278
        %v6463 = vadd.f32 %v6179, %v6281
        %v6464 = vadd.f32 %v6180, %v6292
        %v6465 = vadd.f32 %v6181, %v6295
        %v6466 = vadd.f32 %v6182, %v6298
        %v6467 = vadd.f32 %v6183, %v6301
        %v6468 = vadd.f32 %v6184, %v6312
        %v6469 = vadd.f32 %v6185, %v6315
        %v6470 = vadd.f32 %v6186, %v6318
        %v6471 = vadd.f32 %v6187, %v6321
        %v6472 = vadd.f32 %v6188, %v6332
        %v6473 = vadd.f32 %v6189, %v6335
        %v6474 = vadd.f32 %v6190, %v6338
        %v6475 = vadd.f32 %v6191, %v6341
        %v6476 = vadd.f32 %v6192, %v6352
        %v6477 = vadd.f32 %v6193, %v6355
        %v6478 = vadd.f32 %v6194, %v6358
        %v6479 = vadd.f32 %v6195, %v6361
        %v6480 = vadd.f32 %v6196, %v6372
        %v6481 = vadd.f32 %v6197, %v6375
        %v6482 = vadd.f32 %v6198, %v6378
        %v6483 = vadd.f32 %v6199, %v6381
        %v6484 = vadd.f32 %v6200, %v6392
        %v6485 = vadd.f32 %v6201, %v6395
        %v6486 = vadd.f32 %v6202, %v6398
        %v6487 = vadd.f32 %v6203, %v6401
        %v6488 = vadd.f32 %v6204, %v6412
        %v6489 = vadd.f32 %v6205, %v6415
        %v6490 = vadd.f32 %v6206, %v6418
        %v6491 = vadd.f32 %v6207, %v6421
        %v6492 = vadd.f32 %v6208, %v6432
        %v6493 = vadd.f32 %v6209, %v6435
        %v6494 = vadd.f32 %v6210, %v6438
        %v6495 = vadd.f32 %v6211, %v6441
        %v6496 = vadd.f32 %v6212, %v6452
        %v6497 = vadd.f32 %v6213, %v6455
        %v6498 = vadd.f32 %v6214, %v6458
        %s6499 = scalar_lea.vmem %s3, 104
        %v6500 = vld [vmem:[%s6499] sm:$0x3f]
        %v6502 = vrot.slane %v1960, 6
        %v6503 = vsel %vm3484, %v5142, %v6502
        %v6504 = vrot.slane %v1961, 6
        %v6505 = vsel %vm3484, %v6502, %v6504
        %v6506 = vrot.slane %v1962, 6
        %v6507 = vsel %vm3484, %v6504, %v6506
        %v6508 = vrot.slane %v1963, 6
        %v6509 = vsel %vm3484, %v6506, %v6508
        %v6510 = vrot.slane %v1964, 6
        %v6511 = vsel %vm3484, %v6508, %v6510
        %v6512 = vrot.slane %v1965, 6
        %v6513 = vsel %vm3484, %v6510, %v6512
        %v6514 = vrot.slane %v1966, 6
        %v6515 = vsel %vm3484, %v6512, %v6514
        %v6516 = vrot.slane %v1967, 6
        %v6517 = vsel %vm3484, %v6514, %v6516
        %v6518 = vsel %vm2212, %v6503, 0
        %v6520 = vsel %vm2212, %v6505, 0
        %v6522 = vsel %vm2212, %v6507, 0
        %v6524 = vsel %vm2212, %v6509, 0
        %v6526 = vsel %vm2212, %v6511, 0
        %v6528 = vsel %vm2212, %v6513, 0
        %v6530 = vsel %vm2212, %v6515, 0
        %v6532 = vsel %vm2212, %v6517, 0
        %v6535 = vsel %vm2062, %v6500, 0
        %6537 = vmatpush.msra.mxu0 0.0
        %6538 = vmatpush.msra.mxu0 0.0
        %6539 = vmatpush.msra.mxu0 0.0
        %6540 = vmatpush.msra.mxu0 0.0
        %6541 = vmatpush.msra.mxu0 0.0
        %6542 = vmatpush.msra.mxu0 0.0
        %6543 = vmatpush.msra.mxu0 0.0
        %6544 = vmatpush.msra.mxu0 0.0
        %6545 = vmatpush.msra.mxu0 0.0
        %6546 = vmatpush.msra.mxu0 0.0
        %6547 = vmatpush.msra.mxu0 0.0
        %6548 = vmatpush.msra.mxu0 0.0
        %6549 = vmatpush.msra.mxu0 0.0
        %6550 = vmatpush.msra.mxu0 0.0
        %6551 = vmatpush.msra.mxu0 0.0
        %6552 = vmatpush.msra.mxu0 %v6535
        %6553 = vmatmul.f32.gmra.mxu0 %v3668
        %v6554 = vpop.f32.mrf.mxu0
        %v6555 = vadd.f32 0.0, %v6554
        %6556 = vmatmul.f32.gmra.mxu0 %v3670
        %v6557 = vpop.f32.mrf.mxu0
        %v6558 = vadd.f32 0.0, %v6557
        %6559 = vmatmul.f32.gmra.mxu0 %v3672
        %v6560 = vpop.f32.mrf.mxu0
        %v6561 = vadd.f32 0.0, %v6560
        %6562 = vmatmul.f32.gmra.mxu0 %v3674
        %v6563 = vpop.f32.mrf.mxu0
        %v6564 = vadd.f32 0.0, %v6563
        %6565 = vmatmul.f32.gmra.mxu0 %v3676
        %v6566 = vpop.f32.mrf.mxu0
        %6567 = vmatmul.f32.gmra.mxu0 %v3678
        %v6568 = vpop.f32.mrf.mxu0
        %6569 = vmatmul.f32.gmra.mxu0 %v3680
        %v6570 = vpop.f32.mrf.mxu0
        %6571 = vmatmul.f32.gmra.mxu0 %v3682
        %v6572 = vpop.f32.mrf.mxu0
        %6573 = vmatmul.f32.gmra.mxu0 %v3684
        %v6574 = vpop.f32.mrf.mxu0
        %v6575 = vadd.f32 0.0, %v6574
        %6576 = vmatmul.f32.gmra.mxu0 %v3686
        %v6577 = vpop.f32.mrf.mxu0
        %v6578 = vadd.f32 0.0, %v6577
        %6579 = vmatmul.f32.gmra.mxu0 %v3688
        %v6580 = vpop.f32.mrf.mxu0
        %v6581 = vadd.f32 0.0, %v6580
        %6582 = vmatmul.f32.gmra.mxu0 %v3690
        %v6583 = vpop.f32.mrf.mxu0
        %v6584 = vadd.f32 0.0, %v6583
        %6585 = vmatmul.f32.gmra.mxu0 %v3692
        %v6586 = vpop.f32.mrf.mxu0
        %6587 = vmatmul.f32.gmra.mxu0 %v3694
        %v6588 = vpop.f32.mrf.mxu0
        %6589 = vmatmul.f32.gmra.mxu0 %v3696
        %v6590 = vpop.f32.mrf.mxu0
        %6591 = vmatmul.f32.gmra.mxu0 %v3698
        %v6592 = vpop.f32.mrf.mxu0
        %6593 = vmatmul.f32.gmra.mxu0 %v3700
        %v6594 = vpop.f32.mrf.mxu0
        %v6595 = vadd.f32 0.0, %v6594
        %6596 = vmatmul.f32.gmra.mxu0 %v3702
        %v6597 = vpop.f32.mrf.mxu0
        %v6598 = vadd.f32 0.0, %v6597
        %6599 = vmatmul.f32.gmra.mxu0 %v3704
        %v6600 = vpop.f32.mrf.mxu0
        %v6601 = vadd.f32 0.0, %v6600
        %6602 = vmatmul.f32.gmra.mxu0 %v3706
        %v6603 = vpop.f32.mrf.mxu0
        %v6604 = vadd.f32 0.0, %v6603
        %6605 = vmatmul.f32.gmra.mxu0 %v3708
        %v6606 = vpop.f32.mrf.mxu0
        %6607 = vmatmul.f32.gmra.mxu0 %v3710
        %v6608 = vpop.f32.mrf.mxu0
        %6609 = vmatmul.f32.gmra.mxu0 %v3712
        %v6610 = vpop.f32.mrf.mxu0
        %6611 = vmatmul.f32.gmra.mxu0 %v3714
        %v6612 = vpop.f32.mrf.mxu0
        %6613 = vmatmul.f32.gmra.mxu0 %v3716
        %v6614 = vpop.f32.mrf.mxu0
        %v6615 = vadd.f32 0.0, %v6614
        %6616 = vmatmul.f32.gmra.mxu0 %v3718
        %v6617 = vpop.f32.mrf.mxu0
        %v6618 = vadd.f32 0.0, %v6617
        %6619 = vmatmul.f32.gmra.mxu0 %v3720
        %v6620 = vpop.f32.mrf.mxu0
        %v6621 = vadd.f32 0.0, %v6620
        %6622 = vmatmul.f32.gmra.mxu0 %v3722
        %v6623 = vpop.f32.mrf.mxu0
        %v6624 = vadd.f32 0.0, %v6623
        %6625 = vmatmul.f32.gmra.mxu0 %v3724
        %v6626 = vpop.f32.mrf.mxu0
        %6627 = vmatmul.f32.gmra.mxu0 %v3726
        %v6628 = vpop.f32.mrf.mxu0
        %6629 = vmatmul.f32.gmra.mxu0 %v3728
        %v6630 = vpop.f32.mrf.mxu0
        %6631 = vmatmul.f32.gmra.mxu0 %v3730
        %v6632 = vpop.f32.mrf.mxu0
        %6633 = vmatmul.f32.gmra.mxu0 %v3732
        %v6634 = vpop.f32.mrf.mxu0
        %v6635 = vadd.f32 0.0, %v6634
        %6636 = vmatmul.f32.gmra.mxu0 %v3734
        %v6637 = vpop.f32.mrf.mxu0
        %v6638 = vadd.f32 0.0, %v6637
        %6639 = vmatmul.f32.gmra.mxu0 %v3736
        %v6640 = vpop.f32.mrf.mxu0
        %v6641 = vadd.f32 0.0, %v6640
        %6642 = vmatmul.f32.gmra.mxu0 %v3738
        %v6643 = vpop.f32.mrf.mxu0
        %v6644 = vadd.f32 0.0, %v6643
        %6645 = vmatmul.f32.gmra.mxu0 %v3740
        %v6646 = vpop.f32.mrf.mxu0
        %6647 = vmatmul.f32.gmra.mxu0 %v3742
        %v6648 = vpop.f32.mrf.mxu0
        %6649 = vmatmul.f32.gmra.mxu0 %v3744
        %v6650 = vpop.f32.mrf.mxu0
        %6651 = vmatmul.f32.gmra.mxu0 %v3746
        %v6652 = vpop.f32.mrf.mxu0
        %6653 = vmatmul.f32.gmra.mxu0 %v3748
        %v6654 = vpop.f32.mrf.mxu0
        %v6655 = vadd.f32 0.0, %v6654
        %6656 = vmatmul.f32.gmra.mxu0 %v3750
        %v6657 = vpop.f32.mrf.mxu0
        %v6658 = vadd.f32 0.0, %v6657
        %6659 = vmatmul.f32.gmra.mxu0 %v3752
        %v6660 = vpop.f32.mrf.mxu0
        %v6661 = vadd.f32 0.0, %v6660
        %6662 = vmatmul.f32.gmra.mxu0 %v3754
        %v6663 = vpop.f32.mrf.mxu0
        %v6664 = vadd.f32 0.0, %v6663
        %6665 = vmatmul.f32.gmra.mxu0 %v3756
        %v6666 = vpop.f32.mrf.mxu0
        %6667 = vmatmul.f32.gmra.mxu0 %v3758
        %v6668 = vpop.f32.mrf.mxu0
        %6669 = vmatmul.f32.gmra.mxu0 %v3760
        %v6670 = vpop.f32.mrf.mxu0
        %6671 = vmatmul.f32.gmra.mxu0 %v3762
        %v6672 = vpop.f32.mrf.mxu0
        %6673 = vmatmul.f32.gmra.mxu0 %v3764
        %v6674 = vpop.f32.mrf.mxu0
        %v6675 = vadd.f32 0.0, %v6674
        %6676 = vmatmul.f32.gmra.mxu0 %v3766
        %v6677 = vpop.f32.mrf.mxu0
        %v6678 = vadd.f32 0.0, %v6677
        %6679 = vmatmul.f32.gmra.mxu0 %v3768
        %v6680 = vpop.f32.mrf.mxu0
        %v6681 = vadd.f32 0.0, %v6680
        %6682 = vmatmul.f32.gmra.mxu0 %v3770
        %v6683 = vpop.f32.mrf.mxu0
        %v6684 = vadd.f32 0.0, %v6683
        %6685 = vmatmul.f32.gmra.mxu0 %v3772
        %v6686 = vpop.f32.mrf.mxu0
        %6687 = vmatmul.f32.gmra.mxu0 %v3774
        %v6688 = vpop.f32.mrf.mxu0
        %6689 = vmatmul.f32.gmra.mxu0 %v3776
        %v6690 = vpop.f32.mrf.mxu0
        %6691 = vmatmul.f32.gmra.mxu0 %v3778
        %v6692 = vpop.f32.mrf.mxu0
        %6693 = vmatmul.f32.gmra.mxu0 %v3780
        %v6694 = vpop.f32.mrf.mxu0
        %v6695 = vadd.f32 0.0, %v6694
        %6696 = vmatmul.f32.gmra.mxu0 %v3782
        %v6697 = vpop.f32.mrf.mxu0
        %v6698 = vadd.f32 0.0, %v6697
        %6699 = vmatmul.f32.gmra.mxu0 %v3784
        %v6700 = vpop.f32.mrf.mxu0
        %v6701 = vadd.f32 0.0, %v6700
        %6702 = vmatmul.f32.gmra.mxu0 %v5144
        %v6703 = vpop.f32.mrf.mxu0
        %v6704 = vadd.f32 0.0, %v6703
        %6705 = vmatmul.f32.gmra.mxu0 %v5146
        %v6706 = vpop.f32.mrf.mxu0
        %6707 = vmatmul.f32.gmra.mxu0 %v5148
        %v6708 = vpop.f32.mrf.mxu0
        %6709 = vmatmul.f32.gmra.mxu0 %v5150
        %v6710 = vpop.f32.mrf.mxu0
        %6711 = vmatmul.f32.gmra.mxu0 %v5152
        %v6712 = vpop.f32.mrf.mxu0
        %6713 = vmatmul.f32.gmra.mxu0 %v5154
        %v6714 = vpop.f32.mrf.mxu0
        %v6715 = vadd.f32 0.0, %v6714
        %6716 = vmatmul.f32.gmra.mxu0 %v5156
        %v6717 = vpop.f32.mrf.mxu0
        %v6718 = vadd.f32 0.0, %v6717
        %6719 = vmatmul.f32.gmra.mxu0 %v5158
        %v6720 = vpop.f32.mrf.mxu0
        %v6721 = vadd.f32 0.0, %v6720
        %6722 = vmatmul.f32.gmra.mxu0 %v6518
        %v6723 = vpop.f32.mrf.mxu0
        %v6724 = vadd.f32 0.0, %v6723
        %6725 = vmatmul.f32.gmra.mxu0 %v6520
        %v6726 = vpop.f32.mrf.mxu0
        %6727 = vmatmul.f32.gmra.mxu0 %v6522
        %v6728 = vpop.f32.mrf.mxu0
        %6729 = vmatmul.f32.gmra.mxu0 %v6524
        %v6730 = vpop.f32.mrf.mxu0
        %6731 = vmatmul.f32.gmra.mxu0 %v6526
        %v6732 = vpop.f32.mrf.mxu0
        %6733 = vmatmul.f32.gmra.mxu0 %v6528
        %v6734 = vpop.f32.mrf.mxu0
        %v6735 = vadd.f32 0.0, %v6734
        %6736 = vmatmul.f32.gmra.mxu0 %v6530
        %v6737 = vpop.f32.mrf.mxu0
        %v6738 = vadd.f32 0.0, %v6737
        %6739 = vmatmul.f32.gmra.mxu0 %v6532
        %v6740 = vpop.f32.mrf.mxu0
        %v6741 = vadd.f32 0.0, %v6740
        %6742 = vdwg.mxu0
        %v6743 = vadd.f32 %v6460, %v6555
        %v6744 = vadd.f32 %v6461, %v6558
        %v6745 = vadd.f32 %v6462, %v6561
        %v6746 = vadd.f32 %v6463, %v6564
        %v6747 = vadd.f32 %v6464, %v6575
        %v6748 = vadd.f32 %v6465, %v6578
        %v6749 = vadd.f32 %v6466, %v6581
        %v6750 = vadd.f32 %v6467, %v6584
        %v6751 = vadd.f32 %v6468, %v6595
        %v6752 = vadd.f32 %v6469, %v6598
        %v6753 = vadd.f32 %v6470, %v6601
        %v6754 = vadd.f32 %v6471, %v6604
        %v6755 = vadd.f32 %v6472, %v6615
        %v6756 = vadd.f32 %v6473, %v6618
        %v6757 = vadd.f32 %v6474, %v6621
        %v6758 = vadd.f32 %v6475, %v6624
        %v6759 = vadd.f32 %v6476, %v6635
        %v6760 = vadd.f32 %v6477, %v6638
        %v6761 = vadd.f32 %v6478, %v6641
        %v6762 = vadd.f32 %v6479, %v6644
        %v6763 = vadd.f32 %v6480, %v6655
        %v6764 = vadd.f32 %v6481, %v6658
        %v6765 = vadd.f32 %v6482, %v6661
        %v6766 = vadd.f32 %v6483, %v6664
        %v6767 = vadd.f32 %v6484, %v6675
        %v6768 = vadd.f32 %v6485, %v6678
        %v6769 = vadd.f32 %v6486, %v6681
        %v6770 = vadd.f32 %v6487, %v6684
        %v6771 = vadd.f32 %v6488, %v6695
        %v6772 = vadd.f32 %v6489, %v6698
        %v6773 = vadd.f32 %v6490, %v6701
        %v6774 = vadd.f32 %v6491, %v6704
        %v6775 = vadd.f32 %v6492, %v6715
        %v6776 = vadd.f32 %v6493, %v6718
        %v6777 = vadd.f32 %v6494, %v6721
        %v6778 = vadd.f32 %v6495, %v6724
        %v6779 = vadd.f32 %v6496, %v6735
        %v6780 = vadd.f32 %v6497, %v6738
        %v6781 = vadd.f32 %v6498, %v6741
        %s6782 = scalar_lea.vmem %s3, 112
        %v6783 = vld [vmem:[%s6782] sm:$0x3f]
        %v6784 = vsel %vm2212, %v1967, 0
        %v6787 = vsel %vm2062, %v6783, 0
        %6789 = vmatpush.msra.mxu0 0.0
        %6790 = vmatpush.msra.mxu0 0.0
        %6791 = vmatpush.msra.mxu0 0.0
        %6792 = vmatpush.msra.mxu0 0.0
        %6793 = vmatpush.msra.mxu0 0.0
        %6794 = vmatpush.msra.mxu0 0.0
        %6795 = vmatpush.msra.mxu0 0.0
        %6796 = vmatpush.msra.mxu0 0.0
        %6797 = vmatpush.msra.mxu0 0.0
        %6798 = vmatpush.msra.mxu0 0.0
        %6799 = vmatpush.msra.mxu0 0.0
        %6800 = vmatpush.msra.mxu0 0.0
        %6801 = vmatpush.msra.mxu0 0.0
        %6802 = vmatpush.msra.mxu0 0.0
        %6803 = vmatpush.msra.mxu0 0.0
        %6804 = vmatpush.msra.mxu0 %v6787
        %6805 = vmatmul.f32.gmra.mxu0 %v2606
        %v6806 = vpop.f32.mrf.mxu0
        %v6807 = vadd.f32 0.0, %v6806
        %6808 = vmatmul.f32.gmra.mxu0 %v2608
        %v6809 = vpop.f32.mrf.mxu0
        %v6810 = vadd.f32 0.0, %v6809
        %6811 = vmatmul.f32.gmra.mxu0 %v2610
        %v6812 = vpop.f32.mrf.mxu0
        %v6813 = vadd.f32 0.0, %v6812
        %6814 = vmatmul.f32.gmra.mxu0 %v2612
        %v6815 = vpop.f32.mrf.mxu0
        %v6816 = vadd.f32 0.0, %v6815
        %6817 = vmatmul.f32.gmra.mxu0 %v2614
        %v6818 = vpop.f32.mrf.mxu0
        %6819 = vmatmul.f32.gmra.mxu0 %v2616
        %v6820 = vpop.f32.mrf.mxu0
        %6821 = vmatmul.f32.gmra.mxu0 %v2618
        %v6822 = vpop.f32.mrf.mxu0
        %6823 = vmatmul.f32.gmra.mxu0 %v2620
        %v6824 = vpop.f32.mrf.mxu0
        %6825 = vmatmul.f32.gmra.mxu0 %v2622
        %v6826 = vpop.f32.mrf.mxu0
        %v6827 = vadd.f32 0.0, %v6826
        %6828 = vmatmul.f32.gmra.mxu0 %v2624
        %v6829 = vpop.f32.mrf.mxu0
        %v6830 = vadd.f32 0.0, %v6829
        %6831 = vmatmul.f32.gmra.mxu0 %v2626
        %v6832 = vpop.f32.mrf.mxu0
        %v6833 = vadd.f32 0.0, %v6832
        %6834 = vmatmul.f32.gmra.mxu0 %v2628
        %v6835 = vpop.f32.mrf.mxu0
        %v6836 = vadd.f32 0.0, %v6835
        %6837 = vmatmul.f32.gmra.mxu0 %v2630
        %v6838 = vpop.f32.mrf.mxu0
        %6839 = vmatmul.f32.gmra.mxu0 %v2632
        %v6840 = vpop.f32.mrf.mxu0
        %6841 = vmatmul.f32.gmra.mxu0 %v2634
        %v6842 = vpop.f32.mrf.mxu0
        %6843 = vmatmul.f32.gmra.mxu0 %v2636
        %v6844 = vpop.f32.mrf.mxu0
        %6845 = vmatmul.f32.gmra.mxu0 %v2638
        %v6846 = vpop.f32.mrf.mxu0
        %v6847 = vadd.f32 0.0, %v6846
        %6848 = vmatmul.f32.gmra.mxu0 %v2640
        %v6849 = vpop.f32.mrf.mxu0
        %v6850 = vadd.f32 0.0, %v6849
        %6851 = vmatmul.f32.gmra.mxu0 %v2642
        %v6852 = vpop.f32.mrf.mxu0
        %v6853 = vadd.f32 0.0, %v6852
        %6854 = vmatmul.f32.gmra.mxu0 %v2644
        %v6855 = vpop.f32.mrf.mxu0
        %v6856 = vadd.f32 0.0, %v6855
        %6857 = vmatmul.f32.gmra.mxu0 %v2646
        %v6858 = vpop.f32.mrf.mxu0
        %6859 = vmatmul.f32.gmra.mxu0 %v2648
        %v6860 = vpop.f32.mrf.mxu0
        %6861 = vmatmul.f32.gmra.mxu0 %v2650
        %v6862 = vpop.f32.mrf.mxu0
        %6863 = vmatmul.f32.gmra.mxu0 %v2652
        %v6864 = vpop.f32.mrf.mxu0
        %6865 = vmatmul.f32.gmra.mxu0 %v2654
        %v6866 = vpop.f32.mrf.mxu0
        %v6867 = vadd.f32 0.0, %v6866
        %6868 = vmatmul.f32.gmra.mxu0 %v2656
        %v6869 = vpop.f32.mrf.mxu0
        %v6870 = vadd.f32 0.0, %v6869
        %6871 = vmatmul.f32.gmra.mxu0 %v2658
        %v6872 = vpop.f32.mrf.mxu0
        %v6873 = vadd.f32 0.0, %v6872
        %6874 = vmatmul.f32.gmra.mxu0 %v2660
        %v6875 = vpop.f32.mrf.mxu0
        %v6876 = vadd.f32 0.0, %v6875
        %6877 = vmatmul.f32.gmra.mxu0 %v2662
        %v6878 = vpop.f32.mrf.mxu0
        %6879 = vmatmul.f32.gmra.mxu0 %v2664
        %v6880 = vpop.f32.mrf.mxu0
        %6881 = vmatmul.f32.gmra.mxu0 %v2666
        %v6882 = vpop.f32.mrf.mxu0
        %6883 = vmatmul.f32.gmra.mxu0 %v2668
        %v6884 = vpop.f32.mrf.mxu0
        %6885 = vmatmul.f32.gmra.mxu0 %v2670
        %v6886 = vpop.f32.mrf.mxu0
        %v6887 = vadd.f32 0.0, %v6886
        %6888 = vmatmul.f32.gmra.mxu0 %v2672
        %v6889 = vpop.f32.mrf.mxu0
        %v6890 = vadd.f32 0.0, %v6889
        %6891 = vmatmul.f32.gmra.mxu0 %v2674
        %v6892 = vpop.f32.mrf.mxu0
        %v6893 = vadd.f32 0.0, %v6892
        %6894 = vmatmul.f32.gmra.mxu0 %v2676
        %v6895 = vpop.f32.mrf.mxu0
        %v6896 = vadd.f32 0.0, %v6895
        %6897 = vmatmul.f32.gmra.mxu0 %v2678
        %v6898 = vpop.f32.mrf.mxu0
        %6899 = vmatmul.f32.gmra.mxu0 %v2680
        %v6900 = vpop.f32.mrf.mxu0
        %6901 = vmatmul.f32.gmra.mxu0 %v2682
        %v6902 = vpop.f32.mrf.mxu0
        %6903 = vmatmul.f32.gmra.mxu0 %v2684
        %v6904 = vpop.f32.mrf.mxu0
        %6905 = vmatmul.f32.gmra.mxu0 %v2686
        %v6906 = vpop.f32.mrf.mxu0
        %v6907 = vadd.f32 0.0, %v6906
        %6908 = vmatmul.f32.gmra.mxu0 %v2688
        %v6909 = vpop.f32.mrf.mxu0
        %v6910 = vadd.f32 0.0, %v6909
        %6911 = vmatmul.f32.gmra.mxu0 %v2690
        %v6912 = vpop.f32.mrf.mxu0
        %v6913 = vadd.f32 0.0, %v6912
        %6914 = vmatmul.f32.gmra.mxu0 %v2692
        %v6915 = vpop.f32.mrf.mxu0
        %v6916 = vadd.f32 0.0, %v6915
        %6917 = vmatmul.f32.gmra.mxu0 %v2694
        %v6918 = vpop.f32.mrf.mxu0
        %6919 = vmatmul.f32.gmra.mxu0 %v2696
        %v6920 = vpop.f32.mrf.mxu0
        %6921 = vmatmul.f32.gmra.mxu0 %v2698
        %v6922 = vpop.f32.mrf.mxu0
        %6923 = vmatmul.f32.gmra.mxu0 %v2700
        %v6924 = vpop.f32.mrf.mxu0
        %6925 = vmatmul.f32.gmra.mxu0 %v2702
        %v6926 = vpop.f32.mrf.mxu0
        %v6927 = vadd.f32 0.0, %v6926
        %6928 = vmatmul.f32.gmra.mxu0 %v2704
        %v6929 = vpop.f32.mrf.mxu0
        %v6930 = vadd.f32 0.0, %v6929
        %6931 = vmatmul.f32.gmra.mxu0 %v2706
        %v6932 = vpop.f32.mrf.mxu0
        %v6933 = vadd.f32 0.0, %v6932
        %6934 = vmatmul.f32.gmra.mxu0 %v2708
        %v6935 = vpop.f32.mrf.mxu0
        %v6936 = vadd.f32 0.0, %v6935
        %6937 = vmatmul.f32.gmra.mxu0 %v2710
        %v6938 = vpop.f32.mrf.mxu0
        %6939 = vmatmul.f32.gmra.mxu0 %v2712
        %v6940 = vpop.f32.mrf.mxu0
        %6941 = vmatmul.f32.gmra.mxu0 %v2714
        %v6942 = vpop.f32.mrf.mxu0
        %6943 = vmatmul.f32.gmra.mxu0 %v2716
        %v6944 = vpop.f32.mrf.mxu0
        %6945 = vmatmul.f32.gmra.mxu0 %v2718
        %v6946 = vpop.f32.mrf.mxu0
        %v6947 = vadd.f32 0.0, %v6946
        %6948 = vmatmul.f32.gmra.mxu0 %v2720
        %v6949 = vpop.f32.mrf.mxu0
        %v6950 = vadd.f32 0.0, %v6949
        %6951 = vmatmul.f32.gmra.mxu0 %v4036
        %v6952 = vpop.f32.mrf.mxu0
        %v6953 = vadd.f32 0.0, %v6952
        %6954 = vmatmul.f32.gmra.mxu0 %v4289
        %v6955 = vpop.f32.mrf.mxu0
        %v6956 = vadd.f32 0.0, %v6955
        %6957 = vmatmul.f32.gmra.mxu0 %v4292
        %v6958 = vpop.f32.mrf.mxu0
        %6959 = vmatmul.f32.gmra.mxu0 %v4295
        %v6960 = vpop.f32.mrf.mxu0
        %6961 = vmatmul.f32.gmra.mxu0 %v4298
        %v6962 = vpop.f32.mrf.mxu0
        %6963 = vmatmul.f32.gmra.mxu0 %v4301
        %v6964 = vpop.f32.mrf.mxu0
        %6965 = vmatmul.f32.gmra.mxu0 %v4304
        %v6966 = vpop.f32.mrf.mxu0
        %v6967 = vadd.f32 0.0, %v6966
        %6968 = vmatmul.f32.gmra.mxu0 %v4307
        %v6969 = vpop.f32.mrf.mxu0
        %v6970 = vadd.f32 0.0, %v6969
        %6971 = vmatmul.f32.gmra.mxu0 %v5410
        %v6972 = vpop.f32.mrf.mxu0
        %v6973 = vadd.f32 0.0, %v6972
        %6974 = vmatmul.f32.gmra.mxu0 %v5663
        %v6975 = vpop.f32.mrf.mxu0
        %v6976 = vadd.f32 0.0, %v6975
        %6977 = vmatmul.f32.gmra.mxu0 %v5666
        %v6978 = vpop.f32.mrf.mxu0
        %6979 = vmatmul.f32.gmra.mxu0 %v5669
        %v6980 = vpop.f32.mrf.mxu0
        %6981 = vmatmul.f32.gmra.mxu0 %v5672
        %v6982 = vpop.f32.mrf.mxu0
        %6983 = vmatmul.f32.gmra.mxu0 %v5675
        %v6984 = vpop.f32.mrf.mxu0
        %6985 = vmatmul.f32.gmra.mxu0 %v5678
        %v6986 = vpop.f32.mrf.mxu0
        %v6987 = vadd.f32 0.0, %v6986
        %6988 = vmatmul.f32.gmra.mxu0 %v5681
        %v6989 = vpop.f32.mrf.mxu0
        %v6990 = vadd.f32 0.0, %v6989
        %6991 = vmatmul.f32.gmra.mxu0 %v6784
        %v6992 = vpop.f32.mrf.mxu0
        %v6993 = vadd.f32 0.0, %v6992
        %6994 = vdwg.mxu0
        %v6995 = vadd.f32 %v6743, %v6807
        %v6996 = vadd.f32 %v6744, %v6810
        %v6997 = vadd.f32 %v6745, %v6813
        %v6998 = vadd.f32 %v6746, %v6816
        %v6999 = vadd.f32 %v6747, %v6827
        %v7000 = vadd.f32 %v6748, %v6830
        %v7001 = vadd.f32 %v6749, %v6833
        %v7002 = vadd.f32 %v6750, %v6836
        %v7003 = vadd.f32 %v6751, %v6847
        %v7004 = vadd.f32 %v6752, %v6850
        %v7005 = vadd.f32 %v6753, %v6853
        %v7006 = vadd.f32 %v6754, %v6856
        %v7007 = vadd.f32 %v6755, %v6867
        %v7008 = vadd.f32 %v6756, %v6870
        %v7009 = vadd.f32 %v6757, %v6873
        %v7010 = vadd.f32 %v6758, %v6876
        %v7011 = vadd.f32 %v6759, %v6887
        %v7012 = vadd.f32 %v6760, %v6890
        %v7013 = vadd.f32 %v6761, %v6893
        %v7014 = vadd.f32 %v6762, %v6896
        %v7015 = vadd.f32 %v6763, %v6907
        %v7016 = vadd.f32 %v6764, %v6910
        %v7017 = vadd.f32 %v6765, %v6913
        %v7018 = vadd.f32 %v6766, %v6916
        %v7019 = vadd.f32 %v6767, %v6927
        %v7020 = vadd.f32 %v6768, %v6930
        %v7021 = vadd.f32 %v6769, %v6933
        %v7022 = vadd.f32 %v6770, %v6936
        %v7023 = vadd.f32 %v6771, %v6947
        %v7024 = vadd.f32 %v6772, %v6950
        %v7025 = vadd.f32 %v6773, %v6953
        %v7026 = vadd.f32 %v6774, %v6956
        %v7027 = vadd.f32 %v6775, %v6967
        %v7028 = vadd.f32 %v6776, %v6970
        %v7029 = vadd.f32 %v6777, %v6973
        %v7030 = vadd.f32 %v6778, %v6976
        %v7031 = vadd.f32 %v6779, %v6987
        %v7032 = vadd.f32 %v6780, %v6990
        %v7033 = vadd.f32 %v6781, %v6993
        %s7034 = scalar_lea.vmem %s3, 120
        %v7035 = vld [vmem:[%s7034] sm:$0x3f]
        %v7037 = vsel %vm2212, %v1968, 0
        %v7040 = vsel %vm2212, %v1969, 0
        %v7043 = vsel %vm2212, %v1970, 0
        %v7046 = vsel %vm2212, %v1971, 0
        %v7049 = vsel %vm2212, %v1972, 0
        %v7052 = vsel %vm2212, %v1973, 0
        %v7055 = vsel %vm2212, %v1974, 0
        %v7058 = vsel %vm2062, %v7035, 0
        %7060 = vmatpush.msra.mxu0 0.0
        %7061 = vmatpush.msra.mxu0 0.0
        %7062 = vmatpush.msra.mxu0 0.0
        %7063 = vmatpush.msra.mxu0 0.0
        %7064 = vmatpush.msra.mxu0 0.0
        %7065 = vmatpush.msra.mxu0 0.0
        %7066 = vmatpush.msra.mxu0 0.0
        %7067 = vmatpush.msra.mxu0 0.0
        %7068 = vmatpush.msra.mxu0 0.0
        %7069 = vmatpush.msra.mxu0 0.0
        %7070 = vmatpush.msra.mxu0 0.0
        %7071 = vmatpush.msra.mxu0 0.0
        %7072 = vmatpush.msra.mxu0 0.0
        %7073 = vmatpush.msra.mxu0 0.0
        %7074 = vmatpush.msra.mxu0 0.0
        %7075 = vmatpush.msra.mxu0 %v7058
        %7076 = vmatmul.f32.gmra.mxu0 %v2620
        %v7077 = vpop.f32.mrf.mxu0
        %v7078 = vadd.f32 0.0, %v7077
        %7079 = vmatmul.f32.gmra.mxu0 %v2622
        %v7080 = vpop.f32.mrf.mxu0
        %v7081 = vadd.f32 0.0, %v7080
        %7082 = vmatmul.f32.gmra.mxu0 %v2624
        %v7083 = vpop.f32.mrf.mxu0
        %v7084 = vadd.f32 0.0, %v7083
        %7085 = vmatmul.f32.gmra.mxu0 %v2626
        %v7086 = vpop.f32.mrf.mxu0
        %v7087 = vadd.f32 0.0, %v7086
        %7088 = vmatmul.f32.gmra.mxu0 %v2628
        %v7089 = vpop.f32.mrf.mxu0
        %7090 = vmatmul.f32.gmra.mxu0 %v2630
        %v7091 = vpop.f32.mrf.mxu0
        %7092 = vmatmul.f32.gmra.mxu0 %v2632
        %v7093 = vpop.f32.mrf.mxu0
        %7094 = vmatmul.f32.gmra.mxu0 %v2634
        %v7095 = vpop.f32.mrf.mxu0
        %7096 = vmatmul.f32.gmra.mxu0 %v2636
        %v7097 = vpop.f32.mrf.mxu0
        %v7098 = vadd.f32 0.0, %v7097
        %7099 = vmatmul.f32.gmra.mxu0 %v2638
        %v7100 = vpop.f32.mrf.mxu0
        %v7101 = vadd.f32 0.0, %v7100
        %7102 = vmatmul.f32.gmra.mxu0 %v2640
        %v7103 = vpop.f32.mrf.mxu0
        %v7104 = vadd.f32 0.0, %v7103
        %7105 = vmatmul.f32.gmra.mxu0 %v2642
        %v7106 = vpop.f32.mrf.mxu0
        %v7107 = vadd.f32 0.0, %v7106
        %7108 = vmatmul.f32.gmra.mxu0 %v2644
        %v7109 = vpop.f32.mrf.mxu0
        %7110 = vmatmul.f32.gmra.mxu0 %v2646
        %v7111 = vpop.f32.mrf.mxu0
        %7112 = vmatmul.f32.gmra.mxu0 %v2648
        %v7113 = vpop.f32.mrf.mxu0
        %7114 = vmatmul.f32.gmra.mxu0 %v2650
        %v7115 = vpop.f32.mrf.mxu0
        %7116 = vmatmul.f32.gmra.mxu0 %v2652
        %v7117 = vpop.f32.mrf.mxu0
        %v7118 = vadd.f32 0.0, %v7117
        %7119 = vmatmul.f32.gmra.mxu0 %v2654
        %v7120 = vpop.f32.mrf.mxu0
        %v7121 = vadd.f32 0.0, %v7120
        %7122 = vmatmul.f32.gmra.mxu0 %v2656
        %v7123 = vpop.f32.mrf.mxu0
        %v7124 = vadd.f32 0.0, %v7123
        %7125 = vmatmul.f32.gmra.mxu0 %v2658
        %v7126 = vpop.f32.mrf.mxu0
        %v7127 = vadd.f32 0.0, %v7126
        %7128 = vmatmul.f32.gmra.mxu0 %v2660
        %v7129 = vpop.f32.mrf.mxu0
        %7130 = vmatmul.f32.gmra.mxu0 %v2662
        %v7131 = vpop.f32.mrf.mxu0
        %7132 = vmatmul.f32.gmra.mxu0 %v2664
        %v7133 = vpop.f32.mrf.mxu0
        %7134 = vmatmul.f32.gmra.mxu0 %v2666
        %v7135 = vpop.f32.mrf.mxu0
        %7136 = vmatmul.f32.gmra.mxu0 %v2668
        %v7137 = vpop.f32.mrf.mxu0
        %v7138 = vadd.f32 0.0, %v7137
        %7139 = vmatmul.f32.gmra.mxu0 %v2670
        %v7140 = vpop.f32.mrf.mxu0
        %v7141 = vadd.f32 0.0, %v7140
        %7142 = vmatmul.f32.gmra.mxu0 %v2672
        %v7143 = vpop.f32.mrf.mxu0
        %v7144 = vadd.f32 0.0, %v7143
        %7145 = vmatmul.f32.gmra.mxu0 %v2674
        %v7146 = vpop.f32.mrf.mxu0
        %v7147 = vadd.f32 0.0, %v7146
        %7148 = vmatmul.f32.gmra.mxu0 %v2676
        %v7149 = vpop.f32.mrf.mxu0
        %7150 = vmatmul.f32.gmra.mxu0 %v2678
        %v7151 = vpop.f32.mrf.mxu0
        %7152 = vmatmul.f32.gmra.mxu0 %v2680
        %v7153 = vpop.f32.mrf.mxu0
        %7154 = vmatmul.f32.gmra.mxu0 %v2682
        %v7155 = vpop.f32.mrf.mxu0
        %7156 = vmatmul.f32.gmra.mxu0 %v2684
        %v7157 = vpop.f32.mrf.mxu0
        %v7158 = vadd.f32 0.0, %v7157
        %7159 = vmatmul.f32.gmra.mxu0 %v2686
        %v7160 = vpop.f32.mrf.mxu0
        %v7161 = vadd.f32 0.0, %v7160
        %7162 = vmatmul.f32.gmra.mxu0 %v2688
        %v7163 = vpop.f32.mrf.mxu0
        %v7164 = vadd.f32 0.0, %v7163
        %7165 = vmatmul.f32.gmra.mxu0 %v2690
        %v7166 = vpop.f32.mrf.mxu0
        %v7167 = vadd.f32 0.0, %v7166
        %7168 = vmatmul.f32.gmra.mxu0 %v2692
        %v7169 = vpop.f32.mrf.mxu0
        %7170 = vmatmul.f32.gmra.mxu0 %v2694
        %v7171 = vpop.f32.mrf.mxu0
        %7172 = vmatmul.f32.gmra.mxu0 %v2696
        %v7173 = vpop.f32.mrf.mxu0
        %7174 = vmatmul.f32.gmra.mxu0 %v2698
        %v7175 = vpop.f32.mrf.mxu0
        %7176 = vmatmul.f32.gmra.mxu0 %v2700
        %v7177 = vpop.f32.mrf.mxu0
        %v7178 = vadd.f32 0.0, %v7177
        %7179 = vmatmul.f32.gmra.mxu0 %v2702
        %v7180 = vpop.f32.mrf.mxu0
        %v7181 = vadd.f32 0.0, %v7180
        %7182 = vmatmul.f32.gmra.mxu0 %v2704
        %v7183 = vpop.f32.mrf.mxu0
        %v7184 = vadd.f32 0.0, %v7183
        %7185 = vmatmul.f32.gmra.mxu0 %v2706
        %v7186 = vpop.f32.mrf.mxu0
        %v7187 = vadd.f32 0.0, %v7186
        %7188 = vmatmul.f32.gmra.mxu0 %v2708
        %v7189 = vpop.f32.mrf.mxu0
        %7190 = vmatmul.f32.gmra.mxu0 %v2710
        %v7191 = vpop.f32.mrf.mxu0
        %7192 = vmatmul.f32.gmra.mxu0 %v2712
        %v7193 = vpop.f32.mrf.mxu0
        %7194 = vmatmul.f32.gmra.mxu0 %v2714
        %v7195 = vpop.f32.mrf.mxu0
        %7196 = vmatmul.f32.gmra.mxu0 %v2716
        %v7197 = vpop.f32.mrf.mxu0
        %v7198 = vadd.f32 0.0, %v7197
        %7199 = vmatmul.f32.gmra.mxu0 %v2718
        %v7200 = vpop.f32.mrf.mxu0
        %v7201 = vadd.f32 0.0, %v7200
        %7202 = vmatmul.f32.gmra.mxu0 %v2720
        %v7203 = vpop.f32.mrf.mxu0
        %v7204 = vadd.f32 0.0, %v7203
        %7205 = vmatmul.f32.gmra.mxu0 %v4036
        %v7206 = vpop.f32.mrf.mxu0
        %v7207 = vadd.f32 0.0, %v7206
        %7208 = vmatmul.f32.gmra.mxu0 %v4289
        %v7209 = vpop.f32.mrf.mxu0
        %7210 = vmatmul.f32.gmra.mxu0 %v4292
        %v7211 = vpop.f32.mrf.mxu0
        %7212 = vmatmul.f32.gmra.mxu0 %v4295
        %v7213 = vpop.f32.mrf.mxu0
        %7214 = vmatmul.f32.gmra.mxu0 %v4298
        %v7215 = vpop.f32.mrf.mxu0
        %7216 = vmatmul.f32.gmra.mxu0 %v4301
        %v7217 = vpop.f32.mrf.mxu0
        %v7218 = vadd.f32 0.0, %v7217
        %7219 = vmatmul.f32.gmra.mxu0 %v4304
        %v7220 = vpop.f32.mrf.mxu0
        %v7221 = vadd.f32 0.0, %v7220
        %7222 = vmatmul.f32.gmra.mxu0 %v4307
        %v7223 = vpop.f32.mrf.mxu0
        %v7224 = vadd.f32 0.0, %v7223
        %7225 = vmatmul.f32.gmra.mxu0 %v5410
        %v7226 = vpop.f32.mrf.mxu0
        %v7227 = vadd.f32 0.0, %v7226
        %7228 = vmatmul.f32.gmra.mxu0 %v5663
        %v7229 = vpop.f32.mrf.mxu0
        %7230 = vmatmul.f32.gmra.mxu0 %v5666
        %v7231 = vpop.f32.mrf.mxu0
        %7232 = vmatmul.f32.gmra.mxu0 %v5669
        %v7233 = vpop.f32.mrf.mxu0
        %7234 = vmatmul.f32.gmra.mxu0 %v5672
        %v7235 = vpop.f32.mrf.mxu0
        %7236 = vmatmul.f32.gmra.mxu0 %v5675
        %v7237 = vpop.f32.mrf.mxu0
        %v7238 = vadd.f32 0.0, %v7237
        %7239 = vmatmul.f32.gmra.mxu0 %v5678
        %v7240 = vpop.f32.mrf.mxu0
        %v7241 = vadd.f32 0.0, %v7240
        %7242 = vmatmul.f32.gmra.mxu0 %v5681
        %v7243 = vpop.f32.mrf.mxu0
        %v7244 = vadd.f32 0.0, %v7243
        %7245 = vmatmul.f32.gmra.mxu0 %v6784
        %v7246 = vpop.f32.mrf.mxu0
        %v7247 = vadd.f32 0.0, %v7246
        %7248 = vmatmul.f32.gmra.mxu0 %v7037
        %v7249 = vpop.f32.mrf.mxu0
        %7250 = vmatmul.f32.gmra.mxu0 %v7040
        %v7251 = vpop.f32.mrf.mxu0
        %7252 = vmatmul.f32.gmra.mxu0 %v7043
        %v7253 = vpop.f32.mrf.mxu0
        %7254 = vmatmul.f32.gmra.mxu0 %v7046
        %v7255 = vpop.f32.mrf.mxu0
        %7256 = vmatmul.f32.gmra.mxu0 %v7049
        %v7257 = vpop.f32.mrf.mxu0
        %v7258 = vadd.f32 0.0, %v7257
        %7259 = vmatmul.f32.gmra.mxu0 %v7052
        %v7260 = vpop.f32.mrf.mxu0
        %v7261 = vadd.f32 0.0, %v7260
        %7262 = vmatmul.f32.gmra.mxu0 %v7055
        %v7263 = vpop.f32.mrf.mxu0
        %v7264 = vadd.f32 0.0, %v7263
        %7265 = vdwg.mxu0
        %v7266 = vadd.f32 %v6995, %v7078
        %v7267 = vadd.f32 %v6996, %v7081
        %v7268 = vadd.f32 %v6997, %v7084
        %v7269 = vadd.f32 %v6998, %v7087
        %v7270 = vadd.f32 %v6999, %v7098
        %v7271 = vadd.f32 %v7000, %v7101
        %v7272 = vadd.f32 %v7001, %v7104
        %v7273 = vadd.f32 %v7002, %v7107
        %v7274 = vadd.f32 %v7003, %v7118
        %v7275 = vadd.f32 %v7004, %v7121
        %v7276 = vadd.f32 %v7005, %v7124
        %v7277 = vadd.f32 %v7006, %v7127
        %v7278 = vadd.f32 %v7007, %v7138
        %v7279 = vadd.f32 %v7008, %v7141
        %v7280 = vadd.f32 %v7009, %v7144
        %v7281 = vadd.f32 %v7010, %v7147
        %v7282 = vadd.f32 %v7011, %v7158
        %v7283 = vadd.f32 %v7012, %v7161
        %v7284 = vadd.f32 %v7013, %v7164
        %v7285 = vadd.f32 %v7014, %v7167
        %v7286 = vadd.f32 %v7015, %v7178
        %v7287 = vadd.f32 %v7016, %v7181
        %v7288 = vadd.f32 %v7017, %v7184
        %v7289 = vadd.f32 %v7018, %v7187
        %v7290 = vadd.f32 %v7019, %v7198
        %v7291 = vadd.f32 %v7020, %v7201
        %v7292 = vadd.f32 %v7021, %v7204
        %v7293 = vadd.f32 %v7022, %v7207
        %v7294 = vadd.f32 %v7023, %v7218
        %v7295 = vadd.f32 %v7024, %v7221
        %v7296 = vadd.f32 %v7025, %v7224
        %v7297 = vadd.f32 %v7026, %v7227
        %v7298 = vadd.f32 %v7027, %v7238
        %v7299 = vadd.f32 %v7028, %v7241
        %v7300 = vadd.f32 %v7029, %v7244
        %v7301 = vadd.f32 %v7030, %v7247
        %v7302 = vadd.f32 %v7031, %v7258
        %v7303 = vadd.f32 %v7032, %v7261
        %v7304 = vadd.f32 %v7033, %v7264
        %s7305 = scalar_lea.vmem %s3, 128
        %v7306 = vld [vmem:[%s7305] sm:$0x3f]
        %v7307 = vrot.slane %v1967, 2
        %v7308 = vsel %vm2062, %v5947, %v7307
        %v7309 = vrot.slane %v1968, 2
        %v7310 = vsel %vm2062, %v7307, %v7309
        %v7311 = vrot.slane %v1969, 2
        %v7312 = vsel %vm2062, %v7309, %v7311
        %v7313 = vrot.slane %v1970, 2
        %v7314 = vsel %vm2062, %v7311, %v7313
        %v7315 = vrot.slane %v1971, 2
        %v7316 = vsel %vm2062, %v7313, %v7315
        %v7317 = vrot.slane %v1972, 2
        %v7318 = vsel %vm2062, %v7315, %v7317
        %v7319 = vrot.slane %v1973, 2
        %v7320 = vsel %vm2062, %v7317, %v7319
        %v7321 = vrot.slane %v1974, 2
        %v7322 = vsel %vm2062, %v7319, %v7321
        %v7323 = vsel %vm2212, %v7308, 0
        %v7325 = vsel %vm2212, %v7310, 0
        %v7327 = vsel %vm2212, %v7312, 0
        %v7329 = vsel %vm2212, %v7314, 0
        %v7331 = vsel %vm2212, %v7316, 0
        %v7333 = vsel %vm2212, %v7318, 0
        %v7335 = vsel %vm2212, %v7320, 0
        %v7337 = vsel %vm2212, %v7322, 0
        %v7339 = vsel %vm2212, %v7321, 0
        %v7342 = vsel %vm2062, %v7306, 0
        %7344 = vmatpush.msra.mxu0 0.0
        %7345 = vmatpush.msra.mxu0 0.0
        %7346 = vmatpush.msra.mxu0 0.0
        %7347 = vmatpush.msra.mxu0 0.0
        %7348 = vmatpush.msra.mxu0 0.0
        %7349 = vmatpush.msra.mxu0 0.0
        %7350 = vmatpush.msra.mxu0 0.0
        %7351 = vmatpush.msra.mxu0 0.0
        %7352 = vmatpush.msra.mxu0 0.0
        %7353 = vmatpush.msra.mxu0 0.0
        %7354 = vmatpush.msra.mxu0 0.0
        %7355 = vmatpush.msra.mxu0 0.0
        %7356 = vmatpush.msra.mxu0 0.0
        %7357 = vmatpush.msra.mxu0 0.0
        %7358 = vmatpush.msra.mxu0 0.0
        %7359 = vmatpush.msra.mxu0 %v7342
        %7360 = vmatmul.f32.gmra.mxu0 %v2261
        %v7361 = vpop.f32.mrf.mxu0
        %v7362 = vadd.f32 0.0, %v7361
        %7363 = vmatmul.f32.gmra.mxu0 %v2263
        %v7364 = vpop.f32.mrf.mxu0
        %v7365 = vadd.f32 0.0, %v7364
        %7366 = vmatmul.f32.gmra.mxu0 %v2265
        %v7367 = vpop.f32.mrf.mxu0
        %v7368 = vadd.f32 0.0, %v7367
        %7369 = vmatmul.f32.gmra.mxu0 %v2267
        %v7370 = vpop.f32.mrf.mxu0
        %v7371 = vadd.f32 0.0, %v7370
        %7372 = vmatmul.f32.gmra.mxu0 %v2269
        %v7373 = vpop.f32.mrf.mxu0
        %7374 = vmatmul.f32.gmra.mxu0 %v2271
        %v7375 = vpop.f32.mrf.mxu0
        %7376 = vmatmul.f32.gmra.mxu0 %v2273
        %v7377 = vpop.f32.mrf.mxu0
        %7378 = vmatmul.f32.gmra.mxu0 %v2275
        %v7379 = vpop.f32.mrf.mxu0
        %7380 = vmatmul.f32.gmra.mxu0 %v2277
        %v7381 = vpop.f32.mrf.mxu0
        %v7382 = vadd.f32 0.0, %v7381
        %7383 = vmatmul.f32.gmra.mxu0 %v2279
        %v7384 = vpop.f32.mrf.mxu0
        %v7385 = vadd.f32 0.0, %v7384
        %7386 = vmatmul.f32.gmra.mxu0 %v2281
        %v7387 = vpop.f32.mrf.mxu0
        %v7388 = vadd.f32 0.0, %v7387
        %7389 = vmatmul.f32.gmra.mxu0 %v2283
        %v7390 = vpop.f32.mrf.mxu0
        %v7391 = vadd.f32 0.0, %v7390
        %7392 = vmatmul.f32.gmra.mxu0 %v2285
        %v7393 = vpop.f32.mrf.mxu0
        %7394 = vmatmul.f32.gmra.mxu0 %v2287
        %v7395 = vpop.f32.mrf.mxu0
        %7396 = vmatmul.f32.gmra.mxu0 %v2289
        %v7397 = vpop.f32.mrf.mxu0
        %7398 = vmatmul.f32.gmra.mxu0 %v2291
        %v7399 = vpop.f32.mrf.mxu0
        %7400 = vmatmul.f32.gmra.mxu0 %v2293
        %v7401 = vpop.f32.mrf.mxu0
        %v7402 = vadd.f32 0.0, %v7401
        %7403 = vmatmul.f32.gmra.mxu0 %v2295
        %v7404 = vpop.f32.mrf.mxu0
        %v7405 = vadd.f32 0.0, %v7404
        %7406 = vmatmul.f32.gmra.mxu0 %v2297
        %v7407 = vpop.f32.mrf.mxu0
        %v7408 = vadd.f32 0.0, %v7407
        %7409 = vmatmul.f32.gmra.mxu0 %v2299
        %v7410 = vpop.f32.mrf.mxu0
        %v7411 = vadd.f32 0.0, %v7410
        %7412 = vmatmul.f32.gmra.mxu0 %v2301
        %v7413 = vpop.f32.mrf.mxu0
        %7414 = vmatmul.f32.gmra.mxu0 %v2303
        %v7415 = vpop.f32.mrf.mxu0
        %7416 = vmatmul.f32.gmra.mxu0 %v2305
        %v7417 = vpop.f32.mrf.mxu0
        %7418 = vmatmul.f32.gmra.mxu0 %v2307
        %v7419 = vpop.f32.mrf.mxu0
        %7420 = vmatmul.f32.gmra.mxu0 %v2309
        %v7421 = vpop.f32.mrf.mxu0
        %v7422 = vadd.f32 0.0, %v7421
        %7423 = vmatmul.f32.gmra.mxu0 %v2311
        %v7424 = vpop.f32.mrf.mxu0
        %v7425 = vadd.f32 0.0, %v7424
        %7426 = vmatmul.f32.gmra.mxu0 %v2313
        %v7427 = vpop.f32.mrf.mxu0
        %v7428 = vadd.f32 0.0, %v7427
        %7429 = vmatmul.f32.gmra.mxu0 %v2315
        %v7430 = vpop.f32.mrf.mxu0
        %v7431 = vadd.f32 0.0, %v7430
        %7432 = vmatmul.f32.gmra.mxu0 %v2317
        %v7433 = vpop.f32.mrf.mxu0
        %7434 = vmatmul.f32.gmra.mxu0 %v2319
        %v7435 = vpop.f32.mrf.mxu0
        %7436 = vmatmul.f32.gmra.mxu0 %v2321
        %v7437 = vpop.f32.mrf.mxu0
        %7438 = vmatmul.f32.gmra.mxu0 %v2323
        %v7439 = vpop.f32.mrf.mxu0
        %7440 = vmatmul.f32.gmra.mxu0 %v2325
        %v7441 = vpop.f32.mrf.mxu0
        %v7442 = vadd.f32 0.0, %v7441
        %7443 = vmatmul.f32.gmra.mxu0 %v2327
        %v7444 = vpop.f32.mrf.mxu0
        %v7445 = vadd.f32 0.0, %v7444
        %7446 = vmatmul.f32.gmra.mxu0 %v2329
        %v7447 = vpop.f32.mrf.mxu0
        %v7448 = vadd.f32 0.0, %v7447
        %7449 = vmatmul.f32.gmra.mxu0 %v2331
        %v7450 = vpop.f32.mrf.mxu0
        %v7451 = vadd.f32 0.0, %v7450
        %7452 = vmatmul.f32.gmra.mxu0 %v2333
        %v7453 = vpop.f32.mrf.mxu0
        %7454 = vmatmul.f32.gmra.mxu0 %v2335
        %v7455 = vpop.f32.mrf.mxu0
        %7456 = vmatmul.f32.gmra.mxu0 %v2337
        %v7457 = vpop.f32.mrf.mxu0
        %7458 = vmatmul.f32.gmra.mxu0 %v2339
        %v7459 = vpop.f32.mrf.mxu0
        %7460 = vmatmul.f32.gmra.mxu0 %v2341
        %v7461 = vpop.f32.mrf.mxu0
        %v7462 = vadd.f32 0.0, %v7461
        %7463 = vmatmul.f32.gmra.mxu0 %v2343
        %v7464 = vpop.f32.mrf.mxu0
        %v7465 = vadd.f32 0.0, %v7464
        %7466 = vmatmul.f32.gmra.mxu0 %v2345
        %v7467 = vpop.f32.mrf.mxu0
        %v7468 = vadd.f32 0.0, %v7467
        %7469 = vmatmul.f32.gmra.mxu0 %v2347
        %v7470 = vpop.f32.mrf.mxu0
        %v7471 = vadd.f32 0.0, %v7470
        %7472 = vmatmul.f32.gmra.mxu0 %v2349
        %v7473 = vpop.f32.mrf.mxu0
        %7474 = vmatmul.f32.gmra.mxu0 %v2351
        %v7475 = vpop.f32.mrf.mxu0
        %7476 = vmatmul.f32.gmra.mxu0 %v2353
        %v7477 = vpop.f32.mrf.mxu0
        %7478 = vmatmul.f32.gmra.mxu0 %v2355
        %v7479 = vpop.f32.mrf.mxu0
        %7480 = vmatmul.f32.gmra.mxu0 %v2357
        %v7481 = vpop.f32.mrf.mxu0
        %v7482 = vadd.f32 0.0, %v7481
        %7483 = vmatmul.f32.gmra.mxu0 %v2359
        %v7484 = vpop.f32.mrf.mxu0
        %v7485 = vadd.f32 0.0, %v7484
        %7486 = vmatmul.f32.gmra.mxu0 %v4575
        %v7487 = vpop.f32.mrf.mxu0
        %v7488 = vadd.f32 0.0, %v7487
        %7489 = vmatmul.f32.gmra.mxu0 %v4577
        %v7490 = vpop.f32.mrf.mxu0
        %v7491 = vadd.f32 0.0, %v7490
        %7492 = vmatmul.f32.gmra.mxu0 %v4579
        %v7493 = vpop.f32.mrf.mxu0
        %7494 = vmatmul.f32.gmra.mxu0 %v4581
        %v7495 = vpop.f32.mrf.mxu0
        %7496 = vmatmul.f32.gmra.mxu0 %v4583
        %v7497 = vpop.f32.mrf.mxu0
        %7498 = vmatmul.f32.gmra.mxu0 %v4585
        %v7499 = vpop.f32.mrf.mxu0
        %7500 = vmatmul.f32.gmra.mxu0 %v4587
        %v7501 = vpop.f32.mrf.mxu0
        %v7502 = vadd.f32 0.0, %v7501
        %7503 = vmatmul.f32.gmra.mxu0 %v4589
        %v7504 = vpop.f32.mrf.mxu0
        %v7505 = vadd.f32 0.0, %v7504
        %7506 = vmatmul.f32.gmra.mxu0 %v5949
        %v7507 = vpop.f32.mrf.mxu0
        %v7508 = vadd.f32 0.0, %v7507
        %7509 = vmatmul.f32.gmra.mxu0 %v5951
        %v7510 = vpop.f32.mrf.mxu0
        %v7511 = vadd.f32 0.0, %v7510
        %7512 = vmatmul.f32.gmra.mxu0 %v5953
        %v7513 = vpop.f32.mrf.mxu0
        %7514 = vmatmul.f32.gmra.mxu0 %v5955
        %v7515 = vpop.f32.mrf.mxu0
        %7516 = vmatmul.f32.gmra.mxu0 %v5957
        %v7517 = vpop.f32.mrf.mxu0
        %7518 = vmatmul.f32.gmra.mxu0 %v5959
        %v7519 = vpop.f32.mrf.mxu0
        %7520 = vmatmul.f32.gmra.mxu0 %v5961
        %v7521 = vpop.f32.mrf.mxu0
        %v7522 = vadd.f32 0.0, %v7521
        %7523 = vmatmul.f32.gmra.mxu0 %v5963
        %v7524 = vpop.f32.mrf.mxu0
        %v7525 = vadd.f32 0.0, %v7524
        %7526 = vmatmul.f32.gmra.mxu0 %v7323
        %v7527 = vpop.f32.mrf.mxu0
        %v7528 = vadd.f32 0.0, %v7527
        %7529 = vmatmul.f32.gmra.mxu0 %v7325
        %v7530 = vpop.f32.mrf.mxu0
        %v7531 = vadd.f32 0.0, %v7530
        %7532 = vmatmul.f32.gmra.mxu0 %v7327
        %v7533 = vpop.f32.mrf.mxu0
        %7534 = vmatmul.f32.gmra.mxu0 %v7329
        %v7535 = vpop.f32.mrf.mxu0
        %7536 = vmatmul.f32.gmra.mxu0 %v7331
        %v7537 = vpop.f32.mrf.mxu0
        %7538 = vmatmul.f32.gmra.mxu0 %v7333
        %v7539 = vpop.f32.mrf.mxu0
        %7540 = vmatmul.f32.gmra.mxu0 %v7335
        %v7541 = vpop.f32.mrf.mxu0
        %v7542 = vadd.f32 0.0, %v7541
        %7543 = vmatmul.f32.gmra.mxu0 %v7337
        %v7544 = vpop.f32.mrf.mxu0
        %v7545 = vadd.f32 0.0, %v7544
        %7546 = vmatmul.f32.gmra.mxu0 %v7339
        %v7547 = vpop.f32.mrf.mxu0
        %v7548 = vadd.f32 0.0, %v7547
        %7549 = vdwg.mxu0
        %v7550 = vadd.f32 %v7266, %v7362
        %v7551 = vadd.f32 %v7267, %v7365
        %v7552 = vadd.f32 %v7268, %v7368
        %v7553 = vadd.f32 %v7269, %v7371
        %v7554 = vadd.f32 %v7270, %v7382
        %v7555 = vadd.f32 %v7271, %v7385
        %v7556 = vadd.f32 %v7272, %v7388
        %v7557 = vadd.f32 %v7273, %v7391
        %v7558 = vadd.f32 %v7274, %v7402
        %v7559 = vadd.f32 %v7275, %v7405
        %v7560 = vadd.f32 %v7276, %v7408
        %v7561 = vadd.f32 %v7277, %v7411
        %v7562 = vadd.f32 %v7278, %v7422
        %v7563 = vadd.f32 %v7279, %v7425
        %v7564 = vadd.f32 %v7280, %v7428
        %v7565 = vadd.f32 %v7281, %v7431
        %v7566 = vadd.f32 %v7282, %v7442
        %v7567 = vadd.f32 %v7283, %v7445
        %v7568 = vadd.f32 %v7284, %v7448
        %v7569 = vadd.f32 %v7285, %v7451
        %v7570 = vadd.f32 %v7286, %v7462
        %v7571 = vadd.f32 %v7287, %v7465
        %v7572 = vadd.f32 %v7288, %v7468
        %v7573 = vadd.f32 %v7289, %v7471
        %v7574 = vadd.f32 %v7290, %v7482
        %v7575 = vadd.f32 %v7291, %v7485
        %v7576 = vadd.f32 %v7292, %v7488
        %v7577 = vadd.f32 %v7293, %v7491
        %v7578 = vadd.f32 %v7294, %v7502
        %v7579 = vadd.f32 %v7295, %v7505
        %v7580 = vadd.f32 %v7296, %v7508
        %v7581 = vadd.f32 %v7297, %v7511
        %v7582 = vadd.f32 %v7298, %v7522
        %v7583 = vadd.f32 %v7299, %v7525
        %v7584 = vadd.f32 %v7300, %v7528
        %v7585 = vadd.f32 %v7301, %v7531
        %v7586 = vadd.f32 %v7302, %v7542
        %v7587 = vadd.f32 %v7303, %v7545
        %v7588 = vadd.f32 %v7304, %v7548
        %s7589 = scalar_lea.vmem %s3, 136
        %v7590 = vld [vmem:[%s7589] sm:$0x3f]
        %v7591 = vrot.slane %v1967, 4
        %v7592 = vsel %vm2933, %v6231, %v7591
        %v7593 = vrot.slane %v1968, 4
        %v7594 = vsel %vm2933, %v7591, %v7593
        %v7595 = vrot.slane %v1969, 4
        %v7596 = vsel %vm2933, %v7593, %v7595
        %v7597 = vrot.slane %v1970, 4
        %v7598 = vsel %vm2933, %v7595, %v7597
        %v7599 = vrot.slane %v1971, 4
        %v7600 = vsel %vm2933, %v7597, %v7599
        %v7601 = vrot.slane %v1972, 4
        %v7602 = vsel %vm2933, %v7599, %v7601
        %v7603 = vrot.slane %v1973, 4
        %v7604 = vsel %vm2933, %v7601, %v7603
        %v7605 = vrot.slane %v1974, 4
        %v7606 = vsel %vm2933, %v7603, %v7605
        %v7607 = vsel %vm2212, %v7592, 0
        %v7609 = vsel %vm2212, %v7594, 0
        %v7611 = vsel %vm2212, %v7596, 0
        %v7613 = vsel %vm2212, %v7598, 0
        %v7615 = vsel %vm2212, %v7600, 0
        %v7617 = vsel %vm2212, %v7602, 0
        %v7619 = vsel %vm2212, %v7604, 0
        %v7621 = vsel %vm2212, %v7606, 0
        %v7623 = vsel %vm2212, %v7605, 0
        %v7626 = vsel %vm2062, %v7590, 0
        %7628 = vmatpush.msra.mxu0 0.0
        %7629 = vmatpush.msra.mxu0 0.0
        %7630 = vmatpush.msra.mxu0 0.0
        %7631 = vmatpush.msra.mxu0 0.0
        %7632 = vmatpush.msra.mxu0 0.0
        %7633 = vmatpush.msra.mxu0 0.0
        %7634 = vmatpush.msra.mxu0 0.0
        %7635 = vmatpush.msra.mxu0 0.0
        %7636 = vmatpush.msra.mxu0 0.0
        %7637 = vmatpush.msra.mxu0 0.0
        %7638 = vmatpush.msra.mxu0 0.0
        %7639 = vmatpush.msra.mxu0 0.0
        %7640 = vmatpush.msra.mxu0 0.0
        %7641 = vmatpush.msra.mxu0 0.0
        %7642 = vmatpush.msra.mxu0 0.0
        %7643 = vmatpush.msra.mxu0 %v7626
        %7644 = vmatmul.f32.gmra.mxu0 %v3131
        %v7645 = vpop.f32.mrf.mxu0
        %v7646 = vadd.f32 0.0, %v7645
        %7647 = vmatmul.f32.gmra.mxu0 %v3133
        %v7648 = vpop.f32.mrf.mxu0
        %v7649 = vadd.f32 0.0, %v7648
        %7650 = vmatmul.f32.gmra.mxu0 %v3135
        %v7651 = vpop.f32.mrf.mxu0
        %v7652 = vadd.f32 0.0, %v7651
        %7653 = vmatmul.f32.gmra.mxu0 %v3137
        %v7654 = vpop.f32.mrf.mxu0
        %v7655 = vadd.f32 0.0, %v7654
        %7656 = vmatmul.f32.gmra.mxu0 %v3139
        %v7657 = vpop.f32.mrf.mxu0
        %7658 = vmatmul.f32.gmra.mxu0 %v3141
        %v7659 = vpop.f32.mrf.mxu0
        %7660 = vmatmul.f32.gmra.mxu0 %v3143
        %v7661 = vpop.f32.mrf.mxu0
        %7662 = vmatmul.f32.gmra.mxu0 %v3145
        %v7663 = vpop.f32.mrf.mxu0
        %7664 = vmatmul.f32.gmra.mxu0 %v3147
        %v7665 = vpop.f32.mrf.mxu0
        %v7666 = vadd.f32 0.0, %v7665
        %7667 = vmatmul.f32.gmra.mxu0 %v3149
        %v7668 = vpop.f32.mrf.mxu0
        %v7669 = vadd.f32 0.0, %v7668
        %7670 = vmatmul.f32.gmra.mxu0 %v3151
        %v7671 = vpop.f32.mrf.mxu0
        %v7672 = vadd.f32 0.0, %v7671
        %7673 = vmatmul.f32.gmra.mxu0 %v3153
        %v7674 = vpop.f32.mrf.mxu0
        %v7675 = vadd.f32 0.0, %v7674
        %7676 = vmatmul.f32.gmra.mxu0 %v3155
        %v7677 = vpop.f32.mrf.mxu0
        %7678 = vmatmul.f32.gmra.mxu0 %v3157
        %v7679 = vpop.f32.mrf.mxu0
        %7680 = vmatmul.f32.gmra.mxu0 %v3159
        %v7681 = vpop.f32.mrf.mxu0
        %7682 = vmatmul.f32.gmra.mxu0 %v3161
        %v7683 = vpop.f32.mrf.mxu0
        %7684 = vmatmul.f32.gmra.mxu0 %v3163
        %v7685 = vpop.f32.mrf.mxu0
        %v7686 = vadd.f32 0.0, %v7685
        %7687 = vmatmul.f32.gmra.mxu0 %v3165
        %v7688 = vpop.f32.mrf.mxu0
        %v7689 = vadd.f32 0.0, %v7688
        %7690 = vmatmul.f32.gmra.mxu0 %v3167
        %v7691 = vpop.f32.mrf.mxu0
        %v7692 = vadd.f32 0.0, %v7691
        %7693 = vmatmul.f32.gmra.mxu0 %v3169
        %v7694 = vpop.f32.mrf.mxu0
        %v7695 = vadd.f32 0.0, %v7694
        %7696 = vmatmul.f32.gmra.mxu0 %v3171
        %v7697 = vpop.f32.mrf.mxu0
        %7698 = vmatmul.f32.gmra.mxu0 %v3173
        %v7699 = vpop.f32.mrf.mxu0
        %7700 = vmatmul.f32.gmra.mxu0 %v3175
        %v7701 = vpop.f32.mrf.mxu0
        %7702 = vmatmul.f32.gmra.mxu0 %v3177
        %v7703 = vpop.f32.mrf.mxu0
        %7704 = vmatmul.f32.gmra.mxu0 %v3179
        %v7705 = vpop.f32.mrf.mxu0
        %v7706 = vadd.f32 0.0, %v7705
        %7707 = vmatmul.f32.gmra.mxu0 %v3181
        %v7708 = vpop.f32.mrf.mxu0
        %v7709 = vadd.f32 0.0, %v7708
        %7710 = vmatmul.f32.gmra.mxu0 %v3183
        %v7711 = vpop.f32.mrf.mxu0
        %v7712 = vadd.f32 0.0, %v7711
        %7713 = vmatmul.f32.gmra.mxu0 %v3185
        %v7714 = vpop.f32.mrf.mxu0
        %v7715 = vadd.f32 0.0, %v7714
        %7716 = vmatmul.f32.gmra.mxu0 %v3187
        %v7717 = vpop.f32.mrf.mxu0
        %7718 = vmatmul.f32.gmra.mxu0 %v3189
        %v7719 = vpop.f32.mrf.mxu0
        %7720 = vmatmul.f32.gmra.mxu0 %v3191
        %v7721 = vpop.f32.mrf.mxu0
        %7722 = vmatmul.f32.gmra.mxu0 %v3193
        %v7723 = vpop.f32.mrf.mxu0
        %7724 = vmatmul.f32.gmra.mxu0 %v3195
        %v7725 = vpop.f32.mrf.mxu0
        %v7726 = vadd.f32 0.0, %v7725
        %7727 = vmatmul.f32.gmra.mxu0 %v3197
        %v7728 = vpop.f32.mrf.mxu0
        %v7729 = vadd.f32 0.0, %v7728
        %7730 = vmatmul.f32.gmra.mxu0 %v3199
        %v7731 = vpop.f32.mrf.mxu0
        %v7732 = vadd.f32 0.0, %v7731
        %7733 = vmatmul.f32.gmra.mxu0 %v3201
        %v7734 = vpop.f32.mrf.mxu0
        %v7735 = vadd.f32 0.0, %v7734
        %7736 = vmatmul.f32.gmra.mxu0 %v3203
        %v7737 = vpop.f32.mrf.mxu0
        %7738 = vmatmul.f32.gmra.mxu0 %v3205
        %v7739 = vpop.f32.mrf.mxu0
        %7740 = vmatmul.f32.gmra.mxu0 %v3207
        %v7741 = vpop.f32.mrf.mxu0
        %7742 = vmatmul.f32.gmra.mxu0 %v3209
        %v7743 = vpop.f32.mrf.mxu0
        %7744 = vmatmul.f32.gmra.mxu0 %v3211
        %v7745 = vpop.f32.mrf.mxu0
        %v7746 = vadd.f32 0.0, %v7745
        %7747 = vmatmul.f32.gmra.mxu0 %v3213
        %v7748 = vpop.f32.mrf.mxu0
        %v7749 = vadd.f32 0.0, %v7748
        %7750 = vmatmul.f32.gmra.mxu0 %v3215
        %v7751 = vpop.f32.mrf.mxu0
        %v7752 = vadd.f32 0.0, %v7751
        %7753 = vmatmul.f32.gmra.mxu0 %v3217
        %v7754 = vpop.f32.mrf.mxu0
        %v7755 = vadd.f32 0.0, %v7754
        %7756 = vmatmul.f32.gmra.mxu0 %v3219
        %v7757 = vpop.f32.mrf.mxu0
        %7758 = vmatmul.f32.gmra.mxu0 %v3221
        %v7759 = vpop.f32.mrf.mxu0
        %7760 = vmatmul.f32.gmra.mxu0 %v3223
        %v7761 = vpop.f32.mrf.mxu0
        %7762 = vmatmul.f32.gmra.mxu0 %v3225
        %v7763 = vpop.f32.mrf.mxu0
        %7764 = vmatmul.f32.gmra.mxu0 %v3227
        %v7765 = vpop.f32.mrf.mxu0
        %v7766 = vadd.f32 0.0, %v7765
        %7767 = vmatmul.f32.gmra.mxu0 %v3229
        %v7768 = vpop.f32.mrf.mxu0
        %v7769 = vadd.f32 0.0, %v7768
        %7770 = vmatmul.f32.gmra.mxu0 %v4859
        %v7771 = vpop.f32.mrf.mxu0
        %v7772 = vadd.f32 0.0, %v7771
        %7773 = vmatmul.f32.gmra.mxu0 %v4861
        %v7774 = vpop.f32.mrf.mxu0
        %v7775 = vadd.f32 0.0, %v7774
        %7776 = vmatmul.f32.gmra.mxu0 %v4863
        %v7777 = vpop.f32.mrf.mxu0
        %7778 = vmatmul.f32.gmra.mxu0 %v4865
        %v7779 = vpop.f32.mrf.mxu0
        %7780 = vmatmul.f32.gmra.mxu0 %v4867
        %v7781 = vpop.f32.mrf.mxu0
        %7782 = vmatmul.f32.gmra.mxu0 %v4869
        %v7783 = vpop.f32.mrf.mxu0
        %7784 = vmatmul.f32.gmra.mxu0 %v4871
        %v7785 = vpop.f32.mrf.mxu0
        %v7786 = vadd.f32 0.0, %v7785
        %7787 = vmatmul.f32.gmra.mxu0 %v4873
        %v7788 = vpop.f32.mrf.mxu0
        %v7789 = vadd.f32 0.0, %v7788
        %7790 = vmatmul.f32.gmra.mxu0 %v6233
        %v7791 = vpop.f32.mrf.mxu0
        %v7792 = vadd.f32 0.0, %v7791
        %7793 = vmatmul.f32.gmra.mxu0 %v6235
        %v7794 = vpop.f32.mrf.mxu0
        %v7795 = vadd.f32 0.0, %v7794
        %7796 = vmatmul.f32.gmra.mxu0 %v6237
        %v7797 = vpop.f32.mrf.mxu0
        %7798 = vmatmul.f32.gmra.mxu0 %v6239
        %v7799 = vpop.f32.mrf.mxu0
        %7800 = vmatmul.f32.gmra.mxu0 %v6241
        %v7801 = vpop.f32.mrf.mxu0
        %7802 = vmatmul.f32.gmra.mxu0 %v6243
        %v7803 = vpop.f32.mrf.mxu0
        %7804 = vmatmul.f32.gmra.mxu0 %v6245
        %v7805 = vpop.f32.mrf.mxu0
        %v7806 = vadd.f32 0.0, %v7805
        %7807 = vmatmul.f32.gmra.mxu0 %v6247
        %v7808 = vpop.f32.mrf.mxu0
        %v7809 = vadd.f32 0.0, %v7808
        %7810 = vmatmul.f32.gmra.mxu0 %v7607
        %v7811 = vpop.f32.mrf.mxu0
        %v7812 = vadd.f32 0.0, %v7811
        %7813 = vmatmul.f32.gmra.mxu0 %v7609
        %v7814 = vpop.f32.mrf.mxu0
        %v7815 = vadd.f32 0.0, %v7814
        %7816 = vmatmul.f32.gmra.mxu0 %v7611
        %v7817 = vpop.f32.mrf.mxu0
        %7818 = vmatmul.f32.gmra.mxu0 %v7613
        %v7819 = vpop.f32.mrf.mxu0
        %7820 = vmatmul.f32.gmra.mxu0 %v7615
        %v7821 = vpop.f32.mrf.mxu0
        %7822 = vmatmul.f32.gmra.mxu0 %v7617
        %v7823 = vpop.f32.mrf.mxu0
        %7824 = vmatmul.f32.gmra.mxu0 %v7619
        %v7825 = vpop.f32.mrf.mxu0
        %v7826 = vadd.f32 0.0, %v7825
        %7827 = vmatmul.f32.gmra.mxu0 %v7621
        %v7828 = vpop.f32.mrf.mxu0
        %v7829 = vadd.f32 0.0, %v7828
        %7830 = vmatmul.f32.gmra.mxu0 %v7623
        %v7831 = vpop.f32.mrf.mxu0
        %v7832 = vadd.f32 0.0, %v7831
        %7833 = vdwg.mxu0
        %v7834 = vadd.f32 %v7550, %v7646
        %v7835 = vadd.f32 %v7551, %v7649
        %v7836 = vadd.f32 %v7552, %v7652
        %v7837 = vadd.f32 %v7553, %v7655
        %v7838 = vadd.f32 %v7554, %v7666
        %v7839 = vadd.f32 %v7555, %v7669
        %v7840 = vadd.f32 %v7556, %v7672
        %v7841 = vadd.f32 %v7557, %v7675
        %v7842 = vadd.f32 %v7558, %v7686
        %v7843 = vadd.f32 %v7559, %v7689
        %v7844 = vadd.f32 %v7560, %v7692
        %v7845 = vadd.f32 %v7561, %v7695
        %v7846 = vadd.f32 %v7562, %v7706
        %v7847 = vadd.f32 %v7563, %v7709
        %v7848 = vadd.f32 %v7564, %v7712
        %v7849 = vadd.f32 %v7565, %v7715
        %v7850 = vadd.f32 %v7566, %v7726
        %v7851 = vadd.f32 %v7567, %v7729
        %v7852 = vadd.f32 %v7568, %v7732
        %v7853 = vadd.f32 %v7569, %v7735
        %v7854 = vadd.f32 %v7570, %v7746
        %v7855 = vadd.f32 %v7571, %v7749
        %v7856 = vadd.f32 %v7572, %v7752
        %v7857 = vadd.f32 %v7573, %v7755
        %v7858 = vadd.f32 %v7574, %v7766
        %v7859 = vadd.f32 %v7575, %v7769
        %v7860 = vadd.f32 %v7576, %v7772
        %v7861 = vadd.f32 %v7577, %v7775
        %v7862 = vadd.f32 %v7578, %v7786
        %v7863 = vadd.f32 %v7579, %v7789
        %v7864 = vadd.f32 %v7580, %v7792
        %v7865 = vadd.f32 %v7581, %v7795
        %v7866 = vadd.f32 %v7582, %v7806
        %v7867 = vadd.f32 %v7583, %v7809
        %v7868 = vadd.f32 %v7584, %v7812
        %v7869 = vadd.f32 %v7585, %v7815
        %v7870 = vadd.f32 %v7586, %v7826
        %v7871 = vadd.f32 %v7587, %v7829
        %v7872 = vadd.f32 %v7588, %v7832
        %s7873 = scalar_lea.vmem %s3, 144
        %v7874 = vld [vmem:[%s7873] sm:$0x3f]
        %v7876 = vrot.slane %v1968, 6
        %v7877 = vsel %vm3484, %v6516, %v7876
        %v7878 = vrot.slane %v1969, 6
        %v7879 = vsel %vm3484, %v7876, %v7878
        %v7880 = vrot.slane %v1970, 6
        %v7881 = vsel %vm3484, %v7878, %v7880
        %v7882 = vrot.slane %v1971, 6
        %v7883 = vsel %vm3484, %v7880, %v7882
        %v7884 = vrot.slane %v1972, 6
        %v7885 = vsel %vm3484, %v7882, %v7884
        %v7886 = vrot.slane %v1973, 6
        %v7887 = vsel %vm3484, %v7884, %v7886
        %v7888 = vrot.slane %v1974, 6
        %v7889 = vsel %vm3484, %v7886, %v7888
        %v7890 = vrot.slane %v1975, 6
        %v7891 = vsel %vm3484, %v7888, %v7890
        %v7892 = vsel %vm2212, %v7877, 0
        %v7894 = vsel %vm2212, %v7879, 0
        %v7896 = vsel %vm2212, %v7881, 0
        %v7898 = vsel %vm2212, %v7883, 0
        %v7900 = vsel %vm2212, %v7885, 0
        %v7902 = vsel %vm2212, %v7887, 0
        %v7904 = vsel %vm2212, %v7889, 0
        %v7906 = vsel %vm2212, %v7891, 0
        %v7909 = vsel %vm2062, %v7874, 0
        %7911 = vmatpush.msra.mxu0 0.0
        %7912 = vmatpush.msra.mxu0 0.0
        %7913 = vmatpush.msra.mxu0 0.0
        %7914 = vmatpush.msra.mxu0 0.0
        %7915 = vmatpush.msra.mxu0 0.0
        %7916 = vmatpush.msra.mxu0 0.0
        %7917 = vmatpush.msra.mxu0 0.0
        %7918 = vmatpush.msra.mxu0 0.0
        %7919 = vmatpush.msra.mxu0 0.0
        %7920 = vmatpush.msra.mxu0 0.0
        %7921 = vmatpush.msra.mxu0 0.0
        %7922 = vmatpush.msra.mxu0 0.0
        %7923 = vmatpush.msra.mxu0 0.0
        %7924 = vmatpush.msra.mxu0 0.0
        %7925 = vmatpush.msra.mxu0 0.0
        %7926 = vmatpush.msra.mxu0 %v7909
        %7927 = vmatmul.f32.gmra.mxu0 %v3684
        %v7928 = vpop.f32.mrf.mxu0
        %v7929 = vadd.f32 0.0, %v7928
        %7930 = vmatmul.f32.gmra.mxu0 %v3686
        %v7931 = vpop.f32.mrf.mxu0
        %v7932 = vadd.f32 0.0, %v7931
        %7933 = vmatmul.f32.gmra.mxu0 %v3688
        %v7934 = vpop.f32.mrf.mxu0
        %v7935 = vadd.f32 0.0, %v7934
        %7936 = vmatmul.f32.gmra.mxu0 %v3690
        %v7937 = vpop.f32.mrf.mxu0
        %v7938 = vadd.f32 0.0, %v7937
        %7939 = vmatmul.f32.gmra.mxu0 %v3692
        %v7940 = vpop.f32.mrf.mxu0
        %7941 = vmatmul.f32.gmra.mxu0 %v3694
        %v7942 = vpop.f32.mrf.mxu0
        %7943 = vmatmul.f32.gmra.mxu0 %v3696
        %v7944 = vpop.f32.mrf.mxu0
        %7945 = vmatmul.f32.gmra.mxu0 %v3698
        %v7946 = vpop.f32.mrf.mxu0
        %7947 = vmatmul.f32.gmra.mxu0 %v3700
        %v7948 = vpop.f32.mrf.mxu0
        %v7949 = vadd.f32 0.0, %v7948
        %7950 = vmatmul.f32.gmra.mxu0 %v3702
        %v7951 = vpop.f32.mrf.mxu0
        %v7952 = vadd.f32 0.0, %v7951
        %7953 = vmatmul.f32.gmra.mxu0 %v3704
        %v7954 = vpop.f32.mrf.mxu0
        %v7955 = vadd.f32 0.0, %v7954
        %7956 = vmatmul.f32.gmra.mxu0 %v3706
        %v7957 = vpop.f32.mrf.mxu0
        %v7958 = vadd.f32 0.0, %v7957
        %7959 = vmatmul.f32.gmra.mxu0 %v3708
        %v7960 = vpop.f32.mrf.mxu0
        %7961 = vmatmul.f32.gmra.mxu0 %v3710
        %v7962 = vpop.f32.mrf.mxu0
        %7963 = vmatmul.f32.gmra.mxu0 %v3712
        %v7964 = vpop.f32.mrf.mxu0
        %7965 = vmatmul.f32.gmra.mxu0 %v3714
        %v7966 = vpop.f32.mrf.mxu0
        %7967 = vmatmul.f32.gmra.mxu0 %v3716
        %v7968 = vpop.f32.mrf.mxu0
        %v7969 = vadd.f32 0.0, %v7968
        %7970 = vmatmul.f32.gmra.mxu0 %v3718
        %v7971 = vpop.f32.mrf.mxu0
        %v7972 = vadd.f32 0.0, %v7971
        %7973 = vmatmul.f32.gmra.mxu0 %v3720
        %v7974 = vpop.f32.mrf.mxu0
        %v7975 = vadd.f32 0.0, %v7974
        %7976 = vmatmul.f32.gmra.mxu0 %v3722
        %v7977 = vpop.f32.mrf.mxu0
        %v7978 = vadd.f32 0.0, %v7977
        %7979 = vmatmul.f32.gmra.mxu0 %v3724
        %v7980 = vpop.f32.mrf.mxu0
        %7981 = vmatmul.f32.gmra.mxu0 %v3726
        %v7982 = vpop.f32.mrf.mxu0
        %7983 = vmatmul.f32.gmra.mxu0 %v3728
        %v7984 = vpop.f32.mrf.mxu0
        %7985 = vmatmul.f32.gmra.mxu0 %v3730
        %v7986 = vpop.f32.mrf.mxu0
        %7987 = vmatmul.f32.gmra.mxu0 %v3732
        %v7988 = vpop.f32.mrf.mxu0
        %v7989 = vadd.f32 0.0, %v7988
        %7990 = vmatmul.f32.gmra.mxu0 %v3734
        %v7991 = vpop.f32.mrf.mxu0
        %v7992 = vadd.f32 0.0, %v7991
        %7993 = vmatmul.f32.gmra.mxu0 %v3736
        %v7994 = vpop.f32.mrf.mxu0
        %v7995 = vadd.f32 0.0, %v7994
        %7996 = vmatmul.f32.gmra.mxu0 %v3738
        %v7997 = vpop.f32.mrf.mxu0
        %v7998 = vadd.f32 0.0, %v7997
        %7999 = vmatmul.f32.gmra.mxu0 %v3740
        %v8000 = vpop.f32.mrf.mxu0
        %8001 = vmatmul.f32.gmra.mxu0 %v3742
        %v8002 = vpop.f32.mrf.mxu0
        %8003 = vmatmul.f32.gmra.mxu0 %v3744
        %v8004 = vpop.f32.mrf.mxu0
        %8005 = vmatmul.f32.gmra.mxu0 %v3746
        %v8006 = vpop.f32.mrf.mxu0
        %8007 = vmatmul.f32.gmra.mxu0 %v3748
        %v8008 = vpop.f32.mrf.mxu0
        %v8009 = vadd.f32 0.0, %v8008
        %8010 = vmatmul.f32.gmra.mxu0 %v3750
        %v8011 = vpop.f32.mrf.mxu0
        %v8012 = vadd.f32 0.0, %v8011
        %8013 = vmatmul.f32.gmra.mxu0 %v3752
        %v8014 = vpop.f32.mrf.mxu0
        %v8015 = vadd.f32 0.0, %v8014
        %8016 = vmatmul.f32.gmra.mxu0 %v3754
        %v8017 = vpop.f32.mrf.mxu0
        %v8018 = vadd.f32 0.0, %v8017
        %8019 = vmatmul.f32.gmra.mxu0 %v3756
        %v8020 = vpop.f32.mrf.mxu0
        %8021 = vmatmul.f32.gmra.mxu0 %v3758
        %v8022 = vpop.f32.mrf.mxu0
        %8023 = vmatmul.f32.gmra.mxu0 %v3760
        %v8024 = vpop.f32.mrf.mxu0
        %8025 = vmatmul.f32.gmra.mxu0 %v3762
        %v8026 = vpop.f32.mrf.mxu0
        %8027 = vmatmul.f32.gmra.mxu0 %v3764
        %v8028 = vpop.f32.mrf.mxu0
        %v8029 = vadd.f32 0.0, %v8028
        %8030 = vmatmul.f32.gmra.mxu0 %v3766
        %v8031 = vpop.f32.mrf.mxu0
        %v8032 = vadd.f32 0.0, %v8031
        %8033 = vmatmul.f32.gmra.mxu0 %v3768
        %v8034 = vpop.f32.mrf.mxu0
        %v8035 = vadd.f32 0.0, %v8034
        %8036 = vmatmul.f32.gmra.mxu0 %v3770
        %v8037 = vpop.f32.mrf.mxu0
        %v8038 = vadd.f32 0.0, %v8037
        %8039 = vmatmul.f32.gmra.mxu0 %v3772
        %v8040 = vpop.f32.mrf.mxu0
        %8041 = vmatmul.f32.gmra.mxu0 %v3774
        %v8042 = vpop.f32.mrf.mxu0
        %8043 = vmatmul.f32.gmra.mxu0 %v3776
        %v8044 = vpop.f32.mrf.mxu0
        %8045 = vmatmul.f32.gmra.mxu0 %v3778
        %v8046 = vpop.f32.mrf.mxu0
        %8047 = vmatmul.f32.gmra.mxu0 %v3780
        %v8048 = vpop.f32.mrf.mxu0
        %v8049 = vadd.f32 0.0, %v8048
        %8050 = vmatmul.f32.gmra.mxu0 %v3782
        %v8051 = vpop.f32.mrf.mxu0
        %v8052 = vadd.f32 0.0, %v8051
        %8053 = vmatmul.f32.gmra.mxu0 %v3784
        %v8054 = vpop.f32.mrf.mxu0
        %v8055 = vadd.f32 0.0, %v8054
        %8056 = vmatmul.f32.gmra.mxu0 %v5144
        %v8057 = vpop.f32.mrf.mxu0
        %v8058 = vadd.f32 0.0, %v8057
        %8059 = vmatmul.f32.gmra.mxu0 %v5146
        %v8060 = vpop.f32.mrf.mxu0
        %8061 = vmatmul.f32.gmra.mxu0 %v5148
        %v8062 = vpop.f32.mrf.mxu0
        %8063 = vmatmul.f32.gmra.mxu0 %v5150
        %v8064 = vpop.f32.mrf.mxu0
        %8065 = vmatmul.f32.gmra.mxu0 %v5152
        %v8066 = vpop.f32.mrf.mxu0
        %8067 = vmatmul.f32.gmra.mxu0 %v5154
        %v8068 = vpop.f32.mrf.mxu0
        %v8069 = vadd.f32 0.0, %v8068
        %8070 = vmatmul.f32.gmra.mxu0 %v5156
        %v8071 = vpop.f32.mrf.mxu0
        %v8072 = vadd.f32 0.0, %v8071
        %8073 = vmatmul.f32.gmra.mxu0 %v5158
        %v8074 = vpop.f32.mrf.mxu0
        %v8075 = vadd.f32 0.0, %v8074
        %8076 = vmatmul.f32.gmra.mxu0 %v6518
        %v8077 = vpop.f32.mrf.mxu0
        %v8078 = vadd.f32 0.0, %v8077
        %8079 = vmatmul.f32.gmra.mxu0 %v6520
        %v8080 = vpop.f32.mrf.mxu0
        %8081 = vmatmul.f32.gmra.mxu0 %v6522
        %v8082 = vpop.f32.mrf.mxu0
        %8083 = vmatmul.f32.gmra.mxu0 %v6524
        %v8084 = vpop.f32.mrf.mxu0
        %8085 = vmatmul.f32.gmra.mxu0 %v6526
        %v8086 = vpop.f32.mrf.mxu0
        %8087 = vmatmul.f32.gmra.mxu0 %v6528
        %v8088 = vpop.f32.mrf.mxu0
        %v8089 = vadd.f32 0.0, %v8088
        %8090 = vmatmul.f32.gmra.mxu0 %v6530
        %v8091 = vpop.f32.mrf.mxu0
        %v8092 = vadd.f32 0.0, %v8091
        %8093 = vmatmul.f32.gmra.mxu0 %v6532
        %v8094 = vpop.f32.mrf.mxu0
        %v8095 = vadd.f32 0.0, %v8094
        %8096 = vmatmul.f32.gmra.mxu0 %v7892
        %v8097 = vpop.f32.mrf.mxu0
        %v8098 = vadd.f32 0.0, %v8097
        %8099 = vmatmul.f32.gmra.mxu0 %v7894
        %v8100 = vpop.f32.mrf.mxu0
        %8101 = vmatmul.f32.gmra.mxu0 %v7896
        %v8102 = vpop.f32.mrf.mxu0
        %8103 = vmatmul.f32.gmra.mxu0 %v7898
        %v8104 = vpop.f32.mrf.mxu0
        %8105 = vmatmul.f32.gmra.mxu0 %v7900
        %v8106 = vpop.f32.mrf.mxu0
        %8107 = vmatmul.f32.gmra.mxu0 %v7902
        %v8108 = vpop.f32.mrf.mxu0
        %v8109 = vadd.f32 0.0, %v8108
        %8110 = vmatmul.f32.gmra.mxu0 %v7904
        %v8111 = vpop.f32.mrf.mxu0
        %v8112 = vadd.f32 0.0, %v8111
        %8113 = vmatmul.f32.gmra.mxu0 %v7906
        %v8114 = vpop.f32.mrf.mxu0
        %v8115 = vadd.f32 0.0, %v8114
        %8116 = vdwg.mxu0
        %v8117 = vadd.f32 %v7834, %v7929
        %v8118 = vadd.f32 %v7835, %v7932
        %v8119 = vadd.f32 %v7836, %v7935
        %v8120 = vadd.f32 %v7837, %v7938
        %v8121 = vadd.f32 %v7838, %v7949
        %v8122 = vadd.f32 %v7839, %v7952
        %v8123 = vadd.f32 %v7840, %v7955
        %v8124 = vadd.f32 %v7841, %v7958
        %v8125 = vadd.f32 %v7842, %v7969
        %v8126 = vadd.f32 %v7843, %v7972
        %v8127 = vadd.f32 %v7844, %v7975
        %v8128 = vadd.f32 %v7845, %v7978
        %v8129 = vadd.f32 %v7846, %v7989
        %v8130 = vadd.f32 %v7847, %v7992
        %v8131 = vadd.f32 %v7848, %v7995
        %v8132 = vadd.f32 %v7849, %v7998
        %v8133 = vadd.f32 %v7850, %v8009
        %v8134 = vadd.f32 %v7851, %v8012
        %v8135 = vadd.f32 %v7852, %v8015
        %v8136 = vadd.f32 %v7853, %v8018
        %v8137 = vadd.f32 %v7854, %v8029
        %v8138 = vadd.f32 %v7855, %v8032
        %v8139 = vadd.f32 %v7856, %v8035
        %v8140 = vadd.f32 %v7857, %v8038
        %v8141 = vadd.f32 %v7858, %v8049
        %v8142 = vadd.f32 %v7859, %v8052
        %v8143 = vadd.f32 %v7860, %v8055
        %v8144 = vadd.f32 %v7861, %v8058
        %v8145 = vadd.f32 %v7862, %v8069
        %v8146 = vadd.f32 %v7863, %v8072
        %v8147 = vadd.f32 %v7864, %v8075
        %v8148 = vadd.f32 %v7865, %v8078
        %v8149 = vadd.f32 %v7866, %v8089
        %v8150 = vadd.f32 %v7867, %v8092
        %v8151 = vadd.f32 %v7868, %v8095
        %v8152 = vadd.f32 %v7869, %v8098
        %v8153 = vadd.f32 %v7870, %v8109
        %v8154 = vadd.f32 %v7871, %v8112
        %v8155 = vadd.f32 %v7872, %v8115
        %s8156 = scalar_lea.vmem %s3, 152
        %v8157 = vld [vmem:[%s8156] sm:$0x3f]
        %v8158 = vsel %vm2212, %v1975, 0
        %v8161 = vsel %vm2062, %v8157, 0
        %8163 = vmatpush.msra.mxu0 0.0
        %8164 = vmatpush.msra.mxu0 0.0
        %8165 = vmatpush.msra.mxu0 0.0
        %8166 = vmatpush.msra.mxu0 0.0
        %8167 = vmatpush.msra.mxu0 0.0
        %8168 = vmatpush.msra.mxu0 0.0
        %8169 = vmatpush.msra.mxu0 0.0
        %8170 = vmatpush.msra.mxu0 0.0
        %8171 = vmatpush.msra.mxu0 0.0
        %8172 = vmatpush.msra.mxu0 0.0
        %8173 = vmatpush.msra.mxu0 0.0
        %8174 = vmatpush.msra.mxu0 0.0
        %8175 = vmatpush.msra.mxu0 0.0
        %8176 = vmatpush.msra.mxu0 0.0
        %8177 = vmatpush.msra.mxu0 0.0
        %8178 = vmatpush.msra.mxu0 %v8161
        %8179 = vmatmul.f32.gmra.mxu0 %v2622
        %v8180 = vpop.f32.mrf.mxu0
        %v8181 = vadd.f32 0.0, %v8180
        %8182 = vmatmul.f32.gmra.mxu0 %v2624
        %v8183 = vpop.f32.mrf.mxu0
        %v8184 = vadd.f32 0.0, %v8183
        %8185 = vmatmul.f32.gmra.mxu0 %v2626
        %v8186 = vpop.f32.mrf.mxu0
        %v8187 = vadd.f32 0.0, %v8186
        %8188 = vmatmul.f32.gmra.mxu0 %v2628
        %v8189 = vpop.f32.mrf.mxu0
        %v8190 = vadd.f32 0.0, %v8189
        %8191 = vmatmul.f32.gmra.mxu0 %v2630
        %v8192 = vpop.f32.mrf.mxu0
        %8193 = vmatmul.f32.gmra.mxu0 %v2632
        %v8194 = vpop.f32.mrf.mxu0
        %8195 = vmatmul.f32.gmra.mxu0 %v2634
        %v8196 = vpop.f32.mrf.mxu0
        %8197 = vmatmul.f32.gmra.mxu0 %v2636
        %v8198 = vpop.f32.mrf.mxu0
        %8199 = vmatmul.f32.gmra.mxu0 %v2638
        %v8200 = vpop.f32.mrf.mxu0
        %v8201 = vadd.f32 0.0, %v8200
        %8202 = vmatmul.f32.gmra.mxu0 %v2640
        %v8203 = vpop.f32.mrf.mxu0
        %v8204 = vadd.f32 0.0, %v8203
        %8205 = vmatmul.f32.gmra.mxu0 %v2642
        %v8206 = vpop.f32.mrf.mxu0
        %v8207 = vadd.f32 0.0, %v8206
        %8208 = vmatmul.f32.gmra.mxu0 %v2644
        %v8209 = vpop.f32.mrf.mxu0
        %v8210 = vadd.f32 0.0, %v8209
        %8211 = vmatmul.f32.gmra.mxu0 %v2646
        %v8212 = vpop.f32.mrf.mxu0
        %8213 = vmatmul.f32.gmra.mxu0 %v2648
        %v8214 = vpop.f32.mrf.mxu0
        %8215 = vmatmul.f32.gmra.mxu0 %v2650
        %v8216 = vpop.f32.mrf.mxu0
        %8217 = vmatmul.f32.gmra.mxu0 %v2652
        %v8218 = vpop.f32.mrf.mxu0
        %8219 = vmatmul.f32.gmra.mxu0 %v2654
        %v8220 = vpop.f32.mrf.mxu0
        %v8221 = vadd.f32 0.0, %v8220
        %8222 = vmatmul.f32.gmra.mxu0 %v2656
        %v8223 = vpop.f32.mrf.mxu0
        %v8224 = vadd.f32 0.0, %v8223
        %8225 = vmatmul.f32.gmra.mxu0 %v2658
        %v8226 = vpop.f32.mrf.mxu0
        %v8227 = vadd.f32 0.0, %v8226
        %8228 = vmatmul.f32.gmra.mxu0 %v2660
        %v8229 = vpop.f32.mrf.mxu0
        %v8230 = vadd.f32 0.0, %v8229
        %8231 = vmatmul.f32.gmra.mxu0 %v2662
        %v8232 = vpop.f32.mrf.mxu0
        %8233 = vmatmul.f32.gmra.mxu0 %v2664
        %v8234 = vpop.f32.mrf.mxu0
        %8235 = vmatmul.f32.gmra.mxu0 %v2666
        %v8236 = vpop.f32.mrf.mxu0
        %8237 = vmatmul.f32.gmra.mxu0 %v2668
        %v8238 = vpop.f32.mrf.mxu0
        %8239 = vmatmul.f32.gmra.mxu0 %v2670
        %v8240 = vpop.f32.mrf.mxu0
        %v8241 = vadd.f32 0.0, %v8240
        %8242 = vmatmul.f32.gmra.mxu0 %v2672
        %v8243 = vpop.f32.mrf.mxu0
        %v8244 = vadd.f32 0.0, %v8243
        %8245 = vmatmul.f32.gmra.mxu0 %v2674
        %v8246 = vpop.f32.mrf.mxu0
        %v8247 = vadd.f32 0.0, %v8246
        %8248 = vmatmul.f32.gmra.mxu0 %v2676
        %v8249 = vpop.f32.mrf.mxu0
        %v8250 = vadd.f32 0.0, %v8249
        %8251 = vmatmul.f32.gmra.mxu0 %v2678
        %v8252 = vpop.f32.mrf.mxu0
        %8253 = vmatmul.f32.gmra.mxu0 %v2680
        %v8254 = vpop.f32.mrf.mxu0
        %8255 = vmatmul.f32.gmra.mxu0 %v2682
        %v8256 = vpop.f32.mrf.mxu0
        %8257 = vmatmul.f32.gmra.mxu0 %v2684
        %v8258 = vpop.f32.mrf.mxu0
        %8259 = vmatmul.f32.gmra.mxu0 %v2686
        %v8260 = vpop.f32.mrf.mxu0
        %v8261 = vadd.f32 0.0, %v8260
        %8262 = vmatmul.f32.gmra.mxu0 %v2688
        %v8263 = vpop.f32.mrf.mxu0
        %v8264 = vadd.f32 0.0, %v8263
        %8265 = vmatmul.f32.gmra.mxu0 %v2690
        %v8266 = vpop.f32.mrf.mxu0
        %v8267 = vadd.f32 0.0, %v8266
        %8268 = vmatmul.f32.gmra.mxu0 %v2692
        %v8269 = vpop.f32.mrf.mxu0
        %v8270 = vadd.f32 0.0, %v8269
        %8271 = vmatmul.f32.gmra.mxu0 %v2694
        %v8272 = vpop.f32.mrf.mxu0
        %8273 = vmatmul.f32.gmra.mxu0 %v2696
        %v8274 = vpop.f32.mrf.mxu0
        %8275 = vmatmul.f32.gmra.mxu0 %v2698
        %v8276 = vpop.f32.mrf.mxu0
        %8277 = vmatmul.f32.gmra.mxu0 %v2700
        %v8278 = vpop.f32.mrf.mxu0
        %8279 = vmatmul.f32.gmra.mxu0 %v2702
        %v8280 = vpop.f32.mrf.mxu0
        %v8281 = vadd.f32 0.0, %v8280
        %8282 = vmatmul.f32.gmra.mxu0 %v2704
        %v8283 = vpop.f32.mrf.mxu0
        %v8284 = vadd.f32 0.0, %v8283
        %8285 = vmatmul.f32.gmra.mxu0 %v2706
        %v8286 = vpop.f32.mrf.mxu0
        %v8287 = vadd.f32 0.0, %v8286
        %8288 = vmatmul.f32.gmra.mxu0 %v2708
        %v8289 = vpop.f32.mrf.mxu0
        %v8290 = vadd.f32 0.0, %v8289
        %8291 = vmatmul.f32.gmra.mxu0 %v2710
        %v8292 = vpop.f32.mrf.mxu0
        %8293 = vmatmul.f32.gmra.mxu0 %v2712
        %v8294 = vpop.f32.mrf.mxu0
        %8295 = vmatmul.f32.gmra.mxu0 %v2714
        %v8296 = vpop.f32.mrf.mxu0
        %8297 = vmatmul.f32.gmra.mxu0 %v2716
        %v8298 = vpop.f32.mrf.mxu0
        %8299 = vmatmul.f32.gmra.mxu0 %v2718
        %v8300 = vpop.f32.mrf.mxu0
        %v8301 = vadd.f32 0.0, %v8300
        %8302 = vmatmul.f32.gmra.mxu0 %v2720
        %v8303 = vpop.f32.mrf.mxu0
        %v8304 = vadd.f32 0.0, %v8303
        %8305 = vmatmul.f32.gmra.mxu0 %v4036
        %v8306 = vpop.f32.mrf.mxu0
        %v8307 = vadd.f32 0.0, %v8306
        %8308 = vmatmul.f32.gmra.mxu0 %v4289
        %v8309 = vpop.f32.mrf.mxu0
        %v8310 = vadd.f32 0.0, %v8309
        %8311 = vmatmul.f32.gmra.mxu0 %v4292
        %v8312 = vpop.f32.mrf.mxu0
        %8313 = vmatmul.f32.gmra.mxu0 %v4295
        %v8314 = vpop.f32.mrf.mxu0
        %8315 = vmatmul.f32.gmra.mxu0 %v4298
        %v8316 = vpop.f32.mrf.mxu0
        %8317 = vmatmul.f32.gmra.mxu0 %v4301
        %v8318 = vpop.f32.mrf.mxu0
        %8319 = vmatmul.f32.gmra.mxu0 %v4304
        %v8320 = vpop.f32.mrf.mxu0
        %v8321 = vadd.f32 0.0, %v8320
        %8322 = vmatmul.f32.gmra.mxu0 %v4307
        %v8323 = vpop.f32.mrf.mxu0
        %v8324 = vadd.f32 0.0, %v8323
        %8325 = vmatmul.f32.gmra.mxu0 %v5410
        %v8326 = vpop.f32.mrf.mxu0
        %v8327 = vadd.f32 0.0, %v8326
        %8328 = vmatmul.f32.gmra.mxu0 %v5663
        %v8329 = vpop.f32.mrf.mxu0
        %v8330 = vadd.f32 0.0, %v8329
        %8331 = vmatmul.f32.gmra.mxu0 %v5666
        %v8332 = vpop.f32.mrf.mxu0
        %8333 = vmatmul.f32.gmra.mxu0 %v5669
        %v8334 = vpop.f32.mrf.mxu0
        %8335 = vmatmul.f32.gmra.mxu0 %v5672
        %v8336 = vpop.f32.mrf.mxu0
        %8337 = vmatmul.f32.gmra.mxu0 %v5675
        %v8338 = vpop.f32.mrf.mxu0
        %8339 = vmatmul.f32.gmra.mxu0 %v5678
        %v8340 = vpop.f32.mrf.mxu0
        %v8341 = vadd.f32 0.0, %v8340
        %8342 = vmatmul.f32.gmra.mxu0 %v5681
        %v8343 = vpop.f32.mrf.mxu0
        %v8344 = vadd.f32 0.0, %v8343
        %8345 = vmatmul.f32.gmra.mxu0 %v6784
        %v8346 = vpop.f32.mrf.mxu0
        %v8347 = vadd.f32 0.0, %v8346
        %8348 = vmatmul.f32.gmra.mxu0 %v7037
        %v8349 = vpop.f32.mrf.mxu0
        %v8350 = vadd.f32 0.0, %v8349
        %8351 = vmatmul.f32.gmra.mxu0 %v7040
        %v8352 = vpop.f32.mrf.mxu0
        %8353 = vmatmul.f32.gmra.mxu0 %v7043
        %v8354 = vpop.f32.mrf.mxu0
        %8355 = vmatmul.f32.gmra.mxu0 %v7046
        %v8356 = vpop.f32.mrf.mxu0
        %8357 = vmatmul.f32.gmra.mxu0 %v7049
        %v8358 = vpop.f32.mrf.mxu0
        %8359 = vmatmul.f32.gmra.mxu0 %v7052
        %v8360 = vpop.f32.mrf.mxu0
        %v8361 = vadd.f32 0.0, %v8360
        %8362 = vmatmul.f32.gmra.mxu0 %v7055
        %v8363 = vpop.f32.mrf.mxu0
        %v8364 = vadd.f32 0.0, %v8363
        %8365 = vmatmul.f32.gmra.mxu0 %v8158
        %v8366 = vpop.f32.mrf.mxu0
        %v8367 = vadd.f32 0.0, %v8366
        %8368 = vdwg.mxu0
        %v8369 = vadd.f32 %v8117, %v8181
        %v8370 = vadd.f32 %v8118, %v8184
        %v8371 = vadd.f32 %v8119, %v8187
        %v8372 = vadd.f32 %v8120, %v8190
        %v8373 = vadd.f32 %v8121, %v8201
        %v8374 = vadd.f32 %v8122, %v8204
        %v8375 = vadd.f32 %v8123, %v8207
        %v8376 = vadd.f32 %v8124, %v8210
        %v8377 = vadd.f32 %v8125, %v8221
        %v8378 = vadd.f32 %v8126, %v8224
        %v8379 = vadd.f32 %v8127, %v8227
        %v8380 = vadd.f32 %v8128, %v8230
        %v8381 = vadd.f32 %v8129, %v8241
        %v8382 = vadd.f32 %v8130, %v8244
        %v8383 = vadd.f32 %v8131, %v8247
        %v8384 = vadd.f32 %v8132, %v8250
        %v8385 = vadd.f32 %v8133, %v8261
        %v8386 = vadd.f32 %v8134, %v8264
        %v8387 = vadd.f32 %v8135, %v8267
        %v8388 = vadd.f32 %v8136, %v8270
        %v8389 = vadd.f32 %v8137, %v8281
        %v8390 = vadd.f32 %v8138, %v8284
        %v8391 = vadd.f32 %v8139, %v8287
        %v8392 = vadd.f32 %v8140, %v8290
        %v8393 = vadd.f32 %v8141, %v8301
        %v8394 = vadd.f32 %v8142, %v8304
        %v8395 = vadd.f32 %v8143, %v8307
        %v8396 = vadd.f32 %v8144, %v8310
        %v8397 = vadd.f32 %v8145, %v8321
        %v8398 = vadd.f32 %v8146, %v8324
        %v8399 = vadd.f32 %v8147, %v8327
        %v8400 = vadd.f32 %v8148, %v8330
        %v8401 = vadd.f32 %v8149, %v8341
        %v8402 = vadd.f32 %v8150, %v8344
        %v8403 = vadd.f32 %v8151, %v8347
        %v8404 = vadd.f32 %v8152, %v8350
        %v8405 = vadd.f32 %v8153, %v8361
        %v8406 = vadd.f32 %v8154, %v8364
        %v8407 = vadd.f32 %v8155, %v8367
        %s8408 = scalar_lea.vmem %s3, 160
        %v8409 = vld [vmem:[%s8408] sm:$0x3f]
        %v8411 = vsel %vm2212, %v1976, 0
        %v8414 = vsel %vm2212, %v1977, 0
        %v8417 = vsel %vm2212, %v1978, 0
        %v8420 = vsel %vm2212, %v1979, 0
        %v8423 = vsel %vm2212, %v1980, 0
        %v8426 = vsel %vm2212, %v1981, 0
        %v8429 = vsel %vm2212, %v1982, 0
        %v8432 = vsel %vm2062, %v8409, 0
        %8434 = vmatpush.msra.mxu0 0.0
        %8435 = vmatpush.msra.mxu0 0.0
        %8436 = vmatpush.msra.mxu0 0.0
        %8437 = vmatpush.msra.mxu0 0.0
        %8438 = vmatpush.msra.mxu0 0.0
        %8439 = vmatpush.msra.mxu0 0.0
        %8440 = vmatpush.msra.mxu0 0.0
        %8441 = vmatpush.msra.mxu0 0.0
        %8442 = vmatpush.msra.mxu0 0.0
        %8443 = vmatpush.msra.mxu0 0.0
        %8444 = vmatpush.msra.mxu0 0.0
        %8445 = vmatpush.msra.mxu0 0.0
        %8446 = vmatpush.msra.mxu0 0.0
        %8447 = vmatpush.msra.mxu0 0.0
        %8448 = vmatpush.msra.mxu0 0.0
        %8449 = vmatpush.msra.mxu0 %v8432
        %8450 = vmatmul.f32.gmra.mxu0 %v2636
        %v8451 = vpop.f32.mrf.mxu0
        %v8452 = vadd.f32 0.0, %v8451
        %8453 = vmatmul.f32.gmra.mxu0 %v2638
        %v8454 = vpop.f32.mrf.mxu0
        %v8455 = vadd.f32 0.0, %v8454
        %8456 = vmatmul.f32.gmra.mxu0 %v2640
        %v8457 = vpop.f32.mrf.mxu0
        %v8458 = vadd.f32 0.0, %v8457
        %8459 = vmatmul.f32.gmra.mxu0 %v2642
        %v8460 = vpop.f32.mrf.mxu0
        %v8461 = vadd.f32 0.0, %v8460
        %8462 = vmatmul.f32.gmra.mxu0 %v2644
        %v8463 = vpop.f32.mrf.mxu0
        %8464 = vmatmul.f32.gmra.mxu0 %v2646
        %v8465 = vpop.f32.mrf.mxu0
        %8466 = vmatmul.f32.gmra.mxu0 %v2648
        %v8467 = vpop.f32.mrf.mxu0
        %8468 = vmatmul.f32.gmra.mxu0 %v2650
        %v8469 = vpop.f32.mrf.mxu0
        %8470 = vmatmul.f32.gmra.mxu0 %v2652
        %v8471 = vpop.f32.mrf.mxu0
        %v8472 = vadd.f32 0.0, %v8471
        %8473 = vmatmul.f32.gmra.mxu0 %v2654
        %v8474 = vpop.f32.mrf.mxu0
        %v8475 = vadd.f32 0.0, %v8474
        %8476 = vmatmul.f32.gmra.mxu0 %v2656
        %v8477 = vpop.f32.mrf.mxu0
        %v8478 = vadd.f32 0.0, %v8477
        %8479 = vmatmul.f32.gmra.mxu0 %v2658
        %v8480 = vpop.f32.mrf.mxu0
        %v8481 = vadd.f32 0.0, %v8480
        %8482 = vmatmul.f32.gmra.mxu0 %v2660
        %v8483 = vpop.f32.mrf.mxu0
        %8484 = vmatmul.f32.gmra.mxu0 %v2662
        %v8485 = vpop.f32.mrf.mxu0
        %8486 = vmatmul.f32.gmra.mxu0 %v2664
        %v8487 = vpop.f32.mrf.mxu0
        %8488 = vmatmul.f32.gmra.mxu0 %v2666
        %v8489 = vpop.f32.mrf.mxu0
        %8490 = vmatmul.f32.gmra.mxu0 %v2668
        %v8491 = vpop.f32.mrf.mxu0
        %v8492 = vadd.f32 0.0, %v8491
        %8493 = vmatmul.f32.gmra.mxu0 %v2670
        %v8494 = vpop.f32.mrf.mxu0
        %v8495 = vadd.f32 0.0, %v8494
        %8496 = vmatmul.f32.gmra.mxu0 %v2672
        %v8497 = vpop.f32.mrf.mxu0
        %v8498 = vadd.f32 0.0, %v8497
        %8499 = vmatmul.f32.gmra.mxu0 %v2674
        %v8500 = vpop.f32.mrf.mxu0
        %v8501 = vadd.f32 0.0, %v8500
        %8502 = vmatmul.f32.gmra.mxu0 %v2676
        %v8503 = vpop.f32.mrf.mxu0
        %8504 = vmatmul.f32.gmra.mxu0 %v2678
        %v8505 = vpop.f32.mrf.mxu0
        %8506 = vmatmul.f32.gmra.mxu0 %v2680
        %v8507 = vpop.f32.mrf.mxu0
        %8508 = vmatmul.f32.gmra.mxu0 %v2682
        %v8509 = vpop.f32.mrf.mxu0
        %8510 = vmatmul.f32.gmra.mxu0 %v2684
        %v8511 = vpop.f32.mrf.mxu0
        %v8512 = vadd.f32 0.0, %v8511
        %8513 = vmatmul.f32.gmra.mxu0 %v2686
        %v8514 = vpop.f32.mrf.mxu0
        %v8515 = vadd.f32 0.0, %v8514
        %8516 = vmatmul.f32.gmra.mxu0 %v2688
        %v8517 = vpop.f32.mrf.mxu0
        %v8518 = vadd.f32 0.0, %v8517
        %8519 = vmatmul.f32.gmra.mxu0 %v2690
        %v8520 = vpop.f32.mrf.mxu0
        %v8521 = vadd.f32 0.0, %v8520
        %8522 = vmatmul.f32.gmra.mxu0 %v2692
        %v8523 = vpop.f32.mrf.mxu0
        %8524 = vmatmul.f32.gmra.mxu0 %v2694
        %v8525 = vpop.f32.mrf.mxu0
        %8526 = vmatmul.f32.gmra.mxu0 %v2696
        %v8527 = vpop.f32.mrf.mxu0
        %8528 = vmatmul.f32.gmra.mxu0 %v2698
        %v8529 = vpop.f32.mrf.mxu0
        %8530 = vmatmul.f32.gmra.mxu0 %v2700
        %v8531 = vpop.f32.mrf.mxu0
        %v8532 = vadd.f32 0.0, %v8531
        %8533 = vmatmul.f32.gmra.mxu0 %v2702
        %v8534 = vpop.f32.mrf.mxu0
        %v8535 = vadd.f32 0.0, %v8534
        %8536 = vmatmul.f32.gmra.mxu0 %v2704
        %v8537 = vpop.f32.mrf.mxu0
        %v8538 = vadd.f32 0.0, %v8537
        %8539 = vmatmul.f32.gmra.mxu0 %v2706
        %v8540 = vpop.f32.mrf.mxu0
        %v8541 = vadd.f32 0.0, %v8540
        %8542 = vmatmul.f32.gmra.mxu0 %v2708
        %v8543 = vpop.f32.mrf.mxu0
        %8544 = vmatmul.f32.gmra.mxu0 %v2710
        %v8545 = vpop.f32.mrf.mxu0
        %8546 = vmatmul.f32.gmra.mxu0 %v2712
        %v8547 = vpop.f32.mrf.mxu0
        %8548 = vmatmul.f32.gmra.mxu0 %v2714
        %v8549 = vpop.f32.mrf.mxu0
        %8550 = vmatmul.f32.gmra.mxu0 %v2716
        %v8551 = vpop.f32.mrf.mxu0
        %v8552 = vadd.f32 0.0, %v8551
        %8553 = vmatmul.f32.gmra.mxu0 %v2718
        %v8554 = vpop.f32.mrf.mxu0
        %v8555 = vadd.f32 0.0, %v8554
        %8556 = vmatmul.f32.gmra.mxu0 %v2720
        %v8557 = vpop.f32.mrf.mxu0
        %v8558 = vadd.f32 0.0, %v8557
        %8559 = vmatmul.f32.gmra.mxu0 %v4036
        %v8560 = vpop.f32.mrf.mxu0
        %v8561 = vadd.f32 0.0, %v8560
        %8562 = vmatmul.f32.gmra.mxu0 %v4289
        %v8563 = vpop.f32.mrf.mxu0
        %8564 = vmatmul.f32.gmra.mxu0 %v4292
        %v8565 = vpop.f32.mrf.mxu0
        %8566 = vmatmul.f32.gmra.mxu0 %v4295
        %v8567 = vpop.f32.mrf.mxu0
        %8568 = vmatmul.f32.gmra.mxu0 %v4298
        %v8569 = vpop.f32.mrf.mxu0
        %8570 = vmatmul.f32.gmra.mxu0 %v4301
        %v8571 = vpop.f32.mrf.mxu0
        %v8572 = vadd.f32 0.0, %v8571
        %8573 = vmatmul.f32.gmra.mxu0 %v4304
        %v8574 = vpop.f32.mrf.mxu0
        %v8575 = vadd.f32 0.0, %v8574
        %8576 = vmatmul.f32.gmra.mxu0 %v4307
        %v8577 = vpop.f32.mrf.mxu0
        %v8578 = vadd.f32 0.0, %v8577
        %8579 = vmatmul.f32.gmra.mxu0 %v5410
        %v8580 = vpop.f32.mrf.mxu0
        %v8581 = vadd.f32 0.0, %v8580
        %8582 = vmatmul.f32.gmra.mxu0 %v5663
        %v8583 = vpop.f32.mrf.mxu0
        %8584 = vmatmul.f32.gmra.mxu0 %v5666
        %v8585 = vpop.f32.mrf.mxu0
        %8586 = vmatmul.f32.gmra.mxu0 %v5669
        %v8587 = vpop.f32.mrf.mxu0
        %8588 = vmatmul.f32.gmra.mxu0 %v5672
        %v8589 = vpop.f32.mrf.mxu0
        %8590 = vmatmul.f32.gmra.mxu0 %v5675
        %v8591 = vpop.f32.mrf.mxu0
        %v8592 = vadd.f32 0.0, %v8591
        %8593 = vmatmul.f32.gmra.mxu0 %v5678
        %v8594 = vpop.f32.mrf.mxu0
        %v8595 = vadd.f32 0.0, %v8594
        %8596 = vmatmul.f32.gmra.mxu0 %v5681
        %v8597 = vpop.f32.mrf.mxu0
        %v8598 = vadd.f32 0.0, %v8597
        %8599 = vmatmul.f32.gmra.mxu0 %v6784
        %v8600 = vpop.f32.mrf.mxu0
        %v8601 = vadd.f32 0.0, %v8600
        %8602 = vmatmul.f32.gmra.mxu0 %v7037
        %v8603 = vpop.f32.mrf.mxu0
        %8604 = vmatmul.f32.gmra.mxu0 %v7040
        %v8605 = vpop.f32.mrf.mxu0
        %8606 = vmatmul.f32.gmra.mxu0 %v7043
        %v8607 = vpop.f32.mrf.mxu0
        %8608 = vmatmul.f32.gmra.mxu0 %v7046
        %v8609 = vpop.f32.mrf.mxu0
        %8610 = vmatmul.f32.gmra.mxu0 %v7049
        %v8611 = vpop.f32.mrf.mxu0
        %v8612 = vadd.f32 0.0, %v8611
        %8613 = vmatmul.f32.gmra.mxu0 %v7052
        %v8614 = vpop.f32.mrf.mxu0
        %v8615 = vadd.f32 0.0, %v8614
        %8616 = vmatmul.f32.gmra.mxu0 %v7055
        %v8617 = vpop.f32.mrf.mxu0
        %v8618 = vadd.f32 0.0, %v8617
        %8619 = vmatmul.f32.gmra.mxu0 %v8158
        %v8620 = vpop.f32.mrf.mxu0
        %v8621 = vadd.f32 0.0, %v8620
        %8622 = vmatmul.f32.gmra.mxu0 %v8411
        %v8623 = vpop.f32.mrf.mxu0
        %8624 = vmatmul.f32.gmra.mxu0 %v8414
        %v8625 = vpop.f32.mrf.mxu0
        %8626 = vmatmul.f32.gmra.mxu0 %v8417
        %v8627 = vpop.f32.mrf.mxu0
        %8628 = vmatmul.f32.gmra.mxu0 %v8420
        %v8629 = vpop.f32.mrf.mxu0
        %8630 = vmatmul.f32.gmra.mxu0 %v8423
        %v8631 = vpop.f32.mrf.mxu0
        %v8632 = vadd.f32 0.0, %v8631
        %8633 = vmatmul.f32.gmra.mxu0 %v8426
        %v8634 = vpop.f32.mrf.mxu0
        %v8635 = vadd.f32 0.0, %v8634
        %8636 = vmatmul.f32.gmra.mxu0 %v8429
        %v8637 = vpop.f32.mrf.mxu0
        %v8638 = vadd.f32 0.0, %v8637
        %8639 = vdwg.mxu0
        %v8640 = vadd.f32 %v8369, %v8452
        %v8641 = vadd.f32 %v8370, %v8455
        %v8642 = vadd.f32 %v8371, %v8458
        %v8643 = vadd.f32 %v8372, %v8461
        %v8644 = vadd.f32 %v8373, %v8472
        %v8645 = vadd.f32 %v8374, %v8475
        %v8646 = vadd.f32 %v8375, %v8478
        %v8647 = vadd.f32 %v8376, %v8481
        %v8648 = vadd.f32 %v8377, %v8492
        %v8649 = vadd.f32 %v8378, %v8495
        %v8650 = vadd.f32 %v8379, %v8498
        %v8651 = vadd.f32 %v8380, %v8501
        %v8652 = vadd.f32 %v8381, %v8512
        %v8653 = vadd.f32 %v8382, %v8515
        %v8654 = vadd.f32 %v8383, %v8518
        %v8655 = vadd.f32 %v8384, %v8521
        %v8656 = vadd.f32 %v8385, %v8532
        %v8657 = vadd.f32 %v8386, %v8535
        %v8658 = vadd.f32 %v8387, %v8538
        %v8659 = vadd.f32 %v8388, %v8541
        %v8660 = vadd.f32 %v8389, %v8552
        %v8661 = vadd.f32 %v8390, %v8555
        %v8662 = vadd.f32 %v8391, %v8558
        %v8663 = vadd.f32 %v8392, %v8561
        %v8664 = vadd.f32 %v8393, %v8572
        %v8665 = vadd.f32 %v8394, %v8575
        %v8666 = vadd.f32 %v8395, %v8578
        %v8667 = vadd.f32 %v8396, %v8581
        %v8668 = vadd.f32 %v8397, %v8592
        %v8669 = vadd.f32 %v8398, %v8595
        %v8670 = vadd.f32 %v8399, %v8598
        %v8671 = vadd.f32 %v8400, %v8601
        %v8672 = vadd.f32 %v8401, %v8612
        %v8673 = vadd.f32 %v8402, %v8615
        %v8674 = vadd.f32 %v8403, %v8618
        %v8675 = vadd.f32 %v8404, %v8621
        %v8676 = vadd.f32 %v8405, %v8632
        %v8677 = vadd.f32 %v8406, %v8635
        %v8678 = vadd.f32 %v8407, %v8638
        %s8679 = scalar_lea.vmem %s3, 168
        %v8680 = vld [vmem:[%s8679] sm:$0x3f]
        %v8681 = vrot.slane %v1975, 2
        %v8682 = vsel %vm2062, %v7321, %v8681
        %v8683 = vrot.slane %v1976, 2
        %v8684 = vsel %vm2062, %v8681, %v8683
        %v8685 = vrot.slane %v1977, 2
        %v8686 = vsel %vm2062, %v8683, %v8685
        %v8687 = vrot.slane %v1978, 2
        %v8688 = vsel %vm2062, %v8685, %v8687
        %v8689 = vrot.slane %v1979, 2
        %v8690 = vsel %vm2062, %v8687, %v8689
        %v8691 = vrot.slane %v1980, 2
        %v8692 = vsel %vm2062, %v8689, %v8691
        %v8693 = vrot.slane %v1981, 2
        %v8694 = vsel %vm2062, %v8691, %v8693
        %v8695 = vrot.slane %v1982, 2
        %v8696 = vsel %vm2062, %v8693, %v8695
        %v8697 = vsel %vm2212, %v8682, 0
        %v8699 = vsel %vm2212, %v8684, 0
        %v8701 = vsel %vm2212, %v8686, 0
        %v8703 = vsel %vm2212, %v8688, 0
        %v8705 = vsel %vm2212, %v8690, 0
        %v8707 = vsel %vm2212, %v8692, 0
        %v8709 = vsel %vm2212, %v8694, 0
        %v8711 = vsel %vm2212, %v8696, 0
        %v8713 = vsel %vm2212, %v8695, 0
        %v8716 = vsel %vm2062, %v8680, 0
        %8718 = vmatpush.msra.mxu0 0.0
        %8719 = vmatpush.msra.mxu0 0.0
        %8720 = vmatpush.msra.mxu0 0.0
        %8721 = vmatpush.msra.mxu0 0.0
        %8722 = vmatpush.msra.mxu0 0.0
        %8723 = vmatpush.msra.mxu0 0.0
        %8724 = vmatpush.msra.mxu0 0.0
        %8725 = vmatpush.msra.mxu0 0.0
        %8726 = vmatpush.msra.mxu0 0.0
        %8727 = vmatpush.msra.mxu0 0.0
        %8728 = vmatpush.msra.mxu0 0.0
        %8729 = vmatpush.msra.mxu0 0.0
        %8730 = vmatpush.msra.mxu0 0.0
        %8731 = vmatpush.msra.mxu0 0.0
        %8732 = vmatpush.msra.mxu0 0.0
        %8733 = vmatpush.msra.mxu0 %v8716
        %8734 = vmatmul.f32.gmra.mxu0 %v2277
        %v8735 = vpop.f32.mrf.mxu0
        %v8736 = vadd.f32 0.0, %v8735
        %8737 = vmatmul.f32.gmra.mxu0 %v2279
        %v8738 = vpop.f32.mrf.mxu0
        %v8739 = vadd.f32 0.0, %v8738
        %8740 = vmatmul.f32.gmra.mxu0 %v2281
        %v8741 = vpop.f32.mrf.mxu0
        %v8742 = vadd.f32 0.0, %v8741
        %8743 = vmatmul.f32.gmra.mxu0 %v2283
        %v8744 = vpop.f32.mrf.mxu0
        %v8745 = vadd.f32 0.0, %v8744
        %8746 = vmatmul.f32.gmra.mxu0 %v2285
        %v8747 = vpop.f32.mrf.mxu0
        %8748 = vmatmul.f32.gmra.mxu0 %v2287
        %v8749 = vpop.f32.mrf.mxu0
        %8750 = vmatmul.f32.gmra.mxu0 %v2289
        %v8751 = vpop.f32.mrf.mxu0
        %8752 = vmatmul.f32.gmra.mxu0 %v2291
        %v8753 = vpop.f32.mrf.mxu0
        %8754 = vmatmul.f32.gmra.mxu0 %v2293
        %v8755 = vpop.f32.mrf.mxu0
        %v8756 = vadd.f32 0.0, %v8755
        %8757 = vmatmul.f32.gmra.mxu0 %v2295
        %v8758 = vpop.f32.mrf.mxu0
        %v8759 = vadd.f32 0.0, %v8758
        %8760 = vmatmul.f32.gmra.mxu0 %v2297
        %v8761 = vpop.f32.mrf.mxu0
        %v8762 = vadd.f32 0.0, %v8761
        %8763 = vmatmul.f32.gmra.mxu0 %v2299
        %v8764 = vpop.f32.mrf.mxu0
        %v8765 = vadd.f32 0.0, %v8764
        %8766 = vmatmul.f32.gmra.mxu0 %v2301
        %v8767 = vpop.f32.mrf.mxu0
        %8768 = vmatmul.f32.gmra.mxu0 %v2303
        %v8769 = vpop.f32.mrf.mxu0
        %8770 = vmatmul.f32.gmra.mxu0 %v2305
        %v8771 = vpop.f32.mrf.mxu0
        %8772 = vmatmul.f32.gmra.mxu0 %v2307
        %v8773 = vpop.f32.mrf.mxu0
        %8774 = vmatmul.f32.gmra.mxu0 %v2309
        %v8775 = vpop.f32.mrf.mxu0
        %v8776 = vadd.f32 0.0, %v8775
        %8777 = vmatmul.f32.gmra.mxu0 %v2311
        %v8778 = vpop.f32.mrf.mxu0
        %v8779 = vadd.f32 0.0, %v8778
        %8780 = vmatmul.f32.gmra.mxu0 %v2313
        %v8781 = vpop.f32.mrf.mxu0
        %v8782 = vadd.f32 0.0, %v8781
        %8783 = vmatmul.f32.gmra.mxu0 %v2315
        %v8784 = vpop.f32.mrf.mxu0
        %v8785 = vadd.f32 0.0, %v8784
        %8786 = vmatmul.f32.gmra.mxu0 %v2317
        %v8787 = vpop.f32.mrf.mxu0
        %8788 = vmatmul.f32.gmra.mxu0 %v2319
        %v8789 = vpop.f32.mrf.mxu0
        %8790 = vmatmul.f32.gmra.mxu0 %v2321
        %v8791 = vpop.f32.mrf.mxu0
        %8792 = vmatmul.f32.gmra.mxu0 %v2323
        %v8793 = vpop.f32.mrf.mxu0
        %8794 = vmatmul.f32.gmra.mxu0 %v2325
        %v8795 = vpop.f32.mrf.mxu0
        %v8796 = vadd.f32 0.0, %v8795
        %8797 = vmatmul.f32.gmra.mxu0 %v2327
        %v8798 = vpop.f32.mrf.mxu0
        %v8799 = vadd.f32 0.0, %v8798
        %8800 = vmatmul.f32.gmra.mxu0 %v2329
        %v8801 = vpop.f32.mrf.mxu0
        %v8802 = vadd.f32 0.0, %v8801
        %8803 = vmatmul.f32.gmra.mxu0 %v2331
        %v8804 = vpop.f32.mrf.mxu0
        %v8805 = vadd.f32 0.0, %v8804
        %8806 = vmatmul.f32.gmra.mxu0 %v2333
        %v8807 = vpop.f32.mrf.mxu0
        %8808 = vmatmul.f32.gmra.mxu0 %v2335
        %v8809 = vpop.f32.mrf.mxu0
        %8810 = vmatmul.f32.gmra.mxu0 %v2337
        %v8811 = vpop.f32.mrf.mxu0
        %8812 = vmatmul.f32.gmra.mxu0 %v2339
        %v8813 = vpop.f32.mrf.mxu0
        %8814 = vmatmul.f32.gmra.mxu0 %v2341
        %v8815 = vpop.f32.mrf.mxu0
        %v8816 = vadd.f32 0.0, %v8815
        %8817 = vmatmul.f32.gmra.mxu0 %v2343
        %v8818 = vpop.f32.mrf.mxu0
        %v8819 = vadd.f32 0.0, %v8818
        %8820 = vmatmul.f32.gmra.mxu0 %v2345
        %v8821 = vpop.f32.mrf.mxu0
        %v8822 = vadd.f32 0.0, %v8821
        %8823 = vmatmul.f32.gmra.mxu0 %v2347
        %v8824 = vpop.f32.mrf.mxu0
        %v8825 = vadd.f32 0.0, %v8824
        %8826 = vmatmul.f32.gmra.mxu0 %v2349
        %v8827 = vpop.f32.mrf.mxu0
        %8828 = vmatmul.f32.gmra.mxu0 %v2351
        %v8829 = vpop.f32.mrf.mxu0
        %8830 = vmatmul.f32.gmra.mxu0 %v2353
        %v8831 = vpop.f32.mrf.mxu0
        %8832 = vmatmul.f32.gmra.mxu0 %v2355
        %v8833 = vpop.f32.mrf.mxu0
        %8834 = vmatmul.f32.gmra.mxu0 %v2357
        %v8835 = vpop.f32.mrf.mxu0
        %v8836 = vadd.f32 0.0, %v8835
        %8837 = vmatmul.f32.gmra.mxu0 %v2359
        %v8838 = vpop.f32.mrf.mxu0
        %v8839 = vadd.f32 0.0, %v8838
        %8840 = vmatmul.f32.gmra.mxu0 %v4575
        %v8841 = vpop.f32.mrf.mxu0
        %v8842 = vadd.f32 0.0, %v8841
        %8843 = vmatmul.f32.gmra.mxu0 %v4577
        %v8844 = vpop.f32.mrf.mxu0
        %v8845 = vadd.f32 0.0, %v8844
        %8846 = vmatmul.f32.gmra.mxu0 %v4579
        %v8847 = vpop.f32.mrf.mxu0
        %8848 = vmatmul.f32.gmra.mxu0 %v4581
        %v8849 = vpop.f32.mrf.mxu0
        %8850 = vmatmul.f32.gmra.mxu0 %v4583
        %v8851 = vpop.f32.mrf.mxu0
        %8852 = vmatmul.f32.gmra.mxu0 %v4585
        %v8853 = vpop.f32.mrf.mxu0
        %8854 = vmatmul.f32.gmra.mxu0 %v4587
        %v8855 = vpop.f32.mrf.mxu0
        %v8856 = vadd.f32 0.0, %v8855
        %8857 = vmatmul.f32.gmra.mxu0 %v4589
        %v8858 = vpop.f32.mrf.mxu0
        %v8859 = vadd.f32 0.0, %v8858
        %8860 = vmatmul.f32.gmra.mxu0 %v5949
        %v8861 = vpop.f32.mrf.mxu0
        %v8862 = vadd.f32 0.0, %v8861
        %8863 = vmatmul.f32.gmra.mxu0 %v5951
        %v8864 = vpop.f32.mrf.mxu0
        %v8865 = vadd.f32 0.0, %v8864
        %8866 = vmatmul.f32.gmra.mxu0 %v5953
        %v8867 = vpop.f32.mrf.mxu0
        %8868 = vmatmul.f32.gmra.mxu0 %v5955
        %v8869 = vpop.f32.mrf.mxu0
        %8870 = vmatmul.f32.gmra.mxu0 %v5957
        %v8871 = vpop.f32.mrf.mxu0
        %8872 = vmatmul.f32.gmra.mxu0 %v5959
        %v8873 = vpop.f32.mrf.mxu0
        %8874 = vmatmul.f32.gmra.mxu0 %v5961
        %v8875 = vpop.f32.mrf.mxu0
        %v8876 = vadd.f32 0.0, %v8875
        %8877 = vmatmul.f32.gmra.mxu0 %v5963
        %v8878 = vpop.f32.mrf.mxu0
        %v8879 = vadd.f32 0.0, %v8878
        %8880 = vmatmul.f32.gmra.mxu0 %v7323
        %v8881 = vpop.f32.mrf.mxu0
        %v8882 = vadd.f32 0.0, %v8881
        %8883 = vmatmul.f32.gmra.mxu0 %v7325
        %v8884 = vpop.f32.mrf.mxu0
        %v8885 = vadd.f32 0.0, %v8884
        %8886 = vmatmul.f32.gmra.mxu0 %v7327
        %v8887 = vpop.f32.mrf.mxu0
        %8888 = vmatmul.f32.gmra.mxu0 %v7329
        %v8889 = vpop.f32.mrf.mxu0
        %8890 = vmatmul.f32.gmra.mxu0 %v7331
        %v8891 = vpop.f32.mrf.mxu0
        %8892 = vmatmul.f32.gmra.mxu0 %v7333
        %v8893 = vpop.f32.mrf.mxu0
        %8894 = vmatmul.f32.gmra.mxu0 %v7335
        %v8895 = vpop.f32.mrf.mxu0
        %v8896 = vadd.f32 0.0, %v8895
        %8897 = vmatmul.f32.gmra.mxu0 %v7337
        %v8898 = vpop.f32.mrf.mxu0
        %v8899 = vadd.f32 0.0, %v8898
        %8900 = vmatmul.f32.gmra.mxu0 %v8697
        %v8901 = vpop.f32.mrf.mxu0
        %v8902 = vadd.f32 0.0, %v8901
        %8903 = vmatmul.f32.gmra.mxu0 %v8699
        %v8904 = vpop.f32.mrf.mxu0
        %v8905 = vadd.f32 0.0, %v8904
        %8906 = vmatmul.f32.gmra.mxu0 %v8701
        %v8907 = vpop.f32.mrf.mxu0
        %8908 = vmatmul.f32.gmra.mxu0 %v8703
        %v8909 = vpop.f32.mrf.mxu0
        %8910 = vmatmul.f32.gmra.mxu0 %v8705
        %v8911 = vpop.f32.mrf.mxu0
        %8912 = vmatmul.f32.gmra.mxu0 %v8707
        %v8913 = vpop.f32.mrf.mxu0
        %8914 = vmatmul.f32.gmra.mxu0 %v8709
        %v8915 = vpop.f32.mrf.mxu0
        %v8916 = vadd.f32 0.0, %v8915
        %8917 = vmatmul.f32.gmra.mxu0 %v8711
        %v8918 = vpop.f32.mrf.mxu0
        %v8919 = vadd.f32 0.0, %v8918
        %8920 = vmatmul.f32.gmra.mxu0 %v8713
        %v8921 = vpop.f32.mrf.mxu0
        %v8922 = vadd.f32 0.0, %v8921
        %8923 = vdwg.mxu0
        %v8924 = vadd.f32 %v8640, %v8736
        %v8925 = vadd.f32 %v8641, %v8739
        %v8926 = vadd.f32 %v8642, %v8742
        %v8927 = vadd.f32 %v8643, %v8745
        %v8928 = vadd.f32 %v8644, %v8756
        %v8929 = vadd.f32 %v8645, %v8759
        %v8930 = vadd.f32 %v8646, %v8762
        %v8931 = vadd.f32 %v8647, %v8765
        %v8932 = vadd.f32 %v8648, %v8776
        %v8933 = vadd.f32 %v8649, %v8779
        %v8934 = vadd.f32 %v8650, %v8782
        %v8935 = vadd.f32 %v8651, %v8785
        %v8936 = vadd.f32 %v8652, %v8796
        %v8937 = vadd.f32 %v8653, %v8799
        %v8938 = vadd.f32 %v8654, %v8802
        %v8939 = vadd.f32 %v8655, %v8805
        %v8940 = vadd.f32 %v8656, %v8816
        %v8941 = vadd.f32 %v8657, %v8819
        %v8942 = vadd.f32 %v8658, %v8822
        %v8943 = vadd.f32 %v8659, %v8825
        %v8944 = vadd.f32 %v8660, %v8836
        %v8945 = vadd.f32 %v8661, %v8839
        %v8946 = vadd.f32 %v8662, %v8842
        %v8947 = vadd.f32 %v8663, %v8845
        %v8948 = vadd.f32 %v8664, %v8856
        %v8949 = vadd.f32 %v8665, %v8859
        %v8950 = vadd.f32 %v8666, %v8862
        %v8951 = vadd.f32 %v8667, %v8865
        %v8952 = vadd.f32 %v8668, %v8876
        %v8953 = vadd.f32 %v8669, %v8879
        %v8954 = vadd.f32 %v8670, %v8882
        %v8955 = vadd.f32 %v8671, %v8885
        %v8956 = vadd.f32 %v8672, %v8896
        %v8957 = vadd.f32 %v8673, %v8899
        %v8958 = vadd.f32 %v8674, %v8902
        %v8959 = vadd.f32 %v8675, %v8905
        %v8960 = vadd.f32 %v8676, %v8916
        %v8961 = vadd.f32 %v8677, %v8919
        %v8962 = vadd.f32 %v8678, %v8922
        %s8963 = scalar_lea.vmem %s3, 176
        %v8964 = vld [vmem:[%s8963] sm:$0x3f]
        %v8965 = vrot.slane %v1975, 4
        %v8966 = vsel %vm2933, %v7605, %v8965
        %v8967 = vrot.slane %v1976, 4
        %v8968 = vsel %vm2933, %v8965, %v8967
        %v8969 = vrot.slane %v1977, 4
        %v8970 = vsel %vm2933, %v8967, %v8969
        %v8971 = vrot.slane %v1978, 4
        %v8972 = vsel %vm2933, %v8969, %v8971
        %v8973 = vrot.slane %v1979, 4
        %v8974 = vsel %vm2933, %v8971, %v8973
        %v8975 = vrot.slane %v1980, 4
        %v8976 = vsel %vm2933, %v8973, %v8975
        %v8977 = vrot.slane %v1981, 4
        %v8978 = vsel %vm2933, %v8975, %v8977
        %v8979 = vrot.slane %v1982, 4
        %v8980 = vsel %vm2933, %v8977, %v8979
        %v8981 = vsel %vm2212, %v8966, 0
        %v8983 = vsel %vm2212, %v8968, 0
        %v8985 = vsel %vm2212, %v8970, 0
        %v8987 = vsel %vm2212, %v8972, 0
        %v8989 = vsel %vm2212, %v8974, 0
        %v8991 = vsel %vm2212, %v8976, 0
        %v8993 = vsel %vm2212, %v8978, 0
        %v8995 = vsel %vm2212, %v8980, 0
        %v8997 = vsel %vm2212, %v8979, 0
        %v9000 = vsel %vm2062, %v8964, 0
        %9002 = vmatpush.msra.mxu0 0.0
        %9003 = vmatpush.msra.mxu0 0.0
        %9004 = vmatpush.msra.mxu0 0.0
        %9005 = vmatpush.msra.mxu0 0.0
        %9006 = vmatpush.msra.mxu0 0.0
        %9007 = vmatpush.msra.mxu0 0.0
        %9008 = vmatpush.msra.mxu0 0.0
        %9009 = vmatpush.msra.mxu0 0.0
        %9010 = vmatpush.msra.mxu0 0.0
        %9011 = vmatpush.msra.mxu0 0.0
        %9012 = vmatpush.msra.mxu0 0.0
        %9013 = vmatpush.msra.mxu0 0.0
        %9014 = vmatpush.msra.mxu0 0.0
        %9015 = vmatpush.msra.mxu0 0.0
        %9016 = vmatpush.msra.mxu0 0.0
        %9017 = vmatpush.msra.mxu0 %v9000
        %9018 = vmatmul.f32.gmra.mxu0 %v3147
        %v9019 = vpop.f32.mrf.mxu0
        %v9020 = vadd.f32 0.0, %v9019
        %9021 = vmatmul.f32.gmra.mxu0 %v3149
        %v9022 = vpop.f32.mrf.mxu0
        %v9023 = vadd.f32 0.0, %v9022
        %9024 = vmatmul.f32.gmra.mxu0 %v3151
        %v9025 = vpop.f32.mrf.mxu0
        %v9026 = vadd.f32 0.0, %v9025
        %9027 = vmatmul.f32.gmra.mxu0 %v3153
        %v9028 = vpop.f32.mrf.mxu0
        %v9029 = vadd.f32 0.0, %v9028
        %9030 = vmatmul.f32.gmra.mxu0 %v3155
        %v9031 = vpop.f32.mrf.mxu0
        %9032 = vmatmul.f32.gmra.mxu0 %v3157
        %v9033 = vpop.f32.mrf.mxu0
        %9034 = vmatmul.f32.gmra.mxu0 %v3159
        %v9035 = vpop.f32.mrf.mxu0
        %9036 = vmatmul.f32.gmra.mxu0 %v3161
        %v9037 = vpop.f32.mrf.mxu0
        %9038 = vmatmul.f32.gmra.mxu0 %v3163
        %v9039 = vpop.f32.mrf.mxu0
        %v9040 = vadd.f32 0.0, %v9039
        %9041 = vmatmul.f32.gmra.mxu0 %v3165
        %v9042 = vpop.f32.mrf.mxu0
        %v9043 = vadd.f32 0.0, %v9042
        %9044 = vmatmul.f32.gmra.mxu0 %v3167
        %v9045 = vpop.f32.mrf.mxu0
        %v9046 = vadd.f32 0.0, %v9045
        %9047 = vmatmul.f32.gmra.mxu0 %v3169
        %v9048 = vpop.f32.mrf.mxu0
        %v9049 = vadd.f32 0.0, %v9048
        %9050 = vmatmul.f32.gmra.mxu0 %v3171
        %v9051 = vpop.f32.mrf.mxu0
        %9052 = vmatmul.f32.gmra.mxu0 %v3173
        %v9053 = vpop.f32.mrf.mxu0
        %9054 = vmatmul.f32.gmra.mxu0 %v3175
        %v9055 = vpop.f32.mrf.mxu0
        %9056 = vmatmul.f32.gmra.mxu0 %v3177
        %v9057 = vpop.f32.mrf.mxu0
        %9058 = vmatmul.f32.gmra.mxu0 %v3179
        %v9059 = vpop.f32.mrf.mxu0
        %v9060 = vadd.f32 0.0, %v9059
        %9061 = vmatmul.f32.gmra.mxu0 %v3181
        %v9062 = vpop.f32.mrf.mxu0
        %v9063 = vadd.f32 0.0, %v9062
        %9064 = vmatmul.f32.gmra.mxu0 %v3183
        %v9065 = vpop.f32.mrf.mxu0
        %v9066 = vadd.f32 0.0, %v9065
        %9067 = vmatmul.f32.gmra.mxu0 %v3185
        %v9068 = vpop.f32.mrf.mxu0
        %v9069 = vadd.f32 0.0, %v9068
        %9070 = vmatmul.f32.gmra.mxu0 %v3187
        %v9071 = vpop.f32.mrf.mxu0
        %9072 = vmatmul.f32.gmra.mxu0 %v3189
        %v9073 = vpop.f32.mrf.mxu0
        %9074 = vmatmul.f32.gmra.mxu0 %v3191
        %v9075 = vpop.f32.mrf.mxu0
        %9076 = vmatmul.f32.gmra.mxu0 %v3193
        %v9077 = vpop.f32.mrf.mxu0
        %9078 = vmatmul.f32.gmra.mxu0 %v3195
        %v9079 = vpop.f32.mrf.mxu0
        %v9080 = vadd.f32 0.0, %v9079
        %9081 = vmatmul.f32.gmra.mxu0 %v3197
        %v9082 = vpop.f32.mrf.mxu0
        %v9083 = vadd.f32 0.0, %v9082
        %9084 = vmatmul.f32.gmra.mxu0 %v3199
        %v9085 = vpop.f32.mrf.mxu0
        %v9086 = vadd.f32 0.0, %v9085
        %9087 = vmatmul.f32.gmra.mxu0 %v3201
        %v9088 = vpop.f32.mrf.mxu0
        %v9089 = vadd.f32 0.0, %v9088
        %9090 = vmatmul.f32.gmra.mxu0 %v3203
        %v9091 = vpop.f32.mrf.mxu0
        %9092 = vmatmul.f32.gmra.mxu0 %v3205
        %v9093 = vpop.f32.mrf.mxu0
        %9094 = vmatmul.f32.gmra.mxu0 %v3207
        %v9095 = vpop.f32.mrf.mxu0
        %9096 = vmatmul.f32.gmra.mxu0 %v3209
        %v9097 = vpop.f32.mrf.mxu0
        %9098 = vmatmul.f32.gmra.mxu0 %v3211
        %v9099 = vpop.f32.mrf.mxu0
        %v9100 = vadd.f32 0.0, %v9099
        %9101 = vmatmul.f32.gmra.mxu0 %v3213
        %v9102 = vpop.f32.mrf.mxu0
        %v9103 = vadd.f32 0.0, %v9102
        %9104 = vmatmul.f32.gmra.mxu0 %v3215
        %v9105 = vpop.f32.mrf.mxu0
        %v9106 = vadd.f32 0.0, %v9105
        %9107 = vmatmul.f32.gmra.mxu0 %v3217
        %v9108 = vpop.f32.mrf.mxu0
        %v9109 = vadd.f32 0.0, %v9108
        %9110 = vmatmul.f32.gmra.mxu0 %v3219
        %v9111 = vpop.f32.mrf.mxu0
        %9112 = vmatmul.f32.gmra.mxu0 %v3221
        %v9113 = vpop.f32.mrf.mxu0
        %9114 = vmatmul.f32.gmra.mxu0 %v3223
        %v9115 = vpop.f32.mrf.mxu0
        %9116 = vmatmul.f32.gmra.mxu0 %v3225
        %v9117 = vpop.f32.mrf.mxu0
        %9118 = vmatmul.f32.gmra.mxu0 %v3227
        %v9119 = vpop.f32.mrf.mxu0
        %v9120 = vadd.f32 0.0, %v9119
        %9121 = vmatmul.f32.gmra.mxu0 %v3229
        %v9122 = vpop.f32.mrf.mxu0
        %v9123 = vadd.f32 0.0, %v9122
        %9124 = vmatmul.f32.gmra.mxu0 %v4859
        %v9125 = vpop.f32.mrf.mxu0
        %v9126 = vadd.f32 0.0, %v9125
        %9127 = vmatmul.f32.gmra.mxu0 %v4861
        %v9128 = vpop.f32.mrf.mxu0
        %v9129 = vadd.f32 0.0, %v9128
        %9130 = vmatmul.f32.gmra.mxu0 %v4863
        %v9131 = vpop.f32.mrf.mxu0
        %9132 = vmatmul.f32.gmra.mxu0 %v4865
        %v9133 = vpop.f32.mrf.mxu0
        %9134 = vmatmul.f32.gmra.mxu0 %v4867
        %v9135 = vpop.f32.mrf.mxu0
        %9136 = vmatmul.f32.gmra.mxu0 %v4869
        %v9137 = vpop.f32.mrf.mxu0
        %9138 = vmatmul.f32.gmra.mxu0 %v4871
        %v9139 = vpop.f32.mrf.mxu0
        %v9140 = vadd.f32 0.0, %v9139
        %9141 = vmatmul.f32.gmra.mxu0 %v4873
        %v9142 = vpop.f32.mrf.mxu0
        %v9143 = vadd.f32 0.0, %v9142
        %9144 = vmatmul.f32.gmra.mxu0 %v6233
        %v9145 = vpop.f32.mrf.mxu0
        %v9146 = vadd.f32 0.0, %v9145
        %9147 = vmatmul.f32.gmra.mxu0 %v6235
        %v9148 = vpop.f32.mrf.mxu0
        %v9149 = vadd.f32 0.0, %v9148
        %9150 = vmatmul.f32.gmra.mxu0 %v6237
        %v9151 = vpop.f32.mrf.mxu0
        %9152 = vmatmul.f32.gmra.mxu0 %v6239
        %v9153 = vpop.f32.mrf.mxu0
        %9154 = vmatmul.f32.gmra.mxu0 %v6241
        %v9155 = vpop.f32.mrf.mxu0
        %9156 = vmatmul.f32.gmra.mxu0 %v6243
        %v9157 = vpop.f32.mrf.mxu0
        %9158 = vmatmul.f32.gmra.mxu0 %v6245
        %v9159 = vpop.f32.mrf.mxu0
        %v9160 = vadd.f32 0.0, %v9159
        %9161 = vmatmul.f32.gmra.mxu0 %v6247
        %v9162 = vpop.f32.mrf.mxu0
        %v9163 = vadd.f32 0.0, %v9162
        %9164 = vmatmul.f32.gmra.mxu0 %v7607
        %v9165 = vpop.f32.mrf.mxu0
        %v9166 = vadd.f32 0.0, %v9165
        %9167 = vmatmul.f32.gmra.mxu0 %v7609
        %v9168 = vpop.f32.mrf.mxu0
        %v9169 = vadd.f32 0.0, %v9168
        %9170 = vmatmul.f32.gmra.mxu0 %v7611
        %v9171 = vpop.f32.mrf.mxu0
        %9172 = vmatmul.f32.gmra.mxu0 %v7613
        %v9173 = vpop.f32.mrf.mxu0
        %9174 = vmatmul.f32.gmra.mxu0 %v7615
        %v9175 = vpop.f32.mrf.mxu0
        %9176 = vmatmul.f32.gmra.mxu0 %v7617
        %v9177 = vpop.f32.mrf.mxu0
        %9178 = vmatmul.f32.gmra.mxu0 %v7619
        %v9179 = vpop.f32.mrf.mxu0
        %v9180 = vadd.f32 0.0, %v9179
        %9181 = vmatmul.f32.gmra.mxu0 %v7621
        %v9182 = vpop.f32.mrf.mxu0
        %v9183 = vadd.f32 0.0, %v9182
        %9184 = vmatmul.f32.gmra.mxu0 %v8981
        %v9185 = vpop.f32.mrf.mxu0
        %v9186 = vadd.f32 0.0, %v9185
        %9187 = vmatmul.f32.gmra.mxu0 %v8983
        %v9188 = vpop.f32.mrf.mxu0
        %v9189 = vadd.f32 0.0, %v9188
        %9190 = vmatmul.f32.gmra.mxu0 %v8985
        %v9191 = vpop.f32.mrf.mxu0
        %9192 = vmatmul.f32.gmra.mxu0 %v8987
        %v9193 = vpop.f32.mrf.mxu0
        %9194 = vmatmul.f32.gmra.mxu0 %v8989
        %v9195 = vpop.f32.mrf.mxu0
        %9196 = vmatmul.f32.gmra.mxu0 %v8991
        %v9197 = vpop.f32.mrf.mxu0
        %9198 = vmatmul.f32.gmra.mxu0 %v8993
        %v9199 = vpop.f32.mrf.mxu0
        %v9200 = vadd.f32 0.0, %v9199
        %9201 = vmatmul.f32.gmra.mxu0 %v8995
        %v9202 = vpop.f32.mrf.mxu0
        %v9203 = vadd.f32 0.0, %v9202
        %9204 = vmatmul.f32.gmra.mxu0 %v8997
        %v9205 = vpop.f32.mrf.mxu0
        %v9206 = vadd.f32 0.0, %v9205
        %9207 = vdwg.mxu0
        %v9208 = vadd.f32 %v8924, %v9020
        %v9209 = vadd.f32 %v8925, %v9023
        %v9210 = vadd.f32 %v8926, %v9026
        %v9211 = vadd.f32 %v8927, %v9029
        %v9212 = vadd.f32 %v8928, %v9040
        %v9213 = vadd.f32 %v8929, %v9043
        %v9214 = vadd.f32 %v8930, %v9046
        %v9215 = vadd.f32 %v8931, %v9049
        %v9216 = vadd.f32 %v8932, %v9060
        %v9217 = vadd.f32 %v8933, %v9063
        %v9218 = vadd.f32 %v8934, %v9066
        %v9219 = vadd.f32 %v8935, %v9069
        %v9220 = vadd.f32 %v8936, %v9080
        %v9221 = vadd.f32 %v8937, %v9083
        %v9222 = vadd.f32 %v8938, %v9086
        %v9223 = vadd.f32 %v8939, %v9089
        %v9224 = vadd.f32 %v8940, %v9100
        %v9225 = vadd.f32 %v8941, %v9103
        %v9226 = vadd.f32 %v8942, %v9106
        %v9227 = vadd.f32 %v8943, %v9109
        %v9228 = vadd.f32 %v8944, %v9120
        %v9229 = vadd.f32 %v8945, %v9123
        %v9230 = vadd.f32 %v8946, %v9126
        %v9231 = vadd.f32 %v8947, %v9129
        %v9232 = vadd.f32 %v8948, %v9140
        %v9233 = vadd.f32 %v8949, %v9143
        %v9234 = vadd.f32 %v8950, %v9146
        %v9235 = vadd.f32 %v8951, %v9149
        %v9236 = vadd.f32 %v8952, %v9160
        %v9237 = vadd.f32 %v8953, %v9163
        %v9238 = vadd.f32 %v8954, %v9166
        %v9239 = vadd.f32 %v8955, %v9169
        %v9240 = vadd.f32 %v8956, %v9180
        %v9241 = vadd.f32 %v8957, %v9183
        %v9242 = vadd.f32 %v8958, %v9186
        %v9243 = vadd.f32 %v8959, %v9189
        %v9244 = vadd.f32 %v8960, %v9200
        %v9245 = vadd.f32 %v8961, %v9203
        %v9246 = vadd.f32 %v8962, %v9206
        %s9247 = scalar_lea.vmem %s3, 184
        %v9248 = vld [vmem:[%s9247] sm:$0x3f]
        %v9250 = vrot.slane %v1976, 6
        %v9251 = vsel %vm3484, %v7890, %v9250
        %v9252 = vrot.slane %v1977, 6
        %v9253 = vsel %vm3484, %v9250, %v9252
        %v9254 = vrot.slane %v1978, 6
        %v9255 = vsel %vm3484, %v9252, %v9254
        %v9256 = vrot.slane %v1979, 6
        %v9257 = vsel %vm3484, %v9254, %v9256
        %v9258 = vrot.slane %v1980, 6
        %v9259 = vsel %vm3484, %v9256, %v9258
        %v9260 = vrot.slane %v1981, 6
        %v9261 = vsel %vm3484, %v9258, %v9260
        %v9262 = vrot.slane %v1982, 6
        %v9263 = vsel %vm3484, %v9260, %v9262
        %v9264 = vrot.slane %v1983, 6
        %v9265 = vsel %vm3484, %v9262, %v9264
        %v9266 = vsel %vm2212, %v9251, 0
        %v9268 = vsel %vm2212, %v9253, 0
        %v9270 = vsel %vm2212, %v9255, 0
        %v9272 = vsel %vm2212, %v9257, 0
        %v9274 = vsel %vm2212, %v9259, 0
        %v9276 = vsel %vm2212, %v9261, 0
        %v9278 = vsel %vm2212, %v9263, 0
        %v9280 = vsel %vm2212, %v9265, 0
        %v9283 = vsel %vm2062, %v9248, 0
        %9285 = vmatpush.msra.mxu0 0.0
        %9286 = vmatpush.msra.mxu0 0.0
        %9287 = vmatpush.msra.mxu0 0.0
        %9288 = vmatpush.msra.mxu0 0.0
        %9289 = vmatpush.msra.mxu0 0.0
        %9290 = vmatpush.msra.mxu0 0.0
        %9291 = vmatpush.msra.mxu0 0.0
        %9292 = vmatpush.msra.mxu0 0.0
        %9293 = vmatpush.msra.mxu0 0.0
        %9294 = vmatpush.msra.mxu0 0.0
        %9295 = vmatpush.msra.mxu0 0.0
        %9296 = vmatpush.msra.mxu0 0.0
        %9297 = vmatpush.msra.mxu0 0.0
        %9298 = vmatpush.msra.mxu0 0.0
        %9299 = vmatpush.msra.mxu0 0.0
        %9300 = vmatpush.msra.mxu0 %v9283
        %9301 = vmatmul.f32.gmra.mxu0 %v3700
        %v9302 = vpop.f32.mrf.mxu0
        %v9303 = vadd.f32 0.0, %v9302
        %9304 = vmatmul.f32.gmra.mxu0 %v3702
        %v9305 = vpop.f32.mrf.mxu0
        %v9306 = vadd.f32 0.0, %v9305
        %9307 = vmatmul.f32.gmra.mxu0 %v3704
        %v9308 = vpop.f32.mrf.mxu0
        %v9309 = vadd.f32 0.0, %v9308
        %9310 = vmatmul.f32.gmra.mxu0 %v3706
        %v9311 = vpop.f32.mrf.mxu0
        %v9312 = vadd.f32 0.0, %v9311
        %9313 = vmatmul.f32.gmra.mxu0 %v3708
        %v9314 = vpop.f32.mrf.mxu0
        %9315 = vmatmul.f32.gmra.mxu0 %v3710
        %v9316 = vpop.f32.mrf.mxu0
        %9317 = vmatmul.f32.gmra.mxu0 %v3712
        %v9318 = vpop.f32.mrf.mxu0
        %9319 = vmatmul.f32.gmra.mxu0 %v3714
        %v9320 = vpop.f32.mrf.mxu0
        %9321 = vmatmul.f32.gmra.mxu0 %v3716
        %v9322 = vpop.f32.mrf.mxu0
        %v9323 = vadd.f32 0.0, %v9322
        %9324 = vmatmul.f32.gmra.mxu0 %v3718
        %v9325 = vpop.f32.mrf.mxu0
        %v9326 = vadd.f32 0.0, %v9325
        %9327 = vmatmul.f32.gmra.mxu0 %v3720
        %v9328 = vpop.f32.mrf.mxu0
        %v9329 = vadd.f32 0.0, %v9328
        %9330 = vmatmul.f32.gmra.mxu0 %v3722
        %v9331 = vpop.f32.mrf.mxu0
        %v9332 = vadd.f32 0.0, %v9331
        %9333 = vmatmul.f32.gmra.mxu0 %v3724
        %v9334 = vpop.f32.mrf.mxu0
        %9335 = vmatmul.f32.gmra.mxu0 %v3726
        %v9336 = vpop.f32.mrf.mxu0
        %9337 = vmatmul.f32.gmra.mxu0 %v3728
        %v9338 = vpop.f32.mrf.mxu0
        %9339 = vmatmul.f32.gmra.mxu0 %v3730
        %v9340 = vpop.f32.mrf.mxu0
        %9341 = vmatmul.f32.gmra.mxu0 %v3732
        %v9342 = vpop.f32.mrf.mxu0
        %v9343 = vadd.f32 0.0, %v9342
        %9344 = vmatmul.f32.gmra.mxu0 %v3734
        %v9345 = vpop.f32.mrf.mxu0
        %v9346 = vadd.f32 0.0, %v9345
        %9347 = vmatmul.f32.gmra.mxu0 %v3736
        %v9348 = vpop.f32.mrf.mxu0
        %v9349 = vadd.f32 0.0, %v9348
        %9350 = vmatmul.f32.gmra.mxu0 %v3738
        %v9351 = vpop.f32.mrf.mxu0
        %v9352 = vadd.f32 0.0, %v9351
        %9353 = vmatmul.f32.gmra.mxu0 %v3740
        %v9354 = vpop.f32.mrf.mxu0
        %9355 = vmatmul.f32.gmra.mxu0 %v3742
        %v9356 = vpop.f32.mrf.mxu0
        %9357 = vmatmul.f32.gmra.mxu0 %v3744
        %v9358 = vpop.f32.mrf.mxu0
        %9359 = vmatmul.f32.gmra.mxu0 %v3746
        %v9360 = vpop.f32.mrf.mxu0
        %9361 = vmatmul.f32.gmra.mxu0 %v3748
        %v9362 = vpop.f32.mrf.mxu0
        %v9363 = vadd.f32 0.0, %v9362
        %9364 = vmatmul.f32.gmra.mxu0 %v3750
        %v9365 = vpop.f32.mrf.mxu0
        %v9366 = vadd.f32 0.0, %v9365
        %9367 = vmatmul.f32.gmra.mxu0 %v3752
        %v9368 = vpop.f32.mrf.mxu0
        %v9369 = vadd.f32 0.0, %v9368
        %9370 = vmatmul.f32.gmra.mxu0 %v3754
        %v9371 = vpop.f32.mrf.mxu0
        %v9372 = vadd.f32 0.0, %v9371
        %9373 = vmatmul.f32.gmra.mxu0 %v3756
        %v9374 = vpop.f32.mrf.mxu0
        %9375 = vmatmul.f32.gmra.mxu0 %v3758
        %v9376 = vpop.f32.mrf.mxu0
        %9377 = vmatmul.f32.gmra.mxu0 %v3760
        %v9378 = vpop.f32.mrf.mxu0
        %9379 = vmatmul.f32.gmra.mxu0 %v3762
        %v9380 = vpop.f32.mrf.mxu0
        %9381 = vmatmul.f32.gmra.mxu0 %v3764
        %v9382 = vpop.f32.mrf.mxu0
        %v9383 = vadd.f32 0.0, %v9382
        %9384 = vmatmul.f32.gmra.mxu0 %v3766
        %v9385 = vpop.f32.mrf.mxu0
        %v9386 = vadd.f32 0.0, %v9385
        %9387 = vmatmul.f32.gmra.mxu0 %v3768
        %v9388 = vpop.f32.mrf.mxu0
        %v9389 = vadd.f32 0.0, %v9388
        %9390 = vmatmul.f32.gmra.mxu0 %v3770
        %v9391 = vpop.f32.mrf.mxu0
        %v9392 = vadd.f32 0.0, %v9391
        %9393 = vmatmul.f32.gmra.mxu0 %v3772
        %v9394 = vpop.f32.mrf.mxu0
        %9395 = vmatmul.f32.gmra.mxu0 %v3774
        %v9396 = vpop.f32.mrf.mxu0
        %9397 = vmatmul.f32.gmra.mxu0 %v3776
        %v9398 = vpop.f32.mrf.mxu0
        %9399 = vmatmul.f32.gmra.mxu0 %v3778
        %v9400 = vpop.f32.mrf.mxu0
        %9401 = vmatmul.f32.gmra.mxu0 %v3780
        %v9402 = vpop.f32.mrf.mxu0
        %v9403 = vadd.f32 0.0, %v9402
        %9404 = vmatmul.f32.gmra.mxu0 %v3782
        %v9405 = vpop.f32.mrf.mxu0
        %v9406 = vadd.f32 0.0, %v9405
        %9407 = vmatmul.f32.gmra.mxu0 %v3784
        %v9408 = vpop.f32.mrf.mxu0
        %v9409 = vadd.f32 0.0, %v9408
        %9410 = vmatmul.f32.gmra.mxu0 %v5144
        %v9411 = vpop.f32.mrf.mxu0
        %v9412 = vadd.f32 0.0, %v9411
        %9413 = vmatmul.f32.gmra.mxu0 %v5146
        %v9414 = vpop.f32.mrf.mxu0
        %9415 = vmatmul.f32.gmra.mxu0 %v5148
        %v9416 = vpop.f32.mrf.mxu0
        %9417 = vmatmul.f32.gmra.mxu0 %v5150
        %v9418 = vpop.f32.mrf.mxu0
        %9419 = vmatmul.f32.gmra.mxu0 %v5152
        %v9420 = vpop.f32.mrf.mxu0
        %9421 = vmatmul.f32.gmra.mxu0 %v5154
        %v9422 = vpop.f32.mrf.mxu0
        %v9423 = vadd.f32 0.0, %v9422
        %9424 = vmatmul.f32.gmra.mxu0 %v5156
        %v9425 = vpop.f32.mrf.mxu0
        %v9426 = vadd.f32 0.0, %v9425
        %9427 = vmatmul.f32.gmra.mxu0 %v5158
        %v9428 = vpop.f32.mrf.mxu0
        %v9429 = vadd.f32 0.0, %v9428
        %9430 = vmatmul.f32.gmra.mxu0 %v6518
        %v9431 = vpop.f32.mrf.mxu0
        %v9432 = vadd.f32 0.0, %v9431
        %9433 = vmatmul.f32.gmra.mxu0 %v6520
        %v9434 = vpop.f32.mrf.mxu0
        %9435 = vmatmul.f32.gmra.mxu0 %v6522
        %v9436 = vpop.f32.mrf.mxu0
        %9437 = vmatmul.f32.gmra.mxu0 %v6524
        %v9438 = vpop.f32.mrf.mxu0
        %9439 = vmatmul.f32.gmra.mxu0 %v6526
        %v9440 = vpop.f32.mrf.mxu0
        %9441 = vmatmul.f32.gmra.mxu0 %v6528
        %v9442 = vpop.f32.mrf.mxu0
        %v9443 = vadd.f32 0.0, %v9442
        %9444 = vmatmul.f32.gmra.mxu0 %v6530
        %v9445 = vpop.f32.mrf.mxu0
        %v9446 = vadd.f32 0.0, %v9445
        %9447 = vmatmul.f32.gmra.mxu0 %v6532
        %v9448 = vpop.f32.mrf.mxu0
        %v9449 = vadd.f32 0.0, %v9448
        %9450 = vmatmul.f32.gmra.mxu0 %v7892
        %v9451 = vpop.f32.mrf.mxu0
        %v9452 = vadd.f32 0.0, %v9451
        %9453 = vmatmul.f32.gmra.mxu0 %v7894
        %v9454 = vpop.f32.mrf.mxu0
        %9455 = vmatmul.f32.gmra.mxu0 %v7896
        %v9456 = vpop.f32.mrf.mxu0
        %9457 = vmatmul.f32.gmra.mxu0 %v7898
        %v9458 = vpop.f32.mrf.mxu0
        %9459 = vmatmul.f32.gmra.mxu0 %v7900
        %v9460 = vpop.f32.mrf.mxu0
        %9461 = vmatmul.f32.gmra.mxu0 %v7902
        %v9462 = vpop.f32.mrf.mxu0
        %v9463 = vadd.f32 0.0, %v9462
        %9464 = vmatmul.f32.gmra.mxu0 %v7904
        %v9465 = vpop.f32.mrf.mxu0
        %v9466 = vadd.f32 0.0, %v9465
        %9467 = vmatmul.f32.gmra.mxu0 %v7906
        %v9468 = vpop.f32.mrf.mxu0
        %v9469 = vadd.f32 0.0, %v9468
        %9470 = vmatmul.f32.gmra.mxu0 %v9266
        %v9471 = vpop.f32.mrf.mxu0
        %v9472 = vadd.f32 0.0, %v9471
        %9473 = vmatmul.f32.gmra.mxu0 %v9268
        %v9474 = vpop.f32.mrf.mxu0
        %9475 = vmatmul.f32.gmra.mxu0 %v9270
        %v9476 = vpop.f32.mrf.mxu0
        %9477 = vmatmul.f32.gmra.mxu0 %v9272
        %v9478 = vpop.f32.mrf.mxu0
        %9479 = vmatmul.f32.gmra.mxu0 %v9274
        %v9480 = vpop.f32.mrf.mxu0
        %9481 = vmatmul.f32.gmra.mxu0 %v9276
        %v9482 = vpop.f32.mrf.mxu0
        %v9483 = vadd.f32 0.0, %v9482
        %9484 = vmatmul.f32.gmra.mxu0 %v9278
        %v9485 = vpop.f32.mrf.mxu0
        %v9486 = vadd.f32 0.0, %v9485
        %9487 = vmatmul.f32.gmra.mxu0 %v9280
        %v9488 = vpop.f32.mrf.mxu0
        %v9489 = vadd.f32 0.0, %v9488
        %9490 = vdwg.mxu0
        %v9491 = vadd.f32 %v9208, %v9303
        %v9492 = vadd.f32 %v9209, %v9306
        %v9493 = vadd.f32 %v9210, %v9309
        %v9494 = vadd.f32 %v9211, %v9312
        %v9495 = vadd.f32 %v9212, %v9323
        %v9496 = vadd.f32 %v9213, %v9326
        %v9497 = vadd.f32 %v9214, %v9329
        %v9498 = vadd.f32 %v9215, %v9332
        %v9499 = vadd.f32 %v9216, %v9343
        %v9500 = vadd.f32 %v9217, %v9346
        %v9501 = vadd.f32 %v9218, %v9349
        %v9502 = vadd.f32 %v9219, %v9352
        %v9503 = vadd.f32 %v9220, %v9363
        %v9504 = vadd.f32 %v9221, %v9366
        %v9505 = vadd.f32 %v9222, %v9369
        %v9506 = vadd.f32 %v9223, %v9372
        %v9507 = vadd.f32 %v9224, %v9383
        %v9508 = vadd.f32 %v9225, %v9386
        %v9509 = vadd.f32 %v9226, %v9389
        %v9510 = vadd.f32 %v9227, %v9392
        %v9511 = vadd.f32 %v9228, %v9403
        %v9512 = vadd.f32 %v9229, %v9406
        %v9513 = vadd.f32 %v9230, %v9409
        %v9514 = vadd.f32 %v9231, %v9412
        %v9515 = vadd.f32 %v9232, %v9423
        %v9516 = vadd.f32 %v9233, %v9426
        %v9517 = vadd.f32 %v9234, %v9429
        %v9518 = vadd.f32 %v9235, %v9432
        %v9519 = vadd.f32 %v9236, %v9443
        %v9520 = vadd.f32 %v9237, %v9446
        %v9521 = vadd.f32 %v9238, %v9449
        %v9522 = vadd.f32 %v9239, %v9452
        %v9523 = vadd.f32 %v9240, %v9463
        %v9524 = vadd.f32 %v9241, %v9466
        %v9525 = vadd.f32 %v9242, %v9469
        %v9526 = vadd.f32 %v9243, %v9472
        %v9527 = vadd.f32 %v9244, %v9483
        %v9528 = vadd.f32 %v9245, %v9486
        %v9529 = vadd.f32 %v9246, %v9489
        %s9530 = scalar_lea.vmem %s3, 192
        %v9531 = vld [vmem:[%s9530] sm:$0x3f]
        %v9532 = vsel %vm2212, %v1983, 0
        %v9535 = vsel %vm2062, %v9531, 0
        %9537 = vmatpush.msra.mxu0 0.0
        %9538 = vmatpush.msra.mxu0 0.0
        %9539 = vmatpush.msra.mxu0 0.0
        %9540 = vmatpush.msra.mxu0 0.0
        %9541 = vmatpush.msra.mxu0 0.0
        %9542 = vmatpush.msra.mxu0 0.0
        %9543 = vmatpush.msra.mxu0 0.0
        %9544 = vmatpush.msra.mxu0 0.0
        %9545 = vmatpush.msra.mxu0 0.0
        %9546 = vmatpush.msra.mxu0 0.0
        %9547 = vmatpush.msra.mxu0 0.0
        %9548 = vmatpush.msra.mxu0 0.0
        %9549 = vmatpush.msra.mxu0 0.0
        %9550 = vmatpush.msra.mxu0 0.0
        %9551 = vmatpush.msra.mxu0 0.0
        %9552 = vmatpush.msra.mxu0 %v9535
        %9553 = vmatmul.f32.gmra.mxu0 %v2638
        %v9554 = vpop.f32.mrf.mxu0
        %v9555 = vadd.f32 0.0, %v9554
        %9556 = vmatmul.f32.gmra.mxu0 %v2640
        %v9557 = vpop.f32.mrf.mxu0
        %v9558 = vadd.f32 0.0, %v9557
        %9559 = vmatmul.f32.gmra.mxu0 %v2642
        %v9560 = vpop.f32.mrf.mxu0
        %v9561 = vadd.f32 0.0, %v9560
        %9562 = vmatmul.f32.gmra.mxu0 %v2644
        %v9563 = vpop.f32.mrf.mxu0
        %v9564 = vadd.f32 0.0, %v9563
        %9565 = vmatmul.f32.gmra.mxu0 %v2646
        %v9566 = vpop.f32.mrf.mxu0
        %9567 = vmatmul.f32.gmra.mxu0 %v2648
        %v9568 = vpop.f32.mrf.mxu0
        %9569 = vmatmul.f32.gmra.mxu0 %v2650
        %v9570 = vpop.f32.mrf.mxu0
        %9571 = vmatmul.f32.gmra.mxu0 %v2652
        %v9572 = vpop.f32.mrf.mxu0
        %9573 = vmatmul.f32.gmra.mxu0 %v2654
        %v9574 = vpop.f32.mrf.mxu0
        %v9575 = vadd.f32 0.0, %v9574
        %9576 = vmatmul.f32.gmra.mxu0 %v2656
        %v9577 = vpop.f32.mrf.mxu0
        %v9578 = vadd.f32 0.0, %v9577
        %9579 = vmatmul.f32.gmra.mxu0 %v2658
        %v9580 = vpop.f32.mrf.mxu0
        %v9581 = vadd.f32 0.0, %v9580
        %9582 = vmatmul.f32.gmra.mxu0 %v2660
        %v9583 = vpop.f32.mrf.mxu0
        %v9584 = vadd.f32 0.0, %v9583
        %9585 = vmatmul.f32.gmra.mxu0 %v2662
        %v9586 = vpop.f32.mrf.mxu0
        %9587 = vmatmul.f32.gmra.mxu0 %v2664
        %v9588 = vpop.f32.mrf.mxu0
        %9589 = vmatmul.f32.gmra.mxu0 %v2666
        %v9590 = vpop.f32.mrf.mxu0
        %9591 = vmatmul.f32.gmra.mxu0 %v2668
        %v9592 = vpop.f32.mrf.mxu0
        %9593 = vmatmul.f32.gmra.mxu0 %v2670
        %v9594 = vpop.f32.mrf.mxu0
        %v9595 = vadd.f32 0.0, %v9594
        %9596 = vmatmul.f32.gmra.mxu0 %v2672
        %v9597 = vpop.f32.mrf.mxu0
        %v9598 = vadd.f32 0.0, %v9597
        %9599 = vmatmul.f32.gmra.mxu0 %v2674
        %v9600 = vpop.f32.mrf.mxu0
        %v9601 = vadd.f32 0.0, %v9600
        %9602 = vmatmul.f32.gmra.mxu0 %v2676
        %v9603 = vpop.f32.mrf.mxu0
        %v9604 = vadd.f32 0.0, %v9603
        %9605 = vmatmul.f32.gmra.mxu0 %v2678
        %v9606 = vpop.f32.mrf.mxu0
        %9607 = vmatmul.f32.gmra.mxu0 %v2680
        %v9608 = vpop.f32.mrf.mxu0
        %9609 = vmatmul.f32.gmra.mxu0 %v2682
        %v9610 = vpop.f32.mrf.mxu0
        %9611 = vmatmul.f32.gmra.mxu0 %v2684
        %v9612 = vpop.f32.mrf.mxu0
        %9613 = vmatmul.f32.gmra.mxu0 %v2686
        %v9614 = vpop.f32.mrf.mxu0
        %v9615 = vadd.f32 0.0, %v9614
        %9616 = vmatmul.f32.gmra.mxu0 %v2688
        %v9617 = vpop.f32.mrf.mxu0
        %v9618 = vadd.f32 0.0, %v9617
        %9619 = vmatmul.f32.gmra.mxu0 %v2690
        %v9620 = vpop.f32.mrf.mxu0
        %v9621 = vadd.f32 0.0, %v9620
        %9622 = vmatmul.f32.gmra.mxu0 %v2692
        %v9623 = vpop.f32.mrf.mxu0
        %v9624 = vadd.f32 0.0, %v9623
        %9625 = vmatmul.f32.gmra.mxu0 %v2694
        %v9626 = vpop.f32.mrf.mxu0
        %9627 = vmatmul.f32.gmra.mxu0 %v2696
        %v9628 = vpop.f32.mrf.mxu0
        %9629 = vmatmul.f32.gmra.mxu0 %v2698
        %v9630 = vpop.f32.mrf.mxu0
        %9631 = vmatmul.f32.gmra.mxu0 %v2700
        %v9632 = vpop.f32.mrf.mxu0
        %9633 = vmatmul.f32.gmra.mxu0 %v2702
        %v9634 = vpop.f32.mrf.mxu0
        %v9635 = vadd.f32 0.0, %v9634
        %9636 = vmatmul.f32.gmra.mxu0 %v2704
        %v9637 = vpop.f32.mrf.mxu0
        %v9638 = vadd.f32 0.0, %v9637
        %9639 = vmatmul.f32.gmra.mxu0 %v2706
        %v9640 = vpop.f32.mrf.mxu0
        %v9641 = vadd.f32 0.0, %v9640
        %9642 = vmatmul.f32.gmra.mxu0 %v2708
        %v9643 = vpop.f32.mrf.mxu0
        %v9644 = vadd.f32 0.0, %v9643
        %9645 = vmatmul.f32.gmra.mxu0 %v2710
        %v9646 = vpop.f32.mrf.mxu0
        %9647 = vmatmul.f32.gmra.mxu0 %v2712
        %v9648 = vpop.f32.mrf.mxu0
        %9649 = vmatmul.f32.gmra.mxu0 %v2714
        %v9650 = vpop.f32.mrf.mxu0
        %9651 = vmatmul.f32.gmra.mxu0 %v2716
        %v9652 = vpop.f32.mrf.mxu0
        %9653 = vmatmul.f32.gmra.mxu0 %v2718
        %v9654 = vpop.f32.mrf.mxu0
        %v9655 = vadd.f32 0.0, %v9654
        %9656 = vmatmul.f32.gmra.mxu0 %v2720
        %v9657 = vpop.f32.mrf.mxu0
        %v9658 = vadd.f32 0.0, %v9657
        %9659 = vmatmul.f32.gmra.mxu0 %v4036
        %v9660 = vpop.f32.mrf.mxu0
        %v9661 = vadd.f32 0.0, %v9660
        %9662 = vmatmul.f32.gmra.mxu0 %v4289
        %v9663 = vpop.f32.mrf.mxu0
        %v9664 = vadd.f32 0.0, %v9663
        %9665 = vmatmul.f32.gmra.mxu0 %v4292
        %v9666 = vpop.f32.mrf.mxu0
        %9667 = vmatmul.f32.gmra.mxu0 %v4295
        %v9668 = vpop.f32.mrf.mxu0
        %9669 = vmatmul.f32.gmra.mxu0 %v4298
        %v9670 = vpop.f32.mrf.mxu0
        %9671 = vmatmul.f32.gmra.mxu0 %v4301
        %v9672 = vpop.f32.mrf.mxu0
        %9673 = vmatmul.f32.gmra.mxu0 %v4304
        %v9674 = vpop.f32.mrf.mxu0
        %v9675 = vadd.f32 0.0, %v9674
        %9676 = vmatmul.f32.gmra.mxu0 %v4307
        %v9677 = vpop.f32.mrf.mxu0
        %v9678 = vadd.f32 0.0, %v9677
        %9679 = vmatmul.f32.gmra.mxu0 %v5410
        %v9680 = vpop.f32.mrf.mxu0
        %v9681 = vadd.f32 0.0, %v9680
        %9682 = vmatmul.f32.gmra.mxu0 %v5663
        %v9683 = vpop.f32.mrf.mxu0
        %v9684 = vadd.f32 0.0, %v9683
        %9685 = vmatmul.f32.gmra.mxu0 %v5666
        %v9686 = vpop.f32.mrf.mxu0
        %9687 = vmatmul.f32.gmra.mxu0 %v5669
        %v9688 = vpop.f32.mrf.mxu0
        %9689 = vmatmul.f32.gmra.mxu0 %v5672
        %v9690 = vpop.f32.mrf.mxu0
        %9691 = vmatmul.f32.gmra.mxu0 %v5675
        %v9692 = vpop.f32.mrf.mxu0
        %9693 = vmatmul.f32.gmra.mxu0 %v5678
        %v9694 = vpop.f32.mrf.mxu0
        %v9695 = vadd.f32 0.0, %v9694
        %9696 = vmatmul.f32.gmra.mxu0 %v5681
        %v9697 = vpop.f32.mrf.mxu0
        %v9698 = vadd.f32 0.0, %v9697
        %9699 = vmatmul.f32.gmra.mxu0 %v6784
        %v9700 = vpop.f32.mrf.mxu0
        %v9701 = vadd.f32 0.0, %v9700
        %9702 = vmatmul.f32.gmra.mxu0 %v7037
        %v9703 = vpop.f32.mrf.mxu0
        %v9704 = vadd.f32 0.0, %v9703
        %9705 = vmatmul.f32.gmra.mxu0 %v7040
        %v9706 = vpop.f32.mrf.mxu0
        %9707 = vmatmul.f32.gmra.mxu0 %v7043
        %v9708 = vpop.f32.mrf.mxu0
        %9709 = vmatmul.f32.gmra.mxu0 %v7046
        %v9710 = vpop.f32.mrf.mxu0
        %9711 = vmatmul.f32.gmra.mxu0 %v7049
        %v9712 = vpop.f32.mrf.mxu0
        %9713 = vmatmul.f32.gmra.mxu0 %v7052
        %v9714 = vpop.f32.mrf.mxu0
        %v9715 = vadd.f32 0.0, %v9714
        %9716 = vmatmul.f32.gmra.mxu0 %v7055
        %v9717 = vpop.f32.mrf.mxu0
        %v9718 = vadd.f32 0.0, %v9717
        %9719 = vmatmul.f32.gmra.mxu0 %v8158
        %v9720 = vpop.f32.mrf.mxu0
        %v9721 = vadd.f32 0.0, %v9720
        %9722 = vmatmul.f32.gmra.mxu0 %v8411
        %v9723 = vpop.f32.mrf.mxu0
        %v9724 = vadd.f32 0.0, %v9723
        %9725 = vmatmul.f32.gmra.mxu0 %v8414
        %v9726 = vpop.f32.mrf.mxu0
        %9727 = vmatmul.f32.gmra.mxu0 %v8417
        %v9728 = vpop.f32.mrf.mxu0
        %9729 = vmatmul.f32.gmra.mxu0 %v8420
        %v9730 = vpop.f32.mrf.mxu0
        %9731 = vmatmul.f32.gmra.mxu0 %v8423
        %v9732 = vpop.f32.mrf.mxu0
        %9733 = vmatmul.f32.gmra.mxu0 %v8426
        %v9734 = vpop.f32.mrf.mxu0
        %v9735 = vadd.f32 0.0, %v9734
        %9736 = vmatmul.f32.gmra.mxu0 %v8429
        %v9737 = vpop.f32.mrf.mxu0
        %v9738 = vadd.f32 0.0, %v9737
        %9739 = vmatmul.f32.gmra.mxu0 %v9532
        %v9740 = vpop.f32.mrf.mxu0
        %v9741 = vadd.f32 0.0, %v9740
        %9742 = vdwg.mxu0
        %v9743 = vadd.f32 %v9491, %v9555
        %v9744 = vadd.f32 %v9492, %v9558
        %v9745 = vadd.f32 %v9493, %v9561
        %v9746 = vadd.f32 %v9494, %v9564
        %v9747 = vadd.f32 %v9495, %v9575
        %v9748 = vadd.f32 %v9496, %v9578
        %v9749 = vadd.f32 %v9497, %v9581
        %v9750 = vadd.f32 %v9498, %v9584
        %v9751 = vadd.f32 %v9499, %v9595
        %v9752 = vadd.f32 %v9500, %v9598
        %v9753 = vadd.f32 %v9501, %v9601
        %v9754 = vadd.f32 %v9502, %v9604
        %v9755 = vadd.f32 %v9503, %v9615
        %v9756 = vadd.f32 %v9504, %v9618
        %v9757 = vadd.f32 %v9505, %v9621
        %v9758 = vadd.f32 %v9506, %v9624
        %v9759 = vadd.f32 %v9507, %v9635
        %v9760 = vadd.f32 %v9508, %v9638
        %v9761 = vadd.f32 %v9509, %v9641
        %v9762 = vadd.f32 %v9510, %v9644
        %v9763 = vadd.f32 %v9511, %v9655
        %v9764 = vadd.f32 %v9512, %v9658
        %v9765 = vadd.f32 %v9513, %v9661
        %v9766 = vadd.f32 %v9514, %v9664
        %v9767 = vadd.f32 %v9515, %v9675
        %v9768 = vadd.f32 %v9516, %v9678
        %v9769 = vadd.f32 %v9517, %v9681
        %v9770 = vadd.f32 %v9518, %v9684
        %v9771 = vadd.f32 %v9519, %v9695
        %v9772 = vadd.f32 %v9520, %v9698
        %v9773 = vadd.f32 %v9521, %v9701
        %v9774 = vadd.f32 %v9522, %v9704
        %v9775 = vadd.f32 %v9523, %v9715
        %v9776 = vadd.f32 %v9524, %v9718
        %v9777 = vadd.f32 %v9525, %v9721
        %v9778 = vadd.f32 %v9526, %v9724
        %v9779 = vadd.f32 %v9527, %v9735
        %v9780 = vadd.f32 %v9528, %v9738
        %v9781 = vadd.f32 %v9529, %v9741
        %v9782 = vld [vmem:[%s4] sm:$0x1]
        %v9784 = vperm.slane %v9782, 0
        %v9786 = vadd.f32 %v9743, %v9784
        %v9787 = vadd.f32 %v9744, %v9784
        %v9788 = vadd.f32 %v9745, %v9784
        %v9789 = vadd.f32 %v9746, %v9784
        %v9790 = vadd.f32 %v9747, %v9784
        %v9791 = vadd.f32 %v9748, %v9784
        %v9792 = vadd.f32 %v9749, %v9784
        %v9793 = vadd.f32 %v9750, %v9784
        %v9794 = vadd.f32 %v9751, %v9784
        %v9795 = vadd.f32 %v9752, %v9784
        %v9796 = vadd.f32 %v9753, %v9784
        %v9797 = vadd.f32 %v9754, %v9784
        %v9798 = vadd.f32 %v9755, %v9784
        %v9799 = vadd.f32 %v9756, %v9784
        %v9800 = vadd.f32 %v9757, %v9784
        %v9801 = vadd.f32 %v9758, %v9784
        %v9802 = vadd.f32 %v9759, %v9784
        %v9803 = vadd.f32 %v9760, %v9784
        %v9804 = vadd.f32 %v9761, %v9784
        %v9805 = vadd.f32 %v9762, %v9784
        %v9806 = vadd.f32 %v9763, %v9784
        %v9807 = vadd.f32 %v9764, %v9784
        %v9808 = vadd.f32 %v9765, %v9784
        %v9809 = vadd.f32 %v9766, %v9784
        %v9810 = vadd.f32 %v9767, %v9784
        %v9811 = vadd.f32 %v9768, %v9784
        %v9812 = vadd.f32 %v9769, %v9784
        %v9813 = vadd.f32 %v9770, %v9784
        %v9814 = vadd.f32 %v9771, %v9784
        %v9815 = vadd.f32 %v9772, %v9784
        %v9816 = vadd.f32 %v9773, %v9784
        %v9817 = vadd.f32 %v9774, %v9784
        %v9818 = vadd.f32 %v9775, %v9784
        %v9819 = vadd.f32 %v9776, %v9784
        %v9820 = vadd.f32 %v9777, %v9784
        %v9821 = vadd.f32 %v9778, %v9784
        %v9822 = vadd.f32 %v9779, %v9784
        %v9823 = vadd.f32 %v9780, %v9784
        %v9824 = vadd.f32 %v9781, %v9784
        %v9825 = vmax.f32 %v9786, 0.0
        %v9826 = vmax.f32 %v9787, 0.0
        %v9827 = vmax.f32 %v9788, 0.0
        %v9828 = vmax.f32 %v9789, 0.0
        %v9829 = vmax.f32 %v9790, 0.0
        %v9830 = vmax.f32 %v9791, 0.0
        %v9831 = vmax.f32 %v9792, 0.0
        %v9832 = vmax.f32 %v9793, 0.0
        %v9833 = vmax.f32 %v9794, 0.0
        %v9834 = vmax.f32 %v9795, 0.0
        %v9835 = vmax.f32 %v9796, 0.0
        %v9836 = vmax.f32 %v9797, 0.0
        %v9837 = vmax.f32 %v9798, 0.0
        %v9838 = vmax.f32 %v9799, 0.0
        %v9839 = vmax.f32 %v9800, 0.0
        %v9840 = vmax.f32 %v9801, 0.0
        %v9841 = vmax.f32 %v9802, 0.0
        %v9842 = vmax.f32 %v9803, 0.0
        %v9843 = vmax.f32 %v9804, 0.0
        %v9844 = vmax.f32 %v9805, 0.0
        %v9845 = vmax.f32 %v9806, 0.0
        %v9846 = vmax.f32 %v9807, 0.0
        %v9847 = vmax.f32 %v9808, 0.0
        %v9848 = vmax.f32 %v9809, 0.0
        %v9849 = vmax.f32 %v9810, 0.0
        %v9850 = vmax.f32 %v9811, 0.0
        %v9851 = vmax.f32 %v9812, 0.0
        %v9852 = vmax.f32 %v9813, 0.0
        %v9853 = vmax.f32 %v9814, 0.0
        %v9854 = vmax.f32 %v9815, 0.0
        %v9855 = vmax.f32 %v9816, 0.0
        %v9856 = vmax.f32 %v9817, 0.0
        %v9857 = vmax.f32 %v9818, 0.0
        %v9858 = vmax.f32 %v9819, 0.0
        %v9859 = vmax.f32 %v9820, 0.0
        %v9860 = vmax.f32 %v9821, 0.0
        %v9861 = vmax.f32 %v9822, 0.0
        %v9862 = vmax.f32 %v9823, 0.0
        %v9863 = vmax.f32 %v9824, 0.0
        %v9903 = vrot.slane %v9825, 2
        %v9904 = vrot.slane %v9826, 2
        %v9905 = vsel %vm2062, %v9903, %v9904
        %v9906 = vrot.slane %v9827, 2
        %v9907 = vsel %vm2062, %v9904, %v9906
        %v9908 = vrot.slane %v9828, 2
        %v9909 = vsel %vm2062, %v9906, %v9908
        %v9910 = vrot.slane %v9829, 2
        %v9911 = vrot.slane %v9830, 2
        %v9912 = vsel %vm2062, %v9910, %v9911
        %v9913 = vrot.slane %v9831, 2
        %v9914 = vsel %vm2062, %v9911, %v9913
        %v9915 = vrot.slane %v9832, 2
        %v9916 = vsel %vm2062, %v9913, %v9915
        %v9917 = vrot.slane %v9833, 2
        %v9918 = vrot.slane %v9834, 2
        %v9919 = vsel %vm2062, %v9917, %v9918
        %v9920 = vrot.slane %v9835, 2
        %v9921 = vsel %vm2062, %v9918, %v9920
        %v9922 = vrot.slane %v9836, 2
        %v9923 = vsel %vm2062, %v9920, %v9922
        %v9924 = vrot.slane %v9837, 2
        %v9925 = vrot.slane %v9838, 2
        %v9926 = vsel %vm2062, %v9924, %v9925
        %v9927 = vrot.slane %v9839, 2
        %v9928 = vsel %vm2062, %v9925, %v9927
        %v9929 = vrot.slane %v9840, 2
        %v9930 = vsel %vm2062, %v9927, %v9929
        %v9931 = vrot.slane %v9841, 2
        %v9932 = vrot.slane %v9842, 2
        %v9933 = vsel %vm2062, %v9931, %v9932
        %v9934 = vrot.slane %v9843, 2
        %v9935 = vsel %vm2062, %v9932, %v9934
        %v9936 = vrot.slane %v9844, 2
        %v9937 = vsel %vm2062, %v9934, %v9936
        %v9938 = vrot.slane %v9845, 2
        %v9939 = vrot.slane %v9846, 2
        %v9940 = vsel %vm2062, %v9938, %v9939
        %v9941 = vrot.slane %v9847, 2
        %v9942 = vsel %vm2062, %v9939, %v9941
        %v9943 = vrot.slane %v9848, 2
        %v9944 = vsel %vm2062, %v9941, %v9943
        %v9945 = vrot.slane %v9849, 2
        %v9946 = vrot.slane %v9850, 2
        %v9947 = vsel %vm2062, %v9945, %v9946
        %v9948 = vrot.slane %v9851, 2
        %v9949 = vsel %vm2062, %v9946, %v9948
        %v9950 = vrot.slane %v9852, 2
        %v9951 = vsel %vm2062, %v9948, %v9950
        %v9952 = vrot.slane %v9853, 2
        %v9953 = vrot.slane %v9854, 2
        %v9954 = vsel %vm2062, %v9952, %v9953
        %v9955 = vrot.slane %v9855, 2
        %v9956 = vsel %vm2062, %v9953, %v9955
        %v9957 = vrot.slane %v9856, 2
        %v9958 = vsel %vm2062, %v9955, %v9957
        %v9959 = vrot.slane %v9857, 2
        %v9960 = vrot.slane %v9858, 2
        %v9961 = vsel %vm2062, %v9959, %v9960
        %v9962 = vrot.slane %v9859, 2
        %v9963 = vsel %vm2062, %v9960, %v9962
        %v9964 = vrot.slane %v9860, 2
        %v9965 = vsel %vm2062, %v9962, %v9964
        %v9966 = vrot.slane %v9861, 2
        %v9967 = vrot.slane %v9862, 2
        %v9968 = vsel %vm2062, %v9966, %v9967
        %v9969 = vrot.slane %v9863, 2
        %v9970 = vsel %vm2062, %v9967, %v9969
        %v10001 = vmax.f32 %v9825, %v9905
        %v10002 = vmax.f32 %v9826, %v9907
        %v10003 = vmax.f32 %v9827, %v9909
        %v10004 = vmax.f32 %v9829, %v9912
        %v10005 = vmax.f32 %v9830, %v9914
        %v10006 = vmax.f32 %v9831, %v9916
        %v10007 = vmax.f32 %v9833, %v9919
        %v10008 = vmax.f32 %v9834, %v9921
        %v10009 = vmax.f32 %v9835, %v9923
        %v10010 = vmax.f32 %v9837, %v9926
        %v10011 = vmax.f32 %v9838, %v9928
        %v10012 = vmax.f32 %v9839, %v9930
        %v10013 = vmax.f32 %v9841, %v9933
        %v10014 = vmax.f32 %v9842, %v9935
        %v10015 = vmax.f32 %v9843, %v9937
        %v10016 = vmax.f32 %v9845, %v9940
        %v10017 = vmax.f32 %v9846, %v9942
        %v10018 = vmax.f32 %v9847, %v9944
        %v10019 = vmax.f32 %v9849, %v9947
        %v10020 = vmax.f32 %v9850, %v9949
        %v10021 = vmax.f32 %v9851, %v9951
        %v10022 = vmax.f32 %v9853, %v9954
        %v10023 = vmax.f32 %v9854, %v9956
        %v10024 = vmax.f32 %v9855, %v9958
        %v10025 = vmax.f32 %v9857, %v9961
        %v10026 = vmax.f32 %v9858, %v9963
        %v10027 = vmax.f32 %v9859, %v9965
        %v10028 = vmax.f32 %v9861, %v9968
        %v10029 = vmax.f32 %v9862, %v9970
        %v10030 = vmax.f32 %v9863, %v9969
        %v10031 = vmax.f32 %v10001, %v10004
        %v10032 = vmax.f32 %v10002, %v10005
        %v10033 = vmax.f32 %v10003, %v10006
        %v10034 = vmax.f32 %v10007, %v10010
        %v10035 = vmax.f32 %v10008, %v10011
        %v10036 = vmax.f32 %v10009, %v10012
        %v10037 = vmax.f32 %v10013, %v10016
        %v10038 = vmax.f32 %v10014, %v10017
        %v10039 = vmax.f32 %v10015, %v10018
        %v10040 = vmax.f32 %v10019, %v10022
        %v10041 = vmax.f32 %v10020, %v10023
        %v10042 = vmax.f32 %v10021, %v10024
        %v10043 = vmax.f32 %v10025, %v10028
        %v10044 = vmax.f32 %v10026, %v10029
        %v10045 = vmax.f32 %v10027, %v10030
        %v10046 = vld [vmem:[%s6] sm:$0x1]
        %v10047 = vld [vmem:[%s5] sm:$0xff]
        %v10048 = vld [vmem:[%s5 + $0x8] sm:$0xff]
        %vm10049 = vcmask 130048
        %v10051 = vsel %vm10049, %v10031, 0
        %10053 = vmatpush.msra.mxu0 0.0
        %10054 = vmatpush.msra.mxu0 0.0
        %10055 = vmatpush.msra.mxu0 0.0
        %10056 = vmatpush.msra.mxu0 0.0
        %10057 = vmatpush.msra.mxu0 0.0
        %10058 = vmatpush.msra.mxu0 0.0
        %10059 = vmatpush.msra.mxu0 0.0
        %10060 = vmatpush.msra.mxu0 0.0
        %10061 = vmatpush.msra.mxu0 0.0
        %10062 = vmatpush.msra.mxu0 0.0
        %10063 = vmatpush.msra.mxu0 0.0
        %10064 = vmatpush.msra.mxu0 0.0
        %10065 = vmatpush.msra.mxu0 0.0
        %10066 = vmatpush.msra.mxu0 0.0
        %10067 = vmatpush.msra.mxu0 %v10048
        %10068 = vmatpush.msra.mxu0 %v10047
        %10069 = vmatmul.f32.gmra.mxu0 %v10051
        %v10070 = vpop.f32.mrf.mxu0
        %v10071 = vadd.f32 0.0, %v10070
        %10072 = vdwg.mxu0
        %v10073 = vadd.f32 %v10046, %v10071
        %s10074 = scalar_lea.vmem %s5, 16
        %v10075 = vld [vmem:[%s10074] sm:$0xff]
        %v10076 = vld [vmem:[%s10074 + $0x8] sm:$0xff]
        %v10077 = vrot.slane %v10031, 4
        %v10078 = vsel %vm10049, %v10077, 0
        %10080 = vmatpush.msra.mxu0 0.0
        %10081 = vmatpush.msra.mxu0 0.0
        %10082 = vmatpush.msra.mxu0 0.0
        %10083 = vmatpush.msra.mxu0 0.0
        %10084 = vmatpush.msra.mxu0 0.0
        %10085 = vmatpush.msra.mxu0 0.0
        %10086 = vmatpush.msra.mxu0 0.0
        %10087 = vmatpush.msra.mxu0 0.0
        %10088 = vmatpush.msra.mxu0 0.0
        %10089 = vmatpush.msra.mxu0 0.0
        %10090 = vmatpush.msra.mxu0 0.0
        %10091 = vmatpush.msra.mxu0 0.0
        %10092 = vmatpush.msra.mxu0 0.0
        %10093 = vmatpush.msra.mxu0 0.0
        %10094 = vmatpush.msra.mxu0 %v10076
        %10095 = vmatpush.msra.mxu0 %v10075
        %10096 = vmatmul.f32.gmra.mxu0 %v10078
        %v10097 = vpop.f32.mrf.mxu0
        %v10098 = vadd.f32 0.0, %v10097
        %10099 = vdwg.mxu0
        %v10100 = vadd.f32 %v10073, %v10098
        %s10101 = scalar_lea.vmem %s5, 32
        %v10102 = vld [vmem:[%s10101] sm:$0xff]
        %v10103 = vld [vmem:[%s10101 + $0x8] sm:$0xff]
        %v10105 = vsel %vm10049, %v10032, 0
        %10107 = vmatpush.msra.mxu0 0.0
        %10108 = vmatpush.msra.mxu0 0.0
        %10109 = vmatpush.msra.mxu0 0.0
        %10110 = vmatpush.msra.mxu0 0.0
        %10111 = vmatpush.msra.mxu0 0.0
        %10112 = vmatpush.msra.mxu0 0.0
        %10113 = vmatpush.msra.mxu0 0.0
        %10114 = vmatpush.msra.mxu0 0.0
        %10115 = vmatpush.msra.mxu0 0.0
        %10116 = vmatpush.msra.mxu0 0.0
        %10117 = vmatpush.msra.mxu0 0.0
        %10118 = vmatpush.msra.mxu0 0.0
        %10119 = vmatpush.msra.mxu0 0.0
        %10120 = vmatpush.msra.mxu0 0.0
        %10121 = vmatpush.msra.mxu0 %v10103
        %10122 = vmatpush.msra.mxu0 %v10102
        %10123 = vmatmul.f32.gmra.mxu0 %v10105
        %v10124 = vpop.f32.mrf.mxu0
        %v10125 = vadd.f32 0.0, %v10124
        %10126 = vdwg.mxu0
        %v10127 = vadd.f32 %v10100, %v10125
        %s10128 = scalar_lea.vmem %s5, 48
        %v10129 = vld [vmem:[%s10128] sm:$0xff]
        %v10130 = vld [vmem:[%s10128 + $0x8] sm:$0xff]
        %v10131 = vrot.slane %v10032, 4
        %v10132 = vsel %vm10049, %v10131, 0
        %10134 = vmatpush.msra.mxu0 0.0
        %10135 = vmatpush.msra.mxu0 0.0
        %10136 = vmatpush.msra.mxu0 0.0
        %10137 = vmatpush.msra.mxu0 0.0
        %10138 = vmatpush.msra.mxu0 0.0
        %10139 = vmatpush.msra.mxu0 0.0
        %10140 = vmatpush.msra.mxu0 0.0
        %10141 = vmatpush.msra.mxu0 0.0
        %10142 = vmatpush.msra.mxu0 0.0
        %10143 = vmatpush.msra.mxu0 0.0
        %10144 = vmatpush.msra.mxu0 0.0
        %10145 = vmatpush.msra.mxu0 0.0
        %10146 = vmatpush.msra.mxu0 0.0
        %10147 = vmatpush.msra.mxu0 0.0
        %10148 = vmatpush.msra.mxu0 %v10130
        %10149 = vmatpush.msra.mxu0 %v10129
        %10150 = vmatmul.f32.gmra.mxu0 %v10132
        %v10151 = vpop.f32.mrf.mxu0
        %v10152 = vadd.f32 0.0, %v10151
        %10153 = vdwg.mxu0
        %v10154 = vadd.f32 %v10127, %v10152
        %s10155 = scalar_lea.vmem %s5, 64
        %v10156 = vld [vmem:[%s10155] sm:$0xff]
        %v10157 = vld [vmem:[%s10155 + $0x8] sm:$0xff]
        %v10159 = vsel %vm10049, %v10033, 0
        %10161 = vmatpush.msra.mxu0 0.0
        %10162 = vmatpush.msra.mxu0 0.0
        %10163 = vmatpush.msra.mxu0 0.0
        %10164 = vmatpush.msra.mxu0 0.0
        %10165 = vmatpush.msra.mxu0 0.0
        %10166 = vmatpush.msra.mxu0 0.0
        %10167 = vmatpush.msra.mxu0 0.0
        %10168 = vmatpush.msra.mxu0 0.0
        %10169 = vmatpush.msra.mxu0 0.0
        %10170 = vmatpush.msra.mxu0 0.0
        %10171 = vmatpush.msra.mxu0 0.0
        %10172 = vmatpush.msra.mxu0 0.0
        %10173 = vmatpush.msra.mxu0 0.0
        %10174 = vmatpush.msra.mxu0 0.0
        %10175 = vmatpush.msra.mxu0 %v10157
        %10176 = vmatpush.msra.mxu0 %v10156
        %10177 = vmatmul.f32.gmra.mxu0 %v10159
        %v10178 = vpop.f32.mrf.mxu0
        %v10179 = vadd.f32 0.0, %v10178
        %10180 = vdwg.mxu0
        %v10181 = vadd.f32 %v10154, %v10179
        %s10182 = scalar_lea.vmem %s5, 80
        %v10183 = vld [vmem:[%s10182] sm:$0xff]
        %v10184 = vld [vmem:[%s10182 + $0x8] sm:$0xff]
        %v10186 = vsel %vm10049, %v10034, 0
        %10188 = vmatpush.msra.mxu0 0.0
        %10189 = vmatpush.msra.mxu0 0.0
        %10190 = vmatpush.msra.mxu0 0.0
        %10191 = vmatpush.msra.mxu0 0.0
        %10192 = vmatpush.msra.mxu0 0.0
        %10193 = vmatpush.msra.mxu0 0.0
        %10194 = vmatpush.msra.mxu0 0.0
        %10195 = vmatpush.msra.mxu0 0.0
        %10196 = vmatpush.msra.mxu0 0.0
        %10197 = vmatpush.msra.mxu0 0.0
        %10198 = vmatpush.msra.mxu0 0.0
        %10199 = vmatpush.msra.mxu0 0.0
        %10200 = vmatpush.msra.mxu0 0.0
        %10201 = vmatpush.msra.mxu0 0.0
        %10202 = vmatpush.msra.mxu0 %v10184
        %10203 = vmatpush.msra.mxu0 %v10183
        %10204 = vmatmul.f32.gmra.mxu0 %v10186
        %v10205 = vpop.f32.mrf.mxu0
        %v10206 = vadd.f32 0.0, %v10205
        %10207 = vdwg.mxu0
        %v10208 = vadd.f32 %v10181, %v10206
        %s10209 = scalar_lea.vmem %s5, 96
        %v10210 = vld [vmem:[%s10209] sm:$0xff]
        %v10211 = vld [vmem:[%s10209 + $0x8] sm:$0xff]
        %v10212 = vrot.slane %v10034, 4
        %v10213 = vsel %vm10049, %v10212, 0
        %10215 = vmatpush.msra.mxu0 0.0
        %10216 = vmatpush.msra.mxu0 0.0
        %10217 = vmatpush.msra.mxu0 0.0
        %10218 = vmatpush.msra.mxu0 0.0
        %10219 = vmatpush.msra.mxu0 0.0
        %10220 = vmatpush.msra.mxu0 0.0
        %10221 = vmatpush.msra.mxu0 0.0
        %10222 = vmatpush.msra.mxu0 0.0
        %10223 = vmatpush.msra.mxu0 0.0
        %10224 = vmatpush.msra.mxu0 0.0
        %10225 = vmatpush.msra.mxu0 0.0
        %10226 = vmatpush.msra.mxu0 0.0
        %10227 = vmatpush.msra.mxu0 0.0
        %10228 = vmatpush.msra.mxu0 0.0
        %10229 = vmatpush.msra.mxu0 %v10211
        %10230 = vmatpush.msra.mxu0 %v10210
        %10231 = vmatmul.f32.gmra.mxu0 %v10213
        %v10232 = vpop.f32.mrf.mxu0
        %v10233 = vadd.f32 0.0, %v10232
        %10234 = vdwg.mxu0
        %v10235 = vadd.f32 %v10208, %v10233
        %s10236 = scalar_lea.vmem %s5, 112
        %v10237 = vld [vmem:[%s10236] sm:$0xff]
        %v10238 = vld [vmem:[%s10236 + $0x8] sm:$0xff]
        %v10240 = vsel %vm10049, %v10035, 0
        %10242 = vmatpush.msra.mxu0 0.0
        %10243 = vmatpush.msra.mxu0 0.0
        %10244 = vmatpush.msra.mxu0 0.0
        %10245 = vmatpush.msra.mxu0 0.0
        %10246 = vmatpush.msra.mxu0 0.0
        %10247 = vmatpush.msra.mxu0 0.0
        %10248 = vmatpush.msra.mxu0 0.0
        %10249 = vmatpush.msra.mxu0 0.0
        %10250 = vmatpush.msra.mxu0 0.0
        %10251 = vmatpush.msra.mxu0 0.0
        %10252 = vmatpush.msra.mxu0 0.0
        %10253 = vmatpush.msra.mxu0 0.0
        %10254 = vmatpush.msra.mxu0 0.0
        %10255 = vmatpush.msra.mxu0 0.0
        %10256 = vmatpush.msra.mxu0 %v10238
        %10257 = vmatpush.msra.mxu0 %v10237
        %10258 = vmatmul.f32.gmra.mxu0 %v10240
        %v10259 = vpop.f32.mrf.mxu0
        %v10260 = vadd.f32 0.0, %v10259
        %10261 = vdwg.mxu0
        %v10262 = vadd.f32 %v10235, %v10260
        %s10263 = scalar_lea.vmem %s5, 128
        %v10264 = vld [vmem:[%s10263] sm:$0xff]
        %v10265 = vld [vmem:[%s10263 + $0x8] sm:$0xff]
        %v10266 = vrot.slane %v10035, 4
        %v10267 = vsel %vm10049, %v10266, 0
        %10269 = vmatpush.msra.mxu0 0.0
        %10270 = vmatpush.msra.mxu0 0.0
        %10271 = vmatpush.msra.mxu0 0.0
        %10272 = vmatpush.msra.mxu0 0.0
        %10273 = vmatpush.msra.mxu0 0.0
        %10274 = vmatpush.msra.mxu0 0.0
        %10275 = vmatpush.msra.mxu0 0.0
        %10276 = vmatpush.msra.mxu0 0.0
        %10277 = vmatpush.msra.mxu0 0.0
        %10278 = vmatpush.msra.mxu0 0.0
        %10279 = vmatpush.msra.mxu0 0.0
        %10280 = vmatpush.msra.mxu0 0.0
        %10281 = vmatpush.msra.mxu0 0.0
        %10282 = vmatpush.msra.mxu0 0.0
        %10283 = vmatpush.msra.mxu0 %v10265
        %10284 = vmatpush.msra.mxu0 %v10264
        %10285 = vmatmul.f32.gmra.mxu0 %v10267
        %v10286 = vpop.f32.mrf.mxu0
        %v10287 = vadd.f32 0.0, %v10286
        %10288 = vdwg.mxu0
        %v10289 = vadd.f32 %v10262, %v10287
        %s10290 = scalar_lea.vmem %s5, 144
        %v10291 = vld [vmem:[%s10290] sm:$0xff]
        %v10292 = vld [vmem:[%s10290 + $0x8] sm:$0xff]
        %v10294 = vsel %vm10049, %v10036, 0
        %10296 = vmatpush.msra.mxu0 0.0
        %10297 = vmatpush.msra.mxu0 0.0
        %10298 = vmatpush.msra.mxu0 0.0
        %10299 = vmatpush.msra.mxu0 0.0
        %10300 = vmatpush.msra.mxu0 0.0
        %10301 = vmatpush.msra.mxu0 0.0
        %10302 = vmatpush.msra.mxu0 0.0
        %10303 = vmatpush.msra.mxu0 0.0
        %10304 = vmatpush.msra.mxu0 0.0
        %10305 = vmatpush.msra.mxu0 0.0
        %10306 = vmatpush.msra.mxu0 0.0
        %10307 = vmatpush.msra.mxu0 0.0
        %10308 = vmatpush.msra.mxu0 0.0
        %10309 = vmatpush.msra.mxu0 0.0
        %10310 = vmatpush.msra.mxu0 %v10292
        %10311 = vmatpush.msra.mxu0 %v10291
        %10312 = vmatmul.f32.gmra.mxu0 %v10294
        %v10313 = vpop.f32.mrf.mxu0
        %v10314 = vadd.f32 0.0, %v10313
        %10315 = vdwg.mxu0
        %v10316 = vadd.f32 %v10289, %v10314
        %s10317 = scalar_lea.vmem %s5, 160
        %v10318 = vld [vmem:[%s10317] sm:$0xff]
        %v10319 = vld [vmem:[%s10317 + $0x8] sm:$0xff]
        %v10321 = vsel %vm10049, %v10037, 0
        %10323 = vmatpush.msra.mxu0 0.0
        %10324 = vmatpush.msra.mxu0 0.0
        %10325 = vmatpush.msra.mxu0 0.0
        %10326 = vmatpush.msra.mxu0 0.0
        %10327 = vmatpush.msra.mxu0 0.0
        %10328 = vmatpush.msra.mxu0 0.0
        %10329 = vmatpush.msra.mxu0 0.0
        %10330 = vmatpush.msra.mxu0 0.0
        %10331 = vmatpush.msra.mxu0 0.0
        %10332 = vmatpush.msra.mxu0 0.0
        %10333 = vmatpush.msra.mxu0 0.0
        %10334 = vmatpush.msra.mxu0 0.0
        %10335 = vmatpush.msra.mxu0 0.0
        %10336 = vmatpush.msra.mxu0 0.0
        %10337 = vmatpush.msra.mxu0 %v10319
        %10338 = vmatpush.msra.mxu0 %v10318
        %10339 = vmatmul.f32.gmra.mxu0 %v10321
        %v10340 = vpop.f32.mrf.mxu0
        %v10341 = vadd.f32 0.0, %v10340
        %10342 = vdwg.mxu0
        %v10343 = vadd.f32 %v10316, %v10341
        %s10344 = scalar_lea.vmem %s5, 176
        %v10345 = vld [vmem:[%s10344] sm:$0xff]
        %v10346 = vld [vmem:[%s10344 + $0x8] sm:$0xff]
        %v10347 = vrot.slane %v10037, 4
        %v10348 = vsel %vm10049, %v10347, 0
        %10350 = vmatpush.msra.mxu0 0.0
        %10351 = vmatpush.msra.mxu0 0.0
        %10352 = vmatpush.msra.mxu0 0.0
        %10353 = vmatpush.msra.mxu0 0.0
        %10354 = vmatpush.msra.mxu0 0.0
        %10355 = vmatpush.msra.mxu0 0.0
        %10356 = vmatpush.msra.mxu0 0.0
        %10357 = vmatpush.msra.mxu0 0.0
        %10358 = vmatpush.msra.mxu0 0.0
        %10359 = vmatpush.msra.mxu0 0.0
        %10360 = vmatpush.msra.mxu0 0.0
        %10361 = vmatpush.msra.mxu0 0.0
        %10362 = vmatpush.msra.mxu0 0.0
        %10363 = vmatpush.msra.mxu0 0.0
        %10364 = vmatpush.msra.mxu0 %v10346
        %10365 = vmatpush.msra.mxu0 %v10345
        %10366 = vmatmul.f32.gmra.mxu0 %v10348
        %v10367 = vpop.f32.mrf.mxu0
        %v10368 = vadd.f32 0.0, %v10367
        %10369 = vdwg.mxu0
        %v10370 = vadd.f32 %v10343, %v10368
        %s10371 = scalar_lea.vmem %s5, 192
        %v10372 = vld [vmem:[%s10371] sm:$0xff]
        %v10373 = vld [vmem:[%s10371 + $0x8] sm:$0xff]
        %v10375 = vsel %vm10049, %v10038, 0
        %10377 = vmatpush.msra.mxu0 0.0
        %10378 = vmatpush.msra.mxu0 0.0
        %10379 = vmatpush.msra.mxu0 0.0
        %10380 = vmatpush.msra.mxu0 0.0
        %10381 = vmatpush.msra.mxu0 0.0
        %10382 = vmatpush.msra.mxu0 0.0
        %10383 = vmatpush.msra.mxu0 0.0
        %10384 = vmatpush.msra.mxu0 0.0
        %10385 = vmatpush.msra.mxu0 0.0
        %10386 = vmatpush.msra.mxu0 0.0
        %10387 = vmatpush.msra.mxu0 0.0
        %10388 = vmatpush.msra.mxu0 0.0
        %10389 = vmatpush.msra.mxu0 0.0
        %10390 = vmatpush.msra.mxu0 0.0
        %10391 = vmatpush.msra.mxu0 %v10373
        %10392 = vmatpush.msra.mxu0 %v10372
        %10393 = vmatmul.f32.gmra.mxu0 %v10375
        %v10394 = vpop.f32.mrf.mxu0
        %v10395 = vadd.f32 0.0, %v10394
        %10396 = vdwg.mxu0
        %v10397 = vadd.f32 %v10370, %v10395
        %s10398 = scalar_lea.vmem %s5, 208
        %v10399 = vld [vmem:[%s10398] sm:$0xff]
        %v10400 = vld [vmem:[%s10398 + $0x8] sm:$0xff]
        %v10401 = vrot.slane %v10038, 4
        %v10402 = vsel %vm10049, %v10401, 0
        %10404 = vmatpush.msra.mxu0 0.0
        %10405 = vmatpush.msra.mxu0 0.0
        %10406 = vmatpush.msra.mxu0 0.0
        %10407 = vmatpush.msra.mxu0 0.0
        %10408 = vmatpush.msra.mxu0 0.0
        %10409 = vmatpush.msra.mxu0 0.0
        %10410 = vmatpush.msra.mxu0 0.0
        %10411 = vmatpush.msra.mxu0 0.0
        %10412 = vmatpush.msra.mxu0 0.0
        %10413 = vmatpush.msra.mxu0 0.0
        %10414 = vmatpush.msra.mxu0 0.0
        %10415 = vmatpush.msra.mxu0 0.0
        %10416 = vmatpush.msra.mxu0 0.0
        %10417 = vmatpush.msra.mxu0 0.0
        %10418 = vmatpush.msra.mxu0 %v10400
        %10419 = vmatpush.msra.mxu0 %v10399
        %10420 = vmatmul.f32.gmra.mxu0 %v10402
        %v10421 = vpop.f32.mrf.mxu0
        %v10422 = vadd.f32 0.0, %v10421
        %10423 = vdwg.mxu0
        %v10424 = vadd.f32 %v10397, %v10422
        %s10425 = scalar_lea.vmem %s5, 224
        %v10426 = vld [vmem:[%s10425] sm:$0xff]
        %v10427 = vld [vmem:[%s10425 + $0x8] sm:$0xff]
        %v10429 = vsel %vm10049, %v10039, 0
        %10431 = vmatpush.msra.mxu0 0.0
        %10432 = vmatpush.msra.mxu0 0.0
        %10433 = vmatpush.msra.mxu0 0.0
        %10434 = vmatpush.msra.mxu0 0.0
        %10435 = vmatpush.msra.mxu0 0.0
        %10436 = vmatpush.msra.mxu0 0.0
        %10437 = vmatpush.msra.mxu0 0.0
        %10438 = vmatpush.msra.mxu0 0.0
        %10439 = vmatpush.msra.mxu0 0.0
        %10440 = vmatpush.msra.mxu0 0.0
        %10441 = vmatpush.msra.mxu0 0.0
        %10442 = vmatpush.msra.mxu0 0.0
        %10443 = vmatpush.msra.mxu0 0.0
        %10444 = vmatpush.msra.mxu0 0.0
        %10445 = vmatpush.msra.mxu0 %v10427
        %10446 = vmatpush.msra.mxu0 %v10426
        %10447 = vmatmul.f32.gmra.mxu0 %v10429
        %v10448 = vpop.f32.mrf.mxu0
        %v10449 = vadd.f32 0.0, %v10448
        %10450 = vdwg.mxu0
        %v10451 = vadd.f32 %v10424, %v10449
        %s10452 = scalar_lea.vmem %s5, 240
        %v10453 = vld [vmem:[%s10452] sm:$0xff]
        %v10454 = vld [vmem:[%s10452 + $0x8] sm:$0xff]
        %v10456 = vsel %vm10049, %v10040, 0
        %10458 = vmatpush.msra.mxu0 0.0
        %10459 = vmatpush.msra.mxu0 0.0
        %10460 = vmatpush.msra.mxu0 0.0
        %10461 = vmatpush.msra.mxu0 0.0
        %10462 = vmatpush.msra.mxu0 0.0
        %10463 = vmatpush.msra.mxu0 0.0
        %10464 = vmatpush.msra.mxu0 0.0
        %10465 = vmatpush.msra.mxu0 0.0
        %10466 = vmatpush.msra.mxu0 0.0
        %10467 = vmatpush.msra.mxu0 0.0
        %10468 = vmatpush.msra.mxu0 0.0
        %10469 = vmatpush.msra.mxu0 0.0
        %10470 = vmatpush.msra.mxu0 0.0
        %10471 = vmatpush.msra.mxu0 0.0
        %10472 = vmatpush.msra.mxu0 %v10454
        %10473 = vmatpush.msra.mxu0 %v10453
        %10474 = vmatmul.f32.gmra.mxu0 %v10456
        %v10475 = vpop.f32.mrf.mxu0
        %v10476 = vadd.f32 0.0, %v10475
        %10477 = vdwg.mxu0
        %v10478 = vadd.f32 %v10451, %v10476
        %s10479 = scalar_lea.vmem %s5, 256
        %v10480 = vld [vmem:[%s10479] sm:$0xff]
        %v10481 = vld [vmem:[%s10479 + $0x8] sm:$0xff]
        %v10482 = vrot.slane %v10040, 4
        %v10483 = vsel %vm10049, %v10482, 0
        %10485 = vmatpush.msra.mxu0 0.0
        %10486 = vmatpush.msra.mxu0 0.0
        %10487 = vmatpush.msra.mxu0 0.0
        %10488 = vmatpush.msra.mxu0 0.0
        %10489 = vmatpush.msra.mxu0 0.0
        %10490 = vmatpush.msra.mxu0 0.0
        %10491 = vmatpush.msra.mxu0 0.0
        %10492 = vmatpush.msra.mxu0 0.0
        %10493 = vmatpush.msra.mxu0 0.0
        %10494 = vmatpush.msra.mxu0 0.0
        %10495 = vmatpush.msra.mxu0 0.0
        %10496 = vmatpush.msra.mxu0 0.0
        %10497 = vmatpush.msra.mxu0 0.0
        %10498 = vmatpush.msra.mxu0 0.0
        %10499 = vmatpush.msra.mxu0 %v10481
        %10500 = vmatpush.msra.mxu0 %v10480
        %10501 = vmatmul.f32.gmra.mxu0 %v10483
        %v10502 = vpop.f32.mrf.mxu0
        %v10503 = vadd.f32 0.0, %v10502
        %10504 = vdwg.mxu0
        %v10505 = vadd.f32 %v10478, %v10503
        %s10506 = scalar_lea.vmem %s5, 272
        %v10507 = vld [vmem:[%s10506] sm:$0xff]
        %v10508 = vld [vmem:[%s10506 + $0x8] sm:$0xff]
        %v10510 = vsel %vm10049, %v10041, 0
        %10512 = vmatpush.msra.mxu0 0.0
        %10513 = vmatpush.msra.mxu0 0.0
        %10514 = vmatpush.msra.mxu0 0.0
        %10515 = vmatpush.msra.mxu0 0.0
        %10516 = vmatpush.msra.mxu0 0.0
        %10517 = vmatpush.msra.mxu0 0.0
        %10518 = vmatpush.msra.mxu0 0.0
        %10519 = vmatpush.msra.mxu0 0.0
        %10520 = vmatpush.msra.mxu0 0.0
        %10521 = vmatpush.msra.mxu0 0.0
        %10522 = vmatpush.msra.mxu0 0.0
        %10523 = vmatpush.msra.mxu0 0.0
        %10524 = vmatpush.msra.mxu0 0.0
        %10525 = vmatpush.msra.mxu0 0.0
        %10526 = vmatpush.msra.mxu0 %v10508
        %10527 = vmatpush.msra.mxu0 %v10507
        %10528 = vmatmul.f32.gmra.mxu0 %v10510
        %v10529 = vpop.f32.mrf.mxu0
        %v10530 = vadd.f32 0.0, %v10529
        %10531 = vdwg.mxu0
        %v10532 = vadd.f32 %v10505, %v10530
        %s10533 = scalar_lea.vmem %s5, 288
        %v10534 = vld [vmem:[%s10533] sm:$0xff]
        %v10535 = vld [vmem:[%s10533 + $0x8] sm:$0xff]
        %v10536 = vrot.slane %v10041, 4
        %v10537 = vsel %vm10049, %v10536, 0
        %10539 = vmatpush.msra.mxu0 0.0
        %10540 = vmatpush.msra.mxu0 0.0
        %10541 = vmatpush.msra.mxu0 0.0
        %10542 = vmatpush.msra.mxu0 0.0
        %10543 = vmatpush.msra.mxu0 0.0
        %10544 = vmatpush.msra.mxu0 0.0
        %10545 = vmatpush.msra.mxu0 0.0
        %10546 = vmatpush.msra.mxu0 0.0
        %10547 = vmatpush.msra.mxu0 0.0
        %10548 = vmatpush.msra.mxu0 0.0
        %10549 = vmatpush.msra.mxu0 0.0
        %10550 = vmatpush.msra.mxu0 0.0
        %10551 = vmatpush.msra.mxu0 0.0
        %10552 = vmatpush.msra.mxu0 0.0
        %10553 = vmatpush.msra.mxu0 %v10535
        %10554 = vmatpush.msra.mxu0 %v10534
        %10555 = vmatmul.f32.gmra.mxu0 %v10537
        %v10556 = vpop.f32.mrf.mxu0
        %v10557 = vadd.f32 0.0, %v10556
        %10558 = vdwg.mxu0
        %v10559 = vadd.f32 %v10532, %v10557
        %s10560 = scalar_lea.vmem %s5, 304
        %v10561 = vld [vmem:[%s10560] sm:$0xff]
        %v10562 = vld [vmem:[%s10560 + $0x8] sm:$0xff]
        %v10564 = vsel %vm10049, %v10042, 0
        %10566 = vmatpush.msra.mxu0 0.0
        %10567 = vmatpush.msra.mxu0 0.0
        %10568 = vmatpush.msra.mxu0 0.0
        %10569 = vmatpush.msra.mxu0 0.0
        %10570 = vmatpush.msra.mxu0 0.0
        %10571 = vmatpush.msra.mxu0 0.0
        %10572 = vmatpush.msra.mxu0 0.0
        %10573 = vmatpush.msra.mxu0 0.0
        %10574 = vmatpush.msra.mxu0 0.0
        %10575 = vmatpush.msra.mxu0 0.0
        %10576 = vmatpush.msra.mxu0 0.0
        %10577 = vmatpush.msra.mxu0 0.0
        %10578 = vmatpush.msra.mxu0 0.0
        %10579 = vmatpush.msra.mxu0 0.0
        %10580 = vmatpush.msra.mxu0 %v10562
        %10581 = vmatpush.msra.mxu0 %v10561
        %10582 = vmatmul.f32.gmra.mxu0 %v10564
        %v10583 = vpop.f32.mrf.mxu0
        %v10584 = vadd.f32 0.0, %v10583
        %10585 = vdwg.mxu0
        %v10586 = vadd.f32 %v10559, %v10584
        %s10587 = scalar_lea.vmem %s5, 320
        %v10588 = vld [vmem:[%s10587] sm:$0xff]
        %v10589 = vld [vmem:[%s10587 + $0x8] sm:$0xff]
        %v10591 = vsel %vm10049, %v10043, 0
        %10593 = vmatpush.msra.mxu0 0.0
        %10594 = vmatpush.msra.mxu0 0.0
        %10595 = vmatpush.msra.mxu0 0.0
        %10596 = vmatpush.msra.mxu0 0.0
        %10597 = vmatpush.msra.mxu0 0.0
        %10598 = vmatpush.msra.mxu0 0.0
        %10599 = vmatpush.msra.mxu0 0.0
        %10600 = vmatpush.msra.mxu0 0.0
        %10601 = vmatpush.msra.mxu0 0.0
        %10602 = vmatpush.msra.mxu0 0.0
        %10603 = vmatpush.msra.mxu0 0.0
        %10604 = vmatpush.msra.mxu0 0.0
        %10605 = vmatpush.msra.mxu0 0.0
        %10606 = vmatpush.msra.mxu0 0.0
        %10607 = vmatpush.msra.mxu0 %v10589
        %10608 = vmatpush.msra.mxu0 %v10588
        %10609 = vmatmul.f32.gmra.mxu0 %v10591
        %v10610 = vpop.f32.mrf.mxu0
        %v10611 = vadd.f32 0.0, %v10610
        %10612 = vdwg.mxu0
        %v10613 = vadd.f32 %v10586, %v10611
        %s10614 = scalar_lea.vmem %s5, 336
        %v10615 = vld [vmem:[%s10614] sm:$0xff]
        %v10616 = vld [vmem:[%s10614 + $0x8] sm:$0xff]
        %v10617 = vrot.slane %v10043, 4
        %v10618 = vsel %vm10049, %v10617, 0
        %10620 = vmatpush.msra.mxu0 0.0
        %10621 = vmatpush.msra.mxu0 0.0
        %10622 = vmatpush.msra.mxu0 0.0
        %10623 = vmatpush.msra.mxu0 0.0
        %10624 = vmatpush.msra.mxu0 0.0
        %10625 = vmatpush.msra.mxu0 0.0
        %10626 = vmatpush.msra.mxu0 0.0
        %10627 = vmatpush.msra.mxu0 0.0
        %10628 = vmatpush.msra.mxu0 0.0
        %10629 = vmatpush.msra.mxu0 0.0
        %10630 = vmatpush.msra.mxu0 0.0
        %10631 = vmatpush.msra.mxu0 0.0
        %10632 = vmatpush.msra.mxu0 0.0
        %10633 = vmatpush.msra.mxu0 0.0
        %10634 = vmatpush.msra.mxu0 %v10616
        %10635 = vmatpush.msra.mxu0 %v10615
        %10636 = vmatmul.f32.gmra.mxu0 %v10618
        %v10637 = vpop.f32.mrf.mxu0
        %v10638 = vadd.f32 0.0, %v10637
        %10639 = vdwg.mxu0
        %v10640 = vadd.f32 %v10613, %v10638
        %s10641 = scalar_lea.vmem %s5, 352
        %v10642 = vld [vmem:[%s10641] sm:$0xff]
        %v10643 = vld [vmem:[%s10641 + $0x8] sm:$0xff]
        %v10645 = vsel %vm10049, %v10044, 0
        %10647 = vmatpush.msra.mxu0 0.0
        %10648 = vmatpush.msra.mxu0 0.0
        %10649 = vmatpush.msra.mxu0 0.0
        %10650 = vmatpush.msra.mxu0 0.0
        %10651 = vmatpush.msra.mxu0 0.0
        %10652 = vmatpush.msra.mxu0 0.0
        %10653 = vmatpush.msra.mxu0 0.0
        %10654 = vmatpush.msra.mxu0 0.0
        %10655 = vmatpush.msra.mxu0 0.0
        %10656 = vmatpush.msra.mxu0 0.0
        %10657 = vmatpush.msra.mxu0 0.0
        %10658 = vmatpush.msra.mxu0 0.0
        %10659 = vmatpush.msra.mxu0 0.0
        %10660 = vmatpush.msra.mxu0 0.0
        %10661 = vmatpush.msra.mxu0 %v10643
        %10662 = vmatpush.msra.mxu0 %v10642
        %10663 = vmatmul.f32.gmra.mxu0 %v10645
        %v10664 = vpop.f32.mrf.mxu0
        %v10665 = vadd.f32 0.0, %v10664
        %10666 = vdwg.mxu0
        %v10667 = vadd.f32 %v10640, %v10665
        %s10668 = scalar_lea.vmem %s5, 368
        %v10669 = vld [vmem:[%s10668] sm:$0xff]
        %v10670 = vld [vmem:[%s10668 + $0x8] sm:$0xff]
        %v10671 = vrot.slane %v10044, 4
        %v10672 = vsel %vm10049, %v10671, 0
        %10674 = vmatpush.msra.mxu0 0.0
        %10675 = vmatpush.msra.mxu0 0.0
        %10676 = vmatpush.msra.mxu0 0.0
        %10677 = vmatpush.msra.mxu0 0.0
        %10678 = vmatpush.msra.mxu0 0.0
        %10679 = vmatpush.msra.mxu0 0.0
        %10680 = vmatpush.msra.mxu0 0.0
        %10681 = vmatpush.msra.mxu0 0.0
        %10682 = vmatpush.msra.mxu0 0.0
        %10683 = vmatpush.msra.mxu0 0.0
        %10684 = vmatpush.msra.mxu0 0.0
        %10685 = vmatpush.msra.mxu0 0.0
        %10686 = vmatpush.msra.mxu0 0.0
        %10687 = vmatpush.msra.mxu0 0.0
        %10688 = vmatpush.msra.mxu0 %v10670
        %10689 = vmatpush.msra.mxu0 %v10669
        %10690 = vmatmul.f32.gmra.mxu0 %v10672
        %v10691 = vpop.f32.mrf.mxu0
        %v10692 = vadd.f32 0.0, %v10691
        %10693 = vdwg.mxu0
        %v10694 = vadd.f32 %v10667, %v10692
        %s10695 = scalar_lea.vmem %s5, 384
        %v10696 = vld [vmem:[%s10695] sm:$0xff]
        %v10697 = vld [vmem:[%s10695 + $0x8] sm:$0xff]
        %v10699 = vsel %vm10049, %v10045, 0
        %10701 = vmatpush.msra.mxu0 0.0
        %10702 = vmatpush.msra.mxu0 0.0
        %10703 = vmatpush.msra.mxu0 0.0
        %10704 = vmatpush.msra.mxu0 0.0
        %10705 = vmatpush.msra.mxu0 0.0
        %10706 = vmatpush.msra.mxu0 0.0
        %10707 = vmatpush.msra.mxu0 0.0
        %10708 = vmatpush.msra.mxu0 0.0
        %10709 = vmatpush.msra.mxu0 0.0
        %10710 = vmatpush.msra.mxu0 0.0
        %10711 = vmatpush.msra.mxu0 0.0
        %10712 = vmatpush.msra.mxu0 0.0
        %10713 = vmatpush.msra.mxu0 0.0
        %10714 = vmatpush.msra.mxu0 0.0
        %10715 = vmatpush.msra.mxu0 %v10697
        %10716 = vmatpush.msra.mxu0 %v10696
        %10717 = vmatmul.f32.gmra.mxu0 %v10699
        %v10718 = vpop.f32.mrf.mxu0
        %v10719 = vadd.f32 0.0, %v10718
        %10720 = vdwg.mxu0
        %v10721 = vadd.f32 %v10694, %v10719
        %v10722 = vmax.f32 %v10721, 0.0
        %v10723 = vld [vmem:[%s7] sm:$0xff]
        %v10724 = vld [vmem:[%s7 + $0x8] sm:$0xff]
        %v10725 = vld [vmem:[%s7 + $0x10] sm:$0xff]
        %v10726 = vld [vmem:[%s7 + $0x18] sm:$0xff]
        %v10727 = vld [vmem:[%s7 + $0x20] sm:$0xff]
        %v10728 = vld [vmem:[%s7 + $0x28] sm:$0xff]
        %v10729 = vld [vmem:[%s7 + $0x30] sm:$0xff]
        %v10730 = vld [vmem:[%s7 + $0x38] sm:$0xff]
        %v10731 = vld [vmem:[%s7 + $0x40] sm:$0xff]
        %v10732 = vld [vmem:[%s7 + $0x48] sm:$0xff]
        %v10733 = vld [vmem:[%s7 + $0x50] sm:$0xff]
        %v10734 = vld [vmem:[%s7 + $0x58] sm:$0xff]
        %v10735 = vld [vmem:[%s7 + $0x60] sm:$0xff]
        %v10736 = vld [vmem:[%s7 + $0x68] sm:$0xff]
        %v10737 = vld [vmem:[%s7 + $0x70] sm:$0xff]
        %v10738 = vld [vmem:[%s8] sm:$0x1]
        %vm10739 = vcmask 982016
        %v10741 = vsel %vm10739, %v10722, 0
        %10743 = vmatpush.msra.mxu0 0.0
        %10744 = vmatpush.msra.mxu0 %v10737
        %10745 = vmatpush.msra.mxu0 %v10736
        %10746 = vmatpush.msra.mxu0 %v10735
        %10747 = vmatpush.msra.mxu0 %v10734
        %10748 = vmatpush.msra.mxu0 %v10733
        %10749 = vmatpush.msra.mxu0 %v10732
        %10750 = vmatpush.msra.mxu0 %v10731
        %10751 = vmatpush.msra.mxu0 %v10730
        %10752 = vmatpush.msra.mxu0 %v10729
        %10753 = vmatpush.msra.mxu0 %v10728
        %10754 = vmatpush.msra.mxu0 %v10727
        %10755 = vmatpush.msra.mxu0 %v10726
        %10756 = vmatpush.msra.mxu0 %v10725
        %10757 = vmatpush.msra.mxu0 %v10724
        %10758 = vmatpush.msra.mxu0 %v10723
        %10759 = vmatmul.f32.gmra.mxu0 %v10741
        %v10760 = vpop.f32.mrf.mxu0
        %v10761 = vadd.f32 %v10738, %v10760
        %10762 = vdwg.mxu0
        %v10763 = vmax.f32 %v10761, 0.0
        %v10764 = vld [vmem:[%s9] sm:$0xff]
        %v10765 = vld [vmem:[%s9 + $0x8] sm:$0xff]
        %v10766 = vld [vmem:[%s9 + $0x10] sm:$0xff]
        %v10767 = vld [vmem:[%s9 + $0x18] sm:$0xff]
        %v10768 = vld [vmem:[%s9 + $0x20] sm:$0xff]
        %v10769 = vld [vmem:[%s9 + $0x28] sm:$0xff]
        %v10770 = vld [vmem:[%s9 + $0x30] sm:$0xff]
        %v10771 = vld [vmem:[%s9 + $0x38] sm:$0xff]
        %v10772 = vld [vmem:[%s9 + $0x40] sm:$0xff]
        %v10773 = vld [vmem:[%s9 + $0x48] sm:$0xff]
        %v10774 = vld [vmem:[%s9 + $0x50] sm:$0xf]
        %v10775 = vld [vmem:[%s10] sm:$0x1]
        %vm10776 = vcmask 687104
        %v10778 = vsel %vm10776, %v10763, 0
        %v10781 = vsel %vm2933, %v10774, 0
        %10783 = vmatpush.msra.mxu0 0.0
        %10784 = vmatpush.msra.mxu0 0.0
        %10785 = vmatpush.msra.mxu0 0.0
        %10786 = vmatpush.msra.mxu0 0.0
        %10787 = vmatpush.msra.mxu0 0.0
        %10788 = vmatpush.msra.mxu0 %v10781
        %10789 = vmatpush.msra.mxu0 %v10773
        %10790 = vmatpush.msra.mxu0 %v10772
        %10791 = vmatpush.msra.mxu0 %v10771
        %10792 = vmatpush.msra.mxu0 %v10770
        %10793 = vmatpush.msra.mxu0 %v10769
        %10794 = vmatpush.msra.mxu0 %v10768
        %10795 = vmatpush.msra.mxu0 %v10767
        %10796 = vmatpush.msra.mxu0 %v10766
        %10797 = vmatpush.msra.mxu0 %v10765
        %10798 = vmatpush.msra.mxu0 %v10764
        %10799 = vmatmul.f32.gmra.mxu0 %v10778
        %v10800 = vpop.f32.mrf.mxu0
        %v10801 = vadd.f32 %v10775, %v10800
        %10802 = vdwg.mxu0
        %vm10803 = vcmask 73728
        %10804 = vst.msk [vmem:[%s378] sm:$0x1] %vm10803, %v10801
        %s10805 = sand.u32 %s269, 1
        %s10806 = scalar_lea.sflag [#allocation3], %s10805
        %s10807 = sand.u32 %s269, 1
        %s10808 = scalar_lea.vmem [#allocation2], %s10807
        // Predicated region
        $region65: #{tpu_custom_call.1} parent=63 // pred_check
          %p10809 = pneg %p279
        $region66: #{tpu_custom_call.1} parent=63 // pred_check_branch
          %10811 = sbr.rel (%p10809) target = $region68
        $region67: #{tpu_custom_call.1} parent=63 // pred_region
          %10813 = vsyncadd %s10806, 0
          %s10814 = scalar_lea.hbm %s11, %s25
          %s10816 = sshll.u32 %s10808, 4
          %s10817 = int_to_ptr.vmem [resolvable:$true] %s10816
          %s10818 = sshll.u32 %s10814, 4
          %s10819 = int_to_ptr.hbm [resolvable:$true] %s10818
          %10821 = dma.vmem_to_hbm [thread:$0]  %s10817, 16, %s10819, %s10806
        $region68: #{tpu_custom_call.1} parent=63 // pred_fallthru
          _
      $region64: #{tpu_custom_call.1} parent=5 // pred_fallthru
        _
      %p10822 = scmp.le.s32.totalorder 2, %s20
      // Predicated region
      $region69: #{tpu_custom_call.1} parent=5 // pred_check
        %p10823 = pneg %p10822
      $region70: #{tpu_custom_call.1} parent=5 // pred_check_branch
        %10825 = sbr.rel (%p10823) target = $region72
      $region71: #{tpu_custom_call.1} parent=5 // pred_region
        %s10826 = ssub.s32 %s20, 2
        // Predicated region
        $region73: #{tpu_custom_call.1} parent=71 // pred_check
          %p10827 = pneg %p285
        $region74: #{tpu_custom_call.1} parent=71 // pred_check_branch
          %10829 = sbr.rel (%p10827) target = $region76
        $region75: #{tpu_custom_call.1} parent=71 // pred_region
          %s10830 = sand.u32 %s270, 1
          %s10831 = scalar_lea.sflag [#allocation3], %s10830
          %s10832 = sand.u32 %s270, 1
          %s10833 = scalar_lea.vmem [#allocation2], %s10832
          %10835 = dma.done %s10831, 16
        $region76: #{tpu_custom_call.1} parent=71 // pred_fallthru
          _
      $region72: #{tpu_custom_call.1} parent=5 // pred_fallthru
        _
    $region6: #{tpu_custom_call.1} parent=1 // loop_footer
      %s24 = sadd.s32 1, %s20
    $region7: #{tpu_custom_call.1} parent=1 // loop_footer_branch
      %19 = sbr.rel target = $region3
    $region8: #{tpu_custom_call.1} parent=1 // loop_exit
      _
    %10836 = vsyncpa [#allocation3], 1
    %s10837 = scalar_lea.sflag [#allocation3], 1
    %10838 = vsyncpa %s10837, 1

</llo_original>
